<compile_context>
chip_gen: v7x
topology: tpu7x:2x2x1
jax: 0.10.0
libtpu: 0.0.40
codegen_flags: <defaults>
</compile_context>

<pallas_src>
import functools

import jax
import jax.numpy as jnp
from jax.experimental import pallas as pl
from jax.experimental.pallas import tpu as pltpu


# ------------------------------ fused kernel --------------------------------

def _pred_inform_kernel(H, u_ref, wcat_ref, bias_ref,
                        r5_ref, b5_ref, rcat_ref, brow_ref,
                        scale_ref, shift_ref, alpha_ref,
                        prow_ref, pcol_ref,
                        h_ref, pool_ref):
    """Bt batch elements per grid step, stacked along the matmul M dimension."""
    f32, bf16 = jnp.float32, jnp.bfloat16
    M = u_ref.shape[0]                       # Bt * H stacked rows

    def mm(a, b):
        return jnp.dot(a, b, preferred_element_type=f32)

    # ---- head: the 3 linears + concat fused into ONE matmul (weights stacked)
    h = mm(u_ref[...], wcat_ref[...]) + bias_ref[...]        # (M, D) f32
    h_ref[...] = h                                           # write once, keep local

    # ---- hoisted epilogue constants (no per-call scalar splats) -------------
    row = jax.lax.broadcasted_iota(jnp.int32, (M, 1), 0) % H
    not_first = row != 0            # zero the ky=0 tap on each element's first row
    not_last = row != (H - 1)       # zero the ky=2 tap on each element's last row
    scale = scale_ref[...]          # (1, L) folded eval-mode BN scale
    shift = shift_ref[...]          # (1, L) folded eval-mode BN shift
    alpha = alpha_ref[...]          # (1, L) PReLU slope, pre-broadcast

    def bnpre(a):                   # BN + PReLU, f32 on the VPU
        y = a * scale + shift
        return jnp.where(y >= 0.0, y, y * alpha)

    def taps_cat(a):
        # Vertical taps of the 3x3 conv as XLU rolls + boundary masks.  The rows
        # that would leak across batch elements are exactly the rows the "same"
        # padding zeroes, so one roll over the whole stacked block is correct.
        up = jnp.where(not_first, pltpu.roll(a, 1, 0), 0.0)        # a[i-1]
        dn = jnp.where(not_last, pltpu.roll(a, M - 1, 0), 0.0)     # a[i+1]
        return jnp.concatenate([up, a, dn], axis=1).astype(bf16)   # (M, 3*lanes)

    def conv(a, rcat_bf, brow):
        # 3x3 "same" conv == ONE bf16 MXU matmul: (M, 3*lanes_in) @ (3*lanes_in, L)
        return mm(taps_cat(a), rcat_bf) + brow

    out = conv(h, r5_ref[...], b5_ref[...])                   # c5 : 1 -> C channels
    for blk in range(5):                                      # (c6,c7) ... (c14,c15)
        res = out
        out = conv(bnpre(out), rcat_ref[2 * blk], brow_ref[2 * blk])
        out = conv(bnpre(out), rcat_ref[2 * blk + 1], brow_ref[2 * blk + 1])
        out = out + res

    # ---- 2x2 average pool: block-diag row pool + lane pool (two tiny matmuls)
    pool_ref[...] = mm(mm(prow_ref[...], out), pcol_ref[...])


# --------------------------- wrapper / weight prep ---------------------------

def _conv_lane_mats(w, width):
    """(Cout, Cin, 3, 3) conv weights -> (3*Cin*width, Cout*width) banded matrix.

    Row blocks are ordered [ky=0 | ky=1 | ky=2] to match the in-kernel lane
    concat [shift_down(a) | a | shift_up(a)]; within a tap,
        R[ci*width + u, co*width + v] = w[co, ci, ky, u - v + 1]  for |u - v| <= 1
    which bakes horizontal taps, zero padding in W and channel mixing into a
    single MXU operand."""
    cout, cin = int(w.shape[0]), int(w.shape[1])
    u = jnp.arange(width)[:, None]
    v = jnp.arange(width)[None, :]
    bands = jnp.stack([(u - v == j - 1).astype(jnp.float32) for j in range(3)])
    r = jnp.einsum("ocij,juv->icuov", w.astype(jnp.float32), bands)
    return r.reshape(3 * cin * width, cout * width)


def pred_inform_forward(params, x, ps_at, p_t, *, target_rows=128):
    f32, bf16 = jnp.float32, jnp.bfloat16
    B, S, Dx = x.shape
    D = params["rm_w"].shape[1]          # hidden width == conv image W
    C = params["c5_w"].shape[0]          # conv channels
    A = ps_at.shape[1]
    T = p_t.shape[1]
    H = S + 2
    L = C * D                            # lane-packed conv width
    Ho, Wo = H // 2, D // 2
    Lo = C * Wo

    # --- batch elements per grid step: fill ~target_rows MXU rows per matmul --
    bt = max(1, min(B, target_rows // max(H, 1)))
    if bt < B and ((bt * H) % 8 or (bt * Ho) % 8):
        bt = B                           # single full-extent step is always legal
    n_steps = -(-B // bt)
    b_pad = n_steps * bt
    M = bt * H

    # --- head: stack the 3 linears into one (M, Dx+A+T) @ (., D) matmul ------
    dcat = Dx + A + T
    u = jnp.zeros((b_pad, H, dcat), f32)
    u = u.at[:B, :S, :Dx].set(x)
    u = u.at[:B, S, Dx:Dx + A].set(ps_at)
    u = u.at[:B, S + 1, Dx + A:].set(p_t)
    u_flat = u.reshape(b_pad * H, dcat)
    w_cat = jnp.concatenate(
        [params["rm_w"], params["l_at_w"], params["l_t_w"]], axis=0)      # (dcat, D)
    bias_hd = jnp.concatenate([jnp.tile(params["rm_b"][None, :], (S, 1)),
                               params["l_at_b"][None, :],
                               params["l_t_b"][None, :]], axis=0)         # (H, D)
    bias_big = jnp.tile(bias_hd, (bt, 1))                                  # (M, D)

    # --- conv weights -> banded lane matrices (bf16 MXU operands) ------------
    r5 = _conv_lane_mats(params["c5_w"], D).astype(bf16)                   # (3D, L)
    b5 = jnp.repeat(params["c5_b"], D)[None, :]                            # (1, L)
    rcat = jnp.stack([_conv_lane_mats(params[f"c{k}_w"], D)
                      for k in range(6, 16)]).astype(bf16)                 # (10, 3L, L)
    brow = jnp.stack([jnp.repeat(params[f"c{k}_b"], D)[None, :]
                      for k in range(6, 16)])                              # (10, 1, L)
    scale_row = jnp.repeat(params["bn_scale"], D)[None, :]                 # (1, L)
    shift_row = jnp.repeat(params["bn_shift"], D)[None, :]                 # (1, L)
    alpha_row = jnp.full((1, L), params["prelu_alpha"][0], f32)            # (1, L)

    # --- 2x2 avg-pool as two matmuls; row pool is block-diag over the batch ---
    prow = (jnp.arange(H)[None, :] // 2 == jnp.arange(Ho)[:, None]).astype(f32)
    prow_big = jnp.kron(jnp.eye(bt, dtype=f32), prow)                      # (bt*Ho, M)
    rr = jnp.arange(L)
    qq = jnp.arange(Lo)
    pcol = 0.25 * (((rr[:, None] // D) == (qq[None, :] // Wo))
                   & ((rr[:, None] % D) // 2 == (qq[None, :] % Wo))).astype(f32)  # (L, Lo)

    weight_arrays = [w_cat, bias_big, r5, b5, rcat, brow,
                     scale_row, shift_row, alpha_row, prow_big, pcol]

    def const_spec(a):                   # resident weights: full block every step
        nd = a.ndim
        return pl.BlockSpec(a.shape, lambda b, nd=nd: (0,) * nd)

    in_specs = ([pl.BlockSpec((M, dcat), lambda b: (b, 0))]
                + [const_spec(a) for a in weight_arrays])

    h_flat, pooled = pl.pallas_call(
        functools.partial(_pred_inform_kernel, H),
        grid=(n_steps,),
        in_specs=in_specs,
        out_specs=(pl.BlockSpec((M, D), lambda b: (b, 0)),
                   pl.BlockSpec((bt * Ho, Lo), lambda b: (b, 0))),
        out_shape=(jax.ShapeDtypeStruct((b_pad * H, D), f32),
                   jax.ShapeDtypeStruct((b_pad * Ho, Lo), f32)),
        compiler_params=pltpu.CompilerParams(
            dimension_semantics=("parallel",)),    # batch steps -> both TCs on v7x
    )(u_flat, *weight_arrays)

    h = h_flat.reshape(b_pad, H, D)[:B]
    pooled = pooled.reshape(b_pad, Ho, Lo)[:B]
    # pooled[b, ho, c*Wo + wo] == AvgPool2d(2)(conv stack)[b, c, ho, wo]
    X_in = pooled.reshape(B, Ho, C, Wo).transpose(0, 1, 3, 2).reshape(B, Ho * Wo, C)
    return h, X_in


# ------------------------- pure-JAX reference (check) ------------------------

def reference_forward(params, x, ps_at, p_t):
    h_x = x @ params["rm_w"] + params["rm_b"]
    h_at = ps_at @ params["l_at_w"] + params["l_at_b"]
    h_t = p_t @ params["l_t_w"] + params["l_t_b"]
    h = jnp.concatenate([h_x, h_at[:, None, :], h_t[:, None, :]], axis=1)

    scale = params["bn_scale"][None, :, None, None]
    shift = params["bn_shift"][None, :, None, None]
    alpha = params["prelu_alpha"][0]

    def conv(z, w, b):
        y = jax.lax.conv_general_dilated(
            z, w, window_strides=(1, 1), padding="SAME",
            dimension_numbers=("NCHW", "OIHW", "NCHW"))
        return y + b[None, :, None, None]

    def bnpre(z):
        y = z * scale + shift
        return jnp.where(y >= 0.0, y, alpha * y)

    out = conv(h[:, None, :, :], params["c5_w"], params["c5_b"])
    res = out
    for n1, n2 in [("c6", "c7"), ("c8", "c9"), ("c10", "c11"),
                   ("c12", "c13"), ("c14", "c15")]:
        out = conv(bnpre(out), params[f"{n1}_w"], params[f"{n1}_b"])
        out = conv(bnpre(out), params[f"{n2}_w"], params[f"{n2}_b"])
        out = out + res
        res = out
    Bb, Cc, Hh, Ww = out.shape
    out = out.reshape(Bb, Cc, Hh // 2, 2, Ww // 2, 2).mean(axis=(3, 5))
    X_in = out.reshape(Bb, Cc, -1).transpose(0, 2, 1)
    return h, X_in


# ----------------------------- parameter init --------------------------------

def init_params(key, *, A, T, Dx, D, C):
    ks = jax.random.split(key, 40)
    it = iter(range(40))

    def nrm(shape, scale=0.1):
        return scale * jax.random.normal(ks[next(it)], shape, dtype=jnp.float32)

    p = {
        "l_at_w": nrm((A, D)), "l_at_b": nrm((D,)),
        "l_t_w": nrm((T, D)), "l_t_b": nrm((D,)),
        "rm_w": nrm((Dx, D)), "rm_b": nrm((D,)),
        "c5_w": nrm((C, 1, 3, 3)), "c5_b": nrm((C,)),
    }
    for name in ["c6", "c7", "c8", "c9", "c10",
                 "c11", "c12", "c13", "c14", "c15"]:
        p[f"{name}_w"] = nrm((C, C, 3, 3))
        p[f"{name}_b"] = nrm((C,))

    # Eval-mode BatchNorm2d folded into per-channel scale/shift.
    gamma = 1.0 + nrm((C,))
    beta = nrm((C,))
    running_mean = nrm((C,))
    running_var = 1.0 + jnp.abs(nrm((C,)))
    eps = 1e-5
    scale = gamma / jnp.sqrt(running_var + eps)
    p["bn_scale"] = scale
    p["bn_shift"] = beta - running_mean * scale
    p["prelu_alpha"] = jnp.array([0.25], dtype=jnp.float32)
    return p


# ---------------------------------- main -------------------------------------

if __name__ == "__main__":
    B, S, Dx = 32, 6, 8    # x: batch, sequence, per-step features (Bt=16 -> 2 steps)
    A, T = 5, 3            # ps_at / p_t feature sizes
    D = 32                 # hidden width (conv image W);  C*D = 128 lanes
    C = 4                  # conv channels

    root = jax.random.PRNGKey(0)
    kx, ka, kt, kp = jax.random.split(root, 4)
    x = jax.random.normal(kx, (B, S, Dx), dtype=jnp.float32)
    ps_at = jax.random.normal(ka, (B, A), dtype=jnp.float32)
    p_t = jax.random.normal(kt, (B, T), dtype=jnp.float32)
    params = init_params(kp, A=A, T=T, Dx=Dx, D=D, C=C)

    fwd = jax.jit(pred_inform_forward)
    h, X_in = fwd(params, x, ps_at, p_t)
    jax.block_until_ready((h, X_in))

    assert h.shape == (B, S + 2, D), h.shape
    assert X_in.shape == (B, ((S + 2) // 2) * (D // 2), C), X_in.shape
    assert bool(jnp.all(jnp.isfinite(h))) and bool(jnp.all(jnp.isfinite(X_in)))

    # numerical check against a plain-XLA f32 reference (tolerance covers the
    # bf16 MXU operands used for the conv chain).
    h_ref, X_ref = reference_forward(params, x, ps_at, p_t)
    err_h = float(jnp.max(jnp.abs(h - h_ref)))
    err_x = float(jnp.max(jnp.abs(X_in - X_ref)))
    assert err_h < 1e-2 and err_x < 3e-2, (err_h, err_x)

    print("KERNEL_OK")
</pallas_src>

<mosaic_0001>
module attributes {stable_mosaic.version = 11 : i64} {
  func.func @_pred_inform_kernel(%arg0: i32, %arg1: memref<128x16xf32, #tpu.memory_space<vmem>>, %arg2: memref<16x32xf32, #tpu.memory_space<vmem>>, %arg3: memref<128x32xf32, #tpu.memory_space<vmem>>, %arg4: memref<96x128xbf16, #tpu.memory_space<vmem>>, %arg5: memref<1x128xf32, #tpu.memory_space<vmem>>, %arg6: memref<10x384x128xbf16, #tpu.memory_space<vmem>>, %arg7: memref<10x1x128xf32, #tpu.memory_space<vmem>>, %arg8: memref<1x128xf32, #tpu.memory_space<vmem>>, %arg9: memref<1x128xf32, #tpu.memory_space<vmem>>, %arg10: memref<1x128xf32, #tpu.memory_space<vmem>>, %arg11: memref<64x128xf32, #tpu.memory_space<vmem>>, %arg12: memref<128x64xf32, #tpu.memory_space<vmem>>, %arg13: memref<128x32xf32, #tpu.memory_space<vmem>>, %arg14: memref<64x64xf32, #tpu.memory_space<vmem>>) attributes {dimension_semantics = [#tpu.dimension_semantics<parallel>], iteration_bounds = array<i64: 2>, scalar_prefetch = 0 : i64, scratch_operands = 0 : i64, tpu.core_type = #tpu.core_type<tc>, window_params = [{transform_indices = @transform_0, window_bounds = array<i64: 128, 16>}, {pipeline_mode = #tpu.pipeline_mode<synchronous>, transform_indices = @transform_1, window_bounds = array<i64: 16, 32>}, {pipeline_mode = #tpu.pipeline_mode<synchronous>, transform_indices = @transform_2, window_bounds = array<i64: 128, 32>}, {pipeline_mode = #tpu.pipeline_mode<synchronous>, transform_indices = @transform_3, window_bounds = array<i64: 96, 128>}, {pipeline_mode = #tpu.pipeline_mode<synchronous>, transform_indices = @transform_4, window_bounds = array<i64: 1, 128>}, {pipeline_mode = #tpu.pipeline_mode<synchronous>, transform_indices = @transform_5, window_bounds = array<i64: 10, 384, 128>}, {pipeline_mode = #tpu.pipeline_mode<synchronous>, transform_indices = @transform_6, window_bounds = array<i64: 10, 1, 128>}, {pipeline_mode = #tpu.pipeline_mode<synchronous>, transform_indices = @transform_7, window_bounds = array<i64: 1, 128>}, {pipeline_mode = #tpu.pipeline_mode<synchronous>, transform_indices = @transform_8, window_bounds = array<i64: 1, 128>}, {pipeline_mode = #tpu.pipeline_mode<synchronous>, transform_indices = @transform_9, window_bounds = array<i64: 1, 128>}, {pipeline_mode = #tpu.pipeline_mode<synchronous>, transform_indices = @transform_10, window_bounds = array<i64: 64, 128>}, {pipeline_mode = #tpu.pipeline_mode<synchronous>, transform_indices = @transform_11, window_bounds = array<i64: 128, 64>}, {transform_indices = @transform_12, window_bounds = array<i64: 128, 32>}, {transform_indices = @transform_13, window_bounds = array<i64: 64, 64>}]} {
    %c0 = arith.constant 0 : index
    %c0_0 = arith.constant 0 : index
    %0 = vector.load %arg1[%c0, %c0_0] : memref<128x16xf32, #tpu.memory_space<vmem>>, vector<128x16xf32>
    %c0_1 = arith.constant 0 : index
    %c0_2 = arith.constant 0 : index
    %1 = vector.load %arg2[%c0_1, %c0_2] : memref<16x32xf32, #tpu.memory_space<vmem>>, vector<16x32xf32>
    %cst = arith.constant dense<0.000000e+00> : vector<128x32xf32>
    %2 = tpu.matmul %0, %1, %cst {dimension_numbers = #tpu.dot_dimension_numbers<[1], [0], [0], [1], [0, 0, 1, 1], [], []>} : vector<128x16xf32>, vector<16x32xf32>, vector<128x32xf32> -> vector<128x32xf32>
    %c0_3 = arith.constant 0 : index
    %c0_4 = arith.constant 0 : index
    %3 = vector.load %arg3[%c0_3, %c0_4] : memref<128x32xf32, #tpu.memory_space<vmem>>, vector<128x32xf32>
    %4 = arith.addf %2, %3 : vector<128x32xf32>
    %c0_5 = arith.constant 0 : index
    %c0_6 = arith.constant 0 : index
    %5 = vector.load %arg13[%c0_5, %c0_6] : memref<128x32xf32, #tpu.memory_space<vmem>>, vector<128x32xf32>
    tpu.vector_store %arg13[%c0_5, %c0_6], %4 {strides = array<i32>} : memref<128x32xf32, #tpu.memory_space<vmem>>, vector<128x32xf32>,
    %6 = tpu.iota {dimensions = array<i32: 0>} : vector<128x1xi32>
    %c8_i32 = arith.constant 8 : i32
    %c0_i32 = arith.constant 0 : i32
    %7 = arith.cmpi eq, %c8_i32, %c0_i32 : i32
    %c1_i32 = arith.constant 1 : i32
    %8 = arith.select %7, %c1_i32, %c8_i32 : i32
    %9 = vector.broadcast %8 : i32 to vector<128x1xi32>
    %10 = arith.remsi %6, %9 : vector<128x1xi32>
    %c0_i32_7 = arith.constant 0 : i32
    %11 = vector.broadcast %c0_i32_7 : i32 to vector<128x1xi32>
    %12 = arith.cmpi ne, %10, %11 : vector<128x1xi32>
    %c0_i32_8 = arith.constant 0 : i32
    %13 = vector.broadcast %c0_i32_8 : i32 to vector<128x1xi32>
    %14 = arith.cmpi slt, %10, %13 : vector<128x1xi32>
    %c0_i32_9 = arith.constant 0 : i32
    %15 = arith.cmpi slt, %8, %c0_i32_9 : i32
    %16 = vector.broadcast %15 : i1 to vector<128x1xi1>
    %17 = vector.broadcast %16 : vector<128x1xi1> to vector<128x1xi1>
    %18 = arith.xori %14, %17 : vector<128x1xi1>
    %19 = arith.andi %18, %12 : vector<128x1xi1>
    %20 = vector.broadcast %8 : i32 to vector<128x1xi32>
    %21 = arith.addi %10, %20 : vector<128x1xi32>
    %22 = arith.select %19, %21, %10 : vector<128x1xi1>, vector<128x1xi32>
    %c0_i32_10 = arith.constant 0 : i32
    %23 = vector.broadcast %c0_i32_10 : i32 to vector<128x1xi32>
    %24 = arith.cmpi ne, %22, %23 : vector<128x1xi32>
    %c7_i32 = arith.constant 7 : i32
    %25 = vector.broadcast %c7_i32 : i32 to vector<128x1xi32>
    %26 = arith.cmpi ne, %22, %25 : vector<128x1xi32>
    %c0_11 = arith.constant 0 : index
    %c0_12 = arith.constant 0 : index
    %27 = vector.load %arg8[%c0_11, %c0_12] : memref<1x128xf32, #tpu.memory_space<vmem>>, vector<1x128xf32>
    %c0_13 = arith.constant 0 : index
    %c0_14 = arith.constant 0 : index
    %28 = vector.load %arg9[%c0_13, %c0_14] : memref<1x128xf32, #tpu.memory_space<vmem>>, vector<1x128xf32>
    %c0_15 = arith.constant 0 : index
    %c0_16 = arith.constant 0 : index
    %29 = vector.load %arg10[%c0_15, %c0_16] : memref<1x128xf32, #tpu.memory_space<vmem>>, vector<1x128xf32>
    %c0_17 = arith.constant 0 : index
    %c0_18 = arith.constant 0 : index
    %30 = vector.load %arg4[%c0_17, %c0_18] : memref<96x128xbf16, #tpu.memory_space<vmem>>, vector<96x128xbf16>
    %c0_19 = arith.constant 0 : index
    %c0_20 = arith.constant 0 : index
    %31 = vector.load %arg5[%c0_19, %c0_20] : memref<1x128xf32, #tpu.memory_space<vmem>>, vector<1x128xf32>
    %c1_i32_21 = arith.constant 1 : i32
    %32 = tpu.dynamic_rotate %4 by %c1_i32_21 dim 0 : vector<128x32xf32>, i32 -> vector<128x32xf32>
    %cst_22 = arith.constant 0.000000e+00 : f32
    %33 = vector.shape_cast %24 : vector<128x1xi1> to vector<128x1xi1>
    %34 = vector.broadcast %33 : vector<128x1xi1> to vector<128x32xi1>
    %35 = vector.broadcast %cst_22 : f32 to vector<128x32xf32>
    %36 = arith.select %34, %32, %35 : vector<128x32xi1>, vector<128x32xf32>
    %c127_i32 = arith.constant 127 : i32
    %37 = tpu.dynamic_rotate %4 by %c127_i32 dim 0 : vector<128x32xf32>, i32 -> vector<128x32xf32>
    %cst_23 = arith.constant 0.000000e+00 : f32
    %38 = vector.shape_cast %26 : vector<128x1xi1> to vector<128x1xi1>
    %39 = vector.broadcast %38 : vector<128x1xi1> to vector<128x32xi1>
    %40 = vector.broadcast %cst_23 : f32 to vector<128x32xf32>
    %41 = arith.select %39, %37, %40 : vector<128x32xi1>, vector<128x32xf32>
    %42 = tpu.concatenate %36, %4, %41 in 1 : vector<128x32xf32>, vector<128x32xf32>, vector<128x32xf32> -> vector<128x96xf32>
    %43 = arith.truncf %42 : vector<128x96xf32> to vector<128x96xbf16>
    %cst_24 = arith.constant dense<0.000000e+00> : vector<128x128xf32>
    %44 = tpu.matmul %43, %30, %cst_24 {dimension_numbers = #tpu.dot_dimension_numbers<[1], [0], [0], [1], [0, 0, 1, 1], [], []>} : vector<128x96xbf16>, vector<96x128xbf16>, vector<128x128xf32> -> vector<128x128xf32>
    %45 = vector.broadcast %31 : vector<1x128xf32> to vector<128x128xf32>
    %46 = arith.addf %44, %45 : vector<128x128xf32>
    %47 = vector.broadcast %27 : vector<1x128xf32> to vector<128x128xf32>
    %48 = arith.mulf %46, %47 : vector<128x128xf32>
    %49 = vector.broadcast %28 : vector<1x128xf32> to vector<128x128xf32>
    %50 = arith.addf %48, %49 : vector<128x128xf32>
    %cst_25 = arith.constant 0.000000e+00 : f32
    %51 = vector.broadcast %cst_25 : f32 to vector<128x128xf32>
    %52 = arith.cmpf oge, %50, %51 : vector<128x128xf32>
    %53 = vector.broadcast %29 : vector<1x128xf32> to vector<128x128xf32>
    %54 = arith.mulf %50, %53 : vector<128x128xf32>
    %55 = arith.select %52, %50, %54 : vector<128x128xi1>, vector<128x128xf32>
    %c0_26 = arith.constant 0 : index
    %c0_27 = arith.constant 0 : index
    %c0_28 = arith.constant 0 : index
    %56 = vector.load %arg6[%c0_26, %c0_27, %c0_28] : memref<10x384x128xbf16, #tpu.memory_space<vmem>>, vector<1x384x128xbf16>
    %57 = vector.shape_cast %56 : vector<1x384x128xbf16> to vector<384x128xbf16>
    %c0_29 = arith.constant 0 : index
    %c0_30 = arith.constant 0 : index
    %c0_31 = arith.constant 0 : index
    %58 = vector.load %arg7[%c0_29, %c0_30, %c0_31] : memref<10x1x128xf32, #tpu.memory_space<vmem>>, vector<1x1x128xf32>
    %59 = vector.shape_cast %58 : vector<1x1x128xf32> to vector<1x128xf32>
    %c1_i32_32 = arith.constant 1 : i32
    %60 = tpu.dynamic_rotate %55 by %c1_i32_32 dim 0 : vector<128x128xf32>, i32 -> vector<128x128xf32>
    %cst_33 = arith.constant 0.000000e+00 : f32
    %61 = vector.shape_cast %24 : vector<128x1xi1> to vector<128x1xi1>
    %62 = vector.broadcast %61 : vector<128x1xi1> to vector<128x128xi1>
    %63 = vector.broadcast %cst_33 : f32 to vector<128x128xf32>
    %64 = arith.select %62, %60, %63 : vector<128x128xi1>, vector<128x128xf32>
    %c127_i32_34 = arith.constant 127 : i32
    %65 = tpu.dynamic_rotate %55 by %c127_i32_34 dim 0 : vector<128x128xf32>, i32 -> vector<128x128xf32>
    %cst_35 = arith.constant 0.000000e+00 : f32
    %66 = vector.shape_cast %26 : vector<128x1xi1> to vector<128x1xi1>
    %67 = vector.broadcast %66 : vector<128x1xi1> to vector<128x128xi1>
    %68 = vector.broadcast %cst_35 : f32 to vector<128x128xf32>
    %69 = arith.select %67, %65, %68 : vector<128x128xi1>, vector<128x128xf32>
    %70 = tpu.concatenate %64, %55, %69 in 1 : vector<128x128xf32>, vector<128x128xf32>, vector<128x128xf32> -> vector<128x384xf32>
    %71 = arith.truncf %70 : vector<128x384xf32> to vector<128x384xbf16>
    %cst_36 = arith.constant dense<0.000000e+00> : vector<128x128xf32>
    %72 = tpu.matmul %71, %57, %cst_36 {dimension_numbers = #tpu.dot_dimension_numbers<[1], [0], [0], [1], [0, 0, 1, 1], [], []>} : vector<128x384xbf16>, vector<384x128xbf16>, vector<128x128xf32> -> vector<128x128xf32>
    %73 = vector.broadcast %59 : vector<1x128xf32> to vector<128x128xf32>
    %74 = arith.addf %72, %73 : vector<128x128xf32>
    %75 = vector.broadcast %27 : vector<1x128xf32> to vector<128x128xf32>
    %76 = arith.mulf %74, %75 : vector<128x128xf32>
    %77 = vector.broadcast %28 : vector<1x128xf32> to vector<128x128xf32>
    %78 = arith.addf %76, %77 : vector<128x128xf32>
    %cst_37 = arith.constant 0.000000e+00 : f32
    %79 = vector.broadcast %cst_37 : f32 to vector<128x128xf32>
    %80 = arith.cmpf oge, %78, %79 : vector<128x128xf32>
    %81 = vector.broadcast %29 : vector<1x128xf32> to vector<128x128xf32>
    %82 = arith.mulf %78, %81 : vector<128x128xf32>
    %83 = arith.select %80, %78, %82 : vector<128x128xi1>, vector<128x128xf32>
    %c1 = arith.constant 1 : index
    %c0_38 = arith.constant 0 : index
    %c0_39 = arith.constant 0 : index
    %84 = vector.load %arg6[%c1, %c0_38, %c0_39] : memref<10x384x128xbf16, #tpu.memory_space<vmem>>, vector<1x384x128xbf16>
    %85 = vector.shape_cast %84 : vector<1x384x128xbf16> to vector<384x128xbf16>
    %c1_40 = arith.constant 1 : index
    %c0_41 = arith.constant 0 : index
    %c0_42 = arith.constant 0 : index
    %86 = vector.load %arg7[%c1_40, %c0_41, %c0_42] : memref<10x1x128xf32, #tpu.memory_space<vmem>>, vector<1x1x128xf32>
    %87 = vector.shape_cast %86 : vector<1x1x128xf32> to vector<1x128xf32>
    %c1_i32_43 = arith.constant 1 : i32
    %88 = tpu.dynamic_rotate %83 by %c1_i32_43 dim 0 : vector<128x128xf32>, i32 -> vector<128x128xf32>
    %cst_44 = arith.constant 0.000000e+00 : f32
    %89 = vector.shape_cast %24 : vector<128x1xi1> to vector<128x1xi1>
    %90 = vector.broadcast %89 : vector<128x1xi1> to vector<128x128xi1>
    %91 = vector.broadcast %cst_44 : f32 to vector<128x128xf32>
    %92 = arith.select %90, %88, %91 : vector<128x128xi1>, vector<128x128xf32>
    %c127_i32_45 = arith.constant 127 : i32
    %93 = tpu.dynamic_rotate %83 by %c127_i32_45 dim 0 : vector<128x128xf32>, i32 -> vector<128x128xf32>
    %cst_46 = arith.constant 0.000000e+00 : f32
    %94 = vector.shape_cast %26 : vector<128x1xi1> to vector<128x1xi1>
    %95 = vector.broadcast %94 : vector<128x1xi1> to vector<128x128xi1>
    %96 = vector.broadcast %cst_46 : f32 to vector<128x128xf32>
    %97 = arith.select %95, %93, %96 : vector<128x128xi1>, vector<128x128xf32>
    %98 = tpu.concatenate %92, %83, %97 in 1 : vector<128x128xf32>, vector<128x128xf32>, vector<128x128xf32> -> vector<128x384xf32>
    %99 = arith.truncf %98 : vector<128x384xf32> to vector<128x384xbf16>
    %cst_47 = arith.constant dense<0.000000e+00> : vector<128x128xf32>
    %100 = tpu.matmul %99, %85, %cst_47 {dimension_numbers = #tpu.dot_dimension_numbers<[1], [0], [0], [1], [0, 0, 1, 1], [], []>} : vector<128x384xbf16>, vector<384x128xbf16>, vector<128x128xf32> -> vector<128x128xf32>
    %101 = vector.broadcast %87 : vector<1x128xf32> to vector<128x128xf32>
    %102 = arith.addf %100, %101 : vector<128x128xf32>
    %103 = arith.addf %102, %46 : vector<128x128xf32>
    %104 = vector.broadcast %27 : vector<1x128xf32> to vector<128x128xf32>
    %105 = arith.mulf %103, %104 : vector<128x128xf32>
    %106 = vector.broadcast %28 : vector<1x128xf32> to vector<128x128xf32>
    %107 = arith.addf %105, %106 : vector<128x128xf32>
    %cst_48 = arith.constant 0.000000e+00 : f32
    %108 = vector.broadcast %cst_48 : f32 to vector<128x128xf32>
    %109 = arith.cmpf oge, %107, %108 : vector<128x128xf32>
    %110 = vector.broadcast %29 : vector<1x128xf32> to vector<128x128xf32>
    %111 = arith.mulf %107, %110 : vector<128x128xf32>
    %112 = arith.select %109, %107, %111 : vector<128x128xi1>, vector<128x128xf32>
    %c2 = arith.constant 2 : index
    %c0_49 = arith.constant 0 : index
    %c0_50 = arith.constant 0 : index
    %113 = vector.load %arg6[%c2, %c0_49, %c0_50] : memref<10x384x128xbf16, #tpu.memory_space<vmem>>, vector<1x384x128xbf16>
    %114 = vector.shape_cast %113 : vector<1x384x128xbf16> to vector<384x128xbf16>
    %c2_51 = arith.constant 2 : index
    %c0_52 = arith.constant 0 : index
    %c0_53 = arith.constant 0 : index
    %115 = vector.load %arg7[%c2_51, %c0_52, %c0_53] : memref<10x1x128xf32, #tpu.memory_space<vmem>>, vector<1x1x128xf32>
    %116 = vector.shape_cast %115 : vector<1x1x128xf32> to vector<1x128xf32>
    %c1_i32_54 = arith.constant 1 : i32
    %117 = tpu.dynamic_rotate %112 by %c1_i32_54 dim 0 : vector<128x128xf32>, i32 -> vector<128x128xf32>
    %cst_55 = arith.constant 0.000000e+00 : f32
    %118 = vector.shape_cast %24 : vector<128x1xi1> to vector<128x1xi1>
    %119 = vector.broadcast %118 : vector<128x1xi1> to vector<128x128xi1>
    %120 = vector.broadcast %cst_55 : f32 to vector<128x128xf32>
    %121 = arith.select %119, %117, %120 : vector<128x128xi1>, vector<128x128xf32>
    %c127_i32_56 = arith.constant 127 : i32
    %122 = tpu.dynamic_rotate %112 by %c127_i32_56 dim 0 : vector<128x128xf32>, i32 -> vector<128x128xf32>
    %cst_57 = arith.constant 0.000000e+00 : f32
    %123 = vector.shape_cast %26 : vector<128x1xi1> to vector<128x1xi1>
    %124 = vector.broadcast %123 : vector<128x1xi1> to vector<128x128xi1>
    %125 = vector.broadcast %cst_57 : f32 to vector<128x128xf32>
    %126 = arith.select %124, %122, %125 : vector<128x128xi1>, vector<128x128xf32>
    %127 = tpu.concatenate %121, %112, %126 in 1 : vector<128x128xf32>, vector<128x128xf32>, vector<128x128xf32> -> vector<128x384xf32>
    %128 = arith.truncf %127 : vector<128x384xf32> to vector<128x384xbf16>
    %cst_58 = arith.constant dense<0.000000e+00> : vector<128x128xf32>
    %129 = tpu.matmul %128, %114, %cst_58 {dimension_numbers = #tpu.dot_dimension_numbers<[1], [0], [0], [1], [0, 0, 1, 1], [], []>} : vector<128x384xbf16>, vector<384x128xbf16>, vector<128x128xf32> -> vector<128x128xf32>
    %130 = vector.broadcast %116 : vector<1x128xf32> to vector<128x128xf32>
    %131 = arith.addf %129, %130 : vector<128x128xf32>
    %132 = vector.broadcast %27 : vector<1x128xf32> to vector<128x128xf32>
    %133 = arith.mulf %131, %132 : vector<128x128xf32>
    %134 = vector.broadcast %28 : vector<1x128xf32> to vector<128x128xf32>
    %135 = arith.addf %133, %134 : vector<128x128xf32>
    %cst_59 = arith.constant 0.000000e+00 : f32
    %136 = vector.broadcast %cst_59 : f32 to vector<128x128xf32>
    %137 = arith.cmpf oge, %135, %136 : vector<128x128xf32>
    %138 = vector.broadcast %29 : vector<1x128xf32> to vector<128x128xf32>
    %139 = arith.mulf %135, %138 : vector<128x128xf32>
    %140 = arith.select %137, %135, %139 : vector<128x128xi1>, vector<128x128xf32>
    %c3 = arith.constant 3 : index
    %c0_60 = arith.constant 0 : index
    %c0_61 = arith.constant 0 : index
    %141 = vector.load %arg6[%c3, %c0_60, %c0_61] : memref<10x384x128xbf16, #tpu.memory_space<vmem>>, vector<1x384x128xbf16>
    %142 = vector.shape_cast %141 : vector<1x384x128xbf16> to vector<384x128xbf16>
    %c3_62 = arith.constant 3 : index
    %c0_63 = arith.constant 0 : index
    %c0_64 = arith.constant 0 : index
    %143 = vector.load %arg7[%c3_62, %c0_63, %c0_64] : memref<10x1x128xf32, #tpu.memory_space<vmem>>, vector<1x1x128xf32>
    %144 = vector.shape_cast %143 : vector<1x1x128xf32> to vector<1x128xf32>
    %c1_i32_65 = arith.constant 1 : i32
    %145 = tpu.dynamic_rotate %140 by %c1_i32_65 dim 0 : vector<128x128xf32>, i32 -> vector<128x128xf32>
    %cst_66 = arith.constant 0.000000e+00 : f32
    %146 = vector.shape_cast %24 : vector<128x1xi1> to vector<128x1xi1>
    %147 = vector.broadcast %146 : vector<128x1xi1> to vector<128x128xi1>
    %148 = vector.broadcast %cst_66 : f32 to vector<128x128xf32>
    %149 = arith.select %147, %145, %148 : vector<128x128xi1>, vector<128x128xf32>
    %c127_i32_67 = arith.constant 127 : i32
    %150 = tpu.dynamic_rotate %140 by %c127_i32_67 dim 0 : vector<128x128xf32>, i32 -> vector<128x128xf32>
    %cst_68 = arith.constant 0.000000e+00 : f32
    %151 = vector.shape_cast %26 : vector<128x1xi1> to vector<128x1xi1>
    %152 = vector.broadcast %151 : vector<128x1xi1> to vector<128x128xi1>
    %153 = vector.broadcast %cst_68 : f32 to vector<128x128xf32>
    %154 = arith.select %152, %150, %153 : vector<128x128xi1>, vector<128x128xf32>
    %155 = tpu.concatenate %149, %140, %154 in 1 : vector<128x128xf32>, vector<128x128xf32>, vector<128x128xf32> -> vector<128x384xf32>
    %156 = arith.truncf %155 : vector<128x384xf32> to vector<128x384xbf16>
    %cst_69 = arith.constant dense<0.000000e+00> : vector<128x128xf32>
    %157 = tpu.matmul %156, %142, %cst_69 {dimension_numbers = #tpu.dot_dimension_numbers<[1], [0], [0], [1], [0, 0, 1, 1], [], []>} : vector<128x384xbf16>, vector<384x128xbf16>, vector<128x128xf32> -> vector<128x128xf32>
    %158 = vector.broadcast %144 : vector<1x128xf32> to vector<128x128xf32>
    %159 = arith.addf %157, %158 : vector<128x128xf32>
    %160 = arith.addf %159, %103 : vector<128x128xf32>
    %161 = vector.broadcast %27 : vector<1x128xf32> to vector<128x128xf32>
    %162 = arith.mulf %160, %161 : vector<128x128xf32>
    %163 = vector.broadcast %28 : vector<1x128xf32> to vector<128x128xf32>
    %164 = arith.addf %162, %163 : vector<128x128xf32>
    %cst_70 = arith.constant 0.000000e+00 : f32
    %165 = vector.broadcast %cst_70 : f32 to vector<128x128xf32>
    %166 = arith.cmpf oge, %164, %165 : vector<128x128xf32>
    %167 = vector.broadcast %29 : vector<1x128xf32> to vector<128x128xf32>
    %168 = arith.mulf %164, %167 : vector<128x128xf32>
    %169 = arith.select %166, %164, %168 : vector<128x128xi1>, vector<128x128xf32>
    %c4 = arith.constant 4 : index
    %c0_71 = arith.constant 0 : index
    %c0_72 = arith.constant 0 : index
    %170 = vector.load %arg6[%c4, %c0_71, %c0_72] : memref<10x384x128xbf16, #tpu.memory_space<vmem>>, vector<1x384x128xbf16>
    %171 = vector.shape_cast %170 : vector<1x384x128xbf16> to vector<384x128xbf16>
    %c4_73 = arith.constant 4 : index
    %c0_74 = arith.constant 0 : index
    %c0_75 = arith.constant 0 : index
    %172 = vector.load %arg7[%c4_73, %c0_74, %c0_75] : memref<10x1x128xf32, #tpu.memory_space<vmem>>, vector<1x1x128xf32>
    %173 = vector.shape_cast %172 : vector<1x1x128xf32> to vector<1x128xf32>
    %c1_i32_76 = arith.constant 1 : i32
    %174 = tpu.dynamic_rotate %169 by %c1_i32_76 dim 0 : vector<128x128xf32>, i32 -> vector<128x128xf32>
    %cst_77 = arith.constant 0.000000e+00 : f32
    %175 = vector.shape_cast %24 : vector<128x1xi1> to vector<128x1xi1>
    %176 = vector.broadcast %175 : vector<128x1xi1> to vector<128x128xi1>
    %177 = vector.broadcast %cst_77 : f32 to vector<128x128xf32>
    %178 = arith.select %176, %174, %177 : vector<128x128xi1>, vector<128x128xf32>
    %c127_i32_78 = arith.constant 127 : i32
    %179 = tpu.dynamic_rotate %169 by %c127_i32_78 dim 0 : vector<128x128xf32>, i32 -> vector<128x128xf32>
    %cst_79 = arith.constant 0.000000e+00 : f32
    %180 = vector.shape_cast %26 : vector<128x1xi1> to vector<128x1xi1>
    %181 = vector.broadcast %180 : vector<128x1xi1> to vector<128x128xi1>
    %182 = vector.broadcast %cst_79 : f32 to vector<128x128xf32>
    %183 = arith.select %181, %179, %182 : vector<128x128xi1>, vector<128x128xf32>
    %184 = tpu.concatenate %178, %169, %183 in 1 : vector<128x128xf32>, vector<128x128xf32>, vector<128x128xf32> -> vector<128x384xf32>
    %185 = arith.truncf %184 : vector<128x384xf32> to vector<128x384xbf16>
    %cst_80 = arith.constant dense<0.000000e+00> : vector<128x128xf32>
    %186 = tpu.matmul %185, %171, %cst_80 {dimension_numbers = #tpu.dot_dimension_numbers<[1], [0], [0], [1], [0, 0, 1, 1], [], []>} : vector<128x384xbf16>, vector<384x128xbf16>, vector<128x128xf32> -> vector<128x128xf32>
    %187 = vector.broadcast %173 : vector<1x128xf32> to vector<128x128xf32>
    %188 = arith.addf %186, %187 : vector<128x128xf32>
    %189 = vector.broadcast %27 : vector<1x128xf32> to vector<128x128xf32>
    %190 = arith.mulf %188, %189 : vector<128x128xf32>
    %191 = vector.broadcast %28 : vector<1x128xf32> to vector<128x128xf32>
    %192 = arith.addf %190, %191 : vector<128x128xf32>
    %cst_81 = arith.constant 0.000000e+00 : f32
    %193 = vector.broadcast %cst_81 : f32 to vector<128x128xf32>
    %194 = arith.cmpf oge, %192, %193 : vector<128x128xf32>
    %195 = vector.broadcast %29 : vector<1x128xf32> to vector<128x128xf32>
    %196 = arith.mulf %192, %195 : vector<128x128xf32>
    %197 = arith.select %194, %192, %196 : vector<128x128xi1>, vector<128x128xf32>
    %c5 = arith.constant 5 : index
    %c0_82 = arith.constant 0 : index
    %c0_83 = arith.constant 0 : index
    %198 = vector.load %arg6[%c5, %c0_82, %c0_83] : memref<10x384x128xbf16, #tpu.memory_space<vmem>>, vector<1x384x128xbf16>
    %199 = vector.shape_cast %198 : vector<1x384x128xbf16> to vector<384x128xbf16>
    %c5_84 = arith.constant 5 : index
    %c0_85 = arith.constant 0 : index
    %c0_86 = arith.constant 0 : index
    %200 = vector.load %arg7[%c5_84, %c0_85, %c0_86] : memref<10x1x128xf32, #tpu.memory_space<vmem>>, vector<1x1x128xf32>
    %201 = vector.shape_cast %200 : vector<1x1x128xf32> to vector<1x128xf32>
    %c1_i32_87 = arith.constant 1 : i32
    %202 = tpu.dynamic_rotate %197 by %c1_i32_87 dim 0 : vector<128x128xf32>, i32 -> vector<128x128xf32>
    %cst_88 = arith.constant 0.000000e+00 : f32
    %203 = vector.shape_cast %24 : vector<128x1xi1> to vector<128x1xi1>
    %204 = vector.broadcast %203 : vector<128x1xi1> to vector<128x128xi1>
    %205 = vector.broadcast %cst_88 : f32 to vector<128x128xf32>
    %206 = arith.select %204, %202, %205 : vector<128x128xi1>, vector<128x128xf32>
    %c127_i32_89 = arith.constant 127 : i32
    %207 = tpu.dynamic_rotate %197 by %c127_i32_89 dim 0 : vector<128x128xf32>, i32 -> vector<128x128xf32>
    %cst_90 = arith.constant 0.000000e+00 : f32
    %208 = vector.shape_cast %26 : vector<128x1xi1> to vector<128x1xi1>
    %209 = vector.broadcast %208 : vector<128x1xi1> to vector<128x128xi1>
    %210 = vector.broadcast %cst_90 : f32 to vector<128x128xf32>
    %211 = arith.select %209, %207, %210 : vector<128x128xi1>, vector<128x128xf32>
    %212 = tpu.concatenate %206, %197, %211 in 1 : vector<128x128xf32>, vector<128x128xf32>, vector<128x128xf32> -> vector<128x384xf32>
    %213 = arith.truncf %212 : vector<128x384xf32> to vector<128x384xbf16>
    %cst_91 = arith.constant dense<0.000000e+00> : vector<128x128xf32>
    %214 = tpu.matmul %213, %199, %cst_91 {dimension_numbers = #tpu.dot_dimension_numbers<[1], [0], [0], [1], [0, 0, 1, 1], [], []>} : vector<128x384xbf16>, vector<384x128xbf16>, vector<128x128xf32> -> vector<128x128xf32>
    %215 = vector.broadcast %201 : vector<1x128xf32> to vector<128x128xf32>
    %216 = arith.addf %214, %215 : vector<128x128xf32>
    %217 = arith.addf %216, %160 : vector<128x128xf32>
    %218 = vector.broadcast %27 : vector<1x128xf32> to vector<128x128xf32>
    %219 = arith.mulf %217, %218 : vector<128x128xf32>
    %220 = vector.broadcast %28 : vector<1x128xf32> to vector<128x128xf32>
    %221 = arith.addf %219, %220 : vector<128x128xf32>
    %cst_92 = arith.constant 0.000000e+00 : f32
    %222 = vector.broadcast %cst_92 : f32 to vector<128x128xf32>
    %223 = arith.cmpf oge, %221, %222 : vector<128x128xf32>
    %224 = vector.broadcast %29 : vector<1x128xf32> to vector<128x128xf32>
    %225 = arith.mulf %221, %224 : vector<128x128xf32>
    %226 = arith.select %223, %221, %225 : vector<128x128xi1>, vector<128x128xf32>
    %c6 = arith.constant 6 : index
    %c0_93 = arith.constant 0 : index
    %c0_94 = arith.constant 0 : index
    %227 = vector.load %arg6[%c6, %c0_93, %c0_94] : memref<10x384x128xbf16, #tpu.memory_space<vmem>>, vector<1x384x128xbf16>
    %228 = vector.shape_cast %227 : vector<1x384x128xbf16> to vector<384x128xbf16>
    %c6_95 = arith.constant 6 : index
    %c0_96 = arith.constant 0 : index
    %c0_97 = arith.constant 0 : index
    %229 = vector.load %arg7[%c6_95, %c0_96, %c0_97] : memref<10x1x128xf32, #tpu.memory_space<vmem>>, vector<1x1x128xf32>
    %230 = vector.shape_cast %229 : vector<1x1x128xf32> to vector<1x128xf32>
    %c1_i32_98 = arith.constant 1 : i32
    %231 = tpu.dynamic_rotate %226 by %c1_i32_98 dim 0 : vector<128x128xf32>, i32 -> vector<128x128xf32>
    %cst_99 = arith.constant 0.000000e+00 : f32
    %232 = vector.shape_cast %24 : vector<128x1xi1> to vector<128x1xi1>
    %233 = vector.broadcast %232 : vector<128x1xi1> to vector<128x128xi1>
    %234 = vector.broadcast %cst_99 : f32 to vector<128x128xf32>
    %235 = arith.select %233, %231, %234 : vector<128x128xi1>, vector<128x128xf32>
    %c127_i32_100 = arith.constant 127 : i32
    %236 = tpu.dynamic_rotate %226 by %c127_i32_100 dim 0 : vector<128x128xf32>, i32 -> vector<128x128xf32>
    %cst_101 = arith.constant 0.000000e+00 : f32
    %237 = vector.shape_cast %26 : vector<128x1xi1> to vector<128x1xi1>
    %238 = vector.broadcast %237 : vector<128x1xi1> to vector<128x128xi1>
    %239 = vector.broadcast %cst_101 : f32 to vector<128x128xf32>
    %240 = arith.select %238, %236, %239 : vector<128x128xi1>, vector<128x128xf32>
    %241 = tpu.concatenate %235, %226, %240 in 1 : vector<128x128xf32>, vector<128x128xf32>, vector<128x128xf32> -> vector<128x384xf32>
    %242 = arith.truncf %241 : vector<128x384xf32> to vector<128x384xbf16>
    %cst_102 = arith.constant dense<0.000000e+00> : vector<128x128xf32>
    %243 = tpu.matmul %242, %228, %cst_102 {dimension_numbers = #tpu.dot_dimension_numbers<[1], [0], [0], [1], [0, 0, 1, 1], [], []>} : vector<128x384xbf16>, vector<384x128xbf16>, vector<128x128xf32> -> vector<128x128xf32>
    %244 = vector.broadcast %230 : vector<1x128xf32> to vector<128x128xf32>
    %245 = arith.addf %243, %244 : vector<128x128xf32>
    %246 = vector.broadcast %27 : vector<1x128xf32> to vector<128x128xf32>
    %247 = arith.mulf %245, %246 : vector<128x128xf32>
    %248 = vector.broadcast %28 : vector<1x128xf32> to vector<128x128xf32>
    %249 = arith.addf %247, %248 : vector<128x128xf32>
    %cst_103 = arith.constant 0.000000e+00 : f32
    %250 = vector.broadcast %cst_103 : f32 to vector<128x128xf32>
    %251 = arith.cmpf oge, %249, %250 : vector<128x128xf32>
    %252 = vector.broadcast %29 : vector<1x128xf32> to vector<128x128xf32>
    %253 = arith.mulf %249, %252 : vector<128x128xf32>
    %254 = arith.select %251, %249, %253 : vector<128x128xi1>, vector<128x128xf32>
    %c7 = arith.constant 7 : index
    %c0_104 = arith.constant 0 : index
    %c0_105 = arith.constant 0 : index
    %255 = vector.load %arg6[%c7, %c0_104, %c0_105] : memref<10x384x128xbf16, #tpu.memory_space<vmem>>, vector<1x384x128xbf16>
    %256 = vector.shape_cast %255 : vector<1x384x128xbf16> to vector<384x128xbf16>
    %c7_106 = arith.constant 7 : index
    %c0_107 = arith.constant 0 : index
    %c0_108 = arith.constant 0 : index
    %257 = vector.load %arg7[%c7_106, %c0_107, %c0_108] : memref<10x1x128xf32, #tpu.memory_space<vmem>>, vector<1x1x128xf32>
    %258 = vector.shape_cast %257 : vector<1x1x128xf32> to vector<1x128xf32>
    %c1_i32_109 = arith.constant 1 : i32
    %259 = tpu.dynamic_rotate %254 by %c1_i32_109 dim 0 : vector<128x128xf32>, i32 -> vector<128x128xf32>
    %cst_110 = arith.constant 0.000000e+00 : f32
    %260 = vector.shape_cast %24 : vector<128x1xi1> to vector<128x1xi1>
    %261 = vector.broadcast %260 : vector<128x1xi1> to vector<128x128xi1>
    %262 = vector.broadcast %cst_110 : f32 to vector<128x128xf32>
    %263 = arith.select %261, %259, %262 : vector<128x128xi1>, vector<128x128xf32>
    %c127_i32_111 = arith.constant 127 : i32
    %264 = tpu.dynamic_rotate %254 by %c127_i32_111 dim 0 : vector<128x128xf32>, i32 -> vector<128x128xf32>
    %cst_112 = arith.constant 0.000000e+00 : f32
    %265 = vector.shape_cast %26 : vector<128x1xi1> to vector<128x1xi1>
    %266 = vector.broadcast %265 : vector<128x1xi1> to vector<128x128xi1>
    %267 = vector.broadcast %cst_112 : f32 to vector<128x128xf32>
    %268 = arith.select %266, %264, %267 : vector<128x128xi1>, vector<128x128xf32>
    %269 = tpu.concatenate %263, %254, %268 in 1 : vector<128x128xf32>, vector<128x128xf32>, vector<128x128xf32> -> vector<128x384xf32>
    %270 = arith.truncf %269 : vector<128x384xf32> to vector<128x384xbf16>
    %cst_113 = arith.constant dense<0.000000e+00> : vector<128x128xf32>
    %271 = tpu.matmul %270, %256, %cst_113 {dimension_numbers = #tpu.dot_dimension_numbers<[1], [0], [0], [1], [0, 0, 1, 1], [], []>} : vector<128x384xbf16>, vector<384x128xbf16>, vector<128x128xf32> -> vector<128x128xf32>
    %272 = vector.broadcast %258 : vector<1x128xf32> to vector<128x128xf32>
    %273 = arith.addf %271, %272 : vector<128x128xf32>
    %274 = arith.addf %273, %217 : vector<128x128xf32>
    %275 = vector.broadcast %27 : vector<1x128xf32> to vector<128x128xf32>
    %276 = arith.mulf %274, %275 : vector<128x128xf32>
    %277 = vector.broadcast %28 : vector<1x128xf32> to vector<128x128xf32>
    %278 = arith.addf %276, %277 : vector<128x128xf32>
    %cst_114 = arith.constant 0.000000e+00 : f32
    %279 = vector.broadcast %cst_114 : f32 to vector<128x128xf32>
    %280 = arith.cmpf oge, %278, %279 : vector<128x128xf32>
    %281 = vector.broadcast %29 : vector<1x128xf32> to vector<128x128xf32>
    %282 = arith.mulf %278, %281 : vector<128x128xf32>
    %283 = arith.select %280, %278, %282 : vector<128x128xi1>, vector<128x128xf32>
    %c8 = arith.constant 8 : index
    %c0_115 = arith.constant 0 : index
    %c0_116 = arith.constant 0 : index
    %284 = vector.load %arg6[%c8, %c0_115, %c0_116] : memref<10x384x128xbf16, #tpu.memory_space<vmem>>, vector<1x384x128xbf16>
    %285 = vector.shape_cast %284 : vector<1x384x128xbf16> to vector<384x128xbf16>
    %c8_117 = arith.constant 8 : index
    %c0_118 = arith.constant 0 : index
    %c0_119 = arith.constant 0 : index
    %286 = vector.load %arg7[%c8_117, %c0_118, %c0_119] : memref<10x1x128xf32, #tpu.memory_space<vmem>>, vector<1x1x128xf32>
    %287 = vector.shape_cast %286 : vector<1x1x128xf32> to vector<1x128xf32>
    %c1_i32_120 = arith.constant 1 : i32
    %288 = tpu.dynamic_rotate %283 by %c1_i32_120 dim 0 : vector<128x128xf32>, i32 -> vector<128x128xf32>
    %cst_121 = arith.constant 0.000000e+00 : f32
    %289 = vector.shape_cast %24 : vector<128x1xi1> to vector<128x1xi1>
    %290 = vector.broadcast %289 : vector<128x1xi1> to vector<128x128xi1>
    %291 = vector.broadcast %cst_121 : f32 to vector<128x128xf32>
    %292 = arith.select %290, %288, %291 : vector<128x128xi1>, vector<128x128xf32>
    %c127_i32_122 = arith.constant 127 : i32
    %293 = tpu.dynamic_rotate %283 by %c127_i32_122 dim 0 : vector<128x128xf32>, i32 -> vector<128x128xf32>
    %cst_123 = arith.constant 0.000000e+00 : f32
    %294 = vector.shape_cast %26 : vector<128x1xi1> to vector<128x1xi1>
    %295 = vector.broadcast %294 : vector<128x1xi1> to vector<128x128xi1>
    %296 = vector.broadcast %cst_123 : f32 to vector<128x128xf32>
    %297 = arith.select %295, %293, %296 : vector<128x128xi1>, vector<128x128xf32>
    %298 = tpu.concatenate %292, %283, %297 in 1 : vector<128x128xf32>, vector<128x128xf32>, vector<128x128xf32> -> vector<128x384xf32>
    %299 = arith.truncf %298 : vector<128x384xf32> to vector<128x384xbf16>
    %cst_124 = arith.constant dense<0.000000e+00> : vector<128x128xf32>
    %300 = tpu.matmul %299, %285, %cst_124 {dimension_numbers = #tpu.dot_dimension_numbers<[1], [0], [0], [1], [0, 0, 1, 1], [], []>} : vector<128x384xbf16>, vector<384x128xbf16>, vector<128x128xf32> -> vector<128x128xf32>
    %301 = vector.broadcast %287 : vector<1x128xf32> to vector<128x128xf32>
    %302 = arith.addf %300, %301 : vector<128x128xf32>
    %303 = vector.broadcast %27 : vector<1x128xf32> to vector<128x128xf32>
    %304 = arith.mulf %302, %303 : vector<128x128xf32>
    %305 = vector.broadcast %28 : vector<1x128xf32> to vector<128x128xf32>
    %306 = arith.addf %304, %305 : vector<128x128xf32>
    %cst_125 = arith.constant 0.000000e+00 : f32
    %307 = vector.broadcast %cst_125 : f32 to vector<128x128xf32>
    %308 = arith.cmpf oge, %306, %307 : vector<128x128xf32>
    %309 = vector.broadcast %29 : vector<1x128xf32> to vector<128x128xf32>
    %310 = arith.mulf %306, %309 : vector<128x128xf32>
    %311 = arith.select %308, %306, %310 : vector<128x128xi1>, vector<128x128xf32>
    %c9 = arith.constant 9 : index
    %c0_126 = arith.constant 0 : index
    %c0_127 = arith.constant 0 : index
    %312 = vector.load %arg6[%c9, %c0_126, %c0_127] : memref<10x384x128xbf16, #tpu.memory_space<vmem>>, vector<1x384x128xbf16>
    %313 = vector.shape_cast %312 : vector<1x384x128xbf16> to vector<384x128xbf16>
    %c9_128 = arith.constant 9 : index
    %c0_129 = arith.constant 0 : index
    %c0_130 = arith.constant 0 : index
    %314 = vector.load %arg7[%c9_128, %c0_129, %c0_130] : memref<10x1x128xf32, #tpu.memory_space<vmem>>, vector<1x1x128xf32>
    %315 = vector.shape_cast %314 : vector<1x1x128xf32> to vector<1x128xf32>
    %c1_i32_131 = arith.constant 1 : i32
    %316 = tpu.dynamic_rotate %311 by %c1_i32_131 dim 0 : vector<128x128xf32>, i32 -> vector<128x128xf32>
    %cst_132 = arith.constant 0.000000e+00 : f32
    %317 = vector.shape_cast %24 : vector<128x1xi1> to vector<128x1xi1>
    %318 = vector.broadcast %317 : vector<128x1xi1> to vector<128x128xi1>
    %319 = vector.broadcast %cst_132 : f32 to vector<128x128xf32>
    %320 = arith.select %318, %316, %319 : vector<128x128xi1>, vector<128x128xf32>
    %c127_i32_133 = arith.constant 127 : i32
    %321 = tpu.dynamic_rotate %311 by %c127_i32_133 dim 0 : vector<128x128xf32>, i32 -> vector<128x128xf32>
    %cst_134 = arith.constant 0.000000e+00 : f32
    %322 = vector.shape_cast %26 : vector<128x1xi1> to vector<128x1xi1>
    %323 = vector.broadcast %322 : vector<128x1xi1> to vector<128x128xi1>
    %324 = vector.broadcast %cst_134 : f32 to vector<128x128xf32>
    %325 = arith.select %323, %321, %324 : vector<128x128xi1>, vector<128x128xf32>
    %326 = tpu.concatenate %320, %311, %325 in 1 : vector<128x128xf32>, vector<128x128xf32>, vector<128x128xf32> -> vector<128x384xf32>
    %327 = arith.truncf %326 : vector<128x384xf32> to vector<128x384xbf16>
    %cst_135 = arith.constant dense<0.000000e+00> : vector<128x128xf32>
    %328 = tpu.matmul %327, %313, %cst_135 {dimension_numbers = #tpu.dot_dimension_numbers<[1], [0], [0], [1], [0, 0, 1, 1], [], []>} : vector<128x384xbf16>, vector<384x128xbf16>, vector<128x128xf32> -> vector<128x128xf32>
    %329 = vector.broadcast %315 : vector<1x128xf32> to vector<128x128xf32>
    %330 = arith.addf %328, %329 : vector<128x128xf32>
    %331 = arith.addf %330, %274 : vector<128x128xf32>
    %c0_136 = arith.constant 0 : index
    %c0_137 = arith.constant 0 : index
    %332 = vector.load %arg11[%c0_136, %c0_137] : memref<64x128xf32, #tpu.memory_space<vmem>>, vector<64x128xf32>
    %cst_138 = arith.constant dense<0.000000e+00> : vector<64x128xf32>
    %333 = tpu.matmul %332, %331, %cst_138 {dimension_numbers = #tpu.dot_dimension_numbers<[1], [0], [0], [1], [0, 0, 1, 1], [], []>} : vector<64x128xf32>, vector<128x128xf32>, vector<64x128xf32> -> vector<64x128xf32>
    %c0_139 = arith.constant 0 : index
    %c0_140 = arith.constant 0 : index
    %334 = vector.load %arg12[%c0_139, %c0_140] : memref<128x64xf32, #tpu.memory_space<vmem>>, vector<128x64xf32>
    %cst_141 = arith.constant dense<0.000000e+00> : vector<64x64xf32>
    %335 = tpu.matmul %333, %334, %cst_141 {dimension_numbers = #tpu.dot_dimension_numbers<[1], [0], [0], [1], [0, 0, 1, 1], [], []>} : vector<64x128xf32>, vector<128x64xf32>, vector<64x64xf32> -> vector<64x64xf32>
    %c0_142 = arith.constant 0 : index
    %c0_143 = arith.constant 0 : index
    %336 = vector.load %arg14[%c0_142, %c0_143] : memref<64x64xf32, #tpu.memory_space<vmem>>, vector<64x64xf32>
    tpu.vector_store %arg14[%c0_142, %c0_143], %335 {strides = array<i32>} : memref<64x64xf32, #tpu.memory_space<vmem>>, vector<64x64xf32>,
    return
  }
  func.func @transform_0(%arg0: i32) -> (i32, i32) {
    %c0_i32 = arith.constant 0 : i32
    %c0_i32_0 = arith.constant 0 : i32
    return %arg0, %c0_i32 : i32, i32
  }
  func.func @transform_1(%arg0: i32) -> (i32, i32) {
    %c0_i32 = arith.constant 0 : i32
    %c0_i32_0 = arith.constant 0 : i32
    %c0_i32_1 = arith.constant 0 : i32
    return %c0_i32, %c0_i32_0 : i32, i32
  }
  func.func @transform_2(%arg0: i32) -> (i32, i32) {
    %c0_i32 = arith.constant 0 : i32
    %c0_i32_0 = arith.constant 0 : i32
    %c0_i32_1 = arith.constant 0 : i32
    return %c0_i32, %c0_i32_0 : i32, i32
  }
  func.func @transform_3(%arg0: i32) -> (i32, i32) {
    %c0_i32 = arith.constant 0 : i32
    %c0_i32_0 = arith.constant 0 : i32
    %c0_i32_1 = arith.constant 0 : i32
    return %c0_i32, %c0_i32_0 : i32, i32
  }
  func.func @transform_4(%arg0: i32) -> (i32, i32) {
    %c0_i32 = arith.constant 0 : i32
    %c0_i32_0 = arith.constant 0 : i32
    %c0_i32_1 = arith.constant 0 : i32
    return %c0_i32, %c0_i32_0 : i32, i32
  }
  func.func @transform_5(%arg0: i32) -> (i32, i32, i32) {
    %c0_i32 = arith.constant 0 : i32
    %c0_i32_0 = arith.constant 0 : i32
    %c0_i32_1 = arith.constant 0 : i32
    %c0_i32_2 = arith.constant 0 : i32
    return %c0_i32, %c0_i32_0, %c0_i32_1 : i32, i32, i32
  }
  func.func @transform_6(%arg0: i32) -> (i32, i32, i32) {
    %c0_i32 = arith.constant 0 : i32
    %c0_i32_0 = arith.constant 0 : i32
    %c0_i32_1 = arith.constant 0 : i32
    %c0_i32_2 = arith.constant 0 : i32
    return %c0_i32, %c0_i32_0, %c0_i32_1 : i32, i32, i32
  }
  func.func @transform_7(%arg0: i32) -> (i32, i32) {
    %c0_i32 = arith.constant 0 : i32
    %c0_i32_0 = arith.constant 0 : i32
    %c0_i32_1 = arith.constant 0 : i32
    return %c0_i32, %c0_i32_0 : i32, i32
  }
  func.func @transform_8(%arg0: i32) -> (i32, i32) {
    %c0_i32 = arith.constant 0 : i32
    %c0_i32_0 = arith.constant 0 : i32
    %c0_i32_1 = arith.constant 0 : i32
    return %c0_i32, %c0_i32_0 : i32, i32
  }
  func.func @transform_9(%arg0: i32) -> (i32, i32) {
    %c0_i32 = arith.constant 0 : i32
    %c0_i32_0 = arith.constant 0 : i32
    %c0_i32_1 = arith.constant 0 : i32
    return %c0_i32, %c0_i32_0 : i32, i32
  }
  func.func @transform_10(%arg0: i32) -> (i32, i32) {
    %c0_i32 = arith.constant 0 : i32
    %c0_i32_0 = arith.constant 0 : i32
    %c0_i32_1 = arith.constant 0 : i32
    return %c0_i32, %c0_i32_0 : i32, i32
  }
  func.func @transform_11(%arg0: i32) -> (i32, i32) {
    %c0_i32 = arith.constant 0 : i32
    %c0_i32_0 = arith.constant 0 : i32
    %c0_i32_1 = arith.constant 0 : i32
    return %c0_i32, %c0_i32_0 : i32, i32
  }
  func.func @transform_12(%arg0: i32) -> (i32, i32) {
    %c0_i32 = arith.constant 0 : i32
    %c0_i32_0 = arith.constant 0 : i32
    return %arg0, %c0_i32 : i32, i32
  }
  func.func @transform_13(%arg0: i32) -> (i32, i32) {
    %c0_i32 = arith.constant 0 : i32
    %c0_i32_0 = arith.constant 0 : i32
    return %arg0, %c0_i32 : i32, i32
  }
}

</mosaic_0001>

<llo_original>
// kernel: pred_inform_forward.1
$region0: #{pred_inform_forward.1}
  #allocation0 [shape = 'u32[]', space=smem, size = 0x4, offset = 0x4, fixed_abs, tag = 'smem constant byte address 0x4 - core index']
  #allocation1 [shape = 'u32[144,128]{1,0:T(1,128)}', space=vmem, size = 0x12000, scoped, tag = 'internal scratch']
  %s0 = inlined_call_operand.vmem [shape: f32[256,16], index: 0, kind: input, shape index: {}]
  %s1 = inlined_call_operand.vmem [shape: f32[16,32], index: 1, kind: input, shape index: {}]
  %s2 = inlined_call_operand.vmem [shape: f32[128,32], index: 2, kind: input, shape index: {}]
  %s3 = inlined_call_operand.vmem [shape: bf16[96,128], index: 3, kind: input, shape index: {}]
  %s4 = inlined_call_operand.vmem [shape: f32[1,128], index: 4, kind: input, shape index: {}]
  %s5 = inlined_call_operand.vmem [shape: bf16[10,384,128], index: 5, kind: input, shape index: {}]
  %s6 = inlined_call_operand.vmem [shape: f32[10,1,128], index: 6, kind: input, shape index: {}]
  %s7 = inlined_call_operand.vmem [shape: f32[1,128], index: 7, kind: input, shape index: {}]
  %s8 = inlined_call_operand.vmem [shape: f32[1,128], index: 8, kind: input, shape index: {}]
  %s9 = inlined_call_operand.vmem [shape: f32[1,128], index: 9, kind: input, shape index: {}]
  %s10 = inlined_call_operand.vmem [shape: f32[64,128], index: 10, kind: input, shape index: {}]
  %s11 = inlined_call_operand.vmem [shape: f32[128,64], index: 11, kind: input, shape index: {}]
  %s12 = inlined_call_operand.hbm [shape: f32[256,32], index: 12, kind: output, shape index: {0}]
  %s13 = inlined_call_operand.vmem [shape: f32[128,64], index: 13, kind: output, shape index: {1}]
  %14 = xla_tuple %s12, %s13
  %s15 = sld [smem:[#allocation0]]
  $region89: #{pred_inform_forward.1} parent=0
    _
  %s17 = ssub.s32 1, %s15
  %s18 = scalar_select 0, %s17, %s15
  $region1: #{pred_inform_forward.1} parent=0
    #allocation2 [shape = 'u8[131072]{0}', space=vmem, size = 0x20000, scoped, tag = 'output window, operand 0']
    #allocation3 [shape = 's32[2]{0}', space=sflag, size = 0x8, scoped, tag = 'scoped memory for pred_inform_forward.1']
    %19 = vsyncpa [#allocation3], 0
    %s20 = scalar_lea.sflag [#allocation3], 1
    %21 = vsyncpa %s20, 0
    loop: start=0, step=1, limit=4
    $region2: #{pred_inform_forward.1} parent=1 // loop_pre_header
      _
    $region3: #{pred_inform_forward.1} parent=1 // loop_header
      %s23 = sphi 0, %s27
      %p24 = scmp.ge.s32.totalorder %s23, 4
      %s33 = sphi 0, %s35
      %s36 = sphi 0, %s33
      %s37 = sphi 0, %s36
      %s53 = sphi 0, %s37
      %s57 = sphi 0, %s57
      %s59 = sphi 0, %s57
      %s60 = sphi 0, %s59
      %s74 = sphi 0, %s60
      %s78 = sphi 0, %s78
      %s80 = sphi 0, %s78
      %s81 = sphi 0, %s80
      %s95 = sphi 0, %s81
      %s99 = sphi 0, %s99
      %s101 = sphi 0, %s99
      %s102 = sphi 0, %s101
      %s116 = sphi 0, %s102
      %s120 = sphi 0, %s120
      %s122 = sphi 0, %s120
      %s123 = sphi 0, %s122
      %s137 = sphi 0, %s123
      %s141 = sphi 0, %s141
      %s143 = sphi 0, %s141
      %s144 = sphi 0, %s143
      %s158 = sphi 0, %s144
      %s162 = sphi 0, %s162
      %s164 = sphi 0, %s162
      %s165 = sphi 0, %s164
      %s179 = sphi 0, %s165
      %s183 = sphi 0, %s183
      %s185 = sphi 0, %s183
      %s186 = sphi 0, %s185
      %s200 = sphi 0, %s186
      %s204 = sphi 0, %s204
      %s206 = sphi 0, %s204
      %s207 = sphi 0, %s206
      %s221 = sphi 0, %s207
      %s225 = sphi 0, %s225
      %s227 = sphi 0, %s225
      %s228 = sphi 0, %s227
      %s242 = sphi 0, %s228
      %s246 = sphi 0, %s246
      %s248 = sphi 0, %s246
      %s249 = sphi 0, %s248
      %s263 = sphi 0, %s249
      %s267 = sphi 0, %s267
      %s269 = sphi 0, %s267
      %s270 = sphi 0, %s269
      %s284 = sphi 0, %s270
      %s290 = sphi 0, %s292
      %s293 = sphi 0, %s290
      %s294 = sphi 0, %s293
      %s310 = sphi 0, %s294
      %s316 = sphi 0, %s318
      %s319 = sphi 0, %s316
      %s320 = sphi 0, %s319
      %s336 = sphi 0, %s320
    $region4: #{pred_inform_forward.1} parent=1 // loop_header_branch
      %26 = sbr.rel (%p24) target = $region8
    $region5: #{pred_inform_forward.1} parent=1 // loop_body
      %s28 = ssub.s32 %s23, 1
      %s29 = ssub.s32 %s23, 2
      %s30 = sadd.s32 %s23, 1
      %s31 = ssub.s32 %s23, %s30
      %p32 = scmp.eq.s32.totalorder %s31, 0
      %s34 = sadd.s32 %s33, 1
      %s35 = scalar_select %p32, %s33, %s34
      %p38 = pneg %p32
      %p39 = scmp.eq.s32.totalorder %s23, 1
      %p40 = por %p38, %p39
      %p41 = scmp.ne.s32.totalorder %s33, %s36
      %p42 = scmp.eq.s32.totalorder %s23, 0
      %p43 = por %p41, %p42
      %p44 = scmp.ne.s32.totalorder %s33, %s36
      %p45 = scmp.eq.s32.totalorder %s28, 1
      %p46 = por %p44, %p45
      %p47 = scmp.ne.s32.totalorder %s36, %s37
      %p48 = scmp.eq.s32.totalorder %s28, 0
      %p49 = por %p47, %p48
      %p50 = scmp.ne.s32.totalorder %s36, %s37
      %p51 = scmp.eq.s32.totalorder %s29, 1
      %p52 = por %p50, %p51
      %p54 = scmp.ne.s32.totalorder %s37, %s53
      %p55 = scmp.eq.s32.totalorder %s29, 0
      %p56 = por %p54, %p55
      %s58 = sadd.s32 %s57, 1
      %p61 = scmp.eq.s32.totalorder %s23, 1
      %p62 = scmp.ne.s32.totalorder %s57, %s59
      %p63 = scmp.eq.s32.totalorder %s23, 0
      %p64 = por %p62, %p63
      %p65 = scmp.ne.s32.totalorder %s57, %s59
      %p66 = scmp.eq.s32.totalorder %s28, 1
      %p67 = por %p65, %p66
      %p68 = scmp.ne.s32.totalorder %s59, %s60
      %p69 = scmp.eq.s32.totalorder %s28, 0
      %p70 = por %p68, %p69
      %p71 = scmp.ne.s32.totalorder %s59, %s60
      %p72 = scmp.eq.s32.totalorder %s29, 1
      %p73 = por %p71, %p72
      %p75 = scmp.ne.s32.totalorder %s60, %s74
      %p76 = scmp.eq.s32.totalorder %s29, 0
      %p77 = por %p75, %p76
      %s79 = sadd.s32 %s78, 1
      %p82 = scmp.eq.s32.totalorder %s23, 1
      %p83 = scmp.ne.s32.totalorder %s78, %s80
      %p84 = scmp.eq.s32.totalorder %s23, 0
      %p85 = por %p83, %p84
      %p86 = scmp.ne.s32.totalorder %s78, %s80
      %p87 = scmp.eq.s32.totalorder %s28, 1
      %p88 = por %p86, %p87
      %p89 = scmp.ne.s32.totalorder %s80, %s81
      %p90 = scmp.eq.s32.totalorder %s28, 0
      %p91 = por %p89, %p90
      %p92 = scmp.ne.s32.totalorder %s80, %s81
      %p93 = scmp.eq.s32.totalorder %s29, 1
      %p94 = por %p92, %p93
      %p96 = scmp.ne.s32.totalorder %s81, %s95
      %p97 = scmp.eq.s32.totalorder %s29, 0
      %p98 = por %p96, %p97
      %s100 = sadd.s32 %s99, 1
      %p103 = scmp.eq.s32.totalorder %s23, 1
      %p104 = scmp.ne.s32.totalorder %s99, %s101
      %p105 = scmp.eq.s32.totalorder %s23, 0
      %p106 = por %p104, %p105
      %p107 = scmp.ne.s32.totalorder %s99, %s101
      %p108 = scmp.eq.s32.totalorder %s28, 1
      %p109 = por %p107, %p108
      %p110 = scmp.ne.s32.totalorder %s101, %s102
      %p111 = scmp.eq.s32.totalorder %s28, 0
      %p112 = por %p110, %p111
      %p113 = scmp.ne.s32.totalorder %s101, %s102
      %p114 = scmp.eq.s32.totalorder %s29, 1
      %p115 = por %p113, %p114
      %p117 = scmp.ne.s32.totalorder %s102, %s116
      %p118 = scmp.eq.s32.totalorder %s29, 0
      %p119 = por %p117, %p118
      %s121 = sadd.s32 %s120, 1
      %p124 = scmp.eq.s32.totalorder %s23, 1
      %p125 = scmp.ne.s32.totalorder %s120, %s122
      %p126 = scmp.eq.s32.totalorder %s23, 0
      %p127 = por %p125, %p126
      %p128 = scmp.ne.s32.totalorder %s120, %s122
      %p129 = scmp.eq.s32.totalorder %s28, 1
      %p130 = por %p128, %p129
      %p131 = scmp.ne.s32.totalorder %s122, %s123
      %p132 = scmp.eq.s32.totalorder %s28, 0
      %p133 = por %p131, %p132
      %p134 = scmp.ne.s32.totalorder %s122, %s123
      %p135 = scmp.eq.s32.totalorder %s29, 1
      %p136 = por %p134, %p135
      %p138 = scmp.ne.s32.totalorder %s123, %s137
      %p139 = scmp.eq.s32.totalorder %s29, 0
      %p140 = por %p138, %p139
      %s142 = sadd.s32 %s141, 1
      %p145 = scmp.eq.s32.totalorder %s23, 1
      %p146 = scmp.ne.s32.totalorder %s141, %s143
      %p147 = scmp.eq.s32.totalorder %s23, 0
      %p148 = por %p146, %p147
      %p149 = scmp.ne.s32.totalorder %s141, %s143
      %p150 = scmp.eq.s32.totalorder %s28, 1
      %p151 = por %p149, %p150
      %p152 = scmp.ne.s32.totalorder %s143, %s144
      %p153 = scmp.eq.s32.totalorder %s28, 0
      %p154 = por %p152, %p153
      %p155 = scmp.ne.s32.totalorder %s143, %s144
      %p156 = scmp.eq.s32.totalorder %s29, 1
      %p157 = por %p155, %p156
      %p159 = scmp.ne.s32.totalorder %s144, %s158
      %p160 = scmp.eq.s32.totalorder %s29, 0
      %p161 = por %p159, %p160
      %s163 = sadd.s32 %s162, 1
      %p166 = scmp.eq.s32.totalorder %s23, 1
      %p167 = scmp.ne.s32.totalorder %s162, %s164
      %p168 = scmp.eq.s32.totalorder %s23, 0
      %p169 = por %p167, %p168
      %p170 = scmp.ne.s32.totalorder %s162, %s164
      %p171 = scmp.eq.s32.totalorder %s28, 1
      %p172 = por %p170, %p171
      %p173 = scmp.ne.s32.totalorder %s164, %s165
      %p174 = scmp.eq.s32.totalorder %s28, 0
      %p175 = por %p173, %p174
      %p176 = scmp.ne.s32.totalorder %s164, %s165
      %p177 = scmp.eq.s32.totalorder %s29, 1
      %p178 = por %p176, %p177
      %p180 = scmp.ne.s32.totalorder %s165, %s179
      %p181 = scmp.eq.s32.totalorder %s29, 0
      %p182 = por %p180, %p181
      %s184 = sadd.s32 %s183, 1
      %p187 = scmp.eq.s32.totalorder %s23, 1
      %p188 = scmp.ne.s32.totalorder %s183, %s185
      %p189 = scmp.eq.s32.totalorder %s23, 0
      %p190 = por %p188, %p189
      %p191 = scmp.ne.s32.totalorder %s183, %s185
      %p192 = scmp.eq.s32.totalorder %s28, 1
      %p193 = por %p191, %p192
      %p194 = scmp.ne.s32.totalorder %s185, %s186
      %p195 = scmp.eq.s32.totalorder %s28, 0
      %p196 = por %p194, %p195
      %p197 = scmp.ne.s32.totalorder %s185, %s186
      %p198 = scmp.eq.s32.totalorder %s29, 1
      %p199 = por %p197, %p198
      %p201 = scmp.ne.s32.totalorder %s186, %s200
      %p202 = scmp.eq.s32.totalorder %s29, 0
      %p203 = por %p201, %p202
      %s205 = sadd.s32 %s204, 1
      %p208 = scmp.eq.s32.totalorder %s23, 1
      %p209 = scmp.ne.s32.totalorder %s204, %s206
      %p210 = scmp.eq.s32.totalorder %s23, 0
      %p211 = por %p209, %p210
      %p212 = scmp.ne.s32.totalorder %s204, %s206
      %p213 = scmp.eq.s32.totalorder %s28, 1
      %p214 = por %p212, %p213
      %p215 = scmp.ne.s32.totalorder %s206, %s207
      %p216 = scmp.eq.s32.totalorder %s28, 0
      %p217 = por %p215, %p216
      %p218 = scmp.ne.s32.totalorder %s206, %s207
      %p219 = scmp.eq.s32.totalorder %s29, 1
      %p220 = por %p218, %p219
      %p222 = scmp.ne.s32.totalorder %s207, %s221
      %p223 = scmp.eq.s32.totalorder %s29, 0
      %p224 = por %p222, %p223
      %s226 = sadd.s32 %s225, 1
      %p229 = scmp.eq.s32.totalorder %s23, 1
      %p230 = scmp.ne.s32.totalorder %s225, %s227
      %p231 = scmp.eq.s32.totalorder %s23, 0
      %p232 = por %p230, %p231
      %p233 = scmp.ne.s32.totalorder %s225, %s227
      %p234 = scmp.eq.s32.totalorder %s28, 1
      %p235 = por %p233, %p234
      %p236 = scmp.ne.s32.totalorder %s227, %s228
      %p237 = scmp.eq.s32.totalorder %s28, 0
      %p238 = por %p236, %p237
      %p239 = scmp.ne.s32.totalorder %s227, %s228
      %p240 = scmp.eq.s32.totalorder %s29, 1
      %p241 = por %p239, %p240
      %p243 = scmp.ne.s32.totalorder %s228, %s242
      %p244 = scmp.eq.s32.totalorder %s29, 0
      %p245 = por %p243, %p244
      %s247 = sadd.s32 %s246, 1
      %p250 = scmp.eq.s32.totalorder %s23, 1
      %p251 = scmp.ne.s32.totalorder %s246, %s248
      %p252 = scmp.eq.s32.totalorder %s23, 0
      %p253 = por %p251, %p252
      %p254 = scmp.ne.s32.totalorder %s246, %s248
      %p255 = scmp.eq.s32.totalorder %s28, 1
      %p256 = por %p254, %p255
      %p257 = scmp.ne.s32.totalorder %s248, %s249
      %p258 = scmp.eq.s32.totalorder %s28, 0
      %p259 = por %p257, %p258
      %p260 = scmp.ne.s32.totalorder %s248, %s249
      %p261 = scmp.eq.s32.totalorder %s29, 1
      %p262 = por %p260, %p261
      %p264 = scmp.ne.s32.totalorder %s249, %s263
      %p265 = scmp.eq.s32.totalorder %s29, 0
      %p266 = por %p264, %p265
      %s268 = sadd.s32 %s267, 1
      %p271 = scmp.eq.s32.totalorder %s23, 1
      %p272 = scmp.ne.s32.totalorder %s267, %s269
      %p273 = scmp.eq.s32.totalorder %s23, 0
      %p274 = por %p272, %p273
      %p275 = scmp.ne.s32.totalorder %s267, %s269
      %p276 = scmp.eq.s32.totalorder %s28, 1
      %p277 = por %p275, %p276
      %p278 = scmp.ne.s32.totalorder %s269, %s270
      %p279 = scmp.eq.s32.totalorder %s28, 0
      %p280 = por %p278, %p279
      %p281 = scmp.ne.s32.totalorder %s269, %s270
      %p282 = scmp.eq.s32.totalorder %s29, 1
      %p283 = por %p281, %p282
      %p285 = scmp.ne.s32.totalorder %s270, %s284
      %p286 = scmp.eq.s32.totalorder %s29, 0
      %p287 = por %p285, %p286
      %s288 = ssub.s32 %s23, %s30
      %p289 = scmp.eq.s32.totalorder %s288, 0
      %s291 = sadd.s32 %s290, 1
      %s292 = scalar_select %p289, %s290, %s291
      %p295 = pneg %p289
      %p296 = scmp.eq.s32.totalorder %s23, 1
      %p297 = por %p295, %p296
      %p298 = scmp.ne.s32.totalorder %s290, %s293
      %p299 = scmp.eq.s32.totalorder %s23, 0
      %p300 = por %p298, %p299
      %p301 = scmp.ne.s32.totalorder %s290, %s293
      %p302 = scmp.eq.s32.totalorder %s28, 1
      %p303 = por %p301, %p302
      %p304 = scmp.ne.s32.totalorder %s293, %s294
      %p305 = scmp.eq.s32.totalorder %s28, 0
      %p306 = por %p304, %p305
      %p307 = scmp.ne.s32.totalorder %s293, %s294
      %p308 = scmp.eq.s32.totalorder %s29, 1
      %p309 = por %p307, %p308
      %p311 = scmp.ne.s32.totalorder %s294, %s310
      %p312 = scmp.eq.s32.totalorder %s29, 0
      %p313 = por %p311, %p312
      %s314 = ssub.s32 %s23, %s30
      %p315 = scmp.eq.s32.totalorder %s314, 0
      %s317 = sadd.s32 %s316, 1
      %s318 = scalar_select %p315, %s316, %s317
      %p321 = pneg %p315
      %p322 = scmp.eq.s32.totalorder %s23, 1
      %p323 = por %p321, %p322
      %p324 = scmp.ne.s32.totalorder %s316, %s319
      %p325 = scmp.eq.s32.totalorder %s23, 0
      %p326 = por %p324, %p325
      %p327 = scmp.ne.s32.totalorder %s316, %s319
      %p328 = scmp.eq.s32.totalorder %s28, 1
      %p329 = por %p327, %p328
      %p330 = scmp.ne.s32.totalorder %s319, %s320
      %p331 = scmp.eq.s32.totalorder %s28, 0
      %p332 = por %p330, %p331
      %p333 = scmp.ne.s32.totalorder %s319, %s320
      %p334 = scmp.eq.s32.totalorder %s29, 1
      %p335 = por %p333, %p334
      %p337 = scmp.ne.s32.totalorder %s320, %s336
      %p338 = scmp.eq.s32.totalorder %s29, 0
      %p339 = por %p337, %p338
      %p340 = scmp.le.s32.totalorder 1, %s23
      %p341 = scmp.lt.s32.totalorder %s23, 3
      %p342 = pnand %p340, %p341
      %p343 = pneg %p342
      // Predicated region
      $region9: #{pred_inform_forward.1} parent=5 // pred_check
        _
      $region10: #{pred_inform_forward.1} parent=5 // pred_check_branch
        %345 = sbr.rel (%p342) target = $region12
      $region11: #{pred_inform_forward.1} parent=5 // pred_region
        %s346 = ssub.s32 %s23, 1
        // Predicated region
        $region13: #{pred_inform_forward.1} parent=11 // pred_check
          %p347 = pneg %p70
        $region14: #{pred_inform_forward.1} parent=11 // pred_check_branch
          %349 = sbr.rel (%p347) target = $region16
        $region15: #{pred_inform_forward.1} parent=11 // pred_region
          _
        $region16: #{pred_inform_forward.1} parent=11 // pred_fallthru
          _
        // Predicated region
        $region17: #{pred_inform_forward.1} parent=11 // pred_check
          %p350 = pneg %p91
        $region18: #{pred_inform_forward.1} parent=11 // pred_check_branch
          %352 = sbr.rel (%p350) target = $region20
        $region19: #{pred_inform_forward.1} parent=11 // pred_region
          _
        $region20: #{pred_inform_forward.1} parent=11 // pred_fallthru
          _
        // Predicated region
        $region21: #{pred_inform_forward.1} parent=11 // pred_check
          %p353 = pneg %p112
        $region22: #{pred_inform_forward.1} parent=11 // pred_check_branch
          %355 = sbr.rel (%p353) target = $region24
        $region23: #{pred_inform_forward.1} parent=11 // pred_region
          _
        $region24: #{pred_inform_forward.1} parent=11 // pred_fallthru
          _
        // Predicated region
        $region25: #{pred_inform_forward.1} parent=11 // pred_check
          %p356 = pneg %p133
        $region26: #{pred_inform_forward.1} parent=11 // pred_check_branch
          %358 = sbr.rel (%p356) target = $region28
        $region27: #{pred_inform_forward.1} parent=11 // pred_region
          _
        $region28: #{pred_inform_forward.1} parent=11 // pred_fallthru
          _
        // Predicated region
        $region29: #{pred_inform_forward.1} parent=11 // pred_check
          %p359 = pneg %p154
        $region30: #{pred_inform_forward.1} parent=11 // pred_check_branch
          %361 = sbr.rel (%p359) target = $region32
        $region31: #{pred_inform_forward.1} parent=11 // pred_region
          _
        $region32: #{pred_inform_forward.1} parent=11 // pred_fallthru
          _
        // Predicated region
        $region33: #{pred_inform_forward.1} parent=11 // pred_check
          %p362 = pneg %p175
        $region34: #{pred_inform_forward.1} parent=11 // pred_check_branch
          %364 = sbr.rel (%p362) target = $region36
        $region35: #{pred_inform_forward.1} parent=11 // pred_region
          _
        $region36: #{pred_inform_forward.1} parent=11 // pred_fallthru
          _
        // Predicated region
        $region37: #{pred_inform_forward.1} parent=11 // pred_check
          %p365 = pneg %p196
        $region38: #{pred_inform_forward.1} parent=11 // pred_check_branch
          %367 = sbr.rel (%p365) target = $region40
        $region39: #{pred_inform_forward.1} parent=11 // pred_region
          _
        $region40: #{pred_inform_forward.1} parent=11 // pred_fallthru
          _
        // Predicated region
        $region41: #{pred_inform_forward.1} parent=11 // pred_check
          %p368 = pneg %p217
        $region42: #{pred_inform_forward.1} parent=11 // pred_check_branch
          %370 = sbr.rel (%p368) target = $region44
        $region43: #{pred_inform_forward.1} parent=11 // pred_region
          _
        $region44: #{pred_inform_forward.1} parent=11 // pred_fallthru
          _
        // Predicated region
        $region45: #{pred_inform_forward.1} parent=11 // pred_check
          %p371 = pneg %p238
        $region46: #{pred_inform_forward.1} parent=11 // pred_check_branch
          %373 = sbr.rel (%p371) target = $region48
        $region47: #{pred_inform_forward.1} parent=11 // pred_region
          _
        $region48: #{pred_inform_forward.1} parent=11 // pred_fallthru
          _
        // Predicated region
        $region49: #{pred_inform_forward.1} parent=11 // pred_check
          %p374 = pneg %p259
        $region50: #{pred_inform_forward.1} parent=11 // pred_check_branch
          %376 = sbr.rel (%p374) target = $region52
        $region51: #{pred_inform_forward.1} parent=11 // pred_region
          _
        $region52: #{pred_inform_forward.1} parent=11 // pred_fallthru
          _
        // Predicated region
        $region53: #{pred_inform_forward.1} parent=11 // pred_check
          %p377 = pneg %p280
        $region54: #{pred_inform_forward.1} parent=11 // pred_check_branch
          %379 = sbr.rel (%p377) target = $region56
        $region55: #{pred_inform_forward.1} parent=11 // pred_region
          _
        $region56: #{pred_inform_forward.1} parent=11 // pred_fallthru
          _
      $region12: #{pred_inform_forward.1} parent=5 // pred_fallthru
        _
      %p380 = scmp.lt.s32.totalorder %s23, 2
      // Predicated region
      $region57: #{pred_inform_forward.1} parent=5 // pred_check
        %p381 = pneg %p380
      $region58: #{pred_inform_forward.1} parent=5 // pred_check_branch
        %383 = sbr.rel (%p381) target = $region60
      $region59: #{pred_inform_forward.1} parent=5 // pred_region
        // Predicated region
        $region61: #{pred_inform_forward.1} parent=59 // pred_check
          %p384 = pneg %p43
        $region62: #{pred_inform_forward.1} parent=59 // pred_check_branch
          %386 = sbr.rel (%p384) target = $region64
        $region63: #{pred_inform_forward.1} parent=59 // pred_region
          %s387 = smul.u32 16, %s23
          %p388 = scmp.lt.s32.totalorder %s387, 31
          %s389 = scalar_select %p388, %s387, 31
          %s390 = smul.addr %s389, 8
          %s391 = scalar_lea.vmem %s0, %s390
          %s392 = smul.u32 16, %s23
        $region64: #{pred_inform_forward.1} parent=59 // pred_fallthru
          _
      $region60: #{pred_inform_forward.1} parent=5 // pred_fallthru
        _
      %p393 = scmp.le.s32.totalorder 1, %s23
      %p394 = scmp.lt.s32.totalorder %s23, 3
      %p395 = pnand %p393, %p394
      %p396 = pneg %p395
      // Predicated region
      $region65: #{pred_inform_forward.1} parent=5 // pred_check
        _
      $region66: #{pred_inform_forward.1} parent=5 // pred_check_branch
        %398 = sbr.rel (%p395) target = $region68
      $region67: #{pred_inform_forward.1} parent=5 // pred_region
        %s399 = ssub.s32 %s23, 1
        %s400 = smul.u32 16, %s28
        %p401 = scmp.lt.s32.totalorder %s400, 31
        %s402 = scalar_select %p401, %s400, 31
        %s403 = smul.addr %s402, 8
        %s404 = scalar_lea.vmem %s0, %s403
        %p405 = pneg %p49
        %p406 = pneg %p46
        %p407 = pneg %p70
        %p408 = pneg %p67
        %p409 = pneg %p91
        %p410 = pneg %p88
        %p411 = pneg %p112
        %p412 = pneg %p109
        %p413 = pneg %p133
        %p414 = pneg %p130
        %p415 = pneg %p154
        %p416 = pneg %p151
        %p417 = pneg %p175
        %p418 = pneg %p172
        %p419 = pneg %p196
        %p420 = pneg %p193
        %p421 = pneg %p217
        %p422 = pneg %p214
        %p423 = pneg %p238
        %p424 = pneg %p235
        %p425 = pneg %p259
        %p426 = pneg %p256
        %p427 = pneg %p280
        %p428 = pneg %p277
        %p429 = pneg %p306
        %p430 = pneg %p303
        %s431 = sand.u32 %s293, 1
        %s432 = scalar_lea.sflag [#allocation3], %s431
        %s433 = sand.u32 %s293, 1
        %s434 = smul.addr %s433, 128
        %s435 = scalar_lea.vmem [#allocation2], %s434
        %p436 = pneg %p332
        %p437 = pneg %p329
        %s438 = smul.u32 8, %s28
        %p439 = scmp.lt.s32.totalorder %s438, 15
        %s440 = scalar_select %p439, %s438, 15
        %s441 = smul.addr %s440, 8
        %s442 = scalar_lea.vmem %s13, %s441
        %s443 = smul.u32 16, %s28
        %p444 = scmp.lt.s32.totalorder %s443, 31
        %s445 = scalar_select %p444, %s443, 31
        %s446 = smul.addr %s445, 8
        %s447 = scalar_lea.vmem %s0, %s446
        %s448 = smul.u32 16, %s28
        %s449 = smul.u32 16, %s28
        %s450 = smul.u32 8, %s28
        %p451 = scmp.lt.s32.totalorder %s450, 15
        %s452 = scalar_select %p451, %s450, 15
        %s453 = smul.addr %s452, 8
        %s454 = scalar_lea.vmem %s13, %s453
        %s455 = smul.u32 8, %s28
        %v457 = vld [vmem:[%s447] sm:$0xff]
        %v458 = vld [vmem:[%s447 + $0x8] sm:$0xff]
        %v459 = vld [vmem:[%s447 + $0x10] sm:$0xff]
        %v460 = vld [vmem:[%s447 + $0x18] sm:$0xff]
        %v461 = vld [vmem:[%s447 + $0x20] sm:$0xff]
        %v462 = vld [vmem:[%s447 + $0x28] sm:$0xff]
        %v463 = vld [vmem:[%s447 + $0x30] sm:$0xff]
        %v464 = vld [vmem:[%s447 + $0x38] sm:$0xff]
        %v465 = vld [vmem:[%s447 + $0x40] sm:$0xff]
        %v466 = vld [vmem:[%s447 + $0x48] sm:$0xff]
        %v467 = vld [vmem:[%s447 + $0x50] sm:$0xff]
        %v468 = vld [vmem:[%s447 + $0x58] sm:$0xff]
        %v469 = vld [vmem:[%s447 + $0x60] sm:$0xff]
        %v470 = vld [vmem:[%s447 + $0x68] sm:$0xff]
        %v471 = vld [vmem:[%s447 + $0x70] sm:$0xff]
        %v472 = vld [vmem:[%s447 + $0x78] sm:$0xff]
        %v473 = vld [vmem:[%s1] sm:$0xff]
        %v474 = vld [vmem:[%s1 + $0x8] sm:$0xff]
        %v475 = vld [vmem:[%s2] sm:$0xff]
        %v476 = vld [vmem:[%s2 + $0x8] sm:$0xff]
        %v477 = vld [vmem:[%s2 + $0x10] sm:$0xff]
        %v478 = vld [vmem:[%s2 + $0x18] sm:$0xff]
        %v479 = vld [vmem:[%s2 + $0x20] sm:$0xff]
        %v480 = vld [vmem:[%s2 + $0x28] sm:$0xff]
        %v481 = vld [vmem:[%s2 + $0x30] sm:$0xff]
        %v482 = vld [vmem:[%s2 + $0x38] sm:$0xff]
        %v483 = vld [vmem:[%s2 + $0x40] sm:$0xff]
        %v484 = vld [vmem:[%s2 + $0x48] sm:$0xff]
        %v485 = vld [vmem:[%s2 + $0x50] sm:$0xff]
        %v486 = vld [vmem:[%s2 + $0x58] sm:$0xff]
        %v487 = vld [vmem:[%s2 + $0x60] sm:$0xff]
        %v488 = vld [vmem:[%s2 + $0x68] sm:$0xff]
        %v489 = vld [vmem:[%s2 + $0x70] sm:$0xff]
        %v490 = vld [vmem:[%s2 + $0x78] sm:$0xff]
        %vm491 = vcmask 130048
        %v493 = vsel %vm491, %v457, 0
        %v496 = vsel %vm491, %v458, 0
        %v499 = vsel %vm491, %v459, 0
        %v502 = vsel %vm491, %v460, 0
        %v505 = vsel %vm491, %v461, 0
        %v508 = vsel %vm491, %v462, 0
        %v511 = vsel %vm491, %v463, 0
        %v514 = vsel %vm491, %v464, 0
        %v517 = vsel %vm491, %v465, 0
        %v520 = vsel %vm491, %v466, 0
        %v523 = vsel %vm491, %v467, 0
        %v526 = vsel %vm491, %v468, 0
        %v529 = vsel %vm491, %v469, 0
        %v532 = vsel %vm491, %v470, 0
        %v535 = vsel %vm491, %v471, 0
        %v538 = vsel %vm491, %v472, 0
        %540 = vmatprep.subr.mxu0 0.0
        %541 = vmatpush1.msra.mxu0 %v473
        %542 = vmatprep.subr.mxu0 0.0
        %543 = vmatpush1.msra.mxu0 %v474
        %544 = vmatprep.subr.mxu0 0.0
        %545 = vmatpush1.msra.mxu0 0.0
        %546 = vmatprep.subr.mxu0 0.0
        %547 = vmatpush1.msra.mxu0 0.0
        %548 = vmatprep.subr.mxu0 0.0
        %549 = vmatpush1.msra.mxu0 0.0
        %550 = vmatprep.subr.mxu0 0.0
        %551 = vmatpush1.msra.mxu0 0.0
        %552 = vmatprep.subr.mxu0 0.0
        %553 = vmatpush1.msra.mxu0 0.0
        %554 = vmatprep.subr.mxu0 0.0
        %555 = vmatpush1.msra.mxu0 0.0
        %556 = vmatprep.subr.mxu0 0.0
        %557 = vmatpush1.msra.mxu0 0.0
        %558 = vmatprep.subr.mxu0 0.0
        %559 = vmatpush1.msra.mxu0 0.0
        %560 = vmatprep.subr.mxu0 0.0
        %561 = vmatpush1.msra.mxu0 0.0
        %562 = vmatprep.subr.mxu0 0.0
        %563 = vmatpush1.msra.mxu0 0.0
        %564 = vmatprep.subr.mxu0 0.0
        %565 = vmatpush1.msra.mxu0 0.0
        %566 = vmatprep.subr.mxu0 0.0
        %567 = vmatpush1.msra.mxu0 0.0
        %568 = vmatprep.subr.mxu0 0.0
        %569 = vmatpush1.msra.mxu0 0.0
        %570 = vmatprep.subr.mxu0 0.0
        %571 = vmatpush1.msra.mxu0 0.0
        %572 = vmatprep.subr.mxu0 0.0
        %573 = vmatpush1.msra.mxu0 0.0
        %574 = vmatprep.subr.mxu0 0.0
        %575 = vmatpush1.msra.mxu0 0.0
        %576 = vmatprep.subr.mxu0 0.0
        %577 = vmatpush1.msra.mxu0 0.0
        %578 = vmatprep.subr.mxu0 0.0
        %579 = vmatpush1.msra.mxu0 0.0
        %580 = vmatprep.subr.mxu0 0.0
        %581 = vmatpush1.msra.mxu0 0.0
        %582 = vmatprep.subr.mxu0 0.0
        %583 = vmatpush1.msra.mxu0 0.0
        %584 = vmatprep.subr.mxu0 0.0
        %585 = vmatpush1.msra.mxu0 0.0
        %586 = vmatprep.subr.mxu0 0.0
        %587 = vmatpush1.msra.mxu0 0.0
        %588 = vmatprep.subr.mxu0 0.0
        %589 = vmatpush1.msra.mxu0 0.0
        %590 = vmatprep.subr.mxu0 0.0
        %591 = vmatpush1.msra.mxu0 0.0
        %592 = vmatprep.subr.mxu0 0.0
        %593 = vmatpush1.msra.mxu0 0.0
        %594 = vmatprep.subr.mxu0 0.0
        %595 = vmatpush1.msra.mxu0 0.0
        %596 = vmatprep.subr.mxu0 0.0
        %597 = vmatpush1.msra.mxu0 0.0
        %598 = vmatprep.subr.mxu0 0.0
        %599 = vmatpush1.msra.mxu0 0.0
        %600 = vmatprep.subr.mxu0 0.0
        %601 = vmatpush1.msra.mxu0 0.0
        %602 = vmatprep.subr.mxu0 0.0
        %603 = vmatpush1.msra.mxu0 0.0
        %604 = vmatprep.mubr.f32.mxu0 0.0
        %605 = vmatmul.mubr.f32.gmra.mrb[0].mxu0 %v493
        %v606 = vpop.f32.mrb[0].mxu0
        %v607 = vadd.f32 %v475, %v606
        %v608 = vpop.f32.mrb[0].mxu0
        %609 = vmatprep.mubr.f32.mxu0 0.0
        %610 = vmatmul.mubr.f32.gmra.mrb[0].mxu0 %v496
        %v611 = vpop.f32.mrb[0].mxu0
        %v612 = vadd.f32 %v476, %v611
        %v613 = vpop.f32.mrb[0].mxu0
        %614 = vmatprep.mubr.f32.mxu0 0.0
        %615 = vmatmul.mubr.f32.gmra.mrb[0].mxu0 %v499
        %v616 = vpop.f32.mrb[0].mxu0
        %v617 = vadd.f32 %v477, %v616
        %v618 = vpop.f32.mrb[0].mxu0
        %619 = vmatprep.mubr.f32.mxu0 0.0
        %620 = vmatmul.mubr.f32.gmra.mrb[0].mxu0 %v502
        %v621 = vpop.f32.mrb[0].mxu0
        %v622 = vadd.f32 %v478, %v621
        %v623 = vpop.f32.mrb[0].mxu0
        %624 = vmatprep.mubr.f32.mxu0 0.0
        %625 = vmatmul.mubr.f32.gmra.mrb[0].mxu0 %v505
        %v626 = vpop.f32.mrb[0].mxu0
        %v627 = vadd.f32 %v479, %v626
        %v628 = vpop.f32.mrb[0].mxu0
        %629 = vmatprep.mubr.f32.mxu0 0.0
        %630 = vmatmul.mubr.f32.gmra.mrb[0].mxu0 %v508
        %v631 = vpop.f32.mrb[0].mxu0
        %v632 = vadd.f32 %v480, %v631
        %v633 = vpop.f32.mrb[0].mxu0
        %634 = vmatprep.mubr.f32.mxu0 0.0
        %635 = vmatmul.mubr.f32.gmra.mrb[0].mxu0 %v511
        %v636 = vpop.f32.mrb[0].mxu0
        %v637 = vadd.f32 %v481, %v636
        %v638 = vpop.f32.mrb[0].mxu0
        %639 = vmatprep.mubr.f32.mxu0 0.0
        %640 = vmatmul.mubr.f32.gmra.mrb[0].mxu0 %v514
        %v641 = vpop.f32.mrb[0].mxu0
        %v642 = vadd.f32 %v482, %v641
        %v643 = vpop.f32.mrb[0].mxu0
        %644 = vmatprep.mubr.f32.mxu0 0.0
        %645 = vmatmul.mubr.f32.gmra.mrb[0].mxu0 %v517
        %v646 = vpop.f32.mrb[0].mxu0
        %v647 = vadd.f32 %v483, %v646
        %v648 = vpop.f32.mrb[0].mxu0
        %649 = vmatprep.mubr.f32.mxu0 0.0
        %650 = vmatmul.mubr.f32.gmra.mrb[0].mxu0 %v520
        %v651 = vpop.f32.mrb[0].mxu0
        %v652 = vadd.f32 %v484, %v651
        %v653 = vpop.f32.mrb[0].mxu0
        %654 = vmatprep.mubr.f32.mxu0 0.0
        %655 = vmatmul.mubr.f32.gmra.mrb[0].mxu0 %v523
        %v656 = vpop.f32.mrb[0].mxu0
        %v657 = vadd.f32 %v485, %v656
        %v658 = vpop.f32.mrb[0].mxu0
        %659 = vmatprep.mubr.f32.mxu0 0.0
        %660 = vmatmul.mubr.f32.gmra.mrb[0].mxu0 %v526
        %v661 = vpop.f32.mrb[0].mxu0
        %v662 = vadd.f32 %v486, %v661
        %v663 = vpop.f32.mrb[0].mxu0
        %664 = vmatprep.mubr.f32.mxu0 0.0
        %665 = vmatmul.mubr.f32.gmra.mrb[0].mxu0 %v529
        %v666 = vpop.f32.mrb[0].mxu0
        %v667 = vadd.f32 %v487, %v666
        %v668 = vpop.f32.mrb[0].mxu0
        %669 = vmatprep.mubr.f32.mxu0 0.0
        %670 = vmatmul.mubr.f32.gmra.mrb[0].mxu0 %v532
        %v671 = vpop.f32.mrb[0].mxu0
        %v672 = vadd.f32 %v488, %v671
        %v673 = vpop.f32.mrb[0].mxu0
        %674 = vmatprep.mubr.f32.mxu0 0.0
        %675 = vmatmul.mubr.f32.gmra.mrb[0].mxu0 %v535
        %v676 = vpop.f32.mrb[0].mxu0
        %v677 = vadd.f32 %v489, %v676
        %v678 = vpop.f32.mrb[0].mxu0
        %679 = vmatprep.mubr.f32.mxu0 0.0
        %680 = vmatmul.mubr.f32.gmra.mrb[0].mxu0 %v538
        %v681 = vpop.f32.mrb[0].mxu0
        %v682 = vadd.f32 %v490, %v681
        %v683 = vpop.f32.mrb[0].mxu0
        %684 = vdwg.mxu0
        %vm685 = vcmask 261120
        %686 = vst.msk [vmem:[%s435] sm:$0xff] %vm685, %v607
        %687 = vst.msk [vmem:[%s435 + $0x8] sm:$0xff] %vm685, %v612
        %688 = vst.msk [vmem:[%s435 + $0x10] sm:$0xff] %vm685, %v617
        %689 = vst.msk [vmem:[%s435 + $0x18] sm:$0xff] %vm685, %v622
        %690 = vst.msk [vmem:[%s435 + $0x20] sm:$0xff] %vm685, %v627
        %691 = vst.msk [vmem:[%s435 + $0x28] sm:$0xff] %vm685, %v632
        %692 = vst.msk [vmem:[%s435 + $0x30] sm:$0xff] %vm685, %v637
        %693 = vst.msk [vmem:[%s435 + $0x38] sm:$0xff] %vm685, %v642
        %694 = vst.msk [vmem:[%s435 + $0x40] sm:$0xff] %vm685, %v647
        %695 = vst.msk [vmem:[%s435 + $0x48] sm:$0xff] %vm685, %v652
        %696 = vst.msk [vmem:[%s435 + $0x50] sm:$0xff] %vm685, %v657
        %697 = vst.msk [vmem:[%s435 + $0x58] sm:$0xff] %vm685, %v662
        %698 = vst.msk [vmem:[%s435 + $0x60] sm:$0xff] %vm685, %v667
        %699 = vst.msk [vmem:[%s435 + $0x68] sm:$0xff] %vm685, %v672
        %700 = vst.msk [vmem:[%s435 + $0x70] sm:$0xff] %vm685, %v677
        %701 = vst.msk [vmem:[%s435 + $0x78] sm:$0xff] %vm685, %v682
        %v702 = vlaneseq
        %v703 = vshrl.u32 %v702, 7
        %v704 = vadd.s32 %v703, 8
        %v705 = vadd.s32 %v703, 16
        %v706 = vadd.s32 %v703, 24
        %v707 = vadd.s32 %v703, 32
        %v708 = vadd.s32 %v703, 40
        %v709 = vadd.s32 %v703, 48
        %v710 = vadd.s32 %v703, 56
        %v711 = vadd.s32 %v703, 64
        %v712 = vadd.s32 %v703, 72
        %v713 = vadd.s32 %v703, 80
        %v714 = vadd.s32 %v703, 88
        %v715 = vadd.s32 %v703, 96
        %v716 = vadd.s32 %v703, 104
        %v717 = vadd.s32 %v703, 112
        %v718 = vadd.s32 %v703, 120
        %vm719 = vcmp.lt.s32.totalorder %v703, 0
        %v720 = vsub.s32 0, %v703
        %v721 = vsel %vm719, %v720, %v703
        %v722 = vshrl.u32 %v721, 3
        %v723 = vand.u32 %v721, 7
        %v724 = vsub.s32 0, %v723
        %v725 = vsel %vm719, %v724, %v723
        %vm726 = vcmp.lt.s32.totalorder %v704, 0
        %v727 = vsub.s32 0, %v704
        %v728 = vsel %vm726, %v727, %v704
        %v729 = vshrl.u32 %v728, 3
        %v730 = vand.u32 %v728, 7
        %v731 = vsub.s32 0, %v730
        %v732 = vsel %vm726, %v731, %v730
        %vm733 = vcmp.lt.s32.totalorder %v705, 0
        %v734 = vsub.s32 0, %v705
        %v735 = vsel %vm733, %v734, %v705
        %v736 = vshrl.u32 %v735, 3
        %v737 = vand.u32 %v735, 7
        %v738 = vsub.s32 0, %v737
        %v739 = vsel %vm733, %v738, %v737
        %vm740 = vcmp.lt.s32.totalorder %v706, 0
        %v741 = vsub.s32 0, %v706
        %v742 = vsel %vm740, %v741, %v706
        %v743 = vshrl.u32 %v742, 3
        %v744 = vand.u32 %v742, 7
        %v745 = vsub.s32 0, %v744
        %v746 = vsel %vm740, %v745, %v744
        %vm747 = vcmp.lt.s32.totalorder %v707, 0
        %v748 = vsub.s32 0, %v707
        %v749 = vsel %vm747, %v748, %v707
        %v750 = vshrl.u32 %v749, 3
        %v751 = vand.u32 %v749, 7
        %v752 = vsub.s32 0, %v751
        %v753 = vsel %vm747, %v752, %v751
        %vm754 = vcmp.lt.s32.totalorder %v708, 0
        %v755 = vsub.s32 0, %v708
        %v756 = vsel %vm754, %v755, %v708
        %v757 = vshrl.u32 %v756, 3
        %v758 = vand.u32 %v756, 7
        %v759 = vsub.s32 0, %v758
        %v760 = vsel %vm754, %v759, %v758
        %vm761 = vcmp.lt.s32.totalorder %v709, 0
        %v762 = vsub.s32 0, %v709
        %v763 = vsel %vm761, %v762, %v709
        %v764 = vshrl.u32 %v763, 3
        %v765 = vand.u32 %v763, 7
        %v766 = vsub.s32 0, %v765
        %v767 = vsel %vm761, %v766, %v765
        %vm768 = vcmp.lt.s32.totalorder %v710, 0
        %v769 = vsub.s32 0, %v710
        %v770 = vsel %vm768, %v769, %v710
        %v771 = vshrl.u32 %v770, 3
        %v772 = vand.u32 %v770, 7
        %v773 = vsub.s32 0, %v772
        %v774 = vsel %vm768, %v773, %v772
        %vm775 = vcmp.lt.s32.totalorder %v711, 0
        %v776 = vsub.s32 0, %v711
        %v777 = vsel %vm775, %v776, %v711
        %v778 = vshrl.u32 %v777, 3
        %v779 = vand.u32 %v777, 7
        %v780 = vsub.s32 0, %v779
        %v781 = vsel %vm775, %v780, %v779
        %vm782 = vcmp.lt.s32.totalorder %v712, 0
        %v783 = vsub.s32 0, %v712
        %v784 = vsel %vm782, %v783, %v712
        %v785 = vshrl.u32 %v784, 3
        %v786 = vand.u32 %v784, 7
        %v787 = vsub.s32 0, %v786
        %v788 = vsel %vm782, %v787, %v786
        %vm789 = vcmp.lt.s32.totalorder %v713, 0
        %v790 = vsub.s32 0, %v713
        %v791 = vsel %vm789, %v790, %v713
        %v792 = vshrl.u32 %v791, 3
        %v793 = vand.u32 %v791, 7
        %v794 = vsub.s32 0, %v793
        %v795 = vsel %vm789, %v794, %v793
        %vm796 = vcmp.lt.s32.totalorder %v714, 0
        %v797 = vsub.s32 0, %v714
        %v798 = vsel %vm796, %v797, %v714
        %v799 = vshrl.u32 %v798, 3
        %v800 = vand.u32 %v798, 7
        %v801 = vsub.s32 0, %v800
        %v802 = vsel %vm796, %v801, %v800
        %vm803 = vcmp.lt.s32.totalorder %v715, 0
        %v804 = vsub.s32 0, %v715
        %v805 = vsel %vm803, %v804, %v715
        %v806 = vshrl.u32 %v805, 3
        %v807 = vand.u32 %v805, 7
        %v808 = vsub.s32 0, %v807
        %v809 = vsel %vm803, %v808, %v807
        %vm810 = vcmp.lt.s32.totalorder %v716, 0
        %v811 = vsub.s32 0, %v716
        %v812 = vsel %vm810, %v811, %v716
        %v813 = vshrl.u32 %v812, 3
        %v814 = vand.u32 %v812, 7
        %v815 = vsub.s32 0, %v814
        %v816 = vsel %vm810, %v815, %v814
        %vm817 = vcmp.lt.s32.totalorder %v717, 0
        %v818 = vsub.s32 0, %v717
        %v819 = vsel %vm817, %v818, %v717
        %v820 = vshrl.u32 %v819, 3
        %v821 = vand.u32 %v819, 7
        %v822 = vsub.s32 0, %v821
        %v823 = vsel %vm817, %v822, %v821
        %vm824 = vcmp.lt.s32.totalorder %v718, 0
        %v825 = vsub.s32 0, %v718
        %v826 = vsel %vm824, %v825, %v718
        %v827 = vshrl.u32 %v826, 3
        %v828 = vand.u32 %v826, 7
        %v829 = vsub.s32 0, %v828
        %v830 = vsel %vm824, %v829, %v828
        %vm831 = vcmp.ne.s32.totalorder %v725, 0
        %vm832 = vcmp.ne.s32.totalorder %v732, 0
        %vm833 = vcmp.ne.s32.totalorder %v739, 0
        %vm834 = vcmp.ne.s32.totalorder %v746, 0
        %vm835 = vcmp.ne.s32.totalorder %v753, 0
        %vm836 = vcmp.ne.s32.totalorder %v760, 0
        %vm837 = vcmp.ne.s32.totalorder %v767, 0
        %vm838 = vcmp.ne.s32.totalorder %v774, 0
        %vm839 = vcmp.ne.s32.totalorder %v781, 0
        %vm840 = vcmp.ne.s32.totalorder %v788, 0
        %vm841 = vcmp.ne.s32.totalorder %v795, 0
        %vm842 = vcmp.ne.s32.totalorder %v802, 0
        %vm843 = vcmp.ne.s32.totalorder %v809, 0
        %vm844 = vcmp.ne.s32.totalorder %v816, 0
        %vm845 = vcmp.ne.s32.totalorder %v823, 0
        %vm846 = vcmp.ne.s32.totalorder %v830, 0
        %vm847 = vcmp.lt.s32.totalorder %v725, 0
        %vm848 = vcmp.lt.s32.totalorder %v732, 0
        %vm849 = vcmp.lt.s32.totalorder %v739, 0
        %vm850 = vcmp.lt.s32.totalorder %v746, 0
        %vm851 = vcmp.lt.s32.totalorder %v753, 0
        %vm852 = vcmp.lt.s32.totalorder %v760, 0
        %vm853 = vcmp.lt.s32.totalorder %v767, 0
        %vm854 = vcmp.lt.s32.totalorder %v774, 0
        %vm855 = vcmp.lt.s32.totalorder %v781, 0
        %vm856 = vcmp.lt.s32.totalorder %v788, 0
        %vm857 = vcmp.lt.s32.totalorder %v795, 0
        %vm858 = vcmp.lt.s32.totalorder %v802, 0
        %vm859 = vcmp.lt.s32.totalorder %v809, 0
        %vm860 = vcmp.lt.s32.totalorder %v816, 0
        %vm861 = vcmp.lt.s32.totalorder %v823, 0
        %vm862 = vcmp.lt.s32.totalorder %v830, 0
        %vm863 = vmand %vm847, %vm831
        %vm864 = vmand %vm848, %vm832
        %vm865 = vmand %vm849, %vm833
        %vm866 = vmand %vm850, %vm834
        %vm867 = vmand %vm851, %vm835
        %vm868 = vmand %vm852, %vm836
        %vm869 = vmand %vm853, %vm837
        %vm870 = vmand %vm854, %vm838
        %vm871 = vmand %vm855, %vm839
        %vm872 = vmand %vm856, %vm840
        %vm873 = vmand %vm857, %vm841
        %vm874 = vmand %vm858, %vm842
        %vm875 = vmand %vm859, %vm843
        %vm876 = vmand %vm860, %vm844
        %vm877 = vmand %vm861, %vm845
        %vm878 = vmand %vm862, %vm846
        %v879 = vadd.s32 %v725, 8
        %v880 = vadd.s32 %v732, 8
        %v881 = vadd.s32 %v739, 8
        %v882 = vadd.s32 %v746, 8
        %v883 = vadd.s32 %v753, 8
        %v884 = vadd.s32 %v760, 8
        %v885 = vadd.s32 %v767, 8
        %v886 = vadd.s32 %v774, 8
        %v887 = vadd.s32 %v781, 8
        %v888 = vadd.s32 %v788, 8
        %v889 = vadd.s32 %v795, 8
        %v890 = vadd.s32 %v802, 8
        %v891 = vadd.s32 %v809, 8
        %v892 = vadd.s32 %v816, 8
        %v893 = vadd.s32 %v823, 8
        %v894 = vadd.s32 %v830, 8
        %v895 = vsel %vm863, %v879, %v725
        %v896 = vsel %vm864, %v880, %v732
        %v897 = vsel %vm865, %v881, %v739
        %v898 = vsel %vm866, %v882, %v746
        %v899 = vsel %vm867, %v883, %v753
        %v900 = vsel %vm868, %v884, %v760
        %v901 = vsel %vm869, %v885, %v767
        %v902 = vsel %vm870, %v886, %v774
        %v903 = vsel %vm871, %v887, %v781
        %v904 = vsel %vm872, %v888, %v788
        %v905 = vsel %vm873, %v889, %v795
        %v906 = vsel %vm874, %v890, %v802
        %v907 = vsel %vm875, %v891, %v809
        %v908 = vsel %vm876, %v892, %v816
        %v909 = vsel %vm877, %v893, %v823
        %v910 = vsel %vm878, %v894, %v830
        %vm911 = vcmp.ne.s32.totalorder %v895, 0
        %vm912 = vcmp.ne.s32.totalorder %v896, 0
        %vm913 = vcmp.ne.s32.totalorder %v897, 0
        %vm914 = vcmp.ne.s32.totalorder %v898, 0
        %vm915 = vcmp.ne.s32.totalorder %v899, 0
        %vm916 = vcmp.ne.s32.totalorder %v900, 0
        %vm917 = vcmp.ne.s32.totalorder %v901, 0
        %vm918 = vcmp.ne.s32.totalorder %v902, 0
        %vm919 = vcmp.ne.s32.totalorder %v903, 0
        %vm920 = vcmp.ne.s32.totalorder %v904, 0
        %vm921 = vcmp.ne.s32.totalorder %v905, 0
        %vm922 = vcmp.ne.s32.totalorder %v906, 0
        %vm923 = vcmp.ne.s32.totalorder %v907, 0
        %vm924 = vcmp.ne.s32.totalorder %v908, 0
        %vm925 = vcmp.ne.s32.totalorder %v909, 0
        %vm926 = vcmp.ne.s32.totalorder %v910, 0
        %vm927 = vcmp.ne.s32.totalorder %v895, 7
        %vm928 = vcmp.ne.s32.totalorder %v896, 7
        %vm929 = vcmp.ne.s32.totalorder %v897, 7
        %vm930 = vcmp.ne.s32.totalorder %v898, 7
        %vm931 = vcmp.ne.s32.totalorder %v899, 7
        %vm932 = vcmp.ne.s32.totalorder %v900, 7
        %vm933 = vcmp.ne.s32.totalorder %v901, 7
        %vm934 = vcmp.ne.s32.totalorder %v902, 7
        %vm935 = vcmp.ne.s32.totalorder %v903, 7
        %vm936 = vcmp.ne.s32.totalorder %v904, 7
        %vm937 = vcmp.ne.s32.totalorder %v905, 7
        %vm938 = vcmp.ne.s32.totalorder %v906, 7
        %vm939 = vcmp.ne.s32.totalorder %v907, 7
        %vm940 = vcmp.ne.s32.totalorder %v908, 7
        %vm941 = vcmp.ne.s32.totalorder %v909, 7
        %vm942 = vcmp.ne.s32.totalorder %v910, 7
        %v943 = vld [vmem:[%s7] sm:$0x1]
        %v944 = vld [vmem:[%s8] sm:$0x1]
        %v945 = vld [vmem:[%s9] sm:$0x1]
        %v946 = vld [vmem:[%s3] sm:$0xf]
        %v947 = vld [vmem:[%s3 + $0x4] sm:$0xf]
        %v948 = vld [vmem:[%s3 + $0x8] sm:$0xf]
        %v949 = vld [vmem:[%s3 + $0xc] sm:$0xf]
        %v950 = vld [vmem:[%s3 + $0x10] sm:$0xf]
        %v951 = vld [vmem:[%s3 + $0x14] sm:$0xf]
        %v952 = vld [vmem:[%s3 + $0x18] sm:$0xf]
        %v953 = vld [vmem:[%s3 + $0x1c] sm:$0xf]
        %v954 = vld [vmem:[%s3 + $0x20] sm:$0xf]
        %v955 = vld [vmem:[%s3 + $0x24] sm:$0xf]
        %v956 = vld [vmem:[%s3 + $0x28] sm:$0xf]
        %v957 = vld [vmem:[%s3 + $0x2c] sm:$0xf]
        %v958 = vld [vmem:[%s4] sm:$0x1]
        %v959 = vrot.slane %v607, 7
        %v960 = vrot.slane %v612, 7
        %v961 = vrot.slane %v617, 7
        %v962 = vrot.slane %v622, 7
        %v963 = vrot.slane %v627, 7
        %v964 = vrot.slane %v632, 7
        %v965 = vrot.slane %v637, 7
        %v966 = vrot.slane %v642, 7
        %v967 = vrot.slane %v647, 7
        %v968 = vrot.slane %v652, 7
        %v969 = vrot.slane %v657, 7
        %v970 = vrot.slane %v662, 7
        %v971 = vrot.slane %v667, 7
        %v972 = vrot.slane %v672, 7
        %v973 = vrot.slane %v677, 7
        %v974 = vrot.slane %v682, 7
        %vm975 = vcmp.lt.s32.totalorder %v703, 1
        %v976 = vsel %vm975, %v973, %v974
        %v977 = vsel %vm975, %v972, %v973
        %v978 = vsel %vm975, %v971, %v972
        %v979 = vsel %vm975, %v970, %v971
        %v980 = vsel %vm975, %v969, %v970
        %v981 = vsel %vm975, %v968, %v969
        %v982 = vsel %vm975, %v967, %v968
        %v983 = vsel %vm975, %v966, %v967
        %v984 = vsel %vm975, %v965, %v966
        %v985 = vsel %vm975, %v964, %v965
        %v986 = vsel %vm975, %v963, %v964
        %v987 = vsel %vm975, %v962, %v963
        %v988 = vsel %vm975, %v961, %v962
        %v989 = vsel %vm975, %v960, %v961
        %v990 = vsel %vm975, %v959, %v960
        %v991 = vsel %vm975, %v974, %v959
        %v992 = vsel %vm911, 1, 0
        %v993 = vsel %vm912, 1, 0
        %v994 = vsel %vm913, 1, 0
        %v995 = vsel %vm914, 1, 0
        %v996 = vsel %vm915, 1, 0
        %v997 = vsel %vm916, 1, 0
        %v998 = vsel %vm917, 1, 0
        %v999 = vsel %vm918, 1, 0
        %v1000 = vsel %vm919, 1, 0
        %v1001 = vsel %vm920, 1, 0
        %v1002 = vsel %vm921, 1, 0
        %v1003 = vsel %vm922, 1, 0
        %v1004 = vsel %vm923, 1, 0
        %v1005 = vsel %vm924, 1, 0
        %v1006 = vsel %vm925, 1, 0
        %v1007 = vsel %vm926, 1, 0
        %vm1008 = vcmp.eq.s32.totalorder %v992, 1
        %vm1009 = vcmp.eq.s32.totalorder %v993, 1
        %vm1010 = vcmp.eq.s32.totalorder %v994, 1
        %vm1011 = vcmp.eq.s32.totalorder %v995, 1
        %vm1012 = vcmp.eq.s32.totalorder %v996, 1
        %vm1013 = vcmp.eq.s32.totalorder %v997, 1
        %vm1014 = vcmp.eq.s32.totalorder %v998, 1
        %vm1015 = vcmp.eq.s32.totalorder %v999, 1
        %vm1016 = vcmp.eq.s32.totalorder %v1000, 1
        %vm1017 = vcmp.eq.s32.totalorder %v1001, 1
        %vm1018 = vcmp.eq.s32.totalorder %v1002, 1
        %vm1019 = vcmp.eq.s32.totalorder %v1003, 1
        %vm1020 = vcmp.eq.s32.totalorder %v1004, 1
        %vm1021 = vcmp.eq.s32.totalorder %v1005, 1
        %vm1022 = vcmp.eq.s32.totalorder %v1006, 1
        %vm1023 = vcmp.eq.s32.totalorder %v1007, 1
        %v1024 = vsel %vm1008, %v991, 0.0
        %v1025 = vsel %vm1009, %v990, 0.0
        %v1026 = vsel %vm1010, %v989, 0.0
        %v1027 = vsel %vm1011, %v988, 0.0
        %v1028 = vsel %vm1012, %v987, 0.0
        %v1029 = vsel %vm1013, %v986, 0.0
        %v1030 = vsel %vm1014, %v985, 0.0
        %v1031 = vsel %vm1015, %v984, 0.0
        %v1032 = vsel %vm1016, %v983, 0.0
        %v1033 = vsel %vm1017, %v982, 0.0
        %v1034 = vsel %vm1018, %v981, 0.0
        %v1035 = vsel %vm1019, %v980, 0.0
        %v1036 = vsel %vm1020, %v979, 0.0
        %v1037 = vsel %vm1021, %v978, 0.0
        %v1038 = vsel %vm1022, %v977, 0.0
        %v1039 = vsel %vm1023, %v976, 0.0
        %v1040 = vrot.slane %v607, 1
        %v1041 = vrot.slane %v612, 1
        %v1042 = vrot.slane %v617, 1
        %v1043 = vrot.slane %v622, 1
        %v1044 = vrot.slane %v627, 1
        %v1045 = vrot.slane %v632, 1
        %v1046 = vrot.slane %v637, 1
        %v1047 = vrot.slane %v642, 1
        %v1048 = vrot.slane %v647, 1
        %v1049 = vrot.slane %v652, 1
        %v1050 = vrot.slane %v657, 1
        %v1051 = vrot.slane %v662, 1
        %v1052 = vrot.slane %v667, 1
        %v1053 = vrot.slane %v672, 1
        %v1054 = vrot.slane %v677, 1
        %v1055 = vrot.slane %v682, 1
        %vm1056 = vcmp.lt.s32.totalorder %v703, 7
        %v1057 = vsel %vm1056, %v1054, %v1055
        %v1058 = vsel %vm1056, %v1053, %v1054
        %v1059 = vsel %vm1056, %v1052, %v1053
        %v1060 = vsel %vm1056, %v1051, %v1052
        %v1061 = vsel %vm1056, %v1050, %v1051
        %v1062 = vsel %vm1056, %v1049, %v1050
        %v1063 = vsel %vm1056, %v1048, %v1049
        %v1064 = vsel %vm1056, %v1047, %v1048
        %v1065 = vsel %vm1056, %v1046, %v1047
        %v1066 = vsel %vm1056, %v1045, %v1046
        %v1067 = vsel %vm1056, %v1044, %v1045
        %v1068 = vsel %vm1056, %v1043, %v1044
        %v1069 = vsel %vm1056, %v1042, %v1043
        %v1070 = vsel %vm1056, %v1041, %v1042
        %v1071 = vsel %vm1056, %v1040, %v1041
        %v1072 = vsel %vm1056, %v1055, %v1040
        %v1073 = vsel %vm927, 1, 0
        %v1074 = vsel %vm928, 1, 0
        %v1075 = vsel %vm929, 1, 0
        %v1076 = vsel %vm930, 1, 0
        %v1077 = vsel %vm931, 1, 0
        %v1078 = vsel %vm932, 1, 0
        %v1079 = vsel %vm933, 1, 0
        %v1080 = vsel %vm934, 1, 0
        %v1081 = vsel %vm935, 1, 0
        %v1082 = vsel %vm936, 1, 0
        %v1083 = vsel %vm937, 1, 0
        %v1084 = vsel %vm938, 1, 0
        %v1085 = vsel %vm939, 1, 0
        %v1086 = vsel %vm940, 1, 0
        %v1087 = vsel %vm941, 1, 0
        %v1088 = vsel %vm942, 1, 0
        %vm1089 = vcmp.eq.s32.totalorder %v1073, 1
        %vm1090 = vcmp.eq.s32.totalorder %v1074, 1
        %vm1091 = vcmp.eq.s32.totalorder %v1075, 1
        %vm1092 = vcmp.eq.s32.totalorder %v1076, 1
        %vm1093 = vcmp.eq.s32.totalorder %v1077, 1
        %vm1094 = vcmp.eq.s32.totalorder %v1078, 1
        %vm1095 = vcmp.eq.s32.totalorder %v1079, 1
        %vm1096 = vcmp.eq.s32.totalorder %v1080, 1
        %vm1097 = vcmp.eq.s32.totalorder %v1081, 1
        %vm1098 = vcmp.eq.s32.totalorder %v1082, 1
        %vm1099 = vcmp.eq.s32.totalorder %v1083, 1
        %vm1100 = vcmp.eq.s32.totalorder %v1084, 1
        %vm1101 = vcmp.eq.s32.totalorder %v1085, 1
        %vm1102 = vcmp.eq.s32.totalorder %v1086, 1
        %vm1103 = vcmp.eq.s32.totalorder %v1087, 1
        %vm1104 = vcmp.eq.s32.totalorder %v1088, 1
        %v1105 = vsel %vm1089, %v1071, 0.0
        %v1106 = vsel %vm1090, %v1070, 0.0
        %v1107 = vsel %vm1091, %v1069, 0.0
        %v1108 = vsel %vm1092, %v1068, 0.0
        %v1109 = vsel %vm1093, %v1067, 0.0
        %v1110 = vsel %vm1094, %v1066, 0.0
        %v1111 = vsel %vm1095, %v1065, 0.0
        %v1112 = vsel %vm1096, %v1064, 0.0
        %v1113 = vsel %vm1097, %v1063, 0.0
        %v1114 = vsel %vm1098, %v1062, 0.0
        %v1115 = vsel %vm1099, %v1061, 0.0
        %v1116 = vsel %vm1100, %v1060, 0.0
        %v1117 = vsel %vm1101, %v1059, 0.0
        %v1118 = vsel %vm1102, %v1058, 0.0
        %v1119 = vsel %vm1103, %v1057, 0.0
        %v1120 = vsel %vm1104, %v1072, 0.0
        %1137 = vrot.lane.b32.xlu0 %v607, 32
        %v1138 = vpop.permute.xlu0 %1137
        %1139 = vrot.lane.b32.xlu0 %v612, 32
        %v1140 = vpop.permute.xlu0 %1139
        %1141 = vrot.lane.b32.xlu0 %v617, 32
        %v1142 = vpop.permute.xlu0 %1141
        %1143 = vrot.lane.b32.xlu0 %v622, 32
        %v1144 = vpop.permute.xlu0 %1143
        %1145 = vrot.lane.b32.xlu0 %v627, 32
        %v1146 = vpop.permute.xlu0 %1145
        %1147 = vrot.lane.b32.xlu0 %v632, 32
        %v1148 = vpop.permute.xlu0 %1147
        %1149 = vrot.lane.b32.xlu0 %v637, 32
        %v1150 = vpop.permute.xlu0 %1149
        %1151 = vrot.lane.b32.xlu0 %v642, 32
        %v1152 = vpop.permute.xlu0 %1151
        %1153 = vrot.lane.b32.xlu0 %v647, 32
        %v1154 = vpop.permute.xlu0 %1153
        %1155 = vrot.lane.b32.xlu0 %v652, 32
        %v1156 = vpop.permute.xlu0 %1155
        %1157 = vrot.lane.b32.xlu0 %v657, 32
        %v1158 = vpop.permute.xlu0 %1157
        %1159 = vrot.lane.b32.xlu0 %v662, 32
        %v1160 = vpop.permute.xlu0 %1159
        %1161 = vrot.lane.b32.xlu0 %v667, 32
        %v1162 = vpop.permute.xlu0 %1161
        %1163 = vrot.lane.b32.xlu0 %v672, 32
        %v1164 = vpop.permute.xlu0 %1163
        %1165 = vrot.lane.b32.xlu0 %v677, 32
        %v1166 = vpop.permute.xlu0 %1165
        %1167 = vrot.lane.b32.xlu0 %v682, 32
        %v1168 = vpop.permute.xlu0 %1167
        %1201 = vrot.lane.b32.xlu0 %v1105, 64
        %v1202 = vpop.permute.xlu0 %1201
        %1203 = vrot.lane.b32.xlu0 %v1106, 64
        %v1204 = vpop.permute.xlu0 %1203
        %1205 = vrot.lane.b32.xlu0 %v1107, 64
        %v1206 = vpop.permute.xlu0 %1205
        %1207 = vrot.lane.b32.xlu0 %v1108, 64
        %v1208 = vpop.permute.xlu0 %1207
        %1209 = vrot.lane.b32.xlu0 %v1109, 64
        %v1210 = vpop.permute.xlu0 %1209
        %1211 = vrot.lane.b32.xlu0 %v1110, 64
        %v1212 = vpop.permute.xlu0 %1211
        %1213 = vrot.lane.b32.xlu0 %v1111, 64
        %v1214 = vpop.permute.xlu0 %1213
        %1215 = vrot.lane.b32.xlu0 %v1112, 64
        %v1216 = vpop.permute.xlu0 %1215
        %1217 = vrot.lane.b32.xlu0 %v1113, 64
        %v1218 = vpop.permute.xlu0 %1217
        %1219 = vrot.lane.b32.xlu0 %v1114, 64
        %v1220 = vpop.permute.xlu0 %1219
        %1221 = vrot.lane.b32.xlu0 %v1115, 64
        %v1222 = vpop.permute.xlu0 %1221
        %1223 = vrot.lane.b32.xlu0 %v1116, 64
        %v1224 = vpop.permute.xlu0 %1223
        %1225 = vrot.lane.b32.xlu0 %v1117, 64
        %v1226 = vpop.permute.xlu0 %1225
        %1227 = vrot.lane.b32.xlu0 %v1118, 64
        %v1228 = vpop.permute.xlu0 %1227
        %1229 = vrot.lane.b32.xlu0 %v1119, 64
        %v1230 = vpop.permute.xlu0 %1229
        %1231 = vrot.lane.b32.xlu0 %v1120, 64
        %v1232 = vpop.permute.xlu0 %1231
        %v1249 = vsel %vm685, %v1024, %v1138
        %v1250 = vsel %vm685, %v1025, %v1140
        %v1251 = vsel %vm685, %v1026, %v1142
        %v1252 = vsel %vm685, %v1027, %v1144
        %v1253 = vsel %vm685, %v1028, %v1146
        %v1254 = vsel %vm685, %v1029, %v1148
        %v1255 = vsel %vm685, %v1030, %v1150
        %v1256 = vsel %vm685, %v1031, %v1152
        %v1257 = vsel %vm685, %v1032, %v1154
        %v1258 = vsel %vm685, %v1033, %v1156
        %v1259 = vsel %vm685, %v1034, %v1158
        %v1260 = vsel %vm685, %v1035, %v1160
        %v1261 = vsel %vm685, %v1036, %v1162
        %v1262 = vsel %vm685, %v1037, %v1164
        %v1263 = vsel %vm685, %v1038, %v1166
        %v1264 = vsel %vm685, %v1039, %v1168
        %vm1265 = vcmask 523264
        %v1266 = vsel %vm1265, %v1249, %v1202
        %v1267 = vsel %vm1265, %v1250, %v1204
        %v1268 = vsel %vm1265, %v1251, %v1206
        %v1269 = vsel %vm1265, %v1252, %v1208
        %v1270 = vsel %vm1265, %v1253, %v1210
        %v1271 = vsel %vm1265, %v1254, %v1212
        %v1272 = vsel %vm1265, %v1255, %v1214
        %v1273 = vsel %vm1265, %v1256, %v1216
        %v1274 = vsel %vm1265, %v1257, %v1218
        %v1275 = vsel %vm1265, %v1258, %v1220
        %v1276 = vsel %vm1265, %v1259, %v1222
        %v1277 = vsel %vm1265, %v1260, %v1224
        %v1278 = vsel %vm1265, %v1261, %v1226
        %v1279 = vsel %vm1265, %v1262, %v1228
        %v1280 = vsel %vm1265, %v1263, %v1230
        %v1281 = vsel %vm1265, %v1264, %v1232
        %v1282 = vpack.c.bf16 %v1267, %v1266
        %v1283 = vpack.c.bf16 %v1269, %v1268
        %v1284 = vpack.c.bf16 %v1271, %v1270
        %v1285 = vpack.c.bf16 %v1273, %v1272
        %v1286 = vpack.c.bf16 %v1275, %v1274
        %v1287 = vpack.c.bf16 %v1277, %v1276
        %v1288 = vpack.c.bf16 %v1279, %v1278
        %v1289 = vpack.c.bf16 %v1281, %v1280
        %v1291 = vlaneseq
        %v1292 = vshrl.u32 %v1291, 7
        %v1293 = vsub.s32 0, %v1292
        %v1294 = vrot.slane %v958, %v1293
        %v1308 = vunpack.c.l.b16 %v946
        %v1309 = vunpack.c.l.b16 %v947
        %v1310 = vunpack.c.l.b16 %v948
        %v1311 = vunpack.c.l.b16 %v949
        %v1312 = vunpack.c.l.b16 %v950
        %v1313 = vunpack.c.l.b16 %v951
        %v1314 = vunpack.c.l.b16 %v952
        %v1315 = vunpack.c.l.b16 %v953
        %v1316 = vunpack.c.l.b16 %v954
        %v1317 = vunpack.c.l.b16 %v955
        %v1318 = vunpack.c.l.b16 %v956
        %v1319 = vunpack.c.l.b16 %v957
        %v1320 = vpack.c.b16 %v1309, %v1308
        %v1321 = vpack.c.b16 %v1311, %v1310
        %v1322 = vpack.c.b16 %v1313, %v1312
        %v1323 = vpack.c.b16 %v1315, %v1314
        %v1324 = vpack.c.b16 %v1317, %v1316
        %v1325 = vpack.c.b16 %v1319, %v1318
        %vm1332 = vcmask 785408
        %v1334 = vsel %vm1332, %v1282, 0
        %v1337 = vsel %vm1332, %v1283, 0
        %v1340 = vsel %vm1332, %v1284, 0
        %v1343 = vsel %vm1332, %v1285, 0
        %v1346 = vsel %vm1332, %v1286, 0
        %v1349 = vsel %vm1332, %v1287, 0
        %v1352 = vsel %vm1332, %v1288, 0
        %v1355 = vsel %vm1332, %v1289, 0
        %1357 = vmatprep.subr.bf16.mxu0 0
        %1358 = vmatpush1.bf16.msra.mxu0 %v1320
        %1359 = vmatprep.subr.bf16.mxu0 0
        %1360 = vmatpush1.bf16.msra.mxu0 %v1321
        %1361 = vmatprep.subr.bf16.mxu0 0
        %1362 = vmatpush1.bf16.msra.mxu0 %v1322
        %1363 = vmatprep.subr.bf16.mxu0 0
        %1364 = vmatpush1.bf16.msra.mxu0 %v1323
        %1365 = vmatprep.subr.bf16.mxu0 0
        %1366 = vmatpush1.bf16.msra.mxu0 %v1324
        %1367 = vmatprep.subr.bf16.mxu0 0
        %1368 = vmatpush1.bf16.msra.mxu0 %v1325
        %1369 = vmatprep.subr.bf16.mxu0 0
        %1370 = vmatpush1.bf16.msra.mxu0 0
        %1371 = vmatprep.subr.bf16.mxu0 0
        %1372 = vmatpush1.bf16.msra.mxu0 0
        %1373 = vmatprep.subr.bf16.mxu0 0
        %1374 = vmatpush1.bf16.msra.mxu0 0
        %1375 = vmatprep.subr.bf16.mxu0 0
        %1376 = vmatpush1.bf16.msra.mxu0 0
        %1377 = vmatprep.subr.bf16.mxu0 0
        %1378 = vmatpush1.bf16.msra.mxu0 0
        %1379 = vmatprep.subr.bf16.mxu0 0
        %1380 = vmatpush1.bf16.msra.mxu0 0
        %1381 = vmatprep.subr.bf16.mxu0 0
        %1382 = vmatpush1.bf16.msra.mxu0 0
        %1383 = vmatprep.subr.bf16.mxu0 0
        %1384 = vmatpush1.bf16.msra.mxu0 0
        %1385 = vmatprep.subr.bf16.mxu0 0
        %1386 = vmatpush1.bf16.msra.mxu0 0
        %1387 = vmatprep.subr.bf16.mxu0 0
        %1388 = vmatpush1.bf16.msra.mxu0 0
        %1389 = vmatprep.mubr.bf16.mxu0 0
        %1390 = vmatmul.mubr.bf16.gmra.mrb[0].mxu0 %v1334
        %v1391 = vpop.f32.mrb[0].mxu0
        %v1392 = vadd.f32 %v1294, %v1391
        %v1393 = vpop.f32.mrb[0].mxu0
        %v1394 = vpop.f32.mrb[0].mxu0
        %v1395 = vadd.f32 %v1294, %v1394
        %v1396 = vpop.f32.mrb[0].mxu0
        %1397 = vmatprep.mubr.bf16.mxu0 0
        %1398 = vmatmul.mubr.bf16.gmra.mrb[0].mxu0 %v1337
        %v1399 = vpop.f32.mrb[0].mxu0
        %v1400 = vadd.f32 %v1294, %v1399
        %v1401 = vpop.f32.mrb[0].mxu0
        %v1402 = vpop.f32.mrb[0].mxu0
        %v1403 = vadd.f32 %v1294, %v1402
        %v1404 = vpop.f32.mrb[0].mxu0
        %1405 = vmatprep.mubr.bf16.mxu0 0
        %1406 = vmatmul.mubr.bf16.gmra.mrb[0].mxu0 %v1340
        %v1407 = vpop.f32.mrb[0].mxu0
        %v1408 = vadd.f32 %v1294, %v1407
        %v1409 = vpop.f32.mrb[0].mxu0
        %v1410 = vpop.f32.mrb[0].mxu0
        %v1411 = vadd.f32 %v1294, %v1410
        %v1412 = vpop.f32.mrb[0].mxu0
        %1413 = vmatprep.mubr.bf16.mxu0 0
        %1414 = vmatmul.mubr.bf16.gmra.mrb[0].mxu0 %v1343
        %v1415 = vpop.f32.mrb[0].mxu0
        %v1416 = vadd.f32 %v1294, %v1415
        %v1417 = vpop.f32.mrb[0].mxu0
        %v1418 = vpop.f32.mrb[0].mxu0
        %v1419 = vadd.f32 %v1294, %v1418
        %v1420 = vpop.f32.mrb[0].mxu0
        %1421 = vmatprep.mubr.bf16.mxu0 0
        %1422 = vmatmul.mubr.bf16.gmra.mrb[0].mxu0 %v1346
        %v1423 = vpop.f32.mrb[0].mxu0
        %v1424 = vadd.f32 %v1294, %v1423
        %v1425 = vpop.f32.mrb[0].mxu0
        %v1426 = vpop.f32.mrb[0].mxu0
        %v1427 = vadd.f32 %v1294, %v1426
        %v1428 = vpop.f32.mrb[0].mxu0
        %1429 = vmatprep.mubr.bf16.mxu0 0
        %1430 = vmatmul.mubr.bf16.gmra.mrb[0].mxu0 %v1349
        %v1431 = vpop.f32.mrb[0].mxu0
        %v1432 = vadd.f32 %v1294, %v1431
        %v1433 = vpop.f32.mrb[0].mxu0
        %v1434 = vpop.f32.mrb[0].mxu0
        %v1435 = vadd.f32 %v1294, %v1434
        %v1436 = vpop.f32.mrb[0].mxu0
        %1437 = vmatprep.mubr.bf16.mxu0 0
        %1438 = vmatmul.mubr.bf16.gmra.mrb[0].mxu0 %v1352
        %v1439 = vpop.f32.mrb[0].mxu0
        %v1440 = vadd.f32 %v1294, %v1439
        %v1441 = vpop.f32.mrb[0].mxu0
        %v1442 = vpop.f32.mrb[0].mxu0
        %v1443 = vadd.f32 %v1294, %v1442
        %v1444 = vpop.f32.mrb[0].mxu0
        %1445 = vmatprep.mubr.bf16.mxu0 0
        %1446 = vmatmul.mubr.bf16.gmra.mrb[0].mxu0 %v1355
        %v1447 = vpop.f32.mrb[0].mxu0
        %v1448 = vadd.f32 %v1294, %v1447
        %v1449 = vpop.f32.mrb[0].mxu0
        %v1450 = vpop.f32.mrb[0].mxu0
        %v1451 = vadd.f32 %v1294, %v1450
        %v1452 = vpop.f32.mrb[0].mxu0
        %1453 = vdwg.mxu0
        %v1455 = vlaneseq
        %v1456 = vshrl.u32 %v1455, 7
        %v1457 = vsub.s32 0, %v1456
        %v1458 = vrot.slane %v943, %v1457
        %v1460 = vmul.f32 %v1392, %v1458
        %v1461 = vmul.f32 %v1395, %v1458
        %v1462 = vmul.f32 %v1400, %v1458
        %v1463 = vmul.f32 %v1403, %v1458
        %v1464 = vmul.f32 %v1408, %v1458
        %v1465 = vmul.f32 %v1411, %v1458
        %v1466 = vmul.f32 %v1416, %v1458
        %v1467 = vmul.f32 %v1419, %v1458
        %v1468 = vmul.f32 %v1424, %v1458
        %v1469 = vmul.f32 %v1427, %v1458
        %v1470 = vmul.f32 %v1432, %v1458
        %v1471 = vmul.f32 %v1435, %v1458
        %v1472 = vmul.f32 %v1440, %v1458
        %v1473 = vmul.f32 %v1443, %v1458
        %v1474 = vmul.f32 %v1448, %v1458
        %v1475 = vmul.f32 %v1451, %v1458
        %v1477 = vlaneseq
        %v1478 = vshrl.u32 %v1477, 7
        %v1479 = vsub.s32 0, %v1478
        %v1480 = vrot.slane %v944, %v1479
        %v1482 = vadd.f32 %v1460, %v1480
        %v1483 = vadd.f32 %v1461, %v1480
        %v1484 = vadd.f32 %v1462, %v1480
        %v1485 = vadd.f32 %v1463, %v1480
        %v1486 = vadd.f32 %v1464, %v1480
        %v1487 = vadd.f32 %v1465, %v1480
        %v1488 = vadd.f32 %v1466, %v1480
        %v1489 = vadd.f32 %v1467, %v1480
        %v1490 = vadd.f32 %v1468, %v1480
        %v1491 = vadd.f32 %v1469, %v1480
        %v1492 = vadd.f32 %v1470, %v1480
        %v1493 = vadd.f32 %v1471, %v1480
        %v1494 = vadd.f32 %v1472, %v1480
        %v1495 = vadd.f32 %v1473, %v1480
        %v1496 = vadd.f32 %v1474, %v1480
        %v1497 = vadd.f32 %v1475, %v1480
        %vm1498 = vcmp.ge.f32.partialorder %v1482, 0.0
        %vm1499 = vcmp.ge.f32.partialorder %v1483, 0.0
        %vm1500 = vcmp.ge.f32.partialorder %v1484, 0.0
        %vm1501 = vcmp.ge.f32.partialorder %v1485, 0.0
        %vm1502 = vcmp.ge.f32.partialorder %v1486, 0.0
        %vm1503 = vcmp.ge.f32.partialorder %v1487, 0.0
        %vm1504 = vcmp.ge.f32.partialorder %v1488, 0.0
        %vm1505 = vcmp.ge.f32.partialorder %v1489, 0.0
        %vm1506 = vcmp.ge.f32.partialorder %v1490, 0.0
        %vm1507 = vcmp.ge.f32.partialorder %v1491, 0.0
        %vm1508 = vcmp.ge.f32.partialorder %v1492, 0.0
        %vm1509 = vcmp.ge.f32.partialorder %v1493, 0.0
        %vm1510 = vcmp.ge.f32.partialorder %v1494, 0.0
        %vm1511 = vcmp.ge.f32.partialorder %v1495, 0.0
        %vm1512 = vcmp.ge.f32.partialorder %v1496, 0.0
        %vm1513 = vcmp.ge.f32.partialorder %v1497, 0.0
        %v1515 = vlaneseq
        %v1516 = vshrl.u32 %v1515, 7
        %v1517 = vsub.s32 0, %v1516
        %v1518 = vrot.slane %v945, %v1517
        %v1520 = vmul.f32 %v1482, %v1518
        %v1521 = vmul.f32 %v1483, %v1518
        %v1522 = vmul.f32 %v1484, %v1518
        %v1523 = vmul.f32 %v1485, %v1518
        %v1524 = vmul.f32 %v1486, %v1518
        %v1525 = vmul.f32 %v1487, %v1518
        %v1526 = vmul.f32 %v1488, %v1518
        %v1527 = vmul.f32 %v1489, %v1518
        %v1528 = vmul.f32 %v1490, %v1518
        %v1529 = vmul.f32 %v1491, %v1518
        %v1530 = vmul.f32 %v1492, %v1518
        %v1531 = vmul.f32 %v1493, %v1518
        %v1532 = vmul.f32 %v1494, %v1518
        %v1533 = vmul.f32 %v1495, %v1518
        %v1534 = vmul.f32 %v1496, %v1518
        %v1535 = vmul.f32 %v1497, %v1518
        %v1536 = vsel %vm1498, %v1482, %v1520
        %v1537 = vsel %vm1499, %v1483, %v1521
        %v1538 = vsel %vm1500, %v1484, %v1522
        %v1539 = vsel %vm1501, %v1485, %v1523
        %v1540 = vsel %vm1502, %v1486, %v1524
        %v1541 = vsel %vm1503, %v1487, %v1525
        %v1542 = vsel %vm1504, %v1488, %v1526
        %v1543 = vsel %vm1505, %v1489, %v1527
        %v1544 = vsel %vm1506, %v1490, %v1528
        %v1545 = vsel %vm1507, %v1491, %v1529
        %v1546 = vsel %vm1508, %v1492, %v1530
        %v1547 = vsel %vm1509, %v1493, %v1531
        %v1548 = vsel %vm1510, %v1494, %v1532
        %v1549 = vsel %vm1511, %v1495, %v1533
        %v1550 = vsel %vm1512, %v1496, %v1534
        %v1551 = vsel %vm1513, %v1497, %v1535
        %v1552 = vld [vmem:[%s5] sm:$0xf]
        %v1553 = vld [vmem:[%s5 + $0x4] sm:$0xf]
        %v1554 = vld [vmem:[%s5 + $0x8] sm:$0xf]
        %v1555 = vld [vmem:[%s5 + $0xc] sm:$0xf]
        %v1556 = vld [vmem:[%s5 + $0x10] sm:$0xf]
        %v1557 = vld [vmem:[%s5 + $0x14] sm:$0xf]
        %v1558 = vld [vmem:[%s5 + $0x18] sm:$0xf]
        %v1559 = vld [vmem:[%s5 + $0x1c] sm:$0xf]
        %v1560 = vld [vmem:[%s5 + $0x20] sm:$0xf]
        %v1561 = vld [vmem:[%s5 + $0x24] sm:$0xf]
        %v1562 = vld [vmem:[%s5 + $0x28] sm:$0xf]
        %v1563 = vld [vmem:[%s5 + $0x2c] sm:$0xf]
        %v1564 = vld [vmem:[%s5 + $0x30] sm:$0xf]
        %v1565 = vld [vmem:[%s5 + $0x34] sm:$0xf]
        %v1566 = vld [vmem:[%s5 + $0x38] sm:$0xf]
        %v1567 = vld [vmem:[%s5 + $0x3c] sm:$0xf]
        %v1568 = vld [vmem:[%s5 + $0x40] sm:$0xf]
        %v1569 = vld [vmem:[%s5 + $0x44] sm:$0xf]
        %v1570 = vld [vmem:[%s5 + $0x48] sm:$0xf]
        %v1571 = vld [vmem:[%s5 + $0x4c] sm:$0xf]
        %v1572 = vld [vmem:[%s5 + $0x50] sm:$0xf]
        %v1573 = vld [vmem:[%s5 + $0x54] sm:$0xf]
        %v1574 = vld [vmem:[%s5 + $0x58] sm:$0xf]
        %v1575 = vld [vmem:[%s5 + $0x5c] sm:$0xf]
        %v1576 = vld [vmem:[%s5 + $0x60] sm:$0xf]
        %v1577 = vld [vmem:[%s5 + $0x64] sm:$0xf]
        %v1578 = vld [vmem:[%s5 + $0x68] sm:$0xf]
        %v1579 = vld [vmem:[%s5 + $0x6c] sm:$0xf]
        %v1580 = vld [vmem:[%s5 + $0x70] sm:$0xf]
        %v1581 = vld [vmem:[%s5 + $0x74] sm:$0xf]
        %v1582 = vld [vmem:[%s5 + $0x78] sm:$0xf]
        %v1583 = vld [vmem:[%s5 + $0x7c] sm:$0xf]
        %v1584 = vld [vmem:[%s5 + $0x80] sm:$0xf]
        %v1585 = vld [vmem:[%s5 + $0x84] sm:$0xf]
        %v1586 = vld [vmem:[%s5 + $0x88] sm:$0xf]
        %v1587 = vld [vmem:[%s5 + $0x8c] sm:$0xf]
        %v1588 = vld [vmem:[%s5 + $0x90] sm:$0xf]
        %v1589 = vld [vmem:[%s5 + $0x94] sm:$0xf]
        %v1590 = vld [vmem:[%s5 + $0x98] sm:$0xf]
        %v1591 = vld [vmem:[%s5 + $0x9c] sm:$0xf]
        %v1592 = vld [vmem:[%s5 + $0xa0] sm:$0xf]
        %v1593 = vld [vmem:[%s5 + $0xa4] sm:$0xf]
        %v1594 = vld [vmem:[%s5 + $0xa8] sm:$0xf]
        %v1595 = vld [vmem:[%s5 + $0xac] sm:$0xf]
        %v1596 = vld [vmem:[%s5 + $0xb0] sm:$0xf]
        %v1597 = vld [vmem:[%s5 + $0xb4] sm:$0xf]
        %v1598 = vld [vmem:[%s5 + $0xb8] sm:$0xf]
        %v1599 = vld [vmem:[%s5 + $0xbc] sm:$0xf]
        %v1600 = vld [vmem:[%s6] sm:$0x1]
        %v1601 = vrot.slane %v1536, 7
        %v1602 = vrot.slane %v1537, 7
        %v1603 = vrot.slane %v1538, 7
        %v1604 = vrot.slane %v1539, 7
        %v1605 = vrot.slane %v1540, 7
        %v1606 = vrot.slane %v1541, 7
        %v1607 = vrot.slane %v1542, 7
        %v1608 = vrot.slane %v1543, 7
        %v1609 = vrot.slane %v1544, 7
        %v1610 = vrot.slane %v1545, 7
        %v1611 = vrot.slane %v1546, 7
        %v1612 = vrot.slane %v1547, 7
        %v1613 = vrot.slane %v1548, 7
        %v1614 = vrot.slane %v1549, 7
        %v1615 = vrot.slane %v1550, 7
        %v1616 = vrot.slane %v1551, 7
        %v1617 = vsel %vm975, %v1615, %v1616
        %v1618 = vsel %vm975, %v1614, %v1615
        %v1619 = vsel %vm975, %v1613, %v1614
        %v1620 = vsel %vm975, %v1612, %v1613
        %v1621 = vsel %vm975, %v1611, %v1612
        %v1622 = vsel %vm975, %v1610, %v1611
        %v1623 = vsel %vm975, %v1609, %v1610
        %v1624 = vsel %vm975, %v1608, %v1609
        %v1625 = vsel %vm975, %v1607, %v1608
        %v1626 = vsel %vm975, %v1606, %v1607
        %v1627 = vsel %vm975, %v1605, %v1606
        %v1628 = vsel %vm975, %v1604, %v1605
        %v1629 = vsel %vm975, %v1603, %v1604
        %v1630 = vsel %vm975, %v1602, %v1603
        %v1631 = vsel %vm975, %v1601, %v1602
        %v1632 = vsel %vm975, %v1616, %v1601
        %v1633 = vsel %vm1008, %v1632, 0.0
        %v1634 = vsel %vm1009, %v1631, 0.0
        %v1635 = vsel %vm1010, %v1630, 0.0
        %v1636 = vsel %vm1011, %v1629, 0.0
        %v1637 = vsel %vm1012, %v1628, 0.0
        %v1638 = vsel %vm1013, %v1627, 0.0
        %v1639 = vsel %vm1014, %v1626, 0.0
        %v1640 = vsel %vm1015, %v1625, 0.0
        %v1641 = vsel %vm1016, %v1624, 0.0
        %v1642 = vsel %vm1017, %v1623, 0.0
        %v1643 = vsel %vm1018, %v1622, 0.0
        %v1644 = vsel %vm1019, %v1621, 0.0
        %v1645 = vsel %vm1020, %v1620, 0.0
        %v1646 = vsel %vm1021, %v1619, 0.0
        %v1647 = vsel %vm1022, %v1618, 0.0
        %v1648 = vsel %vm1023, %v1617, 0.0
        %v1649 = vrot.slane %v1536, 1
        %v1650 = vrot.slane %v1537, 1
        %v1651 = vrot.slane %v1538, 1
        %v1652 = vrot.slane %v1539, 1
        %v1653 = vrot.slane %v1540, 1
        %v1654 = vrot.slane %v1541, 1
        %v1655 = vrot.slane %v1542, 1
        %v1656 = vrot.slane %v1543, 1
        %v1657 = vrot.slane %v1544, 1
        %v1658 = vrot.slane %v1545, 1
        %v1659 = vrot.slane %v1546, 1
        %v1660 = vrot.slane %v1547, 1
        %v1661 = vrot.slane %v1548, 1
        %v1662 = vrot.slane %v1549, 1
        %v1663 = vrot.slane %v1550, 1
        %v1664 = vrot.slane %v1551, 1
        %v1665 = vsel %vm1056, %v1663, %v1664
        %v1666 = vsel %vm1056, %v1662, %v1663
        %v1667 = vsel %vm1056, %v1661, %v1662
        %v1668 = vsel %vm1056, %v1660, %v1661
        %v1669 = vsel %vm1056, %v1659, %v1660
        %v1670 = vsel %vm1056, %v1658, %v1659
        %v1671 = vsel %vm1056, %v1657, %v1658
        %v1672 = vsel %vm1056, %v1656, %v1657
        %v1673 = vsel %vm1056, %v1655, %v1656
        %v1674 = vsel %vm1056, %v1654, %v1655
        %v1675 = vsel %vm1056, %v1653, %v1654
        %v1676 = vsel %vm1056, %v1652, %v1653
        %v1677 = vsel %vm1056, %v1651, %v1652
        %v1678 = vsel %vm1056, %v1650, %v1651
        %v1679 = vsel %vm1056, %v1649, %v1650
        %v1680 = vsel %vm1056, %v1664, %v1649
        %v1681 = vsel %vm1089, %v1679, 0.0
        %v1682 = vsel %vm1090, %v1678, 0.0
        %v1683 = vsel %vm1091, %v1677, 0.0
        %v1684 = vsel %vm1092, %v1676, 0.0
        %v1685 = vsel %vm1093, %v1675, 0.0
        %v1686 = vsel %vm1094, %v1674, 0.0
        %v1687 = vsel %vm1095, %v1673, 0.0
        %v1688 = vsel %vm1096, %v1672, 0.0
        %v1689 = vsel %vm1097, %v1671, 0.0
        %v1690 = vsel %vm1098, %v1670, 0.0
        %v1691 = vsel %vm1099, %v1669, 0.0
        %v1692 = vsel %vm1100, %v1668, 0.0
        %v1693 = vsel %vm1101, %v1667, 0.0
        %v1694 = vsel %vm1102, %v1666, 0.0
        %v1695 = vsel %vm1103, %v1665, 0.0
        %v1696 = vsel %vm1104, %v1680, 0.0
        %v1697 = vpack.c.bf16 %v1634, %v1633
        %v1698 = vpack.c.bf16 %v1537, %v1536
        %v1699 = vpack.c.bf16 %v1682, %v1681
        %v1700 = vpack.c.bf16 %v1636, %v1635
        %v1701 = vpack.c.bf16 %v1539, %v1538
        %v1702 = vpack.c.bf16 %v1684, %v1683
        %v1703 = vpack.c.bf16 %v1638, %v1637
        %v1704 = vpack.c.bf16 %v1541, %v1540
        %v1705 = vpack.c.bf16 %v1686, %v1685
        %v1706 = vpack.c.bf16 %v1640, %v1639
        %v1707 = vpack.c.bf16 %v1543, %v1542
        %v1708 = vpack.c.bf16 %v1688, %v1687
        %v1709 = vpack.c.bf16 %v1642, %v1641
        %v1710 = vpack.c.bf16 %v1545, %v1544
        %v1711 = vpack.c.bf16 %v1690, %v1689
        %v1712 = vpack.c.bf16 %v1644, %v1643
        %v1713 = vpack.c.bf16 %v1547, %v1546
        %v1714 = vpack.c.bf16 %v1692, %v1691
        %v1715 = vpack.c.bf16 %v1646, %v1645
        %v1716 = vpack.c.bf16 %v1549, %v1548
        %v1717 = vpack.c.bf16 %v1694, %v1693
        %v1718 = vpack.c.bf16 %v1648, %v1647
        %v1719 = vpack.c.bf16 %v1551, %v1550
        %v1720 = vpack.c.bf16 %v1696, %v1695
        %v1722 = vlaneseq
        %v1723 = vshrl.u32 %v1722, 7
        %v1724 = vsub.s32 0, %v1723
        %v1725 = vrot.slane %v1600, %v1724
        %v1775 = vunpack.c.l.b16 %v1552
        %v1776 = vunpack.c.l.b16 %v1553
        %v1777 = vunpack.c.l.b16 %v1554
        %v1778 = vunpack.c.l.b16 %v1555
        %v1779 = vunpack.c.l.b16 %v1556
        %v1780 = vunpack.c.l.b16 %v1557
        %v1781 = vunpack.c.l.b16 %v1558
        %v1782 = vunpack.c.l.b16 %v1559
        %v1783 = vunpack.c.l.b16 %v1560
        %v1784 = vunpack.c.l.b16 %v1561
        %v1785 = vunpack.c.l.b16 %v1562
        %v1786 = vunpack.c.l.b16 %v1563
        %v1787 = vunpack.c.l.b16 %v1564
        %v1788 = vunpack.c.l.b16 %v1565
        %v1789 = vunpack.c.l.b16 %v1566
        %v1790 = vunpack.c.l.b16 %v1567
        %v1791 = vunpack.c.l.b16 %v1568
        %v1792 = vunpack.c.l.b16 %v1569
        %v1793 = vunpack.c.l.b16 %v1570
        %v1794 = vunpack.c.l.b16 %v1571
        %v1795 = vunpack.c.l.b16 %v1572
        %v1796 = vunpack.c.l.b16 %v1573
        %v1797 = vunpack.c.l.b16 %v1574
        %v1798 = vunpack.c.l.b16 %v1575
        %v1799 = vunpack.c.l.b16 %v1576
        %v1800 = vunpack.c.l.b16 %v1577
        %v1801 = vunpack.c.l.b16 %v1578
        %v1802 = vunpack.c.l.b16 %v1579
        %v1803 = vunpack.c.l.b16 %v1580
        %v1804 = vunpack.c.l.b16 %v1581
        %v1805 = vunpack.c.l.b16 %v1582
        %v1806 = vunpack.c.l.b16 %v1583
        %v1807 = vunpack.c.l.b16 %v1584
        %v1808 = vunpack.c.l.b16 %v1585
        %v1809 = vunpack.c.l.b16 %v1586
        %v1810 = vunpack.c.l.b16 %v1587
        %v1811 = vunpack.c.l.b16 %v1588
        %v1812 = vunpack.c.l.b16 %v1589
        %v1813 = vunpack.c.l.b16 %v1590
        %v1814 = vunpack.c.l.b16 %v1591
        %v1815 = vunpack.c.l.b16 %v1592
        %v1816 = vunpack.c.l.b16 %v1593
        %v1817 = vunpack.c.l.b16 %v1594
        %v1818 = vunpack.c.l.b16 %v1595
        %v1819 = vunpack.c.l.b16 %v1596
        %v1820 = vunpack.c.l.b16 %v1597
        %v1821 = vunpack.c.l.b16 %v1598
        %v1822 = vunpack.c.l.b16 %v1599
        %v1823 = vpack.c.b16 %v1776, %v1775
        %v1824 = vpack.c.b16 %v1778, %v1777
        %v1825 = vpack.c.b16 %v1780, %v1779
        %v1826 = vpack.c.b16 %v1782, %v1781
        %v1827 = vpack.c.b16 %v1784, %v1783
        %v1828 = vpack.c.b16 %v1786, %v1785
        %v1829 = vpack.c.b16 %v1788, %v1787
        %v1830 = vpack.c.b16 %v1790, %v1789
        %v1831 = vpack.c.b16 %v1792, %v1791
        %v1832 = vpack.c.b16 %v1794, %v1793
        %v1833 = vpack.c.b16 %v1796, %v1795
        %v1834 = vpack.c.b16 %v1798, %v1797
        %v1835 = vpack.c.b16 %v1800, %v1799
        %v1836 = vpack.c.b16 %v1802, %v1801
        %v1837 = vpack.c.b16 %v1804, %v1803
        %v1838 = vpack.c.b16 %v1806, %v1805
        %v1839 = vpack.c.b16 %v1808, %v1807
        %v1840 = vpack.c.b16 %v1810, %v1809
        %v1841 = vpack.c.b16 %v1812, %v1811
        %v1842 = vpack.c.b16 %v1814, %v1813
        %v1843 = vpack.c.b16 %v1816, %v1815
        %v1844 = vpack.c.b16 %v1818, %v1817
        %v1845 = vpack.c.b16 %v1820, %v1819
        %v1846 = vpack.c.b16 %v1822, %v1821
        %1871 = vmatprep.subr.bf16.mxu0 0
        %1872 = vmatpush1.bf16.msra.mxu0 %v1823
        %1873 = vmatprep.subr.bf16.mxu0 0
        %1874 = vmatpush1.bf16.msra.mxu0 %v1824
        %1875 = vmatprep.subr.bf16.mxu0 0
        %1876 = vmatpush1.bf16.msra.mxu0 %v1825
        %1877 = vmatprep.subr.bf16.mxu0 0
        %1878 = vmatpush1.bf16.msra.mxu0 %v1826
        %1879 = vmatprep.subr.bf16.mxu0 0
        %1880 = vmatpush1.bf16.msra.mxu0 %v1827
        %1881 = vmatprep.subr.bf16.mxu0 0
        %1882 = vmatpush1.bf16.msra.mxu0 %v1828
        %1883 = vmatprep.subr.bf16.mxu0 0
        %1884 = vmatpush1.bf16.msra.mxu0 %v1829
        %1885 = vmatprep.subr.bf16.mxu0 0
        %1886 = vmatpush1.bf16.msra.mxu0 %v1830
        %1887 = vmatprep.subr.bf16.mxu0 0
        %1888 = vmatpush1.bf16.msra.mxu0 %v1831
        %1889 = vmatprep.subr.bf16.mxu0 0
        %1890 = vmatpush1.bf16.msra.mxu0 %v1832
        %1891 = vmatprep.subr.bf16.mxu0 0
        %1892 = vmatpush1.bf16.msra.mxu0 %v1833
        %1893 = vmatprep.subr.bf16.mxu0 0
        %1894 = vmatpush1.bf16.msra.mxu0 %v1834
        %1895 = vmatprep.subr.bf16.mxu0 0
        %1896 = vmatpush1.bf16.msra.mxu0 %v1835
        %1897 = vmatprep.subr.bf16.mxu0 0
        %1898 = vmatpush1.bf16.msra.mxu0 %v1836
        %1899 = vmatprep.subr.bf16.mxu0 0
        %1900 = vmatpush1.bf16.msra.mxu0 %v1837
        %1901 = vmatprep.subr.bf16.mxu0 0
        %1902 = vmatpush1.bf16.msra.mxu0 %v1838
        %1903 = vmatprep.mubr.bf16.mxu0 %v1698
        %1904 = vmatmul.mubr.bf16.gmra.mrb[0].mxu0 %v1697
        %v1905 = vpop.f32.mrb[0].mxu0
        %v1906 = vadd.f32 %v1725, %v1905
        %v1907 = vpop.f32.mrb[0].mxu0
        %v1908 = vpop.f32.mrb[0].mxu0
        %v1909 = vadd.f32 %v1725, %v1908
        %v1910 = vpop.f32.mrb[0].mxu0
        %1911 = vmatprep.mubr.bf16.mxu0 %v1701
        %1912 = vmatmul.mubr.bf16.gmra.mrb[0].mxu0 %v1700
        %v1913 = vpop.f32.mrb[0].mxu0
        %v1914 = vadd.f32 %v1725, %v1913
        %v1915 = vpop.f32.mrb[0].mxu0
        %v1916 = vpop.f32.mrb[0].mxu0
        %v1917 = vadd.f32 %v1725, %v1916
        %v1918 = vpop.f32.mrb[0].mxu0
        %1919 = vmatprep.mubr.bf16.mxu0 %v1704
        %1920 = vmatmul.mubr.bf16.gmra.mrb[0].mxu0 %v1703
        %v1921 = vpop.f32.mrb[0].mxu0
        %v1922 = vadd.f32 %v1725, %v1921
        %v1923 = vpop.f32.mrb[0].mxu0
        %v1924 = vpop.f32.mrb[0].mxu0
        %v1925 = vadd.f32 %v1725, %v1924
        %v1926 = vpop.f32.mrb[0].mxu0
        %1927 = vmatprep.mubr.bf16.mxu0 %v1707
        %1928 = vmatmul.mubr.bf16.gmra.mrb[0].mxu0 %v1706
        %v1929 = vpop.f32.mrb[0].mxu0
        %v1930 = vadd.f32 %v1725, %v1929
        %v1931 = vpop.f32.mrb[0].mxu0
        %v1932 = vpop.f32.mrb[0].mxu0
        %v1933 = vadd.f32 %v1725, %v1932
        %v1934 = vpop.f32.mrb[0].mxu0
        %1935 = vmatprep.mubr.bf16.mxu0 %v1710
        %1936 = vmatmul.mubr.bf16.gmra.mrb[0].mxu0 %v1709
        %v1937 = vpop.f32.mrb[0].mxu0
        %v1938 = vadd.f32 %v1725, %v1937
        %v1939 = vpop.f32.mrb[0].mxu0
        %v1940 = vpop.f32.mrb[0].mxu0
        %v1941 = vadd.f32 %v1725, %v1940
        %v1942 = vpop.f32.mrb[0].mxu0
        %1943 = vmatprep.mubr.bf16.mxu0 %v1713
        %1944 = vmatmul.mubr.bf16.gmra.mrb[0].mxu0 %v1712
        %v1945 = vpop.f32.mrb[0].mxu0
        %v1946 = vadd.f32 %v1725, %v1945
        %v1947 = vpop.f32.mrb[0].mxu0
        %v1948 = vpop.f32.mrb[0].mxu0
        %v1949 = vadd.f32 %v1725, %v1948
        %v1950 = vpop.f32.mrb[0].mxu0
        %1951 = vmatprep.mubr.bf16.mxu0 %v1716
        %1952 = vmatmul.mubr.bf16.gmra.mrb[0].mxu0 %v1715
        %v1953 = vpop.f32.mrb[0].mxu0
        %v1954 = vadd.f32 %v1725, %v1953
        %v1955 = vpop.f32.mrb[0].mxu0
        %v1956 = vpop.f32.mrb[0].mxu0
        %v1957 = vadd.f32 %v1725, %v1956
        %v1958 = vpop.f32.mrb[0].mxu0
        %1959 = vmatprep.mubr.bf16.mxu0 %v1719
        %1960 = vmatmul.mubr.bf16.gmra.mrb[0].mxu0 %v1718
        %v1961 = vpop.f32.mrb[0].mxu0
        %v1962 = vadd.f32 %v1725, %v1961
        %v1963 = vpop.f32.mrb[0].mxu0
        %v1964 = vpop.f32.mrb[0].mxu0
        %v1965 = vadd.f32 %v1725, %v1964
        %v1966 = vpop.f32.mrb[0].mxu0
        %1967 = vdwg.mxu0
        %1968 = vmatprep.subr.bf16.mxu0 0
        %1969 = vmatpush1.bf16.msra.mxu0 %v1839
        %1970 = vmatprep.subr.bf16.mxu0 0
        %1971 = vmatpush1.bf16.msra.mxu0 %v1840
        %1972 = vmatprep.subr.bf16.mxu0 0
        %1973 = vmatpush1.bf16.msra.mxu0 %v1841
        %1974 = vmatprep.subr.bf16.mxu0 0
        %1975 = vmatpush1.bf16.msra.mxu0 %v1842
        %1976 = vmatprep.subr.bf16.mxu0 0
        %1977 = vmatpush1.bf16.msra.mxu0 %v1843
        %1978 = vmatprep.subr.bf16.mxu0 0
        %1979 = vmatpush1.bf16.msra.mxu0 %v1844
        %1980 = vmatprep.subr.bf16.mxu0 0
        %1981 = vmatpush1.bf16.msra.mxu0 %v1845
        %1982 = vmatprep.subr.bf16.mxu0 0
        %1983 = vmatpush1.bf16.msra.mxu0 %v1846
        %1984 = vmatprep.subr.bf16.mxu0 0
        %1985 = vmatpush1.bf16.msra.mxu0 0
        %1986 = vmatprep.subr.bf16.mxu0 0
        %1987 = vmatpush1.bf16.msra.mxu0 0
        %1988 = vmatprep.subr.bf16.mxu0 0
        %1989 = vmatpush1.bf16.msra.mxu0 0
        %1990 = vmatprep.subr.bf16.mxu0 0
        %1991 = vmatpush1.bf16.msra.mxu0 0
        %1992 = vmatprep.subr.bf16.mxu0 0
        %1993 = vmatpush1.bf16.msra.mxu0 0
        %1994 = vmatprep.subr.bf16.mxu0 0
        %1995 = vmatpush1.bf16.msra.mxu0 0
        %1996 = vmatprep.subr.bf16.mxu0 0
        %1997 = vmatpush1.bf16.msra.mxu0 0
        %1998 = vmatprep.subr.bf16.mxu0 0
        %1999 = vmatpush1.bf16.msra.mxu0 0
        %2000 = vmatprep.mubr.bf16.mxu0 0
        %2001 = vmatmul.mubr.bf16.gmra.mrb[0].mxu0 %v1699
        %v2002 = vpop.f32.mrb[0].mxu0
        %v2003 = vadd.f32 %v1906, %v2002
        %v2004 = vpop.f32.mrb[0].mxu0
        %v2005 = vpop.f32.mrb[0].mxu0
        %v2006 = vadd.f32 %v1909, %v2005
        %v2007 = vpop.f32.mrb[0].mxu0
        %2008 = vmatprep.mubr.bf16.mxu0 0
        %2009 = vmatmul.mubr.bf16.gmra.mrb[0].mxu0 %v1702
        %v2010 = vpop.f32.mrb[0].mxu0
        %v2011 = vadd.f32 %v1914, %v2010
        %v2012 = vpop.f32.mrb[0].mxu0
        %v2013 = vpop.f32.mrb[0].mxu0
        %v2014 = vadd.f32 %v1917, %v2013
        %v2015 = vpop.f32.mrb[0].mxu0
        %2016 = vmatprep.mubr.bf16.mxu0 0
        %2017 = vmatmul.mubr.bf16.gmra.mrb[0].mxu0 %v1705
        %v2018 = vpop.f32.mrb[0].mxu0
        %v2019 = vadd.f32 %v1922, %v2018
        %v2020 = vpop.f32.mrb[0].mxu0
        %v2021 = vpop.f32.mrb[0].mxu0
        %v2022 = vadd.f32 %v1925, %v2021
        %v2023 = vpop.f32.mrb[0].mxu0
        %2024 = vmatprep.mubr.bf16.mxu0 0
        %2025 = vmatmul.mubr.bf16.gmra.mrb[0].mxu0 %v1708
        %v2026 = vpop.f32.mrb[0].mxu0
        %v2027 = vadd.f32 %v1930, %v2026
        %v2028 = vpop.f32.mrb[0].mxu0
        %v2029 = vpop.f32.mrb[0].mxu0
        %v2030 = vadd.f32 %v1933, %v2029
        %v2031 = vpop.f32.mrb[0].mxu0
        %2032 = vmatprep.mubr.bf16.mxu0 0
        %2033 = vmatmul.mubr.bf16.gmra.mrb[0].mxu0 %v1711
        %v2034 = vpop.f32.mrb[0].mxu0
        %v2035 = vadd.f32 %v1938, %v2034
        %v2036 = vpop.f32.mrb[0].mxu0
        %v2037 = vpop.f32.mrb[0].mxu0
        %v2038 = vadd.f32 %v1941, %v2037
        %v2039 = vpop.f32.mrb[0].mxu0
        %2040 = vmatprep.mubr.bf16.mxu0 0
        %2041 = vmatmul.mubr.bf16.gmra.mrb[0].mxu0 %v1714
        %v2042 = vpop.f32.mrb[0].mxu0
        %v2043 = vadd.f32 %v1946, %v2042
        %v2044 = vpop.f32.mrb[0].mxu0
        %v2045 = vpop.f32.mrb[0].mxu0
        %v2046 = vadd.f32 %v1949, %v2045
        %v2047 = vpop.f32.mrb[0].mxu0
        %2048 = vmatprep.mubr.bf16.mxu0 0
        %2049 = vmatmul.mubr.bf16.gmra.mrb[0].mxu0 %v1717
        %v2050 = vpop.f32.mrb[0].mxu0
        %v2051 = vadd.f32 %v1954, %v2050
        %v2052 = vpop.f32.mrb[0].mxu0
        %v2053 = vpop.f32.mrb[0].mxu0
        %v2054 = vadd.f32 %v1957, %v2053
        %v2055 = vpop.f32.mrb[0].mxu0
        %2056 = vmatprep.mubr.bf16.mxu0 0
        %2057 = vmatmul.mubr.bf16.gmra.mrb[0].mxu0 %v1720
        %v2058 = vpop.f32.mrb[0].mxu0
        %v2059 = vadd.f32 %v1962, %v2058
        %v2060 = vpop.f32.mrb[0].mxu0
        %v2061 = vpop.f32.mrb[0].mxu0
        %v2062 = vadd.f32 %v1965, %v2061
        %v2063 = vpop.f32.mrb[0].mxu0
        %2064 = vdwg.mxu0
        %v2065 = vmul.f32 %v2003, %v1458
        %v2066 = vmul.f32 %v2006, %v1458
        %v2067 = vmul.f32 %v2011, %v1458
        %v2068 = vmul.f32 %v2014, %v1458
        %v2069 = vmul.f32 %v2019, %v1458
        %v2070 = vmul.f32 %v2022, %v1458
        %v2071 = vmul.f32 %v2027, %v1458
        %v2072 = vmul.f32 %v2030, %v1458
        %v2073 = vmul.f32 %v2035, %v1458
        %v2074 = vmul.f32 %v2038, %v1458
        %v2075 = vmul.f32 %v2043, %v1458
        %v2076 = vmul.f32 %v2046, %v1458
        %v2077 = vmul.f32 %v2051, %v1458
        %v2078 = vmul.f32 %v2054, %v1458
        %v2079 = vmul.f32 %v2059, %v1458
        %v2080 = vmul.f32 %v2062, %v1458
        %v2081 = vadd.f32 %v2065, %v1480
        %v2082 = vadd.f32 %v2066, %v1480
        %v2083 = vadd.f32 %v2067, %v1480
        %v2084 = vadd.f32 %v2068, %v1480
        %v2085 = vadd.f32 %v2069, %v1480
        %v2086 = vadd.f32 %v2070, %v1480
        %v2087 = vadd.f32 %v2071, %v1480
        %v2088 = vadd.f32 %v2072, %v1480
        %v2089 = vadd.f32 %v2073, %v1480
        %v2090 = vadd.f32 %v2074, %v1480
        %v2091 = vadd.f32 %v2075, %v1480
        %v2092 = vadd.f32 %v2076, %v1480
        %v2093 = vadd.f32 %v2077, %v1480
        %v2094 = vadd.f32 %v2078, %v1480
        %v2095 = vadd.f32 %v2079, %v1480
        %v2096 = vadd.f32 %v2080, %v1480
        %vm2097 = vcmp.ge.f32.partialorder %v2081, 0.0
        %vm2098 = vcmp.ge.f32.partialorder %v2082, 0.0
        %vm2099 = vcmp.ge.f32.partialorder %v2083, 0.0
        %vm2100 = vcmp.ge.f32.partialorder %v2084, 0.0
        %vm2101 = vcmp.ge.f32.partialorder %v2085, 0.0
        %vm2102 = vcmp.ge.f32.partialorder %v2086, 0.0
        %vm2103 = vcmp.ge.f32.partialorder %v2087, 0.0
        %vm2104 = vcmp.ge.f32.partialorder %v2088, 0.0
        %vm2105 = vcmp.ge.f32.partialorder %v2089, 0.0
        %vm2106 = vcmp.ge.f32.partialorder %v2090, 0.0
        %vm2107 = vcmp.ge.f32.partialorder %v2091, 0.0
        %vm2108 = vcmp.ge.f32.partialorder %v2092, 0.0
        %vm2109 = vcmp.ge.f32.partialorder %v2093, 0.0
        %vm2110 = vcmp.ge.f32.partialorder %v2094, 0.0
        %vm2111 = vcmp.ge.f32.partialorder %v2095, 0.0
        %vm2112 = vcmp.ge.f32.partialorder %v2096, 0.0
        %v2113 = vmul.f32 %v2081, %v1518
        %v2114 = vmul.f32 %v2082, %v1518
        %v2115 = vmul.f32 %v2083, %v1518
        %v2116 = vmul.f32 %v2084, %v1518
        %v2117 = vmul.f32 %v2085, %v1518
        %v2118 = vmul.f32 %v2086, %v1518
        %v2119 = vmul.f32 %v2087, %v1518
        %v2120 = vmul.f32 %v2088, %v1518
        %v2121 = vmul.f32 %v2089, %v1518
        %v2122 = vmul.f32 %v2090, %v1518
        %v2123 = vmul.f32 %v2091, %v1518
        %v2124 = vmul.f32 %v2092, %v1518
        %v2125 = vmul.f32 %v2093, %v1518
        %v2126 = vmul.f32 %v2094, %v1518
        %v2127 = vmul.f32 %v2095, %v1518
        %v2128 = vmul.f32 %v2096, %v1518
        %v2129 = vsel %vm2097, %v2081, %v2113
        %v2130 = vsel %vm2098, %v2082, %v2114
        %v2131 = vsel %vm2099, %v2083, %v2115
        %v2132 = vsel %vm2100, %v2084, %v2116
        %v2133 = vsel %vm2101, %v2085, %v2117
        %v2134 = vsel %vm2102, %v2086, %v2118
        %v2135 = vsel %vm2103, %v2087, %v2119
        %v2136 = vsel %vm2104, %v2088, %v2120
        %v2137 = vsel %vm2105, %v2089, %v2121
        %v2138 = vsel %vm2106, %v2090, %v2122
        %v2139 = vsel %vm2107, %v2091, %v2123
        %v2140 = vsel %vm2108, %v2092, %v2124
        %v2141 = vsel %vm2109, %v2093, %v2125
        %v2142 = vsel %vm2110, %v2094, %v2126
        %v2143 = vsel %vm2111, %v2095, %v2127
        %v2144 = vsel %vm2112, %v2096, %v2128
        %s2145 = scalar_lea.vmem %s5, 192
        %v2146 = vld [vmem:[%s2145] sm:$0xf]
        %v2147 = vld [vmem:[%s2145 + $0x4] sm:$0xf]
        %v2148 = vld [vmem:[%s2145 + $0x8] sm:$0xf]
        %v2149 = vld [vmem:[%s2145 + $0xc] sm:$0xf]
        %v2150 = vld [vmem:[%s2145 + $0x10] sm:$0xf]
        %v2151 = vld [vmem:[%s2145 + $0x14] sm:$0xf]
        %v2152 = vld [vmem:[%s2145 + $0x18] sm:$0xf]
        %v2153 = vld [vmem:[%s2145 + $0x1c] sm:$0xf]
        %v2154 = vld [vmem:[%s2145 + $0x20] sm:$0xf]
        %v2155 = vld [vmem:[%s2145 + $0x24] sm:$0xf]
        %v2156 = vld [vmem:[%s2145 + $0x28] sm:$0xf]
        %v2157 = vld [vmem:[%s2145 + $0x2c] sm:$0xf]
        %v2158 = vld [vmem:[%s2145 + $0x30] sm:$0xf]
        %v2159 = vld [vmem:[%s2145 + $0x34] sm:$0xf]
        %v2160 = vld [vmem:[%s2145 + $0x38] sm:$0xf]
        %v2161 = vld [vmem:[%s2145 + $0x3c] sm:$0xf]
        %v2162 = vld [vmem:[%s2145 + $0x40] sm:$0xf]
        %v2163 = vld [vmem:[%s2145 + $0x44] sm:$0xf]
        %v2164 = vld [vmem:[%s2145 + $0x48] sm:$0xf]
        %v2165 = vld [vmem:[%s2145 + $0x4c] sm:$0xf]
        %v2166 = vld [vmem:[%s2145 + $0x50] sm:$0xf]
        %v2167 = vld [vmem:[%s2145 + $0x54] sm:$0xf]
        %v2168 = vld [vmem:[%s2145 + $0x58] sm:$0xf]
        %v2169 = vld [vmem:[%s2145 + $0x5c] sm:$0xf]
        %v2170 = vld [vmem:[%s2145 + $0x60] sm:$0xf]
        %v2171 = vld [vmem:[%s2145 + $0x64] sm:$0xf]
        %v2172 = vld [vmem:[%s2145 + $0x68] sm:$0xf]
        %v2173 = vld [vmem:[%s2145 + $0x6c] sm:$0xf]
        %v2174 = vld [vmem:[%s2145 + $0x70] sm:$0xf]
        %v2175 = vld [vmem:[%s2145 + $0x74] sm:$0xf]
        %v2176 = vld [vmem:[%s2145 + $0x78] sm:$0xf]
        %v2177 = vld [vmem:[%s2145 + $0x7c] sm:$0xf]
        %v2178 = vld [vmem:[%s2145 + $0x80] sm:$0xf]
        %v2179 = vld [vmem:[%s2145 + $0x84] sm:$0xf]
        %v2180 = vld [vmem:[%s2145 + $0x88] sm:$0xf]
        %v2181 = vld [vmem:[%s2145 + $0x8c] sm:$0xf]
        %v2182 = vld [vmem:[%s2145 + $0x90] sm:$0xf]
        %v2183 = vld [vmem:[%s2145 + $0x94] sm:$0xf]
        %v2184 = vld [vmem:[%s2145 + $0x98] sm:$0xf]
        %v2185 = vld [vmem:[%s2145 + $0x9c] sm:$0xf]
        %v2186 = vld [vmem:[%s2145 + $0xa0] sm:$0xf]
        %v2187 = vld [vmem:[%s2145 + $0xa4] sm:$0xf]
        %v2188 = vld [vmem:[%s2145 + $0xa8] sm:$0xf]
        %v2189 = vld [vmem:[%s2145 + $0xac] sm:$0xf]
        %v2190 = vld [vmem:[%s2145 + $0xb0] sm:$0xf]
        %v2191 = vld [vmem:[%s2145 + $0xb4] sm:$0xf]
        %v2192 = vld [vmem:[%s2145 + $0xb8] sm:$0xf]
        %v2193 = vld [vmem:[%s2145 + $0xbc] sm:$0xf]
        %s2194 = scalar_lea.vmem %s6, 1
        %v2195 = vld [vmem:[%s2194] sm:$0x1]
        %v2196 = vrot.slane %v2129, 7
        %v2197 = vrot.slane %v2130, 7
        %v2198 = vrot.slane %v2131, 7
        %v2199 = vrot.slane %v2132, 7
        %v2200 = vrot.slane %v2133, 7
        %v2201 = vrot.slane %v2134, 7
        %v2202 = vrot.slane %v2135, 7
        %v2203 = vrot.slane %v2136, 7
        %v2204 = vrot.slane %v2137, 7
        %v2205 = vrot.slane %v2138, 7
        %v2206 = vrot.slane %v2139, 7
        %v2207 = vrot.slane %v2140, 7
        %v2208 = vrot.slane %v2141, 7
        %v2209 = vrot.slane %v2142, 7
        %v2210 = vrot.slane %v2143, 7
        %v2211 = vrot.slane %v2144, 7
        %v2212 = vsel %vm975, %v2210, %v2211
        %v2213 = vsel %vm975, %v2209, %v2210
        %v2214 = vsel %vm975, %v2208, %v2209
        %v2215 = vsel %vm975, %v2207, %v2208
        %v2216 = vsel %vm975, %v2206, %v2207
        %v2217 = vsel %vm975, %v2205, %v2206
        %v2218 = vsel %vm975, %v2204, %v2205
        %v2219 = vsel %vm975, %v2203, %v2204
        %v2220 = vsel %vm975, %v2202, %v2203
        %v2221 = vsel %vm975, %v2201, %v2202
        %v2222 = vsel %vm975, %v2200, %v2201
        %v2223 = vsel %vm975, %v2199, %v2200
        %v2224 = vsel %vm975, %v2198, %v2199
        %v2225 = vsel %vm975, %v2197, %v2198
        %v2226 = vsel %vm975, %v2196, %v2197
        %v2227 = vsel %vm975, %v2211, %v2196
        %v2228 = vsel %vm1008, %v2227, 0.0
        %v2229 = vsel %vm1009, %v2226, 0.0
        %v2230 = vsel %vm1010, %v2225, 0.0
        %v2231 = vsel %vm1011, %v2224, 0.0
        %v2232 = vsel %vm1012, %v2223, 0.0
        %v2233 = vsel %vm1013, %v2222, 0.0
        %v2234 = vsel %vm1014, %v2221, 0.0
        %v2235 = vsel %vm1015, %v2220, 0.0
        %v2236 = vsel %vm1016, %v2219, 0.0
        %v2237 = vsel %vm1017, %v2218, 0.0
        %v2238 = vsel %vm1018, %v2217, 0.0
        %v2239 = vsel %vm1019, %v2216, 0.0
        %v2240 = vsel %vm1020, %v2215, 0.0
        %v2241 = vsel %vm1021, %v2214, 0.0
        %v2242 = vsel %vm1022, %v2213, 0.0
        %v2243 = vsel %vm1023, %v2212, 0.0
        %v2244 = vrot.slane %v2129, 1
        %v2245 = vrot.slane %v2130, 1
        %v2246 = vrot.slane %v2131, 1
        %v2247 = vrot.slane %v2132, 1
        %v2248 = vrot.slane %v2133, 1
        %v2249 = vrot.slane %v2134, 1
        %v2250 = vrot.slane %v2135, 1
        %v2251 = vrot.slane %v2136, 1
        %v2252 = vrot.slane %v2137, 1
        %v2253 = vrot.slane %v2138, 1
        %v2254 = vrot.slane %v2139, 1
        %v2255 = vrot.slane %v2140, 1
        %v2256 = vrot.slane %v2141, 1
        %v2257 = vrot.slane %v2142, 1
        %v2258 = vrot.slane %v2143, 1
        %v2259 = vrot.slane %v2144, 1
        %v2260 = vsel %vm1056, %v2258, %v2259
        %v2261 = vsel %vm1056, %v2257, %v2258
        %v2262 = vsel %vm1056, %v2256, %v2257
        %v2263 = vsel %vm1056, %v2255, %v2256
        %v2264 = vsel %vm1056, %v2254, %v2255
        %v2265 = vsel %vm1056, %v2253, %v2254
        %v2266 = vsel %vm1056, %v2252, %v2253
        %v2267 = vsel %vm1056, %v2251, %v2252
        %v2268 = vsel %vm1056, %v2250, %v2251
        %v2269 = vsel %vm1056, %v2249, %v2250
        %v2270 = vsel %vm1056, %v2248, %v2249
        %v2271 = vsel %vm1056, %v2247, %v2248
        %v2272 = vsel %vm1056, %v2246, %v2247
        %v2273 = vsel %vm1056, %v2245, %v2246
        %v2274 = vsel %vm1056, %v2244, %v2245
        %v2275 = vsel %vm1056, %v2259, %v2244
        %v2276 = vsel %vm1089, %v2274, 0.0
        %v2277 = vsel %vm1090, %v2273, 0.0
        %v2278 = vsel %vm1091, %v2272, 0.0
        %v2279 = vsel %vm1092, %v2271, 0.0
        %v2280 = vsel %vm1093, %v2270, 0.0
        %v2281 = vsel %vm1094, %v2269, 0.0
        %v2282 = vsel %vm1095, %v2268, 0.0
        %v2283 = vsel %vm1096, %v2267, 0.0
        %v2284 = vsel %vm1097, %v2266, 0.0
        %v2285 = vsel %vm1098, %v2265, 0.0
        %v2286 = vsel %vm1099, %v2264, 0.0
        %v2287 = vsel %vm1100, %v2263, 0.0
        %v2288 = vsel %vm1101, %v2262, 0.0
        %v2289 = vsel %vm1102, %v2261, 0.0
        %v2290 = vsel %vm1103, %v2260, 0.0
        %v2291 = vsel %vm1104, %v2275, 0.0
        %v2292 = vpack.c.bf16 %v2229, %v2228
        %v2293 = vpack.c.bf16 %v2130, %v2129
        %v2294 = vpack.c.bf16 %v2277, %v2276
        %v2295 = vpack.c.bf16 %v2231, %v2230
        %v2296 = vpack.c.bf16 %v2132, %v2131
        %v2297 = vpack.c.bf16 %v2279, %v2278
        %v2298 = vpack.c.bf16 %v2233, %v2232
        %v2299 = vpack.c.bf16 %v2134, %v2133
        %v2300 = vpack.c.bf16 %v2281, %v2280
        %v2301 = vpack.c.bf16 %v2235, %v2234
        %v2302 = vpack.c.bf16 %v2136, %v2135
        %v2303 = vpack.c.bf16 %v2283, %v2282
        %v2304 = vpack.c.bf16 %v2237, %v2236
        %v2305 = vpack.c.bf16 %v2138, %v2137
        %v2306 = vpack.c.bf16 %v2285, %v2284
        %v2307 = vpack.c.bf16 %v2239, %v2238
        %v2308 = vpack.c.bf16 %v2140, %v2139
        %v2309 = vpack.c.bf16 %v2287, %v2286
        %v2310 = vpack.c.bf16 %v2241, %v2240
        %v2311 = vpack.c.bf16 %v2142, %v2141
        %v2312 = vpack.c.bf16 %v2289, %v2288
        %v2313 = vpack.c.bf16 %v2243, %v2242
        %v2314 = vpack.c.bf16 %v2144, %v2143
        %v2315 = vpack.c.bf16 %v2291, %v2290
        %v2317 = vlaneseq
        %v2318 = vshrl.u32 %v2317, 7
        %v2319 = vsub.s32 0, %v2318
        %v2320 = vrot.slane %v2195, %v2319
        %v2370 = vunpack.c.l.b16 %v2146
        %v2371 = vunpack.c.l.b16 %v2147
        %v2372 = vunpack.c.l.b16 %v2148
        %v2373 = vunpack.c.l.b16 %v2149
        %v2374 = vunpack.c.l.b16 %v2150
        %v2375 = vunpack.c.l.b16 %v2151
        %v2376 = vunpack.c.l.b16 %v2152
        %v2377 = vunpack.c.l.b16 %v2153
        %v2378 = vunpack.c.l.b16 %v2154
        %v2379 = vunpack.c.l.b16 %v2155
        %v2380 = vunpack.c.l.b16 %v2156
        %v2381 = vunpack.c.l.b16 %v2157
        %v2382 = vunpack.c.l.b16 %v2158
        %v2383 = vunpack.c.l.b16 %v2159
        %v2384 = vunpack.c.l.b16 %v2160
        %v2385 = vunpack.c.l.b16 %v2161
        %v2386 = vunpack.c.l.b16 %v2162
        %v2387 = vunpack.c.l.b16 %v2163
        %v2388 = vunpack.c.l.b16 %v2164
        %v2389 = vunpack.c.l.b16 %v2165
        %v2390 = vunpack.c.l.b16 %v2166
        %v2391 = vunpack.c.l.b16 %v2167
        %v2392 = vunpack.c.l.b16 %v2168
        %v2393 = vunpack.c.l.b16 %v2169
        %v2394 = vunpack.c.l.b16 %v2170
        %v2395 = vunpack.c.l.b16 %v2171
        %v2396 = vunpack.c.l.b16 %v2172
        %v2397 = vunpack.c.l.b16 %v2173
        %v2398 = vunpack.c.l.b16 %v2174
        %v2399 = vunpack.c.l.b16 %v2175
        %v2400 = vunpack.c.l.b16 %v2176
        %v2401 = vunpack.c.l.b16 %v2177
        %v2402 = vunpack.c.l.b16 %v2178
        %v2403 = vunpack.c.l.b16 %v2179
        %v2404 = vunpack.c.l.b16 %v2180
        %v2405 = vunpack.c.l.b16 %v2181
        %v2406 = vunpack.c.l.b16 %v2182
        %v2407 = vunpack.c.l.b16 %v2183
        %v2408 = vunpack.c.l.b16 %v2184
        %v2409 = vunpack.c.l.b16 %v2185
        %v2410 = vunpack.c.l.b16 %v2186
        %v2411 = vunpack.c.l.b16 %v2187
        %v2412 = vunpack.c.l.b16 %v2188
        %v2413 = vunpack.c.l.b16 %v2189
        %v2414 = vunpack.c.l.b16 %v2190
        %v2415 = vunpack.c.l.b16 %v2191
        %v2416 = vunpack.c.l.b16 %v2192
        %v2417 = vunpack.c.l.b16 %v2193
        %v2418 = vpack.c.b16 %v2371, %v2370
        %v2419 = vpack.c.b16 %v2373, %v2372
        %v2420 = vpack.c.b16 %v2375, %v2374
        %v2421 = vpack.c.b16 %v2377, %v2376
        %v2422 = vpack.c.b16 %v2379, %v2378
        %v2423 = vpack.c.b16 %v2381, %v2380
        %v2424 = vpack.c.b16 %v2383, %v2382
        %v2425 = vpack.c.b16 %v2385, %v2384
        %v2426 = vpack.c.b16 %v2387, %v2386
        %v2427 = vpack.c.b16 %v2389, %v2388
        %v2428 = vpack.c.b16 %v2391, %v2390
        %v2429 = vpack.c.b16 %v2393, %v2392
        %v2430 = vpack.c.b16 %v2395, %v2394
        %v2431 = vpack.c.b16 %v2397, %v2396
        %v2432 = vpack.c.b16 %v2399, %v2398
        %v2433 = vpack.c.b16 %v2401, %v2400
        %v2434 = vpack.c.b16 %v2403, %v2402
        %v2435 = vpack.c.b16 %v2405, %v2404
        %v2436 = vpack.c.b16 %v2407, %v2406
        %v2437 = vpack.c.b16 %v2409, %v2408
        %v2438 = vpack.c.b16 %v2411, %v2410
        %v2439 = vpack.c.b16 %v2413, %v2412
        %v2440 = vpack.c.b16 %v2415, %v2414
        %v2441 = vpack.c.b16 %v2417, %v2416
        %2466 = vmatprep.subr.bf16.mxu0 0
        %2467 = vmatpush1.bf16.msra.mxu0 %v2418
        %2468 = vmatprep.subr.bf16.mxu0 0
        %2469 = vmatpush1.bf16.msra.mxu0 %v2419
        %2470 = vmatprep.subr.bf16.mxu0 0
        %2471 = vmatpush1.bf16.msra.mxu0 %v2420
        %2472 = vmatprep.subr.bf16.mxu0 0
        %2473 = vmatpush1.bf16.msra.mxu0 %v2421
        %2474 = vmatprep.subr.bf16.mxu0 0
        %2475 = vmatpush1.bf16.msra.mxu0 %v2422
        %2476 = vmatprep.subr.bf16.mxu0 0
        %2477 = vmatpush1.bf16.msra.mxu0 %v2423
        %2478 = vmatprep.subr.bf16.mxu0 0
        %2479 = vmatpush1.bf16.msra.mxu0 %v2424
        %2480 = vmatprep.subr.bf16.mxu0 0
        %2481 = vmatpush1.bf16.msra.mxu0 %v2425
        %2482 = vmatprep.subr.bf16.mxu0 0
        %2483 = vmatpush1.bf16.msra.mxu0 %v2426
        %2484 = vmatprep.subr.bf16.mxu0 0
        %2485 = vmatpush1.bf16.msra.mxu0 %v2427
        %2486 = vmatprep.subr.bf16.mxu0 0
        %2487 = vmatpush1.bf16.msra.mxu0 %v2428
        %2488 = vmatprep.subr.bf16.mxu0 0
        %2489 = vmatpush1.bf16.msra.mxu0 %v2429
        %2490 = vmatprep.subr.bf16.mxu0 0
        %2491 = vmatpush1.bf16.msra.mxu0 %v2430
        %2492 = vmatprep.subr.bf16.mxu0 0
        %2493 = vmatpush1.bf16.msra.mxu0 %v2431
        %2494 = vmatprep.subr.bf16.mxu0 0
        %2495 = vmatpush1.bf16.msra.mxu0 %v2432
        %2496 = vmatprep.subr.bf16.mxu0 0
        %2497 = vmatpush1.bf16.msra.mxu0 %v2433
        %2498 = vmatprep.mubr.bf16.mxu0 %v2293
        %2499 = vmatmul.mubr.bf16.gmra.mrb[0].mxu0 %v2292
        %v2500 = vpop.f32.mrb[0].mxu0
        %v2501 = vadd.f32 %v2320, %v2500
        %v2502 = vpop.f32.mrb[0].mxu0
        %v2503 = vpop.f32.mrb[0].mxu0
        %v2504 = vadd.f32 %v2320, %v2503
        %v2505 = vpop.f32.mrb[0].mxu0
        %2506 = vmatprep.mubr.bf16.mxu0 %v2296
        %2507 = vmatmul.mubr.bf16.gmra.mrb[0].mxu0 %v2295
        %v2508 = vpop.f32.mrb[0].mxu0
        %v2509 = vadd.f32 %v2320, %v2508
        %v2510 = vpop.f32.mrb[0].mxu0
        %v2511 = vpop.f32.mrb[0].mxu0
        %v2512 = vadd.f32 %v2320, %v2511
        %v2513 = vpop.f32.mrb[0].mxu0
        %2514 = vmatprep.mubr.bf16.mxu0 %v2299
        %2515 = vmatmul.mubr.bf16.gmra.mrb[0].mxu0 %v2298
        %v2516 = vpop.f32.mrb[0].mxu0
        %v2517 = vadd.f32 %v2320, %v2516
        %v2518 = vpop.f32.mrb[0].mxu0
        %v2519 = vpop.f32.mrb[0].mxu0
        %v2520 = vadd.f32 %v2320, %v2519
        %v2521 = vpop.f32.mrb[0].mxu0
        %2522 = vmatprep.mubr.bf16.mxu0 %v2302
        %2523 = vmatmul.mubr.bf16.gmra.mrb[0].mxu0 %v2301
        %v2524 = vpop.f32.mrb[0].mxu0
        %v2525 = vadd.f32 %v2320, %v2524
        %v2526 = vpop.f32.mrb[0].mxu0
        %v2527 = vpop.f32.mrb[0].mxu0
        %v2528 = vadd.f32 %v2320, %v2527
        %v2529 = vpop.f32.mrb[0].mxu0
        %2530 = vmatprep.mubr.bf16.mxu0 %v2305
        %2531 = vmatmul.mubr.bf16.gmra.mrb[0].mxu0 %v2304
        %v2532 = vpop.f32.mrb[0].mxu0
        %v2533 = vadd.f32 %v2320, %v2532
        %v2534 = vpop.f32.mrb[0].mxu0
        %v2535 = vpop.f32.mrb[0].mxu0
        %v2536 = vadd.f32 %v2320, %v2535
        %v2537 = vpop.f32.mrb[0].mxu0
        %2538 = vmatprep.mubr.bf16.mxu0 %v2308
        %2539 = vmatmul.mubr.bf16.gmra.mrb[0].mxu0 %v2307
        %v2540 = vpop.f32.mrb[0].mxu0
        %v2541 = vadd.f32 %v2320, %v2540
        %v2542 = vpop.f32.mrb[0].mxu0
        %v2543 = vpop.f32.mrb[0].mxu0
        %v2544 = vadd.f32 %v2320, %v2543
        %v2545 = vpop.f32.mrb[0].mxu0
        %2546 = vmatprep.mubr.bf16.mxu0 %v2311
        %2547 = vmatmul.mubr.bf16.gmra.mrb[0].mxu0 %v2310
        %v2548 = vpop.f32.mrb[0].mxu0
        %v2549 = vadd.f32 %v2320, %v2548
        %v2550 = vpop.f32.mrb[0].mxu0
        %v2551 = vpop.f32.mrb[0].mxu0
        %v2552 = vadd.f32 %v2320, %v2551
        %v2553 = vpop.f32.mrb[0].mxu0
        %2554 = vmatprep.mubr.bf16.mxu0 %v2314
        %2555 = vmatmul.mubr.bf16.gmra.mrb[0].mxu0 %v2313
        %v2556 = vpop.f32.mrb[0].mxu0
        %v2557 = vadd.f32 %v2320, %v2556
        %v2558 = vpop.f32.mrb[0].mxu0
        %v2559 = vpop.f32.mrb[0].mxu0
        %v2560 = vadd.f32 %v2320, %v2559
        %v2561 = vpop.f32.mrb[0].mxu0
        %2562 = vdwg.mxu0
        %2563 = vmatprep.subr.bf16.mxu0 0
        %2564 = vmatpush1.bf16.msra.mxu0 %v2434
        %2565 = vmatprep.subr.bf16.mxu0 0
        %2566 = vmatpush1.bf16.msra.mxu0 %v2435
        %2567 = vmatprep.subr.bf16.mxu0 0
        %2568 = vmatpush1.bf16.msra.mxu0 %v2436
        %2569 = vmatprep.subr.bf16.mxu0 0
        %2570 = vmatpush1.bf16.msra.mxu0 %v2437
        %2571 = vmatprep.subr.bf16.mxu0 0
        %2572 = vmatpush1.bf16.msra.mxu0 %v2438
        %2573 = vmatprep.subr.bf16.mxu0 0
        %2574 = vmatpush1.bf16.msra.mxu0 %v2439
        %2575 = vmatprep.subr.bf16.mxu0 0
        %2576 = vmatpush1.bf16.msra.mxu0 %v2440
        %2577 = vmatprep.subr.bf16.mxu0 0
        %2578 = vmatpush1.bf16.msra.mxu0 %v2441
        %2579 = vmatprep.subr.bf16.mxu0 0
        %2580 = vmatpush1.bf16.msra.mxu0 0
        %2581 = vmatprep.subr.bf16.mxu0 0
        %2582 = vmatpush1.bf16.msra.mxu0 0
        %2583 = vmatprep.subr.bf16.mxu0 0
        %2584 = vmatpush1.bf16.msra.mxu0 0
        %2585 = vmatprep.subr.bf16.mxu0 0
        %2586 = vmatpush1.bf16.msra.mxu0 0
        %2587 = vmatprep.subr.bf16.mxu0 0
        %2588 = vmatpush1.bf16.msra.mxu0 0
        %2589 = vmatprep.subr.bf16.mxu0 0
        %2590 = vmatpush1.bf16.msra.mxu0 0
        %2591 = vmatprep.subr.bf16.mxu0 0
        %2592 = vmatpush1.bf16.msra.mxu0 0
        %2593 = vmatprep.subr.bf16.mxu0 0
        %2594 = vmatpush1.bf16.msra.mxu0 0
        %2595 = vmatprep.mubr.bf16.mxu0 0
        %2596 = vmatmul.mubr.bf16.gmra.mrb[0].mxu0 %v2294
        %v2597 = vpop.f32.mrb[0].mxu0
        %v2598 = vadd.f32 %v2501, %v2597
        %v2599 = vpop.f32.mrb[0].mxu0
        %v2600 = vpop.f32.mrb[0].mxu0
        %v2601 = vadd.f32 %v2504, %v2600
        %v2602 = vpop.f32.mrb[0].mxu0
        %2603 = vmatprep.mubr.bf16.mxu0 0
        %2604 = vmatmul.mubr.bf16.gmra.mrb[0].mxu0 %v2297
        %v2605 = vpop.f32.mrb[0].mxu0
        %v2606 = vadd.f32 %v2509, %v2605
        %v2607 = vpop.f32.mrb[0].mxu0
        %v2608 = vpop.f32.mrb[0].mxu0
        %v2609 = vadd.f32 %v2512, %v2608
        %v2610 = vpop.f32.mrb[0].mxu0
        %2611 = vmatprep.mubr.bf16.mxu0 0
        %2612 = vmatmul.mubr.bf16.gmra.mrb[0].mxu0 %v2300
        %v2613 = vpop.f32.mrb[0].mxu0
        %v2614 = vadd.f32 %v2517, %v2613
        %v2615 = vpop.f32.mrb[0].mxu0
        %v2616 = vpop.f32.mrb[0].mxu0
        %v2617 = vadd.f32 %v2520, %v2616
        %v2618 = vpop.f32.mrb[0].mxu0
        %2619 = vmatprep.mubr.bf16.mxu0 0
        %2620 = vmatmul.mubr.bf16.gmra.mrb[0].mxu0 %v2303
        %v2621 = vpop.f32.mrb[0].mxu0
        %v2622 = vadd.f32 %v2525, %v2621
        %v2623 = vpop.f32.mrb[0].mxu0
        %v2624 = vpop.f32.mrb[0].mxu0
        %v2625 = vadd.f32 %v2528, %v2624
        %v2626 = vpop.f32.mrb[0].mxu0
        %2627 = vmatprep.mubr.bf16.mxu0 0
        %2628 = vmatmul.mubr.bf16.gmra.mrb[0].mxu0 %v2306
        %v2629 = vpop.f32.mrb[0].mxu0
        %v2630 = vadd.f32 %v2533, %v2629
        %v2631 = vpop.f32.mrb[0].mxu0
        %v2632 = vpop.f32.mrb[0].mxu0
        %v2633 = vadd.f32 %v2536, %v2632
        %v2634 = vpop.f32.mrb[0].mxu0
        %2635 = vmatprep.mubr.bf16.mxu0 0
        %2636 = vmatmul.mubr.bf16.gmra.mrb[0].mxu0 %v2309
        %v2637 = vpop.f32.mrb[0].mxu0
        %v2638 = vadd.f32 %v2541, %v2637
        %v2639 = vpop.f32.mrb[0].mxu0
        %v2640 = vpop.f32.mrb[0].mxu0
        %v2641 = vadd.f32 %v2544, %v2640
        %v2642 = vpop.f32.mrb[0].mxu0
        %2643 = vmatprep.mubr.bf16.mxu0 0
        %2644 = vmatmul.mubr.bf16.gmra.mrb[0].mxu0 %v2312
        %v2645 = vpop.f32.mrb[0].mxu0
        %v2646 = vadd.f32 %v2549, %v2645
        %v2647 = vpop.f32.mrb[0].mxu0
        %v2648 = vpop.f32.mrb[0].mxu0
        %v2649 = vadd.f32 %v2552, %v2648
        %v2650 = vpop.f32.mrb[0].mxu0
        %2651 = vmatprep.mubr.bf16.mxu0 0
        %2652 = vmatmul.mubr.bf16.gmra.mrb[0].mxu0 %v2315
        %v2653 = vpop.f32.mrb[0].mxu0
        %v2654 = vadd.f32 %v2557, %v2653
        %v2655 = vpop.f32.mrb[0].mxu0
        %v2656 = vpop.f32.mrb[0].mxu0
        %v2657 = vadd.f32 %v2560, %v2656
        %v2658 = vpop.f32.mrb[0].mxu0
        %2659 = vdwg.mxu0
        %v2660 = vadd.f32 %v2598, %v1392
        %v2661 = vadd.f32 %v2601, %v1395
        %v2662 = vadd.f32 %v2606, %v1400
        %v2663 = vadd.f32 %v2609, %v1403
        %v2664 = vadd.f32 %v2614, %v1408
        %v2665 = vadd.f32 %v2617, %v1411
        %v2666 = vadd.f32 %v2622, %v1416
        %v2667 = vadd.f32 %v2625, %v1419
        %v2668 = vadd.f32 %v2630, %v1424
        %v2669 = vadd.f32 %v2633, %v1427
        %v2670 = vadd.f32 %v2638, %v1432
        %v2671 = vadd.f32 %v2641, %v1435
        %v2672 = vadd.f32 %v2646, %v1440
        %v2673 = vadd.f32 %v2649, %v1443
        %v2674 = vadd.f32 %v2654, %v1448
        %v2675 = vadd.f32 %v2657, %v1451
        %v2676 = vmul.f32 %v2660, %v1458
        %v2677 = vmul.f32 %v2661, %v1458
        %v2678 = vmul.f32 %v2662, %v1458
        %v2679 = vmul.f32 %v2663, %v1458
        %v2680 = vmul.f32 %v2664, %v1458
        %v2681 = vmul.f32 %v2665, %v1458
        %v2682 = vmul.f32 %v2666, %v1458
        %v2683 = vmul.f32 %v2667, %v1458
        %v2684 = vmul.f32 %v2668, %v1458
        %v2685 = vmul.f32 %v2669, %v1458
        %v2686 = vmul.f32 %v2670, %v1458
        %v2687 = vmul.f32 %v2671, %v1458
        %v2688 = vmul.f32 %v2672, %v1458
        %v2689 = vmul.f32 %v2673, %v1458
        %v2690 = vmul.f32 %v2674, %v1458
        %v2691 = vmul.f32 %v2675, %v1458
        %v2692 = vadd.f32 %v2676, %v1480
        %v2693 = vadd.f32 %v2677, %v1480
        %v2694 = vadd.f32 %v2678, %v1480
        %v2695 = vadd.f32 %v2679, %v1480
        %v2696 = vadd.f32 %v2680, %v1480
        %v2697 = vadd.f32 %v2681, %v1480
        %v2698 = vadd.f32 %v2682, %v1480
        %v2699 = vadd.f32 %v2683, %v1480
        %v2700 = vadd.f32 %v2684, %v1480
        %v2701 = vadd.f32 %v2685, %v1480
        %v2702 = vadd.f32 %v2686, %v1480
        %v2703 = vadd.f32 %v2687, %v1480
        %v2704 = vadd.f32 %v2688, %v1480
        %v2705 = vadd.f32 %v2689, %v1480
        %v2706 = vadd.f32 %v2690, %v1480
        %v2707 = vadd.f32 %v2691, %v1480
        %vm2708 = vcmp.ge.f32.partialorder %v2692, 0.0
        %vm2709 = vcmp.ge.f32.partialorder %v2693, 0.0
        %vm2710 = vcmp.ge.f32.partialorder %v2694, 0.0
        %vm2711 = vcmp.ge.f32.partialorder %v2695, 0.0
        %vm2712 = vcmp.ge.f32.partialorder %v2696, 0.0
        %vm2713 = vcmp.ge.f32.partialorder %v2697, 0.0
        %vm2714 = vcmp.ge.f32.partialorder %v2698, 0.0
        %vm2715 = vcmp.ge.f32.partialorder %v2699, 0.0
        %vm2716 = vcmp.ge.f32.partialorder %v2700, 0.0
        %vm2717 = vcmp.ge.f32.partialorder %v2701, 0.0
        %vm2718 = vcmp.ge.f32.partialorder %v2702, 0.0
        %vm2719 = vcmp.ge.f32.partialorder %v2703, 0.0
        %vm2720 = vcmp.ge.f32.partialorder %v2704, 0.0
        %vm2721 = vcmp.ge.f32.partialorder %v2705, 0.0
        %vm2722 = vcmp.ge.f32.partialorder %v2706, 0.0
        %vm2723 = vcmp.ge.f32.partialorder %v2707, 0.0
        %v2724 = vmul.f32 %v2692, %v1518
        %v2725 = vmul.f32 %v2693, %v1518
        %v2726 = vmul.f32 %v2694, %v1518
        %v2727 = vmul.f32 %v2695, %v1518
        %v2728 = vmul.f32 %v2696, %v1518
        %v2729 = vmul.f32 %v2697, %v1518
        %v2730 = vmul.f32 %v2698, %v1518
        %v2731 = vmul.f32 %v2699, %v1518
        %v2732 = vmul.f32 %v2700, %v1518
        %v2733 = vmul.f32 %v2701, %v1518
        %v2734 = vmul.f32 %v2702, %v1518
        %v2735 = vmul.f32 %v2703, %v1518
        %v2736 = vmul.f32 %v2704, %v1518
        %v2737 = vmul.f32 %v2705, %v1518
        %v2738 = vmul.f32 %v2706, %v1518
        %v2739 = vmul.f32 %v2707, %v1518
        %v2740 = vsel %vm2708, %v2692, %v2724
        %v2741 = vsel %vm2709, %v2693, %v2725
        %v2742 = vsel %vm2710, %v2694, %v2726
        %v2743 = vsel %vm2711, %v2695, %v2727
        %v2744 = vsel %vm2712, %v2696, %v2728
        %v2745 = vsel %vm2713, %v2697, %v2729
        %v2746 = vsel %vm2714, %v2698, %v2730
        %v2747 = vsel %vm2715, %v2699, %v2731
        %v2748 = vsel %vm2716, %v2700, %v2732
        %v2749 = vsel %vm2717, %v2701, %v2733
        %v2750 = vsel %vm2718, %v2702, %v2734
        %v2751 = vsel %vm2719, %v2703, %v2735
        %v2752 = vsel %vm2720, %v2704, %v2736
        %v2753 = vsel %vm2721, %v2705, %v2737
        %v2754 = vsel %vm2722, %v2706, %v2738
        %v2755 = vsel %vm2723, %v2707, %v2739
        %s2756 = scalar_lea.vmem %s5, 384
        %v2757 = vld [vmem:[%s2756] sm:$0xf]
        %v2758 = vld [vmem:[%s2756 + $0x4] sm:$0xf]
        %v2759 = vld [vmem:[%s2756 + $0x8] sm:$0xf]
        %v2760 = vld [vmem:[%s2756 + $0xc] sm:$0xf]
        %v2761 = vld [vmem:[%s2756 + $0x10] sm:$0xf]
        %v2762 = vld [vmem:[%s2756 + $0x14] sm:$0xf]
        %v2763 = vld [vmem:[%s2756 + $0x18] sm:$0xf]
        %v2764 = vld [vmem:[%s2756 + $0x1c] sm:$0xf]
        %v2765 = vld [vmem:[%s2756 + $0x20] sm:$0xf]
        %v2766 = vld [vmem:[%s2756 + $0x24] sm:$0xf]
        %v2767 = vld [vmem:[%s2756 + $0x28] sm:$0xf]
        %v2768 = vld [vmem:[%s2756 + $0x2c] sm:$0xf]
        %v2769 = vld [vmem:[%s2756 + $0x30] sm:$0xf]
        %v2770 = vld [vmem:[%s2756 + $0x34] sm:$0xf]
        %v2771 = vld [vmem:[%s2756 + $0x38] sm:$0xf]
        %v2772 = vld [vmem:[%s2756 + $0x3c] sm:$0xf]
        %v2773 = vld [vmem:[%s2756 + $0x40] sm:$0xf]
        %v2774 = vld [vmem:[%s2756 + $0x44] sm:$0xf]
        %v2775 = vld [vmem:[%s2756 + $0x48] sm:$0xf]
        %v2776 = vld [vmem:[%s2756 + $0x4c] sm:$0xf]
        %v2777 = vld [vmem:[%s2756 + $0x50] sm:$0xf]
        %v2778 = vld [vmem:[%s2756 + $0x54] sm:$0xf]
        %v2779 = vld [vmem:[%s2756 + $0x58] sm:$0xf]
        %v2780 = vld [vmem:[%s2756 + $0x5c] sm:$0xf]
        %v2781 = vld [vmem:[%s2756 + $0x60] sm:$0xf]
        %v2782 = vld [vmem:[%s2756 + $0x64] sm:$0xf]
        %v2783 = vld [vmem:[%s2756 + $0x68] sm:$0xf]
        %v2784 = vld [vmem:[%s2756 + $0x6c] sm:$0xf]
        %v2785 = vld [vmem:[%s2756 + $0x70] sm:$0xf]
        %v2786 = vld [vmem:[%s2756 + $0x74] sm:$0xf]
        %v2787 = vld [vmem:[%s2756 + $0x78] sm:$0xf]
        %v2788 = vld [vmem:[%s2756 + $0x7c] sm:$0xf]
        %v2789 = vld [vmem:[%s2756 + $0x80] sm:$0xf]
        %v2790 = vld [vmem:[%s2756 + $0x84] sm:$0xf]
        %v2791 = vld [vmem:[%s2756 + $0x88] sm:$0xf]
        %v2792 = vld [vmem:[%s2756 + $0x8c] sm:$0xf]
        %v2793 = vld [vmem:[%s2756 + $0x90] sm:$0xf]
        %v2794 = vld [vmem:[%s2756 + $0x94] sm:$0xf]
        %v2795 = vld [vmem:[%s2756 + $0x98] sm:$0xf]
        %v2796 = vld [vmem:[%s2756 + $0x9c] sm:$0xf]
        %v2797 = vld [vmem:[%s2756 + $0xa0] sm:$0xf]
        %v2798 = vld [vmem:[%s2756 + $0xa4] sm:$0xf]
        %v2799 = vld [vmem:[%s2756 + $0xa8] sm:$0xf]
        %v2800 = vld [vmem:[%s2756 + $0xac] sm:$0xf]
        %v2801 = vld [vmem:[%s2756 + $0xb0] sm:$0xf]
        %v2802 = vld [vmem:[%s2756 + $0xb4] sm:$0xf]
        %v2803 = vld [vmem:[%s2756 + $0xb8] sm:$0xf]
        %v2804 = vld [vmem:[%s2756 + $0xbc] sm:$0xf]
        %s2805 = scalar_lea.vmem %s6, 2
        %v2806 = vld [vmem:[%s2805] sm:$0x1]
        %v2807 = vrot.slane %v2740, 7
        %v2808 = vrot.slane %v2741, 7
        %v2809 = vrot.slane %v2742, 7
        %v2810 = vrot.slane %v2743, 7
        %v2811 = vrot.slane %v2744, 7
        %v2812 = vrot.slane %v2745, 7
        %v2813 = vrot.slane %v2746, 7
        %v2814 = vrot.slane %v2747, 7
        %v2815 = vrot.slane %v2748, 7
        %v2816 = vrot.slane %v2749, 7
        %v2817 = vrot.slane %v2750, 7
        %v2818 = vrot.slane %v2751, 7
        %v2819 = vrot.slane %v2752, 7
        %v2820 = vrot.slane %v2753, 7
        %v2821 = vrot.slane %v2754, 7
        %v2822 = vrot.slane %v2755, 7
        %v2823 = vsel %vm975, %v2821, %v2822
        %v2824 = vsel %vm975, %v2820, %v2821
        %v2825 = vsel %vm975, %v2819, %v2820
        %v2826 = vsel %vm975, %v2818, %v2819
        %v2827 = vsel %vm975, %v2817, %v2818
        %v2828 = vsel %vm975, %v2816, %v2817
        %v2829 = vsel %vm975, %v2815, %v2816
        %v2830 = vsel %vm975, %v2814, %v2815
        %v2831 = vsel %vm975, %v2813, %v2814
        %v2832 = vsel %vm975, %v2812, %v2813
        %v2833 = vsel %vm975, %v2811, %v2812
        %v2834 = vsel %vm975, %v2810, %v2811
        %v2835 = vsel %vm975, %v2809, %v2810
        %v2836 = vsel %vm975, %v2808, %v2809
        %v2837 = vsel %vm975, %v2807, %v2808
        %v2838 = vsel %vm975, %v2822, %v2807
        %v2839 = vsel %vm1008, %v2838, 0.0
        %v2840 = vsel %vm1009, %v2837, 0.0
        %v2841 = vsel %vm1010, %v2836, 0.0
        %v2842 = vsel %vm1011, %v2835, 0.0
        %v2843 = vsel %vm1012, %v2834, 0.0
        %v2844 = vsel %vm1013, %v2833, 0.0
        %v2845 = vsel %vm1014, %v2832, 0.0
        %v2846 = vsel %vm1015, %v2831, 0.0
        %v2847 = vsel %vm1016, %v2830, 0.0
        %v2848 = vsel %vm1017, %v2829, 0.0
        %v2849 = vsel %vm1018, %v2828, 0.0
        %v2850 = vsel %vm1019, %v2827, 0.0
        %v2851 = vsel %vm1020, %v2826, 0.0
        %v2852 = vsel %vm1021, %v2825, 0.0
        %v2853 = vsel %vm1022, %v2824, 0.0
        %v2854 = vsel %vm1023, %v2823, 0.0
        %v2855 = vrot.slane %v2740, 1
        %v2856 = vrot.slane %v2741, 1
        %v2857 = vrot.slane %v2742, 1
        %v2858 = vrot.slane %v2743, 1
        %v2859 = vrot.slane %v2744, 1
        %v2860 = vrot.slane %v2745, 1
        %v2861 = vrot.slane %v2746, 1
        %v2862 = vrot.slane %v2747, 1
        %v2863 = vrot.slane %v2748, 1
        %v2864 = vrot.slane %v2749, 1
        %v2865 = vrot.slane %v2750, 1
        %v2866 = vrot.slane %v2751, 1
        %v2867 = vrot.slane %v2752, 1
        %v2868 = vrot.slane %v2753, 1
        %v2869 = vrot.slane %v2754, 1
        %v2870 = vrot.slane %v2755, 1
        %v2871 = vsel %vm1056, %v2869, %v2870
        %v2872 = vsel %vm1056, %v2868, %v2869
        %v2873 = vsel %vm1056, %v2867, %v2868
        %v2874 = vsel %vm1056, %v2866, %v2867
        %v2875 = vsel %vm1056, %v2865, %v2866
        %v2876 = vsel %vm1056, %v2864, %v2865
        %v2877 = vsel %vm1056, %v2863, %v2864
        %v2878 = vsel %vm1056, %v2862, %v2863
        %v2879 = vsel %vm1056, %v2861, %v2862
        %v2880 = vsel %vm1056, %v2860, %v2861
        %v2881 = vsel %vm1056, %v2859, %v2860
        %v2882 = vsel %vm1056, %v2858, %v2859
        %v2883 = vsel %vm1056, %v2857, %v2858
        %v2884 = vsel %vm1056, %v2856, %v2857
        %v2885 = vsel %vm1056, %v2855, %v2856
        %v2886 = vsel %vm1056, %v2870, %v2855
        %v2887 = vsel %vm1089, %v2885, 0.0
        %v2888 = vsel %vm1090, %v2884, 0.0
        %v2889 = vsel %vm1091, %v2883, 0.0
        %v2890 = vsel %vm1092, %v2882, 0.0
        %v2891 = vsel %vm1093, %v2881, 0.0
        %v2892 = vsel %vm1094, %v2880, 0.0
        %v2893 = vsel %vm1095, %v2879, 0.0
        %v2894 = vsel %vm1096, %v2878, 0.0
        %v2895 = vsel %vm1097, %v2877, 0.0
        %v2896 = vsel %vm1098, %v2876, 0.0
        %v2897 = vsel %vm1099, %v2875, 0.0
        %v2898 = vsel %vm1100, %v2874, 0.0
        %v2899 = vsel %vm1101, %v2873, 0.0
        %v2900 = vsel %vm1102, %v2872, 0.0
        %v2901 = vsel %vm1103, %v2871, 0.0
        %v2902 = vsel %vm1104, %v2886, 0.0
        %v2903 = vpack.c.bf16 %v2840, %v2839
        %v2904 = vpack.c.bf16 %v2741, %v2740
        %v2905 = vpack.c.bf16 %v2888, %v2887
        %v2906 = vpack.c.bf16 %v2842, %v2841
        %v2907 = vpack.c.bf16 %v2743, %v2742
        %v2908 = vpack.c.bf16 %v2890, %v2889
        %v2909 = vpack.c.bf16 %v2844, %v2843
        %v2910 = vpack.c.bf16 %v2745, %v2744
        %v2911 = vpack.c.bf16 %v2892, %v2891
        %v2912 = vpack.c.bf16 %v2846, %v2845
        %v2913 = vpack.c.bf16 %v2747, %v2746
        %v2914 = vpack.c.bf16 %v2894, %v2893
        %v2915 = vpack.c.bf16 %v2848, %v2847
        %v2916 = vpack.c.bf16 %v2749, %v2748
        %v2917 = vpack.c.bf16 %v2896, %v2895
        %v2918 = vpack.c.bf16 %v2850, %v2849
        %v2919 = vpack.c.bf16 %v2751, %v2750
        %v2920 = vpack.c.bf16 %v2898, %v2897
        %v2921 = vpack.c.bf16 %v2852, %v2851
        %v2922 = vpack.c.bf16 %v2753, %v2752
        %v2923 = vpack.c.bf16 %v2900, %v2899
        %v2924 = vpack.c.bf16 %v2854, %v2853
        %v2925 = vpack.c.bf16 %v2755, %v2754
        %v2926 = vpack.c.bf16 %v2902, %v2901
        %v2928 = vlaneseq
        %v2929 = vshrl.u32 %v2928, 7
        %v2930 = vsub.s32 0, %v2929
        %v2931 = vrot.slane %v2806, %v2930
        %v2981 = vunpack.c.l.b16 %v2757
        %v2982 = vunpack.c.l.b16 %v2758
        %v2983 = vunpack.c.l.b16 %v2759
        %v2984 = vunpack.c.l.b16 %v2760
        %v2985 = vunpack.c.l.b16 %v2761
        %v2986 = vunpack.c.l.b16 %v2762
        %v2987 = vunpack.c.l.b16 %v2763
        %v2988 = vunpack.c.l.b16 %v2764
        %v2989 = vunpack.c.l.b16 %v2765
        %v2990 = vunpack.c.l.b16 %v2766
        %v2991 = vunpack.c.l.b16 %v2767
        %v2992 = vunpack.c.l.b16 %v2768
        %v2993 = vunpack.c.l.b16 %v2769
        %v2994 = vunpack.c.l.b16 %v2770
        %v2995 = vunpack.c.l.b16 %v2771
        %v2996 = vunpack.c.l.b16 %v2772
        %v2997 = vunpack.c.l.b16 %v2773
        %v2998 = vunpack.c.l.b16 %v2774
        %v2999 = vunpack.c.l.b16 %v2775
        %v3000 = vunpack.c.l.b16 %v2776
        %v3001 = vunpack.c.l.b16 %v2777
        %v3002 = vunpack.c.l.b16 %v2778
        %v3003 = vunpack.c.l.b16 %v2779
        %v3004 = vunpack.c.l.b16 %v2780
        %v3005 = vunpack.c.l.b16 %v2781
        %v3006 = vunpack.c.l.b16 %v2782
        %v3007 = vunpack.c.l.b16 %v2783
        %v3008 = vunpack.c.l.b16 %v2784
        %v3009 = vunpack.c.l.b16 %v2785
        %v3010 = vunpack.c.l.b16 %v2786
        %v3011 = vunpack.c.l.b16 %v2787
        %v3012 = vunpack.c.l.b16 %v2788
        %v3013 = vunpack.c.l.b16 %v2789
        %v3014 = vunpack.c.l.b16 %v2790
        %v3015 = vunpack.c.l.b16 %v2791
        %v3016 = vunpack.c.l.b16 %v2792
        %v3017 = vunpack.c.l.b16 %v2793
        %v3018 = vunpack.c.l.b16 %v2794
        %v3019 = vunpack.c.l.b16 %v2795
        %v3020 = vunpack.c.l.b16 %v2796
        %v3021 = vunpack.c.l.b16 %v2797
        %v3022 = vunpack.c.l.b16 %v2798
        %v3023 = vunpack.c.l.b16 %v2799
        %v3024 = vunpack.c.l.b16 %v2800
        %v3025 = vunpack.c.l.b16 %v2801
        %v3026 = vunpack.c.l.b16 %v2802
        %v3027 = vunpack.c.l.b16 %v2803
        %v3028 = vunpack.c.l.b16 %v2804
        %v3029 = vpack.c.b16 %v2982, %v2981
        %v3030 = vpack.c.b16 %v2984, %v2983
        %v3031 = vpack.c.b16 %v2986, %v2985
        %v3032 = vpack.c.b16 %v2988, %v2987
        %v3033 = vpack.c.b16 %v2990, %v2989
        %v3034 = vpack.c.b16 %v2992, %v2991
        %v3035 = vpack.c.b16 %v2994, %v2993
        %v3036 = vpack.c.b16 %v2996, %v2995
        %v3037 = vpack.c.b16 %v2998, %v2997
        %v3038 = vpack.c.b16 %v3000, %v2999
        %v3039 = vpack.c.b16 %v3002, %v3001
        %v3040 = vpack.c.b16 %v3004, %v3003
        %v3041 = vpack.c.b16 %v3006, %v3005
        %v3042 = vpack.c.b16 %v3008, %v3007
        %v3043 = vpack.c.b16 %v3010, %v3009
        %v3044 = vpack.c.b16 %v3012, %v3011
        %v3045 = vpack.c.b16 %v3014, %v3013
        %v3046 = vpack.c.b16 %v3016, %v3015
        %v3047 = vpack.c.b16 %v3018, %v3017
        %v3048 = vpack.c.b16 %v3020, %v3019
        %v3049 = vpack.c.b16 %v3022, %v3021
        %v3050 = vpack.c.b16 %v3024, %v3023
        %v3051 = vpack.c.b16 %v3026, %v3025
        %v3052 = vpack.c.b16 %v3028, %v3027
        %3077 = vmatprep.subr.bf16.mxu0 0
        %3078 = vmatpush1.bf16.msra.mxu0 %v3029
        %3079 = vmatprep.subr.bf16.mxu0 0
        %3080 = vmatpush1.bf16.msra.mxu0 %v3030
        %3081 = vmatprep.subr.bf16.mxu0 0
        %3082 = vmatpush1.bf16.msra.mxu0 %v3031
        %3083 = vmatprep.subr.bf16.mxu0 0
        %3084 = vmatpush1.bf16.msra.mxu0 %v3032
        %3085 = vmatprep.subr.bf16.mxu0 0
        %3086 = vmatpush1.bf16.msra.mxu0 %v3033
        %3087 = vmatprep.subr.bf16.mxu0 0
        %3088 = vmatpush1.bf16.msra.mxu0 %v3034
        %3089 = vmatprep.subr.bf16.mxu0 0
        %3090 = vmatpush1.bf16.msra.mxu0 %v3035
        %3091 = vmatprep.subr.bf16.mxu0 0
        %3092 = vmatpush1.bf16.msra.mxu0 %v3036
        %3093 = vmatprep.subr.bf16.mxu0 0
        %3094 = vmatpush1.bf16.msra.mxu0 %v3037
        %3095 = vmatprep.subr.bf16.mxu0 0
        %3096 = vmatpush1.bf16.msra.mxu0 %v3038
        %3097 = vmatprep.subr.bf16.mxu0 0
        %3098 = vmatpush1.bf16.msra.mxu0 %v3039
        %3099 = vmatprep.subr.bf16.mxu0 0
        %3100 = vmatpush1.bf16.msra.mxu0 %v3040
        %3101 = vmatprep.subr.bf16.mxu0 0
        %3102 = vmatpush1.bf16.msra.mxu0 %v3041
        %3103 = vmatprep.subr.bf16.mxu0 0
        %3104 = vmatpush1.bf16.msra.mxu0 %v3042
        %3105 = vmatprep.subr.bf16.mxu0 0
        %3106 = vmatpush1.bf16.msra.mxu0 %v3043
        %3107 = vmatprep.subr.bf16.mxu0 0
        %3108 = vmatpush1.bf16.msra.mxu0 %v3044
        %3109 = vmatprep.mubr.bf16.mxu0 %v2904
        %3110 = vmatmul.mubr.bf16.gmra.mrb[0].mxu0 %v2903
        %v3111 = vpop.f32.mrb[0].mxu0
        %v3112 = vadd.f32 %v2931, %v3111
        %v3113 = vpop.f32.mrb[0].mxu0
        %v3114 = vpop.f32.mrb[0].mxu0
        %v3115 = vadd.f32 %v2931, %v3114
        %v3116 = vpop.f32.mrb[0].mxu0
        %3117 = vmatprep.mubr.bf16.mxu0 %v2907
        %3118 = vmatmul.mubr.bf16.gmra.mrb[0].mxu0 %v2906
        %v3119 = vpop.f32.mrb[0].mxu0
        %v3120 = vadd.f32 %v2931, %v3119
        %v3121 = vpop.f32.mrb[0].mxu0
        %v3122 = vpop.f32.mrb[0].mxu0
        %v3123 = vadd.f32 %v2931, %v3122
        %v3124 = vpop.f32.mrb[0].mxu0
        %3125 = vmatprep.mubr.bf16.mxu0 %v2910
        %3126 = vmatmul.mubr.bf16.gmra.mrb[0].mxu0 %v2909
        %v3127 = vpop.f32.mrb[0].mxu0
        %v3128 = vadd.f32 %v2931, %v3127
        %v3129 = vpop.f32.mrb[0].mxu0
        %v3130 = vpop.f32.mrb[0].mxu0
        %v3131 = vadd.f32 %v2931, %v3130
        %v3132 = vpop.f32.mrb[0].mxu0
        %3133 = vmatprep.mubr.bf16.mxu0 %v2913
        %3134 = vmatmul.mubr.bf16.gmra.mrb[0].mxu0 %v2912
        %v3135 = vpop.f32.mrb[0].mxu0
        %v3136 = vadd.f32 %v2931, %v3135
        %v3137 = vpop.f32.mrb[0].mxu0
        %v3138 = vpop.f32.mrb[0].mxu0
        %v3139 = vadd.f32 %v2931, %v3138
        %v3140 = vpop.f32.mrb[0].mxu0
        %3141 = vmatprep.mubr.bf16.mxu0 %v2916
        %3142 = vmatmul.mubr.bf16.gmra.mrb[0].mxu0 %v2915
        %v3143 = vpop.f32.mrb[0].mxu0
        %v3144 = vadd.f32 %v2931, %v3143
        %v3145 = vpop.f32.mrb[0].mxu0
        %v3146 = vpop.f32.mrb[0].mxu0
        %v3147 = vadd.f32 %v2931, %v3146
        %v3148 = vpop.f32.mrb[0].mxu0
        %3149 = vmatprep.mubr.bf16.mxu0 %v2919
        %3150 = vmatmul.mubr.bf16.gmra.mrb[0].mxu0 %v2918
        %v3151 = vpop.f32.mrb[0].mxu0
        %v3152 = vadd.f32 %v2931, %v3151
        %v3153 = vpop.f32.mrb[0].mxu0
        %v3154 = vpop.f32.mrb[0].mxu0
        %v3155 = vadd.f32 %v2931, %v3154
        %v3156 = vpop.f32.mrb[0].mxu0
        %3157 = vmatprep.mubr.bf16.mxu0 %v2922
        %3158 = vmatmul.mubr.bf16.gmra.mrb[0].mxu0 %v2921
        %v3159 = vpop.f32.mrb[0].mxu0
        %v3160 = vadd.f32 %v2931, %v3159
        %v3161 = vpop.f32.mrb[0].mxu0
        %v3162 = vpop.f32.mrb[0].mxu0
        %v3163 = vadd.f32 %v2931, %v3162
        %v3164 = vpop.f32.mrb[0].mxu0
        %3165 = vmatprep.mubr.bf16.mxu0 %v2925
        %3166 = vmatmul.mubr.bf16.gmra.mrb[0].mxu0 %v2924
        %v3167 = vpop.f32.mrb[0].mxu0
        %v3168 = vadd.f32 %v2931, %v3167
        %v3169 = vpop.f32.mrb[0].mxu0
        %v3170 = vpop.f32.mrb[0].mxu0
        %v3171 = vadd.f32 %v2931, %v3170
        %v3172 = vpop.f32.mrb[0].mxu0
        %3173 = vdwg.mxu0
        %3174 = vmatprep.subr.bf16.mxu0 0
        %3175 = vmatpush1.bf16.msra.mxu0 %v3045
        %3176 = vmatprep.subr.bf16.mxu0 0
        %3177 = vmatpush1.bf16.msra.mxu0 %v3046
        %3178 = vmatprep.subr.bf16.mxu0 0
        %3179 = vmatpush1.bf16.msra.mxu0 %v3047
        %3180 = vmatprep.subr.bf16.mxu0 0
        %3181 = vmatpush1.bf16.msra.mxu0 %v3048
        %3182 = vmatprep.subr.bf16.mxu0 0
        %3183 = vmatpush1.bf16.msra.mxu0 %v3049
        %3184 = vmatprep.subr.bf16.mxu0 0
        %3185 = vmatpush1.bf16.msra.mxu0 %v3050
        %3186 = vmatprep.subr.bf16.mxu0 0
        %3187 = vmatpush1.bf16.msra.mxu0 %v3051
        %3188 = vmatprep.subr.bf16.mxu0 0
        %3189 = vmatpush1.bf16.msra.mxu0 %v3052
        %3190 = vmatprep.subr.bf16.mxu0 0
        %3191 = vmatpush1.bf16.msra.mxu0 0
        %3192 = vmatprep.subr.bf16.mxu0 0
        %3193 = vmatpush1.bf16.msra.mxu0 0
        %3194 = vmatprep.subr.bf16.mxu0 0
        %3195 = vmatpush1.bf16.msra.mxu0 0
        %3196 = vmatprep.subr.bf16.mxu0 0
        %3197 = vmatpush1.bf16.msra.mxu0 0
        %3198 = vmatprep.subr.bf16.mxu0 0
        %3199 = vmatpush1.bf16.msra.mxu0 0
        %3200 = vmatprep.subr.bf16.mxu0 0
        %3201 = vmatpush1.bf16.msra.mxu0 0
        %3202 = vmatprep.subr.bf16.mxu0 0
        %3203 = vmatpush1.bf16.msra.mxu0 0
        %3204 = vmatprep.subr.bf16.mxu0 0
        %3205 = vmatpush1.bf16.msra.mxu0 0
        %3206 = vmatprep.mubr.bf16.mxu0 0
        %3207 = vmatmul.mubr.bf16.gmra.mrb[0].mxu0 %v2905
        %v3208 = vpop.f32.mrb[0].mxu0
        %v3209 = vadd.f32 %v3112, %v3208
        %v3210 = vpop.f32.mrb[0].mxu0
        %v3211 = vpop.f32.mrb[0].mxu0
        %v3212 = vadd.f32 %v3115, %v3211
        %v3213 = vpop.f32.mrb[0].mxu0
        %3214 = vmatprep.mubr.bf16.mxu0 0
        %3215 = vmatmul.mubr.bf16.gmra.mrb[0].mxu0 %v2908
        %v3216 = vpop.f32.mrb[0].mxu0
        %v3217 = vadd.f32 %v3120, %v3216
        %v3218 = vpop.f32.mrb[0].mxu0
        %v3219 = vpop.f32.mrb[0].mxu0
        %v3220 = vadd.f32 %v3123, %v3219
        %v3221 = vpop.f32.mrb[0].mxu0
        %3222 = vmatprep.mubr.bf16.mxu0 0
        %3223 = vmatmul.mubr.bf16.gmra.mrb[0].mxu0 %v2911
        %v3224 = vpop.f32.mrb[0].mxu0
        %v3225 = vadd.f32 %v3128, %v3224
        %v3226 = vpop.f32.mrb[0].mxu0
        %v3227 = vpop.f32.mrb[0].mxu0
        %v3228 = vadd.f32 %v3131, %v3227
        %v3229 = vpop.f32.mrb[0].mxu0
        %3230 = vmatprep.mubr.bf16.mxu0 0
        %3231 = vmatmul.mubr.bf16.gmra.mrb[0].mxu0 %v2914
        %v3232 = vpop.f32.mrb[0].mxu0
        %v3233 = vadd.f32 %v3136, %v3232
        %v3234 = vpop.f32.mrb[0].mxu0
        %v3235 = vpop.f32.mrb[0].mxu0
        %v3236 = vadd.f32 %v3139, %v3235
        %v3237 = vpop.f32.mrb[0].mxu0
        %3238 = vmatprep.mubr.bf16.mxu0 0
        %3239 = vmatmul.mubr.bf16.gmra.mrb[0].mxu0 %v2917
        %v3240 = vpop.f32.mrb[0].mxu0
        %v3241 = vadd.f32 %v3144, %v3240
        %v3242 = vpop.f32.mrb[0].mxu0
        %v3243 = vpop.f32.mrb[0].mxu0
        %v3244 = vadd.f32 %v3147, %v3243
        %v3245 = vpop.f32.mrb[0].mxu0
        %3246 = vmatprep.mubr.bf16.mxu0 0
        %3247 = vmatmul.mubr.bf16.gmra.mrb[0].mxu0 %v2920
        %v3248 = vpop.f32.mrb[0].mxu0
        %v3249 = vadd.f32 %v3152, %v3248
        %v3250 = vpop.f32.mrb[0].mxu0
        %v3251 = vpop.f32.mrb[0].mxu0
        %v3252 = vadd.f32 %v3155, %v3251
        %v3253 = vpop.f32.mrb[0].mxu0
        %3254 = vmatprep.mubr.bf16.mxu0 0
        %3255 = vmatmul.mubr.bf16.gmra.mrb[0].mxu0 %v2923
        %v3256 = vpop.f32.mrb[0].mxu0
        %v3257 = vadd.f32 %v3160, %v3256
        %v3258 = vpop.f32.mrb[0].mxu0
        %v3259 = vpop.f32.mrb[0].mxu0
        %v3260 = vadd.f32 %v3163, %v3259
        %v3261 = vpop.f32.mrb[0].mxu0
        %3262 = vmatprep.mubr.bf16.mxu0 0
        %3263 = vmatmul.mubr.bf16.gmra.mrb[0].mxu0 %v2926
        %v3264 = vpop.f32.mrb[0].mxu0
        %v3265 = vadd.f32 %v3168, %v3264
        %v3266 = vpop.f32.mrb[0].mxu0
        %v3267 = vpop.f32.mrb[0].mxu0
        %v3268 = vadd.f32 %v3171, %v3267
        %v3269 = vpop.f32.mrb[0].mxu0
        %3270 = vdwg.mxu0
        %v3271 = vmul.f32 %v3209, %v1458
        %v3272 = vmul.f32 %v3212, %v1458
        %v3273 = vmul.f32 %v3217, %v1458
        %v3274 = vmul.f32 %v3220, %v1458
        %v3275 = vmul.f32 %v3225, %v1458
        %v3276 = vmul.f32 %v3228, %v1458
        %v3277 = vmul.f32 %v3233, %v1458
        %v3278 = vmul.f32 %v3236, %v1458
        %v3279 = vmul.f32 %v3241, %v1458
        %v3280 = vmul.f32 %v3244, %v1458
        %v3281 = vmul.f32 %v3249, %v1458
        %v3282 = vmul.f32 %v3252, %v1458
        %v3283 = vmul.f32 %v3257, %v1458
        %v3284 = vmul.f32 %v3260, %v1458
        %v3285 = vmul.f32 %v3265, %v1458
        %v3286 = vmul.f32 %v3268, %v1458
        %v3287 = vadd.f32 %v3271, %v1480
        %v3288 = vadd.f32 %v3272, %v1480
        %v3289 = vadd.f32 %v3273, %v1480
        %v3290 = vadd.f32 %v3274, %v1480
        %v3291 = vadd.f32 %v3275, %v1480
        %v3292 = vadd.f32 %v3276, %v1480
        %v3293 = vadd.f32 %v3277, %v1480
        %v3294 = vadd.f32 %v3278, %v1480
        %v3295 = vadd.f32 %v3279, %v1480
        %v3296 = vadd.f32 %v3280, %v1480
        %v3297 = vadd.f32 %v3281, %v1480
        %v3298 = vadd.f32 %v3282, %v1480
        %v3299 = vadd.f32 %v3283, %v1480
        %v3300 = vadd.f32 %v3284, %v1480
        %v3301 = vadd.f32 %v3285, %v1480
        %v3302 = vadd.f32 %v3286, %v1480
        %vm3303 = vcmp.ge.f32.partialorder %v3287, 0.0
        %vm3304 = vcmp.ge.f32.partialorder %v3288, 0.0
        %vm3305 = vcmp.ge.f32.partialorder %v3289, 0.0
        %vm3306 = vcmp.ge.f32.partialorder %v3290, 0.0
        %vm3307 = vcmp.ge.f32.partialorder %v3291, 0.0
        %vm3308 = vcmp.ge.f32.partialorder %v3292, 0.0
        %vm3309 = vcmp.ge.f32.partialorder %v3293, 0.0
        %vm3310 = vcmp.ge.f32.partialorder %v3294, 0.0
        %vm3311 = vcmp.ge.f32.partialorder %v3295, 0.0
        %vm3312 = vcmp.ge.f32.partialorder %v3296, 0.0
        %vm3313 = vcmp.ge.f32.partialorder %v3297, 0.0
        %vm3314 = vcmp.ge.f32.partialorder %v3298, 0.0
        %vm3315 = vcmp.ge.f32.partialorder %v3299, 0.0
        %vm3316 = vcmp.ge.f32.partialorder %v3300, 0.0
        %vm3317 = vcmp.ge.f32.partialorder %v3301, 0.0
        %vm3318 = vcmp.ge.f32.partialorder %v3302, 0.0
        %v3319 = vmul.f32 %v3287, %v1518
        %v3320 = vmul.f32 %v3288, %v1518
        %v3321 = vmul.f32 %v3289, %v1518
        %v3322 = vmul.f32 %v3290, %v1518
        %v3323 = vmul.f32 %v3291, %v1518
        %v3324 = vmul.f32 %v3292, %v1518
        %v3325 = vmul.f32 %v3293, %v1518
        %v3326 = vmul.f32 %v3294, %v1518
        %v3327 = vmul.f32 %v3295, %v1518
        %v3328 = vmul.f32 %v3296, %v1518
        %v3329 = vmul.f32 %v3297, %v1518
        %v3330 = vmul.f32 %v3298, %v1518
        %v3331 = vmul.f32 %v3299, %v1518
        %v3332 = vmul.f32 %v3300, %v1518
        %v3333 = vmul.f32 %v3301, %v1518
        %v3334 = vmul.f32 %v3302, %v1518
        %v3335 = vsel %vm3303, %v3287, %v3319
        %v3336 = vsel %vm3304, %v3288, %v3320
        %v3337 = vsel %vm3305, %v3289, %v3321
        %v3338 = vsel %vm3306, %v3290, %v3322
        %v3339 = vsel %vm3307, %v3291, %v3323
        %v3340 = vsel %vm3308, %v3292, %v3324
        %v3341 = vsel %vm3309, %v3293, %v3325
        %v3342 = vsel %vm3310, %v3294, %v3326
        %v3343 = vsel %vm3311, %v3295, %v3327
        %v3344 = vsel %vm3312, %v3296, %v3328
        %v3345 = vsel %vm3313, %v3297, %v3329
        %v3346 = vsel %vm3314, %v3298, %v3330
        %v3347 = vsel %vm3315, %v3299, %v3331
        %v3348 = vsel %vm3316, %v3300, %v3332
        %v3349 = vsel %vm3317, %v3301, %v3333
        %v3350 = vsel %vm3318, %v3302, %v3334
        %s3351 = scalar_lea.vmem %s5, 576
        %v3352 = vld [vmem:[%s3351] sm:$0xf]
        %v3353 = vld [vmem:[%s3351 + $0x4] sm:$0xf]
        %v3354 = vld [vmem:[%s3351 + $0x8] sm:$0xf]
        %v3355 = vld [vmem:[%s3351 + $0xc] sm:$0xf]
        %v3356 = vld [vmem:[%s3351 + $0x10] sm:$0xf]
        %v3357 = vld [vmem:[%s3351 + $0x14] sm:$0xf]
        %v3358 = vld [vmem:[%s3351 + $0x18] sm:$0xf]
        %v3359 = vld [vmem:[%s3351 + $0x1c] sm:$0xf]
        %v3360 = vld [vmem:[%s3351 + $0x20] sm:$0xf]
        %v3361 = vld [vmem:[%s3351 + $0x24] sm:$0xf]
        %v3362 = vld [vmem:[%s3351 + $0x28] sm:$0xf]
        %v3363 = vld [vmem:[%s3351 + $0x2c] sm:$0xf]
        %v3364 = vld [vmem:[%s3351 + $0x30] sm:$0xf]
        %v3365 = vld [vmem:[%s3351 + $0x34] sm:$0xf]
        %v3366 = vld [vmem:[%s3351 + $0x38] sm:$0xf]
        %v3367 = vld [vmem:[%s3351 + $0x3c] sm:$0xf]
        %v3368 = vld [vmem:[%s3351 + $0x40] sm:$0xf]
        %v3369 = vld [vmem:[%s3351 + $0x44] sm:$0xf]
        %v3370 = vld [vmem:[%s3351 + $0x48] sm:$0xf]
        %v3371 = vld [vmem:[%s3351 + $0x4c] sm:$0xf]
        %v3372 = vld [vmem:[%s3351 + $0x50] sm:$0xf]
        %v3373 = vld [vmem:[%s3351 + $0x54] sm:$0xf]
        %v3374 = vld [vmem:[%s3351 + $0x58] sm:$0xf]
        %v3375 = vld [vmem:[%s3351 + $0x5c] sm:$0xf]
        %v3376 = vld [vmem:[%s3351 + $0x60] sm:$0xf]
        %v3377 = vld [vmem:[%s3351 + $0x64] sm:$0xf]
        %v3378 = vld [vmem:[%s3351 + $0x68] sm:$0xf]
        %v3379 = vld [vmem:[%s3351 + $0x6c] sm:$0xf]
        %v3380 = vld [vmem:[%s3351 + $0x70] sm:$0xf]
        %v3381 = vld [vmem:[%s3351 + $0x74] sm:$0xf]
        %v3382 = vld [vmem:[%s3351 + $0x78] sm:$0xf]
        %v3383 = vld [vmem:[%s3351 + $0x7c] sm:$0xf]
        %v3384 = vld [vmem:[%s3351 + $0x80] sm:$0xf]
        %v3385 = vld [vmem:[%s3351 + $0x84] sm:$0xf]
        %v3386 = vld [vmem:[%s3351 + $0x88] sm:$0xf]
        %v3387 = vld [vmem:[%s3351 + $0x8c] sm:$0xf]
        %v3388 = vld [vmem:[%s3351 + $0x90] sm:$0xf]
        %v3389 = vld [vmem:[%s3351 + $0x94] sm:$0xf]
        %v3390 = vld [vmem:[%s3351 + $0x98] sm:$0xf]
        %v3391 = vld [vmem:[%s3351 + $0x9c] sm:$0xf]
        %v3392 = vld [vmem:[%s3351 + $0xa0] sm:$0xf]
        %v3393 = vld [vmem:[%s3351 + $0xa4] sm:$0xf]
        %v3394 = vld [vmem:[%s3351 + $0xa8] sm:$0xf]
        %v3395 = vld [vmem:[%s3351 + $0xac] sm:$0xf]
        %v3396 = vld [vmem:[%s3351 + $0xb0] sm:$0xf]
        %v3397 = vld [vmem:[%s3351 + $0xb4] sm:$0xf]
        %v3398 = vld [vmem:[%s3351 + $0xb8] sm:$0xf]
        %v3399 = vld [vmem:[%s3351 + $0xbc] sm:$0xf]
        %s3400 = scalar_lea.vmem %s6, 3
        %v3401 = vld [vmem:[%s3400] sm:$0x1]
        %v3402 = vrot.slane %v3335, 7
        %v3403 = vrot.slane %v3336, 7
        %v3404 = vrot.slane %v3337, 7
        %v3405 = vrot.slane %v3338, 7
        %v3406 = vrot.slane %v3339, 7
        %v3407 = vrot.slane %v3340, 7
        %v3408 = vrot.slane %v3341, 7
        %v3409 = vrot.slane %v3342, 7
        %v3410 = vrot.slane %v3343, 7
        %v3411 = vrot.slane %v3344, 7
        %v3412 = vrot.slane %v3345, 7
        %v3413 = vrot.slane %v3346, 7
        %v3414 = vrot.slane %v3347, 7
        %v3415 = vrot.slane %v3348, 7
        %v3416 = vrot.slane %v3349, 7
        %v3417 = vrot.slane %v3350, 7
        %v3418 = vsel %vm975, %v3416, %v3417
        %v3419 = vsel %vm975, %v3415, %v3416
        %v3420 = vsel %vm975, %v3414, %v3415
        %v3421 = vsel %vm975, %v3413, %v3414
        %v3422 = vsel %vm975, %v3412, %v3413
        %v3423 = vsel %vm975, %v3411, %v3412
        %v3424 = vsel %vm975, %v3410, %v3411
        %v3425 = vsel %vm975, %v3409, %v3410
        %v3426 = vsel %vm975, %v3408, %v3409
        %v3427 = vsel %vm975, %v3407, %v3408
        %v3428 = vsel %vm975, %v3406, %v3407
        %v3429 = vsel %vm975, %v3405, %v3406
        %v3430 = vsel %vm975, %v3404, %v3405
        %v3431 = vsel %vm975, %v3403, %v3404
        %v3432 = vsel %vm975, %v3402, %v3403
        %v3433 = vsel %vm975, %v3417, %v3402
        %v3434 = vsel %vm1008, %v3433, 0.0
        %v3435 = vsel %vm1009, %v3432, 0.0
        %v3436 = vsel %vm1010, %v3431, 0.0
        %v3437 = vsel %vm1011, %v3430, 0.0
        %v3438 = vsel %vm1012, %v3429, 0.0
        %v3439 = vsel %vm1013, %v3428, 0.0
        %v3440 = vsel %vm1014, %v3427, 0.0
        %v3441 = vsel %vm1015, %v3426, 0.0
        %v3442 = vsel %vm1016, %v3425, 0.0
        %v3443 = vsel %vm1017, %v3424, 0.0
        %v3444 = vsel %vm1018, %v3423, 0.0
        %v3445 = vsel %vm1019, %v3422, 0.0
        %v3446 = vsel %vm1020, %v3421, 0.0
        %v3447 = vsel %vm1021, %v3420, 0.0
        %v3448 = vsel %vm1022, %v3419, 0.0
        %v3449 = vsel %vm1023, %v3418, 0.0
        %v3450 = vrot.slane %v3335, 1
        %v3451 = vrot.slane %v3336, 1
        %v3452 = vrot.slane %v3337, 1
        %v3453 = vrot.slane %v3338, 1
        %v3454 = vrot.slane %v3339, 1
        %v3455 = vrot.slane %v3340, 1
        %v3456 = vrot.slane %v3341, 1
        %v3457 = vrot.slane %v3342, 1
        %v3458 = vrot.slane %v3343, 1
        %v3459 = vrot.slane %v3344, 1
        %v3460 = vrot.slane %v3345, 1
        %v3461 = vrot.slane %v3346, 1
        %v3462 = vrot.slane %v3347, 1
        %v3463 = vrot.slane %v3348, 1
        %v3464 = vrot.slane %v3349, 1
        %v3465 = vrot.slane %v3350, 1
        %v3466 = vsel %vm1056, %v3464, %v3465
        %v3467 = vsel %vm1056, %v3463, %v3464
        %v3468 = vsel %vm1056, %v3462, %v3463
        %v3469 = vsel %vm1056, %v3461, %v3462
        %v3470 = vsel %vm1056, %v3460, %v3461
        %v3471 = vsel %vm1056, %v3459, %v3460
        %v3472 = vsel %vm1056, %v3458, %v3459
        %v3473 = vsel %vm1056, %v3457, %v3458
        %v3474 = vsel %vm1056, %v3456, %v3457
        %v3475 = vsel %vm1056, %v3455, %v3456
        %v3476 = vsel %vm1056, %v3454, %v3455
        %v3477 = vsel %vm1056, %v3453, %v3454
        %v3478 = vsel %vm1056, %v3452, %v3453
        %v3479 = vsel %vm1056, %v3451, %v3452
        %v3480 = vsel %vm1056, %v3450, %v3451
        %v3481 = vsel %vm1056, %v3465, %v3450
        %v3482 = vsel %vm1089, %v3480, 0.0
        %v3483 = vsel %vm1090, %v3479, 0.0
        %v3484 = vsel %vm1091, %v3478, 0.0
        %v3485 = vsel %vm1092, %v3477, 0.0
        %v3486 = vsel %vm1093, %v3476, 0.0
        %v3487 = vsel %vm1094, %v3475, 0.0
        %v3488 = vsel %vm1095, %v3474, 0.0
        %v3489 = vsel %vm1096, %v3473, 0.0
        %v3490 = vsel %vm1097, %v3472, 0.0
        %v3491 = vsel %vm1098, %v3471, 0.0
        %v3492 = vsel %vm1099, %v3470, 0.0
        %v3493 = vsel %vm1100, %v3469, 0.0
        %v3494 = vsel %vm1101, %v3468, 0.0
        %v3495 = vsel %vm1102, %v3467, 0.0
        %v3496 = vsel %vm1103, %v3466, 0.0
        %v3497 = vsel %vm1104, %v3481, 0.0
        %v3498 = vpack.c.bf16 %v3435, %v3434
        %v3499 = vpack.c.bf16 %v3336, %v3335
        %v3500 = vpack.c.bf16 %v3483, %v3482
        %v3501 = vpack.c.bf16 %v3437, %v3436
        %v3502 = vpack.c.bf16 %v3338, %v3337
        %v3503 = vpack.c.bf16 %v3485, %v3484
        %v3504 = vpack.c.bf16 %v3439, %v3438
        %v3505 = vpack.c.bf16 %v3340, %v3339
        %v3506 = vpack.c.bf16 %v3487, %v3486
        %v3507 = vpack.c.bf16 %v3441, %v3440
        %v3508 = vpack.c.bf16 %v3342, %v3341
        %v3509 = vpack.c.bf16 %v3489, %v3488
        %v3510 = vpack.c.bf16 %v3443, %v3442
        %v3511 = vpack.c.bf16 %v3344, %v3343
        %v3512 = vpack.c.bf16 %v3491, %v3490
        %v3513 = vpack.c.bf16 %v3445, %v3444
        %v3514 = vpack.c.bf16 %v3346, %v3345
        %v3515 = vpack.c.bf16 %v3493, %v3492
        %v3516 = vpack.c.bf16 %v3447, %v3446
        %v3517 = vpack.c.bf16 %v3348, %v3347
        %v3518 = vpack.c.bf16 %v3495, %v3494
        %v3519 = vpack.c.bf16 %v3449, %v3448
        %v3520 = vpack.c.bf16 %v3350, %v3349
        %v3521 = vpack.c.bf16 %v3497, %v3496
        %v3523 = vlaneseq
        %v3524 = vshrl.u32 %v3523, 7
        %v3525 = vsub.s32 0, %v3524
        %v3526 = vrot.slane %v3401, %v3525
        %v3576 = vunpack.c.l.b16 %v3352
        %v3577 = vunpack.c.l.b16 %v3353
        %v3578 = vunpack.c.l.b16 %v3354
        %v3579 = vunpack.c.l.b16 %v3355
        %v3580 = vunpack.c.l.b16 %v3356
        %v3581 = vunpack.c.l.b16 %v3357
        %v3582 = vunpack.c.l.b16 %v3358
        %v3583 = vunpack.c.l.b16 %v3359
        %v3584 = vunpack.c.l.b16 %v3360
        %v3585 = vunpack.c.l.b16 %v3361
        %v3586 = vunpack.c.l.b16 %v3362
        %v3587 = vunpack.c.l.b16 %v3363
        %v3588 = vunpack.c.l.b16 %v3364
        %v3589 = vunpack.c.l.b16 %v3365
        %v3590 = vunpack.c.l.b16 %v3366
        %v3591 = vunpack.c.l.b16 %v3367
        %v3592 = vunpack.c.l.b16 %v3368
        %v3593 = vunpack.c.l.b16 %v3369
        %v3594 = vunpack.c.l.b16 %v3370
        %v3595 = vunpack.c.l.b16 %v3371
        %v3596 = vunpack.c.l.b16 %v3372
        %v3597 = vunpack.c.l.b16 %v3373
        %v3598 = vunpack.c.l.b16 %v3374
        %v3599 = vunpack.c.l.b16 %v3375
        %v3600 = vunpack.c.l.b16 %v3376
        %v3601 = vunpack.c.l.b16 %v3377
        %v3602 = vunpack.c.l.b16 %v3378
        %v3603 = vunpack.c.l.b16 %v3379
        %v3604 = vunpack.c.l.b16 %v3380
        %v3605 = vunpack.c.l.b16 %v3381
        %v3606 = vunpack.c.l.b16 %v3382
        %v3607 = vunpack.c.l.b16 %v3383
        %v3608 = vunpack.c.l.b16 %v3384
        %v3609 = vunpack.c.l.b16 %v3385
        %v3610 = vunpack.c.l.b16 %v3386
        %v3611 = vunpack.c.l.b16 %v3387
        %v3612 = vunpack.c.l.b16 %v3388
        %v3613 = vunpack.c.l.b16 %v3389
        %v3614 = vunpack.c.l.b16 %v3390
        %v3615 = vunpack.c.l.b16 %v3391
        %v3616 = vunpack.c.l.b16 %v3392
        %v3617 = vunpack.c.l.b16 %v3393
        %v3618 = vunpack.c.l.b16 %v3394
        %v3619 = vunpack.c.l.b16 %v3395
        %v3620 = vunpack.c.l.b16 %v3396
        %v3621 = vunpack.c.l.b16 %v3397
        %v3622 = vunpack.c.l.b16 %v3398
        %v3623 = vunpack.c.l.b16 %v3399
        %v3624 = vpack.c.b16 %v3577, %v3576
        %v3625 = vpack.c.b16 %v3579, %v3578
        %v3626 = vpack.c.b16 %v3581, %v3580
        %v3627 = vpack.c.b16 %v3583, %v3582
        %v3628 = vpack.c.b16 %v3585, %v3584
        %v3629 = vpack.c.b16 %v3587, %v3586
        %v3630 = vpack.c.b16 %v3589, %v3588
        %v3631 = vpack.c.b16 %v3591, %v3590
        %v3632 = vpack.c.b16 %v3593, %v3592
        %v3633 = vpack.c.b16 %v3595, %v3594
        %v3634 = vpack.c.b16 %v3597, %v3596
        %v3635 = vpack.c.b16 %v3599, %v3598
        %v3636 = vpack.c.b16 %v3601, %v3600
        %v3637 = vpack.c.b16 %v3603, %v3602
        %v3638 = vpack.c.b16 %v3605, %v3604
        %v3639 = vpack.c.b16 %v3607, %v3606
        %v3640 = vpack.c.b16 %v3609, %v3608
        %v3641 = vpack.c.b16 %v3611, %v3610
        %v3642 = vpack.c.b16 %v3613, %v3612
        %v3643 = vpack.c.b16 %v3615, %v3614
        %v3644 = vpack.c.b16 %v3617, %v3616
        %v3645 = vpack.c.b16 %v3619, %v3618
        %v3646 = vpack.c.b16 %v3621, %v3620
        %v3647 = vpack.c.b16 %v3623, %v3622
        %3672 = vmatprep.subr.bf16.mxu0 0
        %3673 = vmatpush1.bf16.msra.mxu0 %v3624
        %3674 = vmatprep.subr.bf16.mxu0 0
        %3675 = vmatpush1.bf16.msra.mxu0 %v3625
        %3676 = vmatprep.subr.bf16.mxu0 0
        %3677 = vmatpush1.bf16.msra.mxu0 %v3626
        %3678 = vmatprep.subr.bf16.mxu0 0
        %3679 = vmatpush1.bf16.msra.mxu0 %v3627
        %3680 = vmatprep.subr.bf16.mxu0 0
        %3681 = vmatpush1.bf16.msra.mxu0 %v3628
        %3682 = vmatprep.subr.bf16.mxu0 0
        %3683 = vmatpush1.bf16.msra.mxu0 %v3629
        %3684 = vmatprep.subr.bf16.mxu0 0
        %3685 = vmatpush1.bf16.msra.mxu0 %v3630
        %3686 = vmatprep.subr.bf16.mxu0 0
        %3687 = vmatpush1.bf16.msra.mxu0 %v3631
        %3688 = vmatprep.subr.bf16.mxu0 0
        %3689 = vmatpush1.bf16.msra.mxu0 %v3632
        %3690 = vmatprep.subr.bf16.mxu0 0
        %3691 = vmatpush1.bf16.msra.mxu0 %v3633
        %3692 = vmatprep.subr.bf16.mxu0 0
        %3693 = vmatpush1.bf16.msra.mxu0 %v3634
        %3694 = vmatprep.subr.bf16.mxu0 0
        %3695 = vmatpush1.bf16.msra.mxu0 %v3635
        %3696 = vmatprep.subr.bf16.mxu0 0
        %3697 = vmatpush1.bf16.msra.mxu0 %v3636
        %3698 = vmatprep.subr.bf16.mxu0 0
        %3699 = vmatpush1.bf16.msra.mxu0 %v3637
        %3700 = vmatprep.subr.bf16.mxu0 0
        %3701 = vmatpush1.bf16.msra.mxu0 %v3638
        %3702 = vmatprep.subr.bf16.mxu0 0
        %3703 = vmatpush1.bf16.msra.mxu0 %v3639
        %3704 = vmatprep.mubr.bf16.mxu0 %v3499
        %3705 = vmatmul.mubr.bf16.gmra.mrb[0].mxu0 %v3498
        %v3706 = vpop.f32.mrb[0].mxu0
        %v3707 = vadd.f32 %v3526, %v3706
        %v3708 = vpop.f32.mrb[0].mxu0
        %v3709 = vpop.f32.mrb[0].mxu0
        %v3710 = vadd.f32 %v3526, %v3709
        %v3711 = vpop.f32.mrb[0].mxu0
        %3712 = vmatprep.mubr.bf16.mxu0 %v3502
        %3713 = vmatmul.mubr.bf16.gmra.mrb[0].mxu0 %v3501
        %v3714 = vpop.f32.mrb[0].mxu0
        %v3715 = vadd.f32 %v3526, %v3714
        %v3716 = vpop.f32.mrb[0].mxu0
        %v3717 = vpop.f32.mrb[0].mxu0
        %v3718 = vadd.f32 %v3526, %v3717
        %v3719 = vpop.f32.mrb[0].mxu0
        %3720 = vmatprep.mubr.bf16.mxu0 %v3505
        %3721 = vmatmul.mubr.bf16.gmra.mrb[0].mxu0 %v3504
        %v3722 = vpop.f32.mrb[0].mxu0
        %v3723 = vadd.f32 %v3526, %v3722
        %v3724 = vpop.f32.mrb[0].mxu0
        %v3725 = vpop.f32.mrb[0].mxu0
        %v3726 = vadd.f32 %v3526, %v3725
        %v3727 = vpop.f32.mrb[0].mxu0
        %3728 = vmatprep.mubr.bf16.mxu0 %v3508
        %3729 = vmatmul.mubr.bf16.gmra.mrb[0].mxu0 %v3507
        %v3730 = vpop.f32.mrb[0].mxu0
        %v3731 = vadd.f32 %v3526, %v3730
        %v3732 = vpop.f32.mrb[0].mxu0
        %v3733 = vpop.f32.mrb[0].mxu0
        %v3734 = vadd.f32 %v3526, %v3733
        %v3735 = vpop.f32.mrb[0].mxu0
        %3736 = vmatprep.mubr.bf16.mxu0 %v3511
        %3737 = vmatmul.mubr.bf16.gmra.mrb[0].mxu0 %v3510
        %v3738 = vpop.f32.mrb[0].mxu0
        %v3739 = vadd.f32 %v3526, %v3738
        %v3740 = vpop.f32.mrb[0].mxu0
        %v3741 = vpop.f32.mrb[0].mxu0
        %v3742 = vadd.f32 %v3526, %v3741
        %v3743 = vpop.f32.mrb[0].mxu0
        %3744 = vmatprep.mubr.bf16.mxu0 %v3514
        %3745 = vmatmul.mubr.bf16.gmra.mrb[0].mxu0 %v3513
        %v3746 = vpop.f32.mrb[0].mxu0
        %v3747 = vadd.f32 %v3526, %v3746
        %v3748 = vpop.f32.mrb[0].mxu0
        %v3749 = vpop.f32.mrb[0].mxu0
        %v3750 = vadd.f32 %v3526, %v3749
        %v3751 = vpop.f32.mrb[0].mxu0
        %3752 = vmatprep.mubr.bf16.mxu0 %v3517
        %3753 = vmatmul.mubr.bf16.gmra.mrb[0].mxu0 %v3516
        %v3754 = vpop.f32.mrb[0].mxu0
        %v3755 = vadd.f32 %v3526, %v3754
        %v3756 = vpop.f32.mrb[0].mxu0
        %v3757 = vpop.f32.mrb[0].mxu0
        %v3758 = vadd.f32 %v3526, %v3757
        %v3759 = vpop.f32.mrb[0].mxu0
        %3760 = vmatprep.mubr.bf16.mxu0 %v3520
        %3761 = vmatmul.mubr.bf16.gmra.mrb[0].mxu0 %v3519
        %v3762 = vpop.f32.mrb[0].mxu0
        %v3763 = vadd.f32 %v3526, %v3762
        %v3764 = vpop.f32.mrb[0].mxu0
        %v3765 = vpop.f32.mrb[0].mxu0
        %v3766 = vadd.f32 %v3526, %v3765
        %v3767 = vpop.f32.mrb[0].mxu0
        %3768 = vdwg.mxu0
        %3769 = vmatprep.subr.bf16.mxu0 0
        %3770 = vmatpush1.bf16.msra.mxu0 %v3640
        %3771 = vmatprep.subr.bf16.mxu0 0
        %3772 = vmatpush1.bf16.msra.mxu0 %v3641
        %3773 = vmatprep.subr.bf16.mxu0 0
        %3774 = vmatpush1.bf16.msra.mxu0 %v3642
        %3775 = vmatprep.subr.bf16.mxu0 0
        %3776 = vmatpush1.bf16.msra.mxu0 %v3643
        %3777 = vmatprep.subr.bf16.mxu0 0
        %3778 = vmatpush1.bf16.msra.mxu0 %v3644
        %3779 = vmatprep.subr.bf16.mxu0 0
        %3780 = vmatpush1.bf16.msra.mxu0 %v3645
        %3781 = vmatprep.subr.bf16.mxu0 0
        %3782 = vmatpush1.bf16.msra.mxu0 %v3646
        %3783 = vmatprep.subr.bf16.mxu0 0
        %3784 = vmatpush1.bf16.msra.mxu0 %v3647
        %3785 = vmatprep.subr.bf16.mxu0 0
        %3786 = vmatpush1.bf16.msra.mxu0 0
        %3787 = vmatprep.subr.bf16.mxu0 0
        %3788 = vmatpush1.bf16.msra.mxu0 0
        %3789 = vmatprep.subr.bf16.mxu0 0
        %3790 = vmatpush1.bf16.msra.mxu0 0
        %3791 = vmatprep.subr.bf16.mxu0 0
        %3792 = vmatpush1.bf16.msra.mxu0 0
        %3793 = vmatprep.subr.bf16.mxu0 0
        %3794 = vmatpush1.bf16.msra.mxu0 0
        %3795 = vmatprep.subr.bf16.mxu0 0
        %3796 = vmatpush1.bf16.msra.mxu0 0
        %3797 = vmatprep.subr.bf16.mxu0 0
        %3798 = vmatpush1.bf16.msra.mxu0 0
        %3799 = vmatprep.subr.bf16.mxu0 0
        %3800 = vmatpush1.bf16.msra.mxu0 0
        %3801 = vmatprep.mubr.bf16.mxu0 0
        %3802 = vmatmul.mubr.bf16.gmra.mrb[0].mxu0 %v3500
        %v3803 = vpop.f32.mrb[0].mxu0
        %v3804 = vadd.f32 %v3707, %v3803
        %v3805 = vpop.f32.mrb[0].mxu0
        %v3806 = vpop.f32.mrb[0].mxu0
        %v3807 = vadd.f32 %v3710, %v3806
        %v3808 = vpop.f32.mrb[0].mxu0
        %3809 = vmatprep.mubr.bf16.mxu0 0
        %3810 = vmatmul.mubr.bf16.gmra.mrb[0].mxu0 %v3503
        %v3811 = vpop.f32.mrb[0].mxu0
        %v3812 = vadd.f32 %v3715, %v3811
        %v3813 = vpop.f32.mrb[0].mxu0
        %v3814 = vpop.f32.mrb[0].mxu0
        %v3815 = vadd.f32 %v3718, %v3814
        %v3816 = vpop.f32.mrb[0].mxu0
        %3817 = vmatprep.mubr.bf16.mxu0 0
        %3818 = vmatmul.mubr.bf16.gmra.mrb[0].mxu0 %v3506
        %v3819 = vpop.f32.mrb[0].mxu0
        %v3820 = vadd.f32 %v3723, %v3819
        %v3821 = vpop.f32.mrb[0].mxu0
        %v3822 = vpop.f32.mrb[0].mxu0
        %v3823 = vadd.f32 %v3726, %v3822
        %v3824 = vpop.f32.mrb[0].mxu0
        %3825 = vmatprep.mubr.bf16.mxu0 0
        %3826 = vmatmul.mubr.bf16.gmra.mrb[0].mxu0 %v3509
        %v3827 = vpop.f32.mrb[0].mxu0
        %v3828 = vadd.f32 %v3731, %v3827
        %v3829 = vpop.f32.mrb[0].mxu0
        %v3830 = vpop.f32.mrb[0].mxu0
        %v3831 = vadd.f32 %v3734, %v3830
        %v3832 = vpop.f32.mrb[0].mxu0
        %3833 = vmatprep.mubr.bf16.mxu0 0
        %3834 = vmatmul.mubr.bf16.gmra.mrb[0].mxu0 %v3512
        %v3835 = vpop.f32.mrb[0].mxu0
        %v3836 = vadd.f32 %v3739, %v3835
        %v3837 = vpop.f32.mrb[0].mxu0
        %v3838 = vpop.f32.mrb[0].mxu0
        %v3839 = vadd.f32 %v3742, %v3838
        %v3840 = vpop.f32.mrb[0].mxu0
        %3841 = vmatprep.mubr.bf16.mxu0 0
        %3842 = vmatmul.mubr.bf16.gmra.mrb[0].mxu0 %v3515
        %v3843 = vpop.f32.mrb[0].mxu0
        %v3844 = vadd.f32 %v3747, %v3843
        %v3845 = vpop.f32.mrb[0].mxu0
        %v3846 = vpop.f32.mrb[0].mxu0
        %v3847 = vadd.f32 %v3750, %v3846
        %v3848 = vpop.f32.mrb[0].mxu0
        %3849 = vmatprep.mubr.bf16.mxu0 0
        %3850 = vmatmul.mubr.bf16.gmra.mrb[0].mxu0 %v3518
        %v3851 = vpop.f32.mrb[0].mxu0
        %v3852 = vadd.f32 %v3755, %v3851
        %v3853 = vpop.f32.mrb[0].mxu0
        %v3854 = vpop.f32.mrb[0].mxu0
        %v3855 = vadd.f32 %v3758, %v3854
        %v3856 = vpop.f32.mrb[0].mxu0
        %3857 = vmatprep.mubr.bf16.mxu0 0
        %3858 = vmatmul.mubr.bf16.gmra.mrb[0].mxu0 %v3521
        %v3859 = vpop.f32.mrb[0].mxu0
        %v3860 = vadd.f32 %v3763, %v3859
        %v3861 = vpop.f32.mrb[0].mxu0
        %v3862 = vpop.f32.mrb[0].mxu0
        %v3863 = vadd.f32 %v3766, %v3862
        %v3864 = vpop.f32.mrb[0].mxu0
        %3865 = vdwg.mxu0
        %v3866 = vadd.f32 %v3804, %v2660
        %v3867 = vadd.f32 %v3807, %v2661
        %v3868 = vadd.f32 %v3812, %v2662
        %v3869 = vadd.f32 %v3815, %v2663
        %v3870 = vadd.f32 %v3820, %v2664
        %v3871 = vadd.f32 %v3823, %v2665
        %v3872 = vadd.f32 %v3828, %v2666
        %v3873 = vadd.f32 %v3831, %v2667
        %v3874 = vadd.f32 %v3836, %v2668
        %v3875 = vadd.f32 %v3839, %v2669
        %v3876 = vadd.f32 %v3844, %v2670
        %v3877 = vadd.f32 %v3847, %v2671
        %v3878 = vadd.f32 %v3852, %v2672
        %v3879 = vadd.f32 %v3855, %v2673
        %v3880 = vadd.f32 %v3860, %v2674
        %v3881 = vadd.f32 %v3863, %v2675
        %v3882 = vmul.f32 %v3866, %v1458
        %v3883 = vmul.f32 %v3867, %v1458
        %v3884 = vmul.f32 %v3868, %v1458
        %v3885 = vmul.f32 %v3869, %v1458
        %v3886 = vmul.f32 %v3870, %v1458
        %v3887 = vmul.f32 %v3871, %v1458
        %v3888 = vmul.f32 %v3872, %v1458
        %v3889 = vmul.f32 %v3873, %v1458
        %v3890 = vmul.f32 %v3874, %v1458
        %v3891 = vmul.f32 %v3875, %v1458
        %v3892 = vmul.f32 %v3876, %v1458
        %v3893 = vmul.f32 %v3877, %v1458
        %v3894 = vmul.f32 %v3878, %v1458
        %v3895 = vmul.f32 %v3879, %v1458
        %v3896 = vmul.f32 %v3880, %v1458
        %v3897 = vmul.f32 %v3881, %v1458
        %v3898 = vadd.f32 %v3882, %v1480
        %v3899 = vadd.f32 %v3883, %v1480
        %v3900 = vadd.f32 %v3884, %v1480
        %v3901 = vadd.f32 %v3885, %v1480
        %v3902 = vadd.f32 %v3886, %v1480
        %v3903 = vadd.f32 %v3887, %v1480
        %v3904 = vadd.f32 %v3888, %v1480
        %v3905 = vadd.f32 %v3889, %v1480
        %v3906 = vadd.f32 %v3890, %v1480
        %v3907 = vadd.f32 %v3891, %v1480
        %v3908 = vadd.f32 %v3892, %v1480
        %v3909 = vadd.f32 %v3893, %v1480
        %v3910 = vadd.f32 %v3894, %v1480
        %v3911 = vadd.f32 %v3895, %v1480
        %v3912 = vadd.f32 %v3896, %v1480
        %v3913 = vadd.f32 %v3897, %v1480
        %vm3914 = vcmp.ge.f32.partialorder %v3898, 0.0
        %vm3915 = vcmp.ge.f32.partialorder %v3899, 0.0
        %vm3916 = vcmp.ge.f32.partialorder %v3900, 0.0
        %vm3917 = vcmp.ge.f32.partialorder %v3901, 0.0
        %vm3918 = vcmp.ge.f32.partialorder %v3902, 0.0
        %vm3919 = vcmp.ge.f32.partialorder %v3903, 0.0
        %vm3920 = vcmp.ge.f32.partialorder %v3904, 0.0
        %vm3921 = vcmp.ge.f32.partialorder %v3905, 0.0
        %vm3922 = vcmp.ge.f32.partialorder %v3906, 0.0
        %vm3923 = vcmp.ge.f32.partialorder %v3907, 0.0
        %vm3924 = vcmp.ge.f32.partialorder %v3908, 0.0
        %vm3925 = vcmp.ge.f32.partialorder %v3909, 0.0
        %vm3926 = vcmp.ge.f32.partialorder %v3910, 0.0
        %vm3927 = vcmp.ge.f32.partialorder %v3911, 0.0
        %vm3928 = vcmp.ge.f32.partialorder %v3912, 0.0
        %vm3929 = vcmp.ge.f32.partialorder %v3913, 0.0
        %v3930 = vmul.f32 %v3898, %v1518
        %v3931 = vmul.f32 %v3899, %v1518
        %v3932 = vmul.f32 %v3900, %v1518
        %v3933 = vmul.f32 %v3901, %v1518
        %v3934 = vmul.f32 %v3902, %v1518
        %v3935 = vmul.f32 %v3903, %v1518
        %v3936 = vmul.f32 %v3904, %v1518
        %v3937 = vmul.f32 %v3905, %v1518
        %v3938 = vmul.f32 %v3906, %v1518
        %v3939 = vmul.f32 %v3907, %v1518
        %v3940 = vmul.f32 %v3908, %v1518
        %v3941 = vmul.f32 %v3909, %v1518
        %v3942 = vmul.f32 %v3910, %v1518
        %v3943 = vmul.f32 %v3911, %v1518
        %v3944 = vmul.f32 %v3912, %v1518
        %v3945 = vmul.f32 %v3913, %v1518
        %v3946 = vsel %vm3914, %v3898, %v3930
        %v3947 = vsel %vm3915, %v3899, %v3931
        %v3948 = vsel %vm3916, %v3900, %v3932
        %v3949 = vsel %vm3917, %v3901, %v3933
        %v3950 = vsel %vm3918, %v3902, %v3934
        %v3951 = vsel %vm3919, %v3903, %v3935
        %v3952 = vsel %vm3920, %v3904, %v3936
        %v3953 = vsel %vm3921, %v3905, %v3937
        %v3954 = vsel %vm3922, %v3906, %v3938
        %v3955 = vsel %vm3923, %v3907, %v3939
        %v3956 = vsel %vm3924, %v3908, %v3940
        %v3957 = vsel %vm3925, %v3909, %v3941
        %v3958 = vsel %vm3926, %v3910, %v3942
        %v3959 = vsel %vm3927, %v3911, %v3943
        %v3960 = vsel %vm3928, %v3912, %v3944
        %v3961 = vsel %vm3929, %v3913, %v3945
        %s3962 = scalar_lea.vmem %s5, 768
        %v3963 = vld [vmem:[%s3962] sm:$0xf]
        %v3964 = vld [vmem:[%s3962 + $0x4] sm:$0xf]
        %v3965 = vld [vmem:[%s3962 + $0x8] sm:$0xf]
        %v3966 = vld [vmem:[%s3962 + $0xc] sm:$0xf]
        %v3967 = vld [vmem:[%s3962 + $0x10] sm:$0xf]
        %v3968 = vld [vmem:[%s3962 + $0x14] sm:$0xf]
        %v3969 = vld [vmem:[%s3962 + $0x18] sm:$0xf]
        %v3970 = vld [vmem:[%s3962 + $0x1c] sm:$0xf]
        %v3971 = vld [vmem:[%s3962 + $0x20] sm:$0xf]
        %v3972 = vld [vmem:[%s3962 + $0x24] sm:$0xf]
        %v3973 = vld [vmem:[%s3962 + $0x28] sm:$0xf]
        %v3974 = vld [vmem:[%s3962 + $0x2c] sm:$0xf]
        %v3975 = vld [vmem:[%s3962 + $0x30] sm:$0xf]
        %v3976 = vld [vmem:[%s3962 + $0x34] sm:$0xf]
        %v3977 = vld [vmem:[%s3962 + $0x38] sm:$0xf]
        %v3978 = vld [vmem:[%s3962 + $0x3c] sm:$0xf]
        %v3979 = vld [vmem:[%s3962 + $0x40] sm:$0xf]
        %v3980 = vld [vmem:[%s3962 + $0x44] sm:$0xf]
        %v3981 = vld [vmem:[%s3962 + $0x48] sm:$0xf]
        %v3982 = vld [vmem:[%s3962 + $0x4c] sm:$0xf]
        %v3983 = vld [vmem:[%s3962 + $0x50] sm:$0xf]
        %v3984 = vld [vmem:[%s3962 + $0x54] sm:$0xf]
        %v3985 = vld [vmem:[%s3962 + $0x58] sm:$0xf]
        %v3986 = vld [vmem:[%s3962 + $0x5c] sm:$0xf]
        %v3987 = vld [vmem:[%s3962 + $0x60] sm:$0xf]
        %v3988 = vld [vmem:[%s3962 + $0x64] sm:$0xf]
        %v3989 = vld [vmem:[%s3962 + $0x68] sm:$0xf]
        %v3990 = vld [vmem:[%s3962 + $0x6c] sm:$0xf]
        %v3991 = vld [vmem:[%s3962 + $0x70] sm:$0xf]
        %v3992 = vld [vmem:[%s3962 + $0x74] sm:$0xf]
        %v3993 = vld [vmem:[%s3962 + $0x78] sm:$0xf]
        %v3994 = vld [vmem:[%s3962 + $0x7c] sm:$0xf]
        %v3995 = vld [vmem:[%s3962 + $0x80] sm:$0xf]
        %v3996 = vld [vmem:[%s3962 + $0x84] sm:$0xf]
        %v3997 = vld [vmem:[%s3962 + $0x88] sm:$0xf]
        %v3998 = vld [vmem:[%s3962 + $0x8c] sm:$0xf]
        %v3999 = vld [vmem:[%s3962 + $0x90] sm:$0xf]
        %v4000 = vld [vmem:[%s3962 + $0x94] sm:$0xf]
        %v4001 = vld [vmem:[%s3962 + $0x98] sm:$0xf]
        %v4002 = vld [vmem:[%s3962 + $0x9c] sm:$0xf]
        %v4003 = vld [vmem:[%s3962 + $0xa0] sm:$0xf]
        %v4004 = vld [vmem:[%s3962 + $0xa4] sm:$0xf]
        %v4005 = vld [vmem:[%s3962 + $0xa8] sm:$0xf]
        %v4006 = vld [vmem:[%s3962 + $0xac] sm:$0xf]
        %v4007 = vld [vmem:[%s3962 + $0xb0] sm:$0xf]
        %v4008 = vld [vmem:[%s3962 + $0xb4] sm:$0xf]
        %v4009 = vld [vmem:[%s3962 + $0xb8] sm:$0xf]
        %v4010 = vld [vmem:[%s3962 + $0xbc] sm:$0xf]
        %s4011 = scalar_lea.vmem %s6, 4
        %v4012 = vld [vmem:[%s4011] sm:$0x1]
        %v4013 = vrot.slane %v3946, 7
        %v4014 = vrot.slane %v3947, 7
        %v4015 = vrot.slane %v3948, 7
        %v4016 = vrot.slane %v3949, 7
        %v4017 = vrot.slane %v3950, 7
        %v4018 = vrot.slane %v3951, 7
        %v4019 = vrot.slane %v3952, 7
        %v4020 = vrot.slane %v3953, 7
        %v4021 = vrot.slane %v3954, 7
        %v4022 = vrot.slane %v3955, 7
        %v4023 = vrot.slane %v3956, 7
        %v4024 = vrot.slane %v3957, 7
        %v4025 = vrot.slane %v3958, 7
        %v4026 = vrot.slane %v3959, 7
        %v4027 = vrot.slane %v3960, 7
        %v4028 = vrot.slane %v3961, 7
        %v4029 = vsel %vm975, %v4027, %v4028
        %v4030 = vsel %vm975, %v4026, %v4027
        %v4031 = vsel %vm975, %v4025, %v4026
        %v4032 = vsel %vm975, %v4024, %v4025
        %v4033 = vsel %vm975, %v4023, %v4024
        %v4034 = vsel %vm975, %v4022, %v4023
        %v4035 = vsel %vm975, %v4021, %v4022
        %v4036 = vsel %vm975, %v4020, %v4021
        %v4037 = vsel %vm975, %v4019, %v4020
        %v4038 = vsel %vm975, %v4018, %v4019
        %v4039 = vsel %vm975, %v4017, %v4018
        %v4040 = vsel %vm975, %v4016, %v4017
        %v4041 = vsel %vm975, %v4015, %v4016
        %v4042 = vsel %vm975, %v4014, %v4015
        %v4043 = vsel %vm975, %v4013, %v4014
        %v4044 = vsel %vm975, %v4028, %v4013
        %v4045 = vsel %vm1008, %v4044, 0.0
        %v4046 = vsel %vm1009, %v4043, 0.0
        %v4047 = vsel %vm1010, %v4042, 0.0
        %v4048 = vsel %vm1011, %v4041, 0.0
        %v4049 = vsel %vm1012, %v4040, 0.0
        %v4050 = vsel %vm1013, %v4039, 0.0
        %v4051 = vsel %vm1014, %v4038, 0.0
        %v4052 = vsel %vm1015, %v4037, 0.0
        %v4053 = vsel %vm1016, %v4036, 0.0
        %v4054 = vsel %vm1017, %v4035, 0.0
        %v4055 = vsel %vm1018, %v4034, 0.0
        %v4056 = vsel %vm1019, %v4033, 0.0
        %v4057 = vsel %vm1020, %v4032, 0.0
        %v4058 = vsel %vm1021, %v4031, 0.0
        %v4059 = vsel %vm1022, %v4030, 0.0
        %v4060 = vsel %vm1023, %v4029, 0.0
        %v4061 = vrot.slane %v3946, 1
        %v4062 = vrot.slane %v3947, 1
        %v4063 = vrot.slane %v3948, 1
        %v4064 = vrot.slane %v3949, 1
        %v4065 = vrot.slane %v3950, 1
        %v4066 = vrot.slane %v3951, 1
        %v4067 = vrot.slane %v3952, 1
        %v4068 = vrot.slane %v3953, 1
        %v4069 = vrot.slane %v3954, 1
        %v4070 = vrot.slane %v3955, 1
        %v4071 = vrot.slane %v3956, 1
        %v4072 = vrot.slane %v3957, 1
        %v4073 = vrot.slane %v3958, 1
        %v4074 = vrot.slane %v3959, 1
        %v4075 = vrot.slane %v3960, 1
        %v4076 = vrot.slane %v3961, 1
        %v4077 = vsel %vm1056, %v4075, %v4076
        %v4078 = vsel %vm1056, %v4074, %v4075
        %v4079 = vsel %vm1056, %v4073, %v4074
        %v4080 = vsel %vm1056, %v4072, %v4073
        %v4081 = vsel %vm1056, %v4071, %v4072
        %v4082 = vsel %vm1056, %v4070, %v4071
        %v4083 = vsel %vm1056, %v4069, %v4070
        %v4084 = vsel %vm1056, %v4068, %v4069
        %v4085 = vsel %vm1056, %v4067, %v4068
        %v4086 = vsel %vm1056, %v4066, %v4067
        %v4087 = vsel %vm1056, %v4065, %v4066
        %v4088 = vsel %vm1056, %v4064, %v4065
        %v4089 = vsel %vm1056, %v4063, %v4064
        %v4090 = vsel %vm1056, %v4062, %v4063
        %v4091 = vsel %vm1056, %v4061, %v4062
        %v4092 = vsel %vm1056, %v4076, %v4061
        %v4093 = vsel %vm1089, %v4091, 0.0
        %v4094 = vsel %vm1090, %v4090, 0.0
        %v4095 = vsel %vm1091, %v4089, 0.0
        %v4096 = vsel %vm1092, %v4088, 0.0
        %v4097 = vsel %vm1093, %v4087, 0.0
        %v4098 = vsel %vm1094, %v4086, 0.0
        %v4099 = vsel %vm1095, %v4085, 0.0
        %v4100 = vsel %vm1096, %v4084, 0.0
        %v4101 = vsel %vm1097, %v4083, 0.0
        %v4102 = vsel %vm1098, %v4082, 0.0
        %v4103 = vsel %vm1099, %v4081, 0.0
        %v4104 = vsel %vm1100, %v4080, 0.0
        %v4105 = vsel %vm1101, %v4079, 0.0
        %v4106 = vsel %vm1102, %v4078, 0.0
        %v4107 = vsel %vm1103, %v4077, 0.0
        %v4108 = vsel %vm1104, %v4092, 0.0
        %v4109 = vpack.c.bf16 %v4046, %v4045
        %v4110 = vpack.c.bf16 %v3947, %v3946
        %v4111 = vpack.c.bf16 %v4094, %v4093
        %v4112 = vpack.c.bf16 %v4048, %v4047
        %v4113 = vpack.c.bf16 %v3949, %v3948
        %v4114 = vpack.c.bf16 %v4096, %v4095
        %v4115 = vpack.c.bf16 %v4050, %v4049
        %v4116 = vpack.c.bf16 %v3951, %v3950
        %v4117 = vpack.c.bf16 %v4098, %v4097
        %v4118 = vpack.c.bf16 %v4052, %v4051
        %v4119 = vpack.c.bf16 %v3953, %v3952
        %v4120 = vpack.c.bf16 %v4100, %v4099
        %v4121 = vpack.c.bf16 %v4054, %v4053
        %v4122 = vpack.c.bf16 %v3955, %v3954
        %v4123 = vpack.c.bf16 %v4102, %v4101
        %v4124 = vpack.c.bf16 %v4056, %v4055
        %v4125 = vpack.c.bf16 %v3957, %v3956
        %v4126 = vpack.c.bf16 %v4104, %v4103
        %v4127 = vpack.c.bf16 %v4058, %v4057
        %v4128 = vpack.c.bf16 %v3959, %v3958
        %v4129 = vpack.c.bf16 %v4106, %v4105
        %v4130 = vpack.c.bf16 %v4060, %v4059
        %v4131 = vpack.c.bf16 %v3961, %v3960
        %v4132 = vpack.c.bf16 %v4108, %v4107
        %v4134 = vlaneseq
        %v4135 = vshrl.u32 %v4134, 7
        %v4136 = vsub.s32 0, %v4135
        %v4137 = vrot.slane %v4012, %v4136
        %v4187 = vunpack.c.l.b16 %v3963
        %v4188 = vunpack.c.l.b16 %v3964
        %v4189 = vunpack.c.l.b16 %v3965
        %v4190 = vunpack.c.l.b16 %v3966
        %v4191 = vunpack.c.l.b16 %v3967
        %v4192 = vunpack.c.l.b16 %v3968
        %v4193 = vunpack.c.l.b16 %v3969
        %v4194 = vunpack.c.l.b16 %v3970
        %v4195 = vunpack.c.l.b16 %v3971
        %v4196 = vunpack.c.l.b16 %v3972
        %v4197 = vunpack.c.l.b16 %v3973
        %v4198 = vunpack.c.l.b16 %v3974
        %v4199 = vunpack.c.l.b16 %v3975
        %v4200 = vunpack.c.l.b16 %v3976
        %v4201 = vunpack.c.l.b16 %v3977
        %v4202 = vunpack.c.l.b16 %v3978
        %v4203 = vunpack.c.l.b16 %v3979
        %v4204 = vunpack.c.l.b16 %v3980
        %v4205 = vunpack.c.l.b16 %v3981
        %v4206 = vunpack.c.l.b16 %v3982
        %v4207 = vunpack.c.l.b16 %v3983
        %v4208 = vunpack.c.l.b16 %v3984
        %v4209 = vunpack.c.l.b16 %v3985
        %v4210 = vunpack.c.l.b16 %v3986
        %v4211 = vunpack.c.l.b16 %v3987
        %v4212 = vunpack.c.l.b16 %v3988
        %v4213 = vunpack.c.l.b16 %v3989
        %v4214 = vunpack.c.l.b16 %v3990
        %v4215 = vunpack.c.l.b16 %v3991
        %v4216 = vunpack.c.l.b16 %v3992
        %v4217 = vunpack.c.l.b16 %v3993
        %v4218 = vunpack.c.l.b16 %v3994
        %v4219 = vunpack.c.l.b16 %v3995
        %v4220 = vunpack.c.l.b16 %v3996
        %v4221 = vunpack.c.l.b16 %v3997
        %v4222 = vunpack.c.l.b16 %v3998
        %v4223 = vunpack.c.l.b16 %v3999
        %v4224 = vunpack.c.l.b16 %v4000
        %v4225 = vunpack.c.l.b16 %v4001
        %v4226 = vunpack.c.l.b16 %v4002
        %v4227 = vunpack.c.l.b16 %v4003
        %v4228 = vunpack.c.l.b16 %v4004
        %v4229 = vunpack.c.l.b16 %v4005
        %v4230 = vunpack.c.l.b16 %v4006
        %v4231 = vunpack.c.l.b16 %v4007
        %v4232 = vunpack.c.l.b16 %v4008
        %v4233 = vunpack.c.l.b16 %v4009
        %v4234 = vunpack.c.l.b16 %v4010
        %v4235 = vpack.c.b16 %v4188, %v4187
        %v4236 = vpack.c.b16 %v4190, %v4189
        %v4237 = vpack.c.b16 %v4192, %v4191
        %v4238 = vpack.c.b16 %v4194, %v4193
        %v4239 = vpack.c.b16 %v4196, %v4195
        %v4240 = vpack.c.b16 %v4198, %v4197
        %v4241 = vpack.c.b16 %v4200, %v4199
        %v4242 = vpack.c.b16 %v4202, %v4201
        %v4243 = vpack.c.b16 %v4204, %v4203
        %v4244 = vpack.c.b16 %v4206, %v4205
        %v4245 = vpack.c.b16 %v4208, %v4207
        %v4246 = vpack.c.b16 %v4210, %v4209
        %v4247 = vpack.c.b16 %v4212, %v4211
        %v4248 = vpack.c.b16 %v4214, %v4213
        %v4249 = vpack.c.b16 %v4216, %v4215
        %v4250 = vpack.c.b16 %v4218, %v4217
        %v4251 = vpack.c.b16 %v4220, %v4219
        %v4252 = vpack.c.b16 %v4222, %v4221
        %v4253 = vpack.c.b16 %v4224, %v4223
        %v4254 = vpack.c.b16 %v4226, %v4225
        %v4255 = vpack.c.b16 %v4228, %v4227
        %v4256 = vpack.c.b16 %v4230, %v4229
        %v4257 = vpack.c.b16 %v4232, %v4231
        %v4258 = vpack.c.b16 %v4234, %v4233
        %4283 = vmatprep.subr.bf16.mxu0 0
        %4284 = vmatpush1.bf16.msra.mxu0 %v4235
        %4285 = vmatprep.subr.bf16.mxu0 0
        %4286 = vmatpush1.bf16.msra.mxu0 %v4236
        %4287 = vmatprep.subr.bf16.mxu0 0
        %4288 = vmatpush1.bf16.msra.mxu0 %v4237
        %4289 = vmatprep.subr.bf16.mxu0 0
        %4290 = vmatpush1.bf16.msra.mxu0 %v4238
        %4291 = vmatprep.subr.bf16.mxu0 0
        %4292 = vmatpush1.bf16.msra.mxu0 %v4239
        %4293 = vmatprep.subr.bf16.mxu0 0
        %4294 = vmatpush1.bf16.msra.mxu0 %v4240
        %4295 = vmatprep.subr.bf16.mxu0 0
        %4296 = vmatpush1.bf16.msra.mxu0 %v4241
        %4297 = vmatprep.subr.bf16.mxu0 0
        %4298 = vmatpush1.bf16.msra.mxu0 %v4242
        %4299 = vmatprep.subr.bf16.mxu0 0
        %4300 = vmatpush1.bf16.msra.mxu0 %v4243
        %4301 = vmatprep.subr.bf16.mxu0 0
        %4302 = vmatpush1.bf16.msra.mxu0 %v4244
        %4303 = vmatprep.subr.bf16.mxu0 0
        %4304 = vmatpush1.bf16.msra.mxu0 %v4245
        %4305 = vmatprep.subr.bf16.mxu0 0
        %4306 = vmatpush1.bf16.msra.mxu0 %v4246
        %4307 = vmatprep.subr.bf16.mxu0 0
        %4308 = vmatpush1.bf16.msra.mxu0 %v4247
        %4309 = vmatprep.subr.bf16.mxu0 0
        %4310 = vmatpush1.bf16.msra.mxu0 %v4248
        %4311 = vmatprep.subr.bf16.mxu0 0
        %4312 = vmatpush1.bf16.msra.mxu0 %v4249
        %4313 = vmatprep.subr.bf16.mxu0 0
        %4314 = vmatpush1.bf16.msra.mxu0 %v4250
        %4315 = vmatprep.mubr.bf16.mxu0 %v4110
        %4316 = vmatmul.mubr.bf16.gmra.mrb[0].mxu0 %v4109
        %v4317 = vpop.f32.mrb[0].mxu0
        %v4318 = vadd.f32 %v4137, %v4317
        %v4319 = vpop.f32.mrb[0].mxu0
        %v4320 = vpop.f32.mrb[0].mxu0
        %v4321 = vadd.f32 %v4137, %v4320
        %v4322 = vpop.f32.mrb[0].mxu0
        %4323 = vmatprep.mubr.bf16.mxu0 %v4113
        %4324 = vmatmul.mubr.bf16.gmra.mrb[0].mxu0 %v4112
        %v4325 = vpop.f32.mrb[0].mxu0
        %v4326 = vadd.f32 %v4137, %v4325
        %v4327 = vpop.f32.mrb[0].mxu0
        %v4328 = vpop.f32.mrb[0].mxu0
        %v4329 = vadd.f32 %v4137, %v4328
        %v4330 = vpop.f32.mrb[0].mxu0
        %4331 = vmatprep.mubr.bf16.mxu0 %v4116
        %4332 = vmatmul.mubr.bf16.gmra.mrb[0].mxu0 %v4115
        %v4333 = vpop.f32.mrb[0].mxu0
        %v4334 = vadd.f32 %v4137, %v4333
        %v4335 = vpop.f32.mrb[0].mxu0
        %v4336 = vpop.f32.mrb[0].mxu0
        %v4337 = vadd.f32 %v4137, %v4336
        %v4338 = vpop.f32.mrb[0].mxu0
        %4339 = vmatprep.mubr.bf16.mxu0 %v4119
        %4340 = vmatmul.mubr.bf16.gmra.mrb[0].mxu0 %v4118
        %v4341 = vpop.f32.mrb[0].mxu0
        %v4342 = vadd.f32 %v4137, %v4341
        %v4343 = vpop.f32.mrb[0].mxu0
        %v4344 = vpop.f32.mrb[0].mxu0
        %v4345 = vadd.f32 %v4137, %v4344
        %v4346 = vpop.f32.mrb[0].mxu0
        %4347 = vmatprep.mubr.bf16.mxu0 %v4122
        %4348 = vmatmul.mubr.bf16.gmra.mrb[0].mxu0 %v4121
        %v4349 = vpop.f32.mrb[0].mxu0
        %v4350 = vadd.f32 %v4137, %v4349
        %v4351 = vpop.f32.mrb[0].mxu0
        %v4352 = vpop.f32.mrb[0].mxu0
        %v4353 = vadd.f32 %v4137, %v4352
        %v4354 = vpop.f32.mrb[0].mxu0
        %4355 = vmatprep.mubr.bf16.mxu0 %v4125
        %4356 = vmatmul.mubr.bf16.gmra.mrb[0].mxu0 %v4124
        %v4357 = vpop.f32.mrb[0].mxu0
        %v4358 = vadd.f32 %v4137, %v4357
        %v4359 = vpop.f32.mrb[0].mxu0
        %v4360 = vpop.f32.mrb[0].mxu0
        %v4361 = vadd.f32 %v4137, %v4360
        %v4362 = vpop.f32.mrb[0].mxu0
        %4363 = vmatprep.mubr.bf16.mxu0 %v4128
        %4364 = vmatmul.mubr.bf16.gmra.mrb[0].mxu0 %v4127
        %v4365 = vpop.f32.mrb[0].mxu0
        %v4366 = vadd.f32 %v4137, %v4365
        %v4367 = vpop.f32.mrb[0].mxu0
        %v4368 = vpop.f32.mrb[0].mxu0
        %v4369 = vadd.f32 %v4137, %v4368
        %v4370 = vpop.f32.mrb[0].mxu0
        %4371 = vmatprep.mubr.bf16.mxu0 %v4131
        %4372 = vmatmul.mubr.bf16.gmra.mrb[0].mxu0 %v4130
        %v4373 = vpop.f32.mrb[0].mxu0
        %v4374 = vadd.f32 %v4137, %v4373
        %v4375 = vpop.f32.mrb[0].mxu0
        %v4376 = vpop.f32.mrb[0].mxu0
        %v4377 = vadd.f32 %v4137, %v4376
        %v4378 = vpop.f32.mrb[0].mxu0
        %4379 = vdwg.mxu0
        %4380 = vmatprep.subr.bf16.mxu0 0
        %4381 = vmatpush1.bf16.msra.mxu0 %v4251
        %4382 = vmatprep.subr.bf16.mxu0 0
        %4383 = vmatpush1.bf16.msra.mxu0 %v4252
        %4384 = vmatprep.subr.bf16.mxu0 0
        %4385 = vmatpush1.bf16.msra.mxu0 %v4253
        %4386 = vmatprep.subr.bf16.mxu0 0
        %4387 = vmatpush1.bf16.msra.mxu0 %v4254
        %4388 = vmatprep.subr.bf16.mxu0 0
        %4389 = vmatpush1.bf16.msra.mxu0 %v4255
        %4390 = vmatprep.subr.bf16.mxu0 0
        %4391 = vmatpush1.bf16.msra.mxu0 %v4256
        %4392 = vmatprep.subr.bf16.mxu0 0
        %4393 = vmatpush1.bf16.msra.mxu0 %v4257
        %4394 = vmatprep.subr.bf16.mxu0 0
        %4395 = vmatpush1.bf16.msra.mxu0 %v4258
        %4396 = vmatprep.subr.bf16.mxu0 0
        %4397 = vmatpush1.bf16.msra.mxu0 0
        %4398 = vmatprep.subr.bf16.mxu0 0
        %4399 = vmatpush1.bf16.msra.mxu0 0
        %4400 = vmatprep.subr.bf16.mxu0 0
        %4401 = vmatpush1.bf16.msra.mxu0 0
        %4402 = vmatprep.subr.bf16.mxu0 0
        %4403 = vmatpush1.bf16.msra.mxu0 0
        %4404 = vmatprep.subr.bf16.mxu0 0
        %4405 = vmatpush1.bf16.msra.mxu0 0
        %4406 = vmatprep.subr.bf16.mxu0 0
        %4407 = vmatpush1.bf16.msra.mxu0 0
        %4408 = vmatprep.subr.bf16.mxu0 0
        %4409 = vmatpush1.bf16.msra.mxu0 0
        %4410 = vmatprep.subr.bf16.mxu0 0
        %4411 = vmatpush1.bf16.msra.mxu0 0
        %4412 = vmatprep.mubr.bf16.mxu0 0
        %4413 = vmatmul.mubr.bf16.gmra.mrb[0].mxu0 %v4111
        %v4414 = vpop.f32.mrb[0].mxu0
        %v4415 = vadd.f32 %v4318, %v4414
        %v4416 = vpop.f32.mrb[0].mxu0
        %v4417 = vpop.f32.mrb[0].mxu0
        %v4418 = vadd.f32 %v4321, %v4417
        %v4419 = vpop.f32.mrb[0].mxu0
        %4420 = vmatprep.mubr.bf16.mxu0 0
        %4421 = vmatmul.mubr.bf16.gmra.mrb[0].mxu0 %v4114
        %v4422 = vpop.f32.mrb[0].mxu0
        %v4423 = vadd.f32 %v4326, %v4422
        %v4424 = vpop.f32.mrb[0].mxu0
        %v4425 = vpop.f32.mrb[0].mxu0
        %v4426 = vadd.f32 %v4329, %v4425
        %v4427 = vpop.f32.mrb[0].mxu0
        %4428 = vmatprep.mubr.bf16.mxu0 0
        %4429 = vmatmul.mubr.bf16.gmra.mrb[0].mxu0 %v4117
        %v4430 = vpop.f32.mrb[0].mxu0
        %v4431 = vadd.f32 %v4334, %v4430
        %v4432 = vpop.f32.mrb[0].mxu0
        %v4433 = vpop.f32.mrb[0].mxu0
        %v4434 = vadd.f32 %v4337, %v4433
        %v4435 = vpop.f32.mrb[0].mxu0
        %4436 = vmatprep.mubr.bf16.mxu0 0
        %4437 = vmatmul.mubr.bf16.gmra.mrb[0].mxu0 %v4120
        %v4438 = vpop.f32.mrb[0].mxu0
        %v4439 = vadd.f32 %v4342, %v4438
        %v4440 = vpop.f32.mrb[0].mxu0
        %v4441 = vpop.f32.mrb[0].mxu0
        %v4442 = vadd.f32 %v4345, %v4441
        %v4443 = vpop.f32.mrb[0].mxu0
        %4444 = vmatprep.mubr.bf16.mxu0 0
        %4445 = vmatmul.mubr.bf16.gmra.mrb[0].mxu0 %v4123
        %v4446 = vpop.f32.mrb[0].mxu0
        %v4447 = vadd.f32 %v4350, %v4446
        %v4448 = vpop.f32.mrb[0].mxu0
        %v4449 = vpop.f32.mrb[0].mxu0
        %v4450 = vadd.f32 %v4353, %v4449
        %v4451 = vpop.f32.mrb[0].mxu0
        %4452 = vmatprep.mubr.bf16.mxu0 0
        %4453 = vmatmul.mubr.bf16.gmra.mrb[0].mxu0 %v4126
        %v4454 = vpop.f32.mrb[0].mxu0
        %v4455 = vadd.f32 %v4358, %v4454
        %v4456 = vpop.f32.mrb[0].mxu0
        %v4457 = vpop.f32.mrb[0].mxu0
        %v4458 = vadd.f32 %v4361, %v4457
        %v4459 = vpop.f32.mrb[0].mxu0
        %4460 = vmatprep.mubr.bf16.mxu0 0
        %4461 = vmatmul.mubr.bf16.gmra.mrb[0].mxu0 %v4129
        %v4462 = vpop.f32.mrb[0].mxu0
        %v4463 = vadd.f32 %v4366, %v4462
        %v4464 = vpop.f32.mrb[0].mxu0
        %v4465 = vpop.f32.mrb[0].mxu0
        %v4466 = vadd.f32 %v4369, %v4465
        %v4467 = vpop.f32.mrb[0].mxu0
        %4468 = vmatprep.mubr.bf16.mxu0 0
        %4469 = vmatmul.mubr.bf16.gmra.mrb[0].mxu0 %v4132
        %v4470 = vpop.f32.mrb[0].mxu0
        %v4471 = vadd.f32 %v4374, %v4470
        %v4472 = vpop.f32.mrb[0].mxu0
        %v4473 = vpop.f32.mrb[0].mxu0
        %v4474 = vadd.f32 %v4377, %v4473
        %v4475 = vpop.f32.mrb[0].mxu0
        %4476 = vdwg.mxu0
        %v4477 = vmul.f32 %v4415, %v1458
        %v4478 = vmul.f32 %v4418, %v1458
        %v4479 = vmul.f32 %v4423, %v1458
        %v4480 = vmul.f32 %v4426, %v1458
        %v4481 = vmul.f32 %v4431, %v1458
        %v4482 = vmul.f32 %v4434, %v1458
        %v4483 = vmul.f32 %v4439, %v1458
        %v4484 = vmul.f32 %v4442, %v1458
        %v4485 = vmul.f32 %v4447, %v1458
        %v4486 = vmul.f32 %v4450, %v1458
        %v4487 = vmul.f32 %v4455, %v1458
        %v4488 = vmul.f32 %v4458, %v1458
        %v4489 = vmul.f32 %v4463, %v1458
        %v4490 = vmul.f32 %v4466, %v1458
        %v4491 = vmul.f32 %v4471, %v1458
        %v4492 = vmul.f32 %v4474, %v1458
        %v4493 = vadd.f32 %v4477, %v1480
        %v4494 = vadd.f32 %v4478, %v1480
        %v4495 = vadd.f32 %v4479, %v1480
        %v4496 = vadd.f32 %v4480, %v1480
        %v4497 = vadd.f32 %v4481, %v1480
        %v4498 = vadd.f32 %v4482, %v1480
        %v4499 = vadd.f32 %v4483, %v1480
        %v4500 = vadd.f32 %v4484, %v1480
        %v4501 = vadd.f32 %v4485, %v1480
        %v4502 = vadd.f32 %v4486, %v1480
        %v4503 = vadd.f32 %v4487, %v1480
        %v4504 = vadd.f32 %v4488, %v1480
        %v4505 = vadd.f32 %v4489, %v1480
        %v4506 = vadd.f32 %v4490, %v1480
        %v4507 = vadd.f32 %v4491, %v1480
        %v4508 = vadd.f32 %v4492, %v1480
        %vm4509 = vcmp.ge.f32.partialorder %v4493, 0.0
        %vm4510 = vcmp.ge.f32.partialorder %v4494, 0.0
        %vm4511 = vcmp.ge.f32.partialorder %v4495, 0.0
        %vm4512 = vcmp.ge.f32.partialorder %v4496, 0.0
        %vm4513 = vcmp.ge.f32.partialorder %v4497, 0.0
        %vm4514 = vcmp.ge.f32.partialorder %v4498, 0.0
        %vm4515 = vcmp.ge.f32.partialorder %v4499, 0.0
        %vm4516 = vcmp.ge.f32.partialorder %v4500, 0.0
        %vm4517 = vcmp.ge.f32.partialorder %v4501, 0.0
        %vm4518 = vcmp.ge.f32.partialorder %v4502, 0.0
        %vm4519 = vcmp.ge.f32.partialorder %v4503, 0.0
        %vm4520 = vcmp.ge.f32.partialorder %v4504, 0.0
        %vm4521 = vcmp.ge.f32.partialorder %v4505, 0.0
        %vm4522 = vcmp.ge.f32.partialorder %v4506, 0.0
        %vm4523 = vcmp.ge.f32.partialorder %v4507, 0.0
        %vm4524 = vcmp.ge.f32.partialorder %v4508, 0.0
        %v4525 = vmul.f32 %v4493, %v1518
        %v4526 = vmul.f32 %v4494, %v1518
        %v4527 = vmul.f32 %v4495, %v1518
        %v4528 = vmul.f32 %v4496, %v1518
        %v4529 = vmul.f32 %v4497, %v1518
        %v4530 = vmul.f32 %v4498, %v1518
        %v4531 = vmul.f32 %v4499, %v1518
        %v4532 = vmul.f32 %v4500, %v1518
        %v4533 = vmul.f32 %v4501, %v1518
        %v4534 = vmul.f32 %v4502, %v1518
        %v4535 = vmul.f32 %v4503, %v1518
        %v4536 = vmul.f32 %v4504, %v1518
        %v4537 = vmul.f32 %v4505, %v1518
        %v4538 = vmul.f32 %v4506, %v1518
        %v4539 = vmul.f32 %v4507, %v1518
        %v4540 = vmul.f32 %v4508, %v1518
        %v4541 = vsel %vm4509, %v4493, %v4525
        %v4542 = vsel %vm4510, %v4494, %v4526
        %v4543 = vsel %vm4511, %v4495, %v4527
        %v4544 = vsel %vm4512, %v4496, %v4528
        %v4545 = vsel %vm4513, %v4497, %v4529
        %v4546 = vsel %vm4514, %v4498, %v4530
        %v4547 = vsel %vm4515, %v4499, %v4531
        %v4548 = vsel %vm4516, %v4500, %v4532
        %v4549 = vsel %vm4517, %v4501, %v4533
        %v4550 = vsel %vm4518, %v4502, %v4534
        %v4551 = vsel %vm4519, %v4503, %v4535
        %v4552 = vsel %vm4520, %v4504, %v4536
        %v4553 = vsel %vm4521, %v4505, %v4537
        %v4554 = vsel %vm4522, %v4506, %v4538
        %v4555 = vsel %vm4523, %v4507, %v4539
        %v4556 = vsel %vm4524, %v4508, %v4540
        %s4557 = scalar_lea.vmem %s5, 960
        %v4558 = vld [vmem:[%s4557] sm:$0xf]
        %v4559 = vld [vmem:[%s4557 + $0x4] sm:$0xf]
        %v4560 = vld [vmem:[%s4557 + $0x8] sm:$0xf]
        %v4561 = vld [vmem:[%s4557 + $0xc] sm:$0xf]
        %v4562 = vld [vmem:[%s4557 + $0x10] sm:$0xf]
        %v4563 = vld [vmem:[%s4557 + $0x14] sm:$0xf]
        %v4564 = vld [vmem:[%s4557 + $0x18] sm:$0xf]
        %v4565 = vld [vmem:[%s4557 + $0x1c] sm:$0xf]
        %v4566 = vld [vmem:[%s4557 + $0x20] sm:$0xf]
        %v4567 = vld [vmem:[%s4557 + $0x24] sm:$0xf]
        %v4568 = vld [vmem:[%s4557 + $0x28] sm:$0xf]
        %v4569 = vld [vmem:[%s4557 + $0x2c] sm:$0xf]
        %v4570 = vld [vmem:[%s4557 + $0x30] sm:$0xf]
        %v4571 = vld [vmem:[%s4557 + $0x34] sm:$0xf]
        %v4572 = vld [vmem:[%s4557 + $0x38] sm:$0xf]
        %v4573 = vld [vmem:[%s4557 + $0x3c] sm:$0xf]
        %v4574 = vld [vmem:[%s4557 + $0x40] sm:$0xf]
        %v4575 = vld [vmem:[%s4557 + $0x44] sm:$0xf]
        %v4576 = vld [vmem:[%s4557 + $0x48] sm:$0xf]
        %v4577 = vld [vmem:[%s4557 + $0x4c] sm:$0xf]
        %v4578 = vld [vmem:[%s4557 + $0x50] sm:$0xf]
        %v4579 = vld [vmem:[%s4557 + $0x54] sm:$0xf]
        %v4580 = vld [vmem:[%s4557 + $0x58] sm:$0xf]
        %v4581 = vld [vmem:[%s4557 + $0x5c] sm:$0xf]
        %v4582 = vld [vmem:[%s4557 + $0x60] sm:$0xf]
        %v4583 = vld [vmem:[%s4557 + $0x64] sm:$0xf]
        %v4584 = vld [vmem:[%s4557 + $0x68] sm:$0xf]
        %v4585 = vld [vmem:[%s4557 + $0x6c] sm:$0xf]
        %v4586 = vld [vmem:[%s4557 + $0x70] sm:$0xf]
        %v4587 = vld [vmem:[%s4557 + $0x74] sm:$0xf]
        %v4588 = vld [vmem:[%s4557 + $0x78] sm:$0xf]
        %v4589 = vld [vmem:[%s4557 + $0x7c] sm:$0xf]
        %v4590 = vld [vmem:[%s4557 + $0x80] sm:$0xf]
        %v4591 = vld [vmem:[%s4557 + $0x84] sm:$0xf]
        %v4592 = vld [vmem:[%s4557 + $0x88] sm:$0xf]
        %v4593 = vld [vmem:[%s4557 + $0x8c] sm:$0xf]
        %v4594 = vld [vmem:[%s4557 + $0x90] sm:$0xf]
        %v4595 = vld [vmem:[%s4557 + $0x94] sm:$0xf]
        %v4596 = vld [vmem:[%s4557 + $0x98] sm:$0xf]
        %v4597 = vld [vmem:[%s4557 + $0x9c] sm:$0xf]
        %v4598 = vld [vmem:[%s4557 + $0xa0] sm:$0xf]
        %v4599 = vld [vmem:[%s4557 + $0xa4] sm:$0xf]
        %v4600 = vld [vmem:[%s4557 + $0xa8] sm:$0xf]
        %v4601 = vld [vmem:[%s4557 + $0xac] sm:$0xf]
        %v4602 = vld [vmem:[%s4557 + $0xb0] sm:$0xf]
        %v4603 = vld [vmem:[%s4557 + $0xb4] sm:$0xf]
        %v4604 = vld [vmem:[%s4557 + $0xb8] sm:$0xf]
        %v4605 = vld [vmem:[%s4557 + $0xbc] sm:$0xf]
        %s4606 = scalar_lea.vmem %s6, 5
        %v4607 = vld [vmem:[%s4606] sm:$0x1]
        %v4608 = vrot.slane %v4541, 7
        %v4609 = vrot.slane %v4542, 7
        %v4610 = vrot.slane %v4543, 7
        %v4611 = vrot.slane %v4544, 7
        %v4612 = vrot.slane %v4545, 7
        %v4613 = vrot.slane %v4546, 7
        %v4614 = vrot.slane %v4547, 7
        %v4615 = vrot.slane %v4548, 7
        %v4616 = vrot.slane %v4549, 7
        %v4617 = vrot.slane %v4550, 7
        %v4618 = vrot.slane %v4551, 7
        %v4619 = vrot.slane %v4552, 7
        %v4620 = vrot.slane %v4553, 7
        %v4621 = vrot.slane %v4554, 7
        %v4622 = vrot.slane %v4555, 7
        %v4623 = vrot.slane %v4556, 7
        %v4624 = vsel %vm975, %v4622, %v4623
        %v4625 = vsel %vm975, %v4621, %v4622
        %v4626 = vsel %vm975, %v4620, %v4621
        %v4627 = vsel %vm975, %v4619, %v4620
        %v4628 = vsel %vm975, %v4618, %v4619
        %v4629 = vsel %vm975, %v4617, %v4618
        %v4630 = vsel %vm975, %v4616, %v4617
        %v4631 = vsel %vm975, %v4615, %v4616
        %v4632 = vsel %vm975, %v4614, %v4615
        %v4633 = vsel %vm975, %v4613, %v4614
        %v4634 = vsel %vm975, %v4612, %v4613
        %v4635 = vsel %vm975, %v4611, %v4612
        %v4636 = vsel %vm975, %v4610, %v4611
        %v4637 = vsel %vm975, %v4609, %v4610
        %v4638 = vsel %vm975, %v4608, %v4609
        %v4639 = vsel %vm975, %v4623, %v4608
        %v4640 = vsel %vm1008, %v4639, 0.0
        %v4641 = vsel %vm1009, %v4638, 0.0
        %v4642 = vsel %vm1010, %v4637, 0.0
        %v4643 = vsel %vm1011, %v4636, 0.0
        %v4644 = vsel %vm1012, %v4635, 0.0
        %v4645 = vsel %vm1013, %v4634, 0.0
        %v4646 = vsel %vm1014, %v4633, 0.0
        %v4647 = vsel %vm1015, %v4632, 0.0
        %v4648 = vsel %vm1016, %v4631, 0.0
        %v4649 = vsel %vm1017, %v4630, 0.0
        %v4650 = vsel %vm1018, %v4629, 0.0
        %v4651 = vsel %vm1019, %v4628, 0.0
        %v4652 = vsel %vm1020, %v4627, 0.0
        %v4653 = vsel %vm1021, %v4626, 0.0
        %v4654 = vsel %vm1022, %v4625, 0.0
        %v4655 = vsel %vm1023, %v4624, 0.0
        %v4656 = vrot.slane %v4541, 1
        %v4657 = vrot.slane %v4542, 1
        %v4658 = vrot.slane %v4543, 1
        %v4659 = vrot.slane %v4544, 1
        %v4660 = vrot.slane %v4545, 1
        %v4661 = vrot.slane %v4546, 1
        %v4662 = vrot.slane %v4547, 1
        %v4663 = vrot.slane %v4548, 1
        %v4664 = vrot.slane %v4549, 1
        %v4665 = vrot.slane %v4550, 1
        %v4666 = vrot.slane %v4551, 1
        %v4667 = vrot.slane %v4552, 1
        %v4668 = vrot.slane %v4553, 1
        %v4669 = vrot.slane %v4554, 1
        %v4670 = vrot.slane %v4555, 1
        %v4671 = vrot.slane %v4556, 1
        %v4672 = vsel %vm1056, %v4670, %v4671
        %v4673 = vsel %vm1056, %v4669, %v4670
        %v4674 = vsel %vm1056, %v4668, %v4669
        %v4675 = vsel %vm1056, %v4667, %v4668
        %v4676 = vsel %vm1056, %v4666, %v4667
        %v4677 = vsel %vm1056, %v4665, %v4666
        %v4678 = vsel %vm1056, %v4664, %v4665
        %v4679 = vsel %vm1056, %v4663, %v4664
        %v4680 = vsel %vm1056, %v4662, %v4663
        %v4681 = vsel %vm1056, %v4661, %v4662
        %v4682 = vsel %vm1056, %v4660, %v4661
        %v4683 = vsel %vm1056, %v4659, %v4660
        %v4684 = vsel %vm1056, %v4658, %v4659
        %v4685 = vsel %vm1056, %v4657, %v4658
        %v4686 = vsel %vm1056, %v4656, %v4657
        %v4687 = vsel %vm1056, %v4671, %v4656
        %v4688 = vsel %vm1089, %v4686, 0.0
        %v4689 = vsel %vm1090, %v4685, 0.0
        %v4690 = vsel %vm1091, %v4684, 0.0
        %v4691 = vsel %vm1092, %v4683, 0.0
        %v4692 = vsel %vm1093, %v4682, 0.0
        %v4693 = vsel %vm1094, %v4681, 0.0
        %v4694 = vsel %vm1095, %v4680, 0.0
        %v4695 = vsel %vm1096, %v4679, 0.0
        %v4696 = vsel %vm1097, %v4678, 0.0
        %v4697 = vsel %vm1098, %v4677, 0.0
        %v4698 = vsel %vm1099, %v4676, 0.0
        %v4699 = vsel %vm1100, %v4675, 0.0
        %v4700 = vsel %vm1101, %v4674, 0.0
        %v4701 = vsel %vm1102, %v4673, 0.0
        %v4702 = vsel %vm1103, %v4672, 0.0
        %v4703 = vsel %vm1104, %v4687, 0.0
        %v4704 = vpack.c.bf16 %v4641, %v4640
        %v4705 = vpack.c.bf16 %v4542, %v4541
        %v4706 = vpack.c.bf16 %v4689, %v4688
        %v4707 = vpack.c.bf16 %v4643, %v4642
        %v4708 = vpack.c.bf16 %v4544, %v4543
        %v4709 = vpack.c.bf16 %v4691, %v4690
        %v4710 = vpack.c.bf16 %v4645, %v4644
        %v4711 = vpack.c.bf16 %v4546, %v4545
        %v4712 = vpack.c.bf16 %v4693, %v4692
        %v4713 = vpack.c.bf16 %v4647, %v4646
        %v4714 = vpack.c.bf16 %v4548, %v4547
        %v4715 = vpack.c.bf16 %v4695, %v4694
        %v4716 = vpack.c.bf16 %v4649, %v4648
        %v4717 = vpack.c.bf16 %v4550, %v4549
        %v4718 = vpack.c.bf16 %v4697, %v4696
        %v4719 = vpack.c.bf16 %v4651, %v4650
        %v4720 = vpack.c.bf16 %v4552, %v4551
        %v4721 = vpack.c.bf16 %v4699, %v4698
        %v4722 = vpack.c.bf16 %v4653, %v4652
        %v4723 = vpack.c.bf16 %v4554, %v4553
        %v4724 = vpack.c.bf16 %v4701, %v4700
        %v4725 = vpack.c.bf16 %v4655, %v4654
        %v4726 = vpack.c.bf16 %v4556, %v4555
        %v4727 = vpack.c.bf16 %v4703, %v4702
        %v4729 = vlaneseq
        %v4730 = vshrl.u32 %v4729, 7
        %v4731 = vsub.s32 0, %v4730
        %v4732 = vrot.slane %v4607, %v4731
        %v4782 = vunpack.c.l.b16 %v4558
        %v4783 = vunpack.c.l.b16 %v4559
        %v4784 = vunpack.c.l.b16 %v4560
        %v4785 = vunpack.c.l.b16 %v4561
        %v4786 = vunpack.c.l.b16 %v4562
        %v4787 = vunpack.c.l.b16 %v4563
        %v4788 = vunpack.c.l.b16 %v4564
        %v4789 = vunpack.c.l.b16 %v4565
        %v4790 = vunpack.c.l.b16 %v4566
        %v4791 = vunpack.c.l.b16 %v4567
        %v4792 = vunpack.c.l.b16 %v4568
        %v4793 = vunpack.c.l.b16 %v4569
        %v4794 = vunpack.c.l.b16 %v4570
        %v4795 = vunpack.c.l.b16 %v4571
        %v4796 = vunpack.c.l.b16 %v4572
        %v4797 = vunpack.c.l.b16 %v4573
        %v4798 = vunpack.c.l.b16 %v4574
        %v4799 = vunpack.c.l.b16 %v4575
        %v4800 = vunpack.c.l.b16 %v4576
        %v4801 = vunpack.c.l.b16 %v4577
        %v4802 = vunpack.c.l.b16 %v4578
        %v4803 = vunpack.c.l.b16 %v4579
        %v4804 = vunpack.c.l.b16 %v4580
        %v4805 = vunpack.c.l.b16 %v4581
        %v4806 = vunpack.c.l.b16 %v4582
        %v4807 = vunpack.c.l.b16 %v4583
        %v4808 = vunpack.c.l.b16 %v4584
        %v4809 = vunpack.c.l.b16 %v4585
        %v4810 = vunpack.c.l.b16 %v4586
        %v4811 = vunpack.c.l.b16 %v4587
        %v4812 = vunpack.c.l.b16 %v4588
        %v4813 = vunpack.c.l.b16 %v4589
        %v4814 = vunpack.c.l.b16 %v4590
        %v4815 = vunpack.c.l.b16 %v4591
        %v4816 = vunpack.c.l.b16 %v4592
        %v4817 = vunpack.c.l.b16 %v4593
        %v4818 = vunpack.c.l.b16 %v4594
        %v4819 = vunpack.c.l.b16 %v4595
        %v4820 = vunpack.c.l.b16 %v4596
        %v4821 = vunpack.c.l.b16 %v4597
        %v4822 = vunpack.c.l.b16 %v4598
        %v4823 = vunpack.c.l.b16 %v4599
        %v4824 = vunpack.c.l.b16 %v4600
        %v4825 = vunpack.c.l.b16 %v4601
        %v4826 = vunpack.c.l.b16 %v4602
        %v4827 = vunpack.c.l.b16 %v4603
        %v4828 = vunpack.c.l.b16 %v4604
        %v4829 = vunpack.c.l.b16 %v4605
        %v4830 = vpack.c.b16 %v4783, %v4782
        %v4831 = vpack.c.b16 %v4785, %v4784
        %v4832 = vpack.c.b16 %v4787, %v4786
        %v4833 = vpack.c.b16 %v4789, %v4788
        %v4834 = vpack.c.b16 %v4791, %v4790
        %v4835 = vpack.c.b16 %v4793, %v4792
        %v4836 = vpack.c.b16 %v4795, %v4794
        %v4837 = vpack.c.b16 %v4797, %v4796
        %v4838 = vpack.c.b16 %v4799, %v4798
        %v4839 = vpack.c.b16 %v4801, %v4800
        %v4840 = vpack.c.b16 %v4803, %v4802
        %v4841 = vpack.c.b16 %v4805, %v4804
        %v4842 = vpack.c.b16 %v4807, %v4806
        %v4843 = vpack.c.b16 %v4809, %v4808
        %v4844 = vpack.c.b16 %v4811, %v4810
        %v4845 = vpack.c.b16 %v4813, %v4812
        %v4846 = vpack.c.b16 %v4815, %v4814
        %v4847 = vpack.c.b16 %v4817, %v4816
        %v4848 = vpack.c.b16 %v4819, %v4818
        %v4849 = vpack.c.b16 %v4821, %v4820
        %v4850 = vpack.c.b16 %v4823, %v4822
        %v4851 = vpack.c.b16 %v4825, %v4824
        %v4852 = vpack.c.b16 %v4827, %v4826
        %v4853 = vpack.c.b16 %v4829, %v4828
        %4878 = vmatprep.subr.bf16.mxu0 0
        %4879 = vmatpush1.bf16.msra.mxu0 %v4830
        %4880 = vmatprep.subr.bf16.mxu0 0
        %4881 = vmatpush1.bf16.msra.mxu0 %v4831
        %4882 = vmatprep.subr.bf16.mxu0 0
        %4883 = vmatpush1.bf16.msra.mxu0 %v4832
        %4884 = vmatprep.subr.bf16.mxu0 0
        %4885 = vmatpush1.bf16.msra.mxu0 %v4833
        %4886 = vmatprep.subr.bf16.mxu0 0
        %4887 = vmatpush1.bf16.msra.mxu0 %v4834
        %4888 = vmatprep.subr.bf16.mxu0 0
        %4889 = vmatpush1.bf16.msra.mxu0 %v4835
        %4890 = vmatprep.subr.bf16.mxu0 0
        %4891 = vmatpush1.bf16.msra.mxu0 %v4836
        %4892 = vmatprep.subr.bf16.mxu0 0
        %4893 = vmatpush1.bf16.msra.mxu0 %v4837
        %4894 = vmatprep.subr.bf16.mxu0 0
        %4895 = vmatpush1.bf16.msra.mxu0 %v4838
        %4896 = vmatprep.subr.bf16.mxu0 0
        %4897 = vmatpush1.bf16.msra.mxu0 %v4839
        %4898 = vmatprep.subr.bf16.mxu0 0
        %4899 = vmatpush1.bf16.msra.mxu0 %v4840
        %4900 = vmatprep.subr.bf16.mxu0 0
        %4901 = vmatpush1.bf16.msra.mxu0 %v4841
        %4902 = vmatprep.subr.bf16.mxu0 0
        %4903 = vmatpush1.bf16.msra.mxu0 %v4842
        %4904 = vmatprep.subr.bf16.mxu0 0
        %4905 = vmatpush1.bf16.msra.mxu0 %v4843
        %4906 = vmatprep.subr.bf16.mxu0 0
        %4907 = vmatpush1.bf16.msra.mxu0 %v4844
        %4908 = vmatprep.subr.bf16.mxu0 0
        %4909 = vmatpush1.bf16.msra.mxu0 %v4845
        %4910 = vmatprep.mubr.bf16.mxu0 %v4705
        %4911 = vmatmul.mubr.bf16.gmra.mrb[0].mxu0 %v4704
        %v4912 = vpop.f32.mrb[0].mxu0
        %v4913 = vadd.f32 %v4732, %v4912
        %v4914 = vpop.f32.mrb[0].mxu0
        %v4915 = vpop.f32.mrb[0].mxu0
        %v4916 = vadd.f32 %v4732, %v4915
        %v4917 = vpop.f32.mrb[0].mxu0
        %4918 = vmatprep.mubr.bf16.mxu0 %v4708
        %4919 = vmatmul.mubr.bf16.gmra.mrb[0].mxu0 %v4707
        %v4920 = vpop.f32.mrb[0].mxu0
        %v4921 = vadd.f32 %v4732, %v4920
        %v4922 = vpop.f32.mrb[0].mxu0
        %v4923 = vpop.f32.mrb[0].mxu0
        %v4924 = vadd.f32 %v4732, %v4923
        %v4925 = vpop.f32.mrb[0].mxu0
        %4926 = vmatprep.mubr.bf16.mxu0 %v4711
        %4927 = vmatmul.mubr.bf16.gmra.mrb[0].mxu0 %v4710
        %v4928 = vpop.f32.mrb[0].mxu0
        %v4929 = vadd.f32 %v4732, %v4928
        %v4930 = vpop.f32.mrb[0].mxu0
        %v4931 = vpop.f32.mrb[0].mxu0
        %v4932 = vadd.f32 %v4732, %v4931
        %v4933 = vpop.f32.mrb[0].mxu0
        %4934 = vmatprep.mubr.bf16.mxu0 %v4714
        %4935 = vmatmul.mubr.bf16.gmra.mrb[0].mxu0 %v4713
        %v4936 = vpop.f32.mrb[0].mxu0
        %v4937 = vadd.f32 %v4732, %v4936
        %v4938 = vpop.f32.mrb[0].mxu0
        %v4939 = vpop.f32.mrb[0].mxu0
        %v4940 = vadd.f32 %v4732, %v4939
        %v4941 = vpop.f32.mrb[0].mxu0
        %4942 = vmatprep.mubr.bf16.mxu0 %v4717
        %4943 = vmatmul.mubr.bf16.gmra.mrb[0].mxu0 %v4716
        %v4944 = vpop.f32.mrb[0].mxu0
        %v4945 = vadd.f32 %v4732, %v4944
        %v4946 = vpop.f32.mrb[0].mxu0
        %v4947 = vpop.f32.mrb[0].mxu0
        %v4948 = vadd.f32 %v4732, %v4947
        %v4949 = vpop.f32.mrb[0].mxu0
        %4950 = vmatprep.mubr.bf16.mxu0 %v4720
        %4951 = vmatmul.mubr.bf16.gmra.mrb[0].mxu0 %v4719
        %v4952 = vpop.f32.mrb[0].mxu0
        %v4953 = vadd.f32 %v4732, %v4952
        %v4954 = vpop.f32.mrb[0].mxu0
        %v4955 = vpop.f32.mrb[0].mxu0
        %v4956 = vadd.f32 %v4732, %v4955
        %v4957 = vpop.f32.mrb[0].mxu0
        %4958 = vmatprep.mubr.bf16.mxu0 %v4723
        %4959 = vmatmul.mubr.bf16.gmra.mrb[0].mxu0 %v4722
        %v4960 = vpop.f32.mrb[0].mxu0
        %v4961 = vadd.f32 %v4732, %v4960
        %v4962 = vpop.f32.mrb[0].mxu0
        %v4963 = vpop.f32.mrb[0].mxu0
        %v4964 = vadd.f32 %v4732, %v4963
        %v4965 = vpop.f32.mrb[0].mxu0
        %4966 = vmatprep.mubr.bf16.mxu0 %v4726
        %4967 = vmatmul.mubr.bf16.gmra.mrb[0].mxu0 %v4725
        %v4968 = vpop.f32.mrb[0].mxu0
        %v4969 = vadd.f32 %v4732, %v4968
        %v4970 = vpop.f32.mrb[0].mxu0
        %v4971 = vpop.f32.mrb[0].mxu0
        %v4972 = vadd.f32 %v4732, %v4971
        %v4973 = vpop.f32.mrb[0].mxu0
        %4974 = vdwg.mxu0
        %4975 = vmatprep.subr.bf16.mxu0 0
        %4976 = vmatpush1.bf16.msra.mxu0 %v4846
        %4977 = vmatprep.subr.bf16.mxu0 0
        %4978 = vmatpush1.bf16.msra.mxu0 %v4847
        %4979 = vmatprep.subr.bf16.mxu0 0
        %4980 = vmatpush1.bf16.msra.mxu0 %v4848
        %4981 = vmatprep.subr.bf16.mxu0 0
        %4982 = vmatpush1.bf16.msra.mxu0 %v4849
        %4983 = vmatprep.subr.bf16.mxu0 0
        %4984 = vmatpush1.bf16.msra.mxu0 %v4850
        %4985 = vmatprep.subr.bf16.mxu0 0
        %4986 = vmatpush1.bf16.msra.mxu0 %v4851
        %4987 = vmatprep.subr.bf16.mxu0 0
        %4988 = vmatpush1.bf16.msra.mxu0 %v4852
        %4989 = vmatprep.subr.bf16.mxu0 0
        %4990 = vmatpush1.bf16.msra.mxu0 %v4853
        %4991 = vmatprep.subr.bf16.mxu0 0
        %4992 = vmatpush1.bf16.msra.mxu0 0
        %4993 = vmatprep.subr.bf16.mxu0 0
        %4994 = vmatpush1.bf16.msra.mxu0 0
        %4995 = vmatprep.subr.bf16.mxu0 0
        %4996 = vmatpush1.bf16.msra.mxu0 0
        %4997 = vmatprep.subr.bf16.mxu0 0
        %4998 = vmatpush1.bf16.msra.mxu0 0
        %4999 = vmatprep.subr.bf16.mxu0 0
        %5000 = vmatpush1.bf16.msra.mxu0 0
        %5001 = vmatprep.subr.bf16.mxu0 0
        %5002 = vmatpush1.bf16.msra.mxu0 0
        %5003 = vmatprep.subr.bf16.mxu0 0
        %5004 = vmatpush1.bf16.msra.mxu0 0
        %5005 = vmatprep.subr.bf16.mxu0 0
        %5006 = vmatpush1.bf16.msra.mxu0 0
        %5007 = vmatprep.mubr.bf16.mxu0 0
        %5008 = vmatmul.mubr.bf16.gmra.mrb[0].mxu0 %v4706
        %v5009 = vpop.f32.mrb[0].mxu0
        %v5010 = vadd.f32 %v4913, %v5009
        %v5011 = vpop.f32.mrb[0].mxu0
        %v5012 = vpop.f32.mrb[0].mxu0
        %v5013 = vadd.f32 %v4916, %v5012
        %v5014 = vpop.f32.mrb[0].mxu0
        %5015 = vmatprep.mubr.bf16.mxu0 0
        %5016 = vmatmul.mubr.bf16.gmra.mrb[0].mxu0 %v4709
        %v5017 = vpop.f32.mrb[0].mxu0
        %v5018 = vadd.f32 %v4921, %v5017
        %v5019 = vpop.f32.mrb[0].mxu0
        %v5020 = vpop.f32.mrb[0].mxu0
        %v5021 = vadd.f32 %v4924, %v5020
        %v5022 = vpop.f32.mrb[0].mxu0
        %5023 = vmatprep.mubr.bf16.mxu0 0
        %5024 = vmatmul.mubr.bf16.gmra.mrb[0].mxu0 %v4712
        %v5025 = vpop.f32.mrb[0].mxu0
        %v5026 = vadd.f32 %v4929, %v5025
        %v5027 = vpop.f32.mrb[0].mxu0
        %v5028 = vpop.f32.mrb[0].mxu0
        %v5029 = vadd.f32 %v4932, %v5028
        %v5030 = vpop.f32.mrb[0].mxu0
        %5031 = vmatprep.mubr.bf16.mxu0 0
        %5032 = vmatmul.mubr.bf16.gmra.mrb[0].mxu0 %v4715
        %v5033 = vpop.f32.mrb[0].mxu0
        %v5034 = vadd.f32 %v4937, %v5033
        %v5035 = vpop.f32.mrb[0].mxu0
        %v5036 = vpop.f32.mrb[0].mxu0
        %v5037 = vadd.f32 %v4940, %v5036
        %v5038 = vpop.f32.mrb[0].mxu0
        %5039 = vmatprep.mubr.bf16.mxu0 0
        %5040 = vmatmul.mubr.bf16.gmra.mrb[0].mxu0 %v4718
        %v5041 = vpop.f32.mrb[0].mxu0
        %v5042 = vadd.f32 %v4945, %v5041
        %v5043 = vpop.f32.mrb[0].mxu0
        %v5044 = vpop.f32.mrb[0].mxu0
        %v5045 = vadd.f32 %v4948, %v5044
        %v5046 = vpop.f32.mrb[0].mxu0
        %5047 = vmatprep.mubr.bf16.mxu0 0
        %5048 = vmatmul.mubr.bf16.gmra.mrb[0].mxu0 %v4721
        %v5049 = vpop.f32.mrb[0].mxu0
        %v5050 = vadd.f32 %v4953, %v5049
        %v5051 = vpop.f32.mrb[0].mxu0
        %v5052 = vpop.f32.mrb[0].mxu0
        %v5053 = vadd.f32 %v4956, %v5052
        %v5054 = vpop.f32.mrb[0].mxu0
        %5055 = vmatprep.mubr.bf16.mxu0 0
        %5056 = vmatmul.mubr.bf16.gmra.mrb[0].mxu0 %v4724
        %v5057 = vpop.f32.mrb[0].mxu0
        %v5058 = vadd.f32 %v4961, %v5057
        %v5059 = vpop.f32.mrb[0].mxu0
        %v5060 = vpop.f32.mrb[0].mxu0
        %v5061 = vadd.f32 %v4964, %v5060
        %v5062 = vpop.f32.mrb[0].mxu0
        %5063 = vmatprep.mubr.bf16.mxu0 0
        %5064 = vmatmul.mubr.bf16.gmra.mrb[0].mxu0 %v4727
        %v5065 = vpop.f32.mrb[0].mxu0
        %v5066 = vadd.f32 %v4969, %v5065
        %v5067 = vpop.f32.mrb[0].mxu0
        %v5068 = vpop.f32.mrb[0].mxu0
        %v5069 = vadd.f32 %v4972, %v5068
        %v5070 = vpop.f32.mrb[0].mxu0
        %5071 = vdwg.mxu0
        %v5072 = vadd.f32 %v5010, %v3866
        %v5073 = vadd.f32 %v5013, %v3867
        %v5074 = vadd.f32 %v5018, %v3868
        %v5075 = vadd.f32 %v5021, %v3869
        %v5076 = vadd.f32 %v5026, %v3870
        %v5077 = vadd.f32 %v5029, %v3871
        %v5078 = vadd.f32 %v5034, %v3872
        %v5079 = vadd.f32 %v5037, %v3873
        %v5080 = vadd.f32 %v5042, %v3874
        %v5081 = vadd.f32 %v5045, %v3875
        %v5082 = vadd.f32 %v5050, %v3876
        %v5083 = vadd.f32 %v5053, %v3877
        %v5084 = vadd.f32 %v5058, %v3878
        %v5085 = vadd.f32 %v5061, %v3879
        %v5086 = vadd.f32 %v5066, %v3880
        %v5087 = vadd.f32 %v5069, %v3881
        %v5088 = vmul.f32 %v5072, %v1458
        %v5089 = vmul.f32 %v5073, %v1458
        %v5090 = vmul.f32 %v5074, %v1458
        %v5091 = vmul.f32 %v5075, %v1458
        %v5092 = vmul.f32 %v5076, %v1458
        %v5093 = vmul.f32 %v5077, %v1458
        %v5094 = vmul.f32 %v5078, %v1458
        %v5095 = vmul.f32 %v5079, %v1458
        %v5096 = vmul.f32 %v5080, %v1458
        %v5097 = vmul.f32 %v5081, %v1458
        %v5098 = vmul.f32 %v5082, %v1458
        %v5099 = vmul.f32 %v5083, %v1458
        %v5100 = vmul.f32 %v5084, %v1458
        %v5101 = vmul.f32 %v5085, %v1458
        %v5102 = vmul.f32 %v5086, %v1458
        %v5103 = vmul.f32 %v5087, %v1458
        %v5104 = vadd.f32 %v5088, %v1480
        %v5105 = vadd.f32 %v5089, %v1480
        %v5106 = vadd.f32 %v5090, %v1480
        %v5107 = vadd.f32 %v5091, %v1480
        %v5108 = vadd.f32 %v5092, %v1480
        %v5109 = vadd.f32 %v5093, %v1480
        %v5110 = vadd.f32 %v5094, %v1480
        %v5111 = vadd.f32 %v5095, %v1480
        %v5112 = vadd.f32 %v5096, %v1480
        %v5113 = vadd.f32 %v5097, %v1480
        %v5114 = vadd.f32 %v5098, %v1480
        %v5115 = vadd.f32 %v5099, %v1480
        %v5116 = vadd.f32 %v5100, %v1480
        %v5117 = vadd.f32 %v5101, %v1480
        %v5118 = vadd.f32 %v5102, %v1480
        %v5119 = vadd.f32 %v5103, %v1480
        %vm5120 = vcmp.ge.f32.partialorder %v5104, 0.0
        %vm5121 = vcmp.ge.f32.partialorder %v5105, 0.0
        %vm5122 = vcmp.ge.f32.partialorder %v5106, 0.0
        %vm5123 = vcmp.ge.f32.partialorder %v5107, 0.0
        %vm5124 = vcmp.ge.f32.partialorder %v5108, 0.0
        %vm5125 = vcmp.ge.f32.partialorder %v5109, 0.0
        %vm5126 = vcmp.ge.f32.partialorder %v5110, 0.0
        %vm5127 = vcmp.ge.f32.partialorder %v5111, 0.0
        %vm5128 = vcmp.ge.f32.partialorder %v5112, 0.0
        %vm5129 = vcmp.ge.f32.partialorder %v5113, 0.0
        %vm5130 = vcmp.ge.f32.partialorder %v5114, 0.0
        %vm5131 = vcmp.ge.f32.partialorder %v5115, 0.0
        %vm5132 = vcmp.ge.f32.partialorder %v5116, 0.0
        %vm5133 = vcmp.ge.f32.partialorder %v5117, 0.0
        %vm5134 = vcmp.ge.f32.partialorder %v5118, 0.0
        %vm5135 = vcmp.ge.f32.partialorder %v5119, 0.0
        %v5136 = vmul.f32 %v5104, %v1518
        %v5137 = vmul.f32 %v5105, %v1518
        %v5138 = vmul.f32 %v5106, %v1518
        %v5139 = vmul.f32 %v5107, %v1518
        %v5140 = vmul.f32 %v5108, %v1518
        %v5141 = vmul.f32 %v5109, %v1518
        %v5142 = vmul.f32 %v5110, %v1518
        %v5143 = vmul.f32 %v5111, %v1518
        %v5144 = vmul.f32 %v5112, %v1518
        %v5145 = vmul.f32 %v5113, %v1518
        %v5146 = vmul.f32 %v5114, %v1518
        %v5147 = vmul.f32 %v5115, %v1518
        %v5148 = vmul.f32 %v5116, %v1518
        %v5149 = vmul.f32 %v5117, %v1518
        %v5150 = vmul.f32 %v5118, %v1518
        %v5151 = vmul.f32 %v5119, %v1518
        %v5152 = vsel %vm5120, %v5104, %v5136
        %v5153 = vsel %vm5121, %v5105, %v5137
        %v5154 = vsel %vm5122, %v5106, %v5138
        %v5155 = vsel %vm5123, %v5107, %v5139
        %v5156 = vsel %vm5124, %v5108, %v5140
        %v5157 = vsel %vm5125, %v5109, %v5141
        %v5158 = vsel %vm5126, %v5110, %v5142
        %v5159 = vsel %vm5127, %v5111, %v5143
        %v5160 = vsel %vm5128, %v5112, %v5144
        %v5161 = vsel %vm5129, %v5113, %v5145
        %v5162 = vsel %vm5130, %v5114, %v5146
        %v5163 = vsel %vm5131, %v5115, %v5147
        %v5164 = vsel %vm5132, %v5116, %v5148
        %v5165 = vsel %vm5133, %v5117, %v5149
        %v5166 = vsel %vm5134, %v5118, %v5150
        %v5167 = vsel %vm5135, %v5119, %v5151
        %s5168 = scalar_lea.vmem %s5, 1152
        %v5169 = vld [vmem:[%s5168] sm:$0xf]
        %v5170 = vld [vmem:[%s5168 + $0x4] sm:$0xf]
        %v5171 = vld [vmem:[%s5168 + $0x8] sm:$0xf]
        %v5172 = vld [vmem:[%s5168 + $0xc] sm:$0xf]
        %v5173 = vld [vmem:[%s5168 + $0x10] sm:$0xf]
        %v5174 = vld [vmem:[%s5168 + $0x14] sm:$0xf]
        %v5175 = vld [vmem:[%s5168 + $0x18] sm:$0xf]
        %v5176 = vld [vmem:[%s5168 + $0x1c] sm:$0xf]
        %v5177 = vld [vmem:[%s5168 + $0x20] sm:$0xf]
        %v5178 = vld [vmem:[%s5168 + $0x24] sm:$0xf]
        %v5179 = vld [vmem:[%s5168 + $0x28] sm:$0xf]
        %v5180 = vld [vmem:[%s5168 + $0x2c] sm:$0xf]
        %v5181 = vld [vmem:[%s5168 + $0x30] sm:$0xf]
        %v5182 = vld [vmem:[%s5168 + $0x34] sm:$0xf]
        %v5183 = vld [vmem:[%s5168 + $0x38] sm:$0xf]
        %v5184 = vld [vmem:[%s5168 + $0x3c] sm:$0xf]
        %v5185 = vld [vmem:[%s5168 + $0x40] sm:$0xf]
        %v5186 = vld [vmem:[%s5168 + $0x44] sm:$0xf]
        %v5187 = vld [vmem:[%s5168 + $0x48] sm:$0xf]
        %v5188 = vld [vmem:[%s5168 + $0x4c] sm:$0xf]
        %v5189 = vld [vmem:[%s5168 + $0x50] sm:$0xf]
        %v5190 = vld [vmem:[%s5168 + $0x54] sm:$0xf]
        %v5191 = vld [vmem:[%s5168 + $0x58] sm:$0xf]
        %v5192 = vld [vmem:[%s5168 + $0x5c] sm:$0xf]
        %v5193 = vld [vmem:[%s5168 + $0x60] sm:$0xf]
        %v5194 = vld [vmem:[%s5168 + $0x64] sm:$0xf]
        %v5195 = vld [vmem:[%s5168 + $0x68] sm:$0xf]
        %v5196 = vld [vmem:[%s5168 + $0x6c] sm:$0xf]
        %v5197 = vld [vmem:[%s5168 + $0x70] sm:$0xf]
        %v5198 = vld [vmem:[%s5168 + $0x74] sm:$0xf]
        %v5199 = vld [vmem:[%s5168 + $0x78] sm:$0xf]
        %v5200 = vld [vmem:[%s5168 + $0x7c] sm:$0xf]
        %v5201 = vld [vmem:[%s5168 + $0x80] sm:$0xf]
        %v5202 = vld [vmem:[%s5168 + $0x84] sm:$0xf]
        %v5203 = vld [vmem:[%s5168 + $0x88] sm:$0xf]
        %v5204 = vld [vmem:[%s5168 + $0x8c] sm:$0xf]
        %v5205 = vld [vmem:[%s5168 + $0x90] sm:$0xf]
        %v5206 = vld [vmem:[%s5168 + $0x94] sm:$0xf]
        %v5207 = vld [vmem:[%s5168 + $0x98] sm:$0xf]
        %v5208 = vld [vmem:[%s5168 + $0x9c] sm:$0xf]
        %v5209 = vld [vmem:[%s5168 + $0xa0] sm:$0xf]
        %v5210 = vld [vmem:[%s5168 + $0xa4] sm:$0xf]
        %v5211 = vld [vmem:[%s5168 + $0xa8] sm:$0xf]
        %v5212 = vld [vmem:[%s5168 + $0xac] sm:$0xf]
        %v5213 = vld [vmem:[%s5168 + $0xb0] sm:$0xf]
        %v5214 = vld [vmem:[%s5168 + $0xb4] sm:$0xf]
        %v5215 = vld [vmem:[%s5168 + $0xb8] sm:$0xf]
        %v5216 = vld [vmem:[%s5168 + $0xbc] sm:$0xf]
        %s5217 = scalar_lea.vmem %s6, 6
        %v5218 = vld [vmem:[%s5217] sm:$0x1]
        %v5219 = vrot.slane %v5152, 7
        %v5220 = vrot.slane %v5153, 7
        %v5221 = vrot.slane %v5154, 7
        %v5222 = vrot.slane %v5155, 7
        %v5223 = vrot.slane %v5156, 7
        %v5224 = vrot.slane %v5157, 7
        %v5225 = vrot.slane %v5158, 7
        %v5226 = vrot.slane %v5159, 7
        %v5227 = vrot.slane %v5160, 7
        %v5228 = vrot.slane %v5161, 7
        %v5229 = vrot.slane %v5162, 7
        %v5230 = vrot.slane %v5163, 7
        %v5231 = vrot.slane %v5164, 7
        %v5232 = vrot.slane %v5165, 7
        %v5233 = vrot.slane %v5166, 7
        %v5234 = vrot.slane %v5167, 7
        %v5235 = vsel %vm975, %v5233, %v5234
        %v5236 = vsel %vm975, %v5232, %v5233
        %v5237 = vsel %vm975, %v5231, %v5232
        %v5238 = vsel %vm975, %v5230, %v5231
        %v5239 = vsel %vm975, %v5229, %v5230
        %v5240 = vsel %vm975, %v5228, %v5229
        %v5241 = vsel %vm975, %v5227, %v5228
        %v5242 = vsel %vm975, %v5226, %v5227
        %v5243 = vsel %vm975, %v5225, %v5226
        %v5244 = vsel %vm975, %v5224, %v5225
        %v5245 = vsel %vm975, %v5223, %v5224
        %v5246 = vsel %vm975, %v5222, %v5223
        %v5247 = vsel %vm975, %v5221, %v5222
        %v5248 = vsel %vm975, %v5220, %v5221
        %v5249 = vsel %vm975, %v5219, %v5220
        %v5250 = vsel %vm975, %v5234, %v5219
        %v5251 = vsel %vm1008, %v5250, 0.0
        %v5252 = vsel %vm1009, %v5249, 0.0
        %v5253 = vsel %vm1010, %v5248, 0.0
        %v5254 = vsel %vm1011, %v5247, 0.0
        %v5255 = vsel %vm1012, %v5246, 0.0
        %v5256 = vsel %vm1013, %v5245, 0.0
        %v5257 = vsel %vm1014, %v5244, 0.0
        %v5258 = vsel %vm1015, %v5243, 0.0
        %v5259 = vsel %vm1016, %v5242, 0.0
        %v5260 = vsel %vm1017, %v5241, 0.0
        %v5261 = vsel %vm1018, %v5240, 0.0
        %v5262 = vsel %vm1019, %v5239, 0.0
        %v5263 = vsel %vm1020, %v5238, 0.0
        %v5264 = vsel %vm1021, %v5237, 0.0
        %v5265 = vsel %vm1022, %v5236, 0.0
        %v5266 = vsel %vm1023, %v5235, 0.0
        %v5267 = vrot.slane %v5152, 1
        %v5268 = vrot.slane %v5153, 1
        %v5269 = vrot.slane %v5154, 1
        %v5270 = vrot.slane %v5155, 1
        %v5271 = vrot.slane %v5156, 1
        %v5272 = vrot.slane %v5157, 1
        %v5273 = vrot.slane %v5158, 1
        %v5274 = vrot.slane %v5159, 1
        %v5275 = vrot.slane %v5160, 1
        %v5276 = vrot.slane %v5161, 1
        %v5277 = vrot.slane %v5162, 1
        %v5278 = vrot.slane %v5163, 1
        %v5279 = vrot.slane %v5164, 1
        %v5280 = vrot.slane %v5165, 1
        %v5281 = vrot.slane %v5166, 1
        %v5282 = vrot.slane %v5167, 1
        %v5283 = vsel %vm1056, %v5281, %v5282
        %v5284 = vsel %vm1056, %v5280, %v5281
        %v5285 = vsel %vm1056, %v5279, %v5280
        %v5286 = vsel %vm1056, %v5278, %v5279
        %v5287 = vsel %vm1056, %v5277, %v5278
        %v5288 = vsel %vm1056, %v5276, %v5277
        %v5289 = vsel %vm1056, %v5275, %v5276
        %v5290 = vsel %vm1056, %v5274, %v5275
        %v5291 = vsel %vm1056, %v5273, %v5274
        %v5292 = vsel %vm1056, %v5272, %v5273
        %v5293 = vsel %vm1056, %v5271, %v5272
        %v5294 = vsel %vm1056, %v5270, %v5271
        %v5295 = vsel %vm1056, %v5269, %v5270
        %v5296 = vsel %vm1056, %v5268, %v5269
        %v5297 = vsel %vm1056, %v5267, %v5268
        %v5298 = vsel %vm1056, %v5282, %v5267
        %v5299 = vsel %vm1089, %v5297, 0.0
        %v5300 = vsel %vm1090, %v5296, 0.0
        %v5301 = vsel %vm1091, %v5295, 0.0
        %v5302 = vsel %vm1092, %v5294, 0.0
        %v5303 = vsel %vm1093, %v5293, 0.0
        %v5304 = vsel %vm1094, %v5292, 0.0
        %v5305 = vsel %vm1095, %v5291, 0.0
        %v5306 = vsel %vm1096, %v5290, 0.0
        %v5307 = vsel %vm1097, %v5289, 0.0
        %v5308 = vsel %vm1098, %v5288, 0.0
        %v5309 = vsel %vm1099, %v5287, 0.0
        %v5310 = vsel %vm1100, %v5286, 0.0
        %v5311 = vsel %vm1101, %v5285, 0.0
        %v5312 = vsel %vm1102, %v5284, 0.0
        %v5313 = vsel %vm1103, %v5283, 0.0
        %v5314 = vsel %vm1104, %v5298, 0.0
        %v5315 = vpack.c.bf16 %v5252, %v5251
        %v5316 = vpack.c.bf16 %v5153, %v5152
        %v5317 = vpack.c.bf16 %v5300, %v5299
        %v5318 = vpack.c.bf16 %v5254, %v5253
        %v5319 = vpack.c.bf16 %v5155, %v5154
        %v5320 = vpack.c.bf16 %v5302, %v5301
        %v5321 = vpack.c.bf16 %v5256, %v5255
        %v5322 = vpack.c.bf16 %v5157, %v5156
        %v5323 = vpack.c.bf16 %v5304, %v5303
        %v5324 = vpack.c.bf16 %v5258, %v5257
        %v5325 = vpack.c.bf16 %v5159, %v5158
        %v5326 = vpack.c.bf16 %v5306, %v5305
        %v5327 = vpack.c.bf16 %v5260, %v5259
        %v5328 = vpack.c.bf16 %v5161, %v5160
        %v5329 = vpack.c.bf16 %v5308, %v5307
        %v5330 = vpack.c.bf16 %v5262, %v5261
        %v5331 = vpack.c.bf16 %v5163, %v5162
        %v5332 = vpack.c.bf16 %v5310, %v5309
        %v5333 = vpack.c.bf16 %v5264, %v5263
        %v5334 = vpack.c.bf16 %v5165, %v5164
        %v5335 = vpack.c.bf16 %v5312, %v5311
        %v5336 = vpack.c.bf16 %v5266, %v5265
        %v5337 = vpack.c.bf16 %v5167, %v5166
        %v5338 = vpack.c.bf16 %v5314, %v5313
        %v5340 = vlaneseq
        %v5341 = vshrl.u32 %v5340, 7
        %v5342 = vsub.s32 0, %v5341
        %v5343 = vrot.slane %v5218, %v5342
        %v5393 = vunpack.c.l.b16 %v5169
        %v5394 = vunpack.c.l.b16 %v5170
        %v5395 = vunpack.c.l.b16 %v5171
        %v5396 = vunpack.c.l.b16 %v5172
        %v5397 = vunpack.c.l.b16 %v5173
        %v5398 = vunpack.c.l.b16 %v5174
        %v5399 = vunpack.c.l.b16 %v5175
        %v5400 = vunpack.c.l.b16 %v5176
        %v5401 = vunpack.c.l.b16 %v5177
        %v5402 = vunpack.c.l.b16 %v5178
        %v5403 = vunpack.c.l.b16 %v5179
        %v5404 = vunpack.c.l.b16 %v5180
        %v5405 = vunpack.c.l.b16 %v5181
        %v5406 = vunpack.c.l.b16 %v5182
        %v5407 = vunpack.c.l.b16 %v5183
        %v5408 = vunpack.c.l.b16 %v5184
        %v5409 = vunpack.c.l.b16 %v5185
        %v5410 = vunpack.c.l.b16 %v5186
        %v5411 = vunpack.c.l.b16 %v5187
        %v5412 = vunpack.c.l.b16 %v5188
        %v5413 = vunpack.c.l.b16 %v5189
        %v5414 = vunpack.c.l.b16 %v5190
        %v5415 = vunpack.c.l.b16 %v5191
        %v5416 = vunpack.c.l.b16 %v5192
        %v5417 = vunpack.c.l.b16 %v5193
        %v5418 = vunpack.c.l.b16 %v5194
        %v5419 = vunpack.c.l.b16 %v5195
        %v5420 = vunpack.c.l.b16 %v5196
        %v5421 = vunpack.c.l.b16 %v5197
        %v5422 = vunpack.c.l.b16 %v5198
        %v5423 = vunpack.c.l.b16 %v5199
        %v5424 = vunpack.c.l.b16 %v5200
        %v5425 = vunpack.c.l.b16 %v5201
        %v5426 = vunpack.c.l.b16 %v5202
        %v5427 = vunpack.c.l.b16 %v5203
        %v5428 = vunpack.c.l.b16 %v5204
        %v5429 = vunpack.c.l.b16 %v5205
        %v5430 = vunpack.c.l.b16 %v5206
        %v5431 = vunpack.c.l.b16 %v5207
        %v5432 = vunpack.c.l.b16 %v5208
        %v5433 = vunpack.c.l.b16 %v5209
        %v5434 = vunpack.c.l.b16 %v5210
        %v5435 = vunpack.c.l.b16 %v5211
        %v5436 = vunpack.c.l.b16 %v5212
        %v5437 = vunpack.c.l.b16 %v5213
        %v5438 = vunpack.c.l.b16 %v5214
        %v5439 = vunpack.c.l.b16 %v5215
        %v5440 = vunpack.c.l.b16 %v5216
        %v5441 = vpack.c.b16 %v5394, %v5393
        %v5442 = vpack.c.b16 %v5396, %v5395
        %v5443 = vpack.c.b16 %v5398, %v5397
        %v5444 = vpack.c.b16 %v5400, %v5399
        %v5445 = vpack.c.b16 %v5402, %v5401
        %v5446 = vpack.c.b16 %v5404, %v5403
        %v5447 = vpack.c.b16 %v5406, %v5405
        %v5448 = vpack.c.b16 %v5408, %v5407
        %v5449 = vpack.c.b16 %v5410, %v5409
        %v5450 = vpack.c.b16 %v5412, %v5411
        %v5451 = vpack.c.b16 %v5414, %v5413
        %v5452 = vpack.c.b16 %v5416, %v5415
        %v5453 = vpack.c.b16 %v5418, %v5417
        %v5454 = vpack.c.b16 %v5420, %v5419
        %v5455 = vpack.c.b16 %v5422, %v5421
        %v5456 = vpack.c.b16 %v5424, %v5423
        %v5457 = vpack.c.b16 %v5426, %v5425
        %v5458 = vpack.c.b16 %v5428, %v5427
        %v5459 = vpack.c.b16 %v5430, %v5429
        %v5460 = vpack.c.b16 %v5432, %v5431
        %v5461 = vpack.c.b16 %v5434, %v5433
        %v5462 = vpack.c.b16 %v5436, %v5435
        %v5463 = vpack.c.b16 %v5438, %v5437
        %v5464 = vpack.c.b16 %v5440, %v5439
        %5489 = vmatprep.subr.bf16.mxu0 0
        %5490 = vmatpush1.bf16.msra.mxu0 %v5441
        %5491 = vmatprep.subr.bf16.mxu0 0
        %5492 = vmatpush1.bf16.msra.mxu0 %v5442
        %5493 = vmatprep.subr.bf16.mxu0 0
        %5494 = vmatpush1.bf16.msra.mxu0 %v5443
        %5495 = vmatprep.subr.bf16.mxu0 0
        %5496 = vmatpush1.bf16.msra.mxu0 %v5444
        %5497 = vmatprep.subr.bf16.mxu0 0
        %5498 = vmatpush1.bf16.msra.mxu0 %v5445
        %5499 = vmatprep.subr.bf16.mxu0 0
        %5500 = vmatpush1.bf16.msra.mxu0 %v5446
        %5501 = vmatprep.subr.bf16.mxu0 0
        %5502 = vmatpush1.bf16.msra.mxu0 %v5447
        %5503 = vmatprep.subr.bf16.mxu0 0
        %5504 = vmatpush1.bf16.msra.mxu0 %v5448
        %5505 = vmatprep.subr.bf16.mxu0 0
        %5506 = vmatpush1.bf16.msra.mxu0 %v5449
        %5507 = vmatprep.subr.bf16.mxu0 0
        %5508 = vmatpush1.bf16.msra.mxu0 %v5450
        %5509 = vmatprep.subr.bf16.mxu0 0
        %5510 = vmatpush1.bf16.msra.mxu0 %v5451
        %5511 = vmatprep.subr.bf16.mxu0 0
        %5512 = vmatpush1.bf16.msra.mxu0 %v5452
        %5513 = vmatprep.subr.bf16.mxu0 0
        %5514 = vmatpush1.bf16.msra.mxu0 %v5453
        %5515 = vmatprep.subr.bf16.mxu0 0
        %5516 = vmatpush1.bf16.msra.mxu0 %v5454
        %5517 = vmatprep.subr.bf16.mxu0 0
        %5518 = vmatpush1.bf16.msra.mxu0 %v5455
        %5519 = vmatprep.subr.bf16.mxu0 0
        %5520 = vmatpush1.bf16.msra.mxu0 %v5456
        %5521 = vmatprep.mubr.bf16.mxu0 %v5316
        %5522 = vmatmul.mubr.bf16.gmra.mrb[0].mxu0 %v5315
        %v5523 = vpop.f32.mrb[0].mxu0
        %v5524 = vadd.f32 %v5343, %v5523
        %v5525 = vpop.f32.mrb[0].mxu0
        %v5526 = vpop.f32.mrb[0].mxu0
        %v5527 = vadd.f32 %v5343, %v5526
        %v5528 = vpop.f32.mrb[0].mxu0
        %5529 = vmatprep.mubr.bf16.mxu0 %v5319
        %5530 = vmatmul.mubr.bf16.gmra.mrb[0].mxu0 %v5318
        %v5531 = vpop.f32.mrb[0].mxu0
        %v5532 = vadd.f32 %v5343, %v5531
        %v5533 = vpop.f32.mrb[0].mxu0
        %v5534 = vpop.f32.mrb[0].mxu0
        %v5535 = vadd.f32 %v5343, %v5534
        %v5536 = vpop.f32.mrb[0].mxu0
        %5537 = vmatprep.mubr.bf16.mxu0 %v5322
        %5538 = vmatmul.mubr.bf16.gmra.mrb[0].mxu0 %v5321
        %v5539 = vpop.f32.mrb[0].mxu0
        %v5540 = vadd.f32 %v5343, %v5539
        %v5541 = vpop.f32.mrb[0].mxu0
        %v5542 = vpop.f32.mrb[0].mxu0
        %v5543 = vadd.f32 %v5343, %v5542
        %v5544 = vpop.f32.mrb[0].mxu0
        %5545 = vmatprep.mubr.bf16.mxu0 %v5325
        %5546 = vmatmul.mubr.bf16.gmra.mrb[0].mxu0 %v5324
        %v5547 = vpop.f32.mrb[0].mxu0
        %v5548 = vadd.f32 %v5343, %v5547
        %v5549 = vpop.f32.mrb[0].mxu0
        %v5550 = vpop.f32.mrb[0].mxu0
        %v5551 = vadd.f32 %v5343, %v5550
        %v5552 = vpop.f32.mrb[0].mxu0
        %5553 = vmatprep.mubr.bf16.mxu0 %v5328
        %5554 = vmatmul.mubr.bf16.gmra.mrb[0].mxu0 %v5327
        %v5555 = vpop.f32.mrb[0].mxu0
        %v5556 = vadd.f32 %v5343, %v5555
        %v5557 = vpop.f32.mrb[0].mxu0
        %v5558 = vpop.f32.mrb[0].mxu0
        %v5559 = vadd.f32 %v5343, %v5558
        %v5560 = vpop.f32.mrb[0].mxu0
        %5561 = vmatprep.mubr.bf16.mxu0 %v5331
        %5562 = vmatmul.mubr.bf16.gmra.mrb[0].mxu0 %v5330
        %v5563 = vpop.f32.mrb[0].mxu0
        %v5564 = vadd.f32 %v5343, %v5563
        %v5565 = vpop.f32.mrb[0].mxu0
        %v5566 = vpop.f32.mrb[0].mxu0
        %v5567 = vadd.f32 %v5343, %v5566
        %v5568 = vpop.f32.mrb[0].mxu0
        %5569 = vmatprep.mubr.bf16.mxu0 %v5334
        %5570 = vmatmul.mubr.bf16.gmra.mrb[0].mxu0 %v5333
        %v5571 = vpop.f32.mrb[0].mxu0
        %v5572 = vadd.f32 %v5343, %v5571
        %v5573 = vpop.f32.mrb[0].mxu0
        %v5574 = vpop.f32.mrb[0].mxu0
        %v5575 = vadd.f32 %v5343, %v5574
        %v5576 = vpop.f32.mrb[0].mxu0
        %5577 = vmatprep.mubr.bf16.mxu0 %v5337
        %5578 = vmatmul.mubr.bf16.gmra.mrb[0].mxu0 %v5336
        %v5579 = vpop.f32.mrb[0].mxu0
        %v5580 = vadd.f32 %v5343, %v5579
        %v5581 = vpop.f32.mrb[0].mxu0
        %v5582 = vpop.f32.mrb[0].mxu0
        %v5583 = vadd.f32 %v5343, %v5582
        %v5584 = vpop.f32.mrb[0].mxu0
        %5585 = vdwg.mxu0
        %5586 = vmatprep.subr.bf16.mxu0 0
        %5587 = vmatpush1.bf16.msra.mxu0 %v5457
        %5588 = vmatprep.subr.bf16.mxu0 0
        %5589 = vmatpush1.bf16.msra.mxu0 %v5458
        %5590 = vmatprep.subr.bf16.mxu0 0
        %5591 = vmatpush1.bf16.msra.mxu0 %v5459
        %5592 = vmatprep.subr.bf16.mxu0 0
        %5593 = vmatpush1.bf16.msra.mxu0 %v5460
        %5594 = vmatprep.subr.bf16.mxu0 0
        %5595 = vmatpush1.bf16.msra.mxu0 %v5461
        %5596 = vmatprep.subr.bf16.mxu0 0
        %5597 = vmatpush1.bf16.msra.mxu0 %v5462
        %5598 = vmatprep.subr.bf16.mxu0 0
        %5599 = vmatpush1.bf16.msra.mxu0 %v5463
        %5600 = vmatprep.subr.bf16.mxu0 0
        %5601 = vmatpush1.bf16.msra.mxu0 %v5464
        %5602 = vmatprep.subr.bf16.mxu0 0
        %5603 = vmatpush1.bf16.msra.mxu0 0
        %5604 = vmatprep.subr.bf16.mxu0 0
        %5605 = vmatpush1.bf16.msra.mxu0 0
        %5606 = vmatprep.subr.bf16.mxu0 0
        %5607 = vmatpush1.bf16.msra.mxu0 0
        %5608 = vmatprep.subr.bf16.mxu0 0
        %5609 = vmatpush1.bf16.msra.mxu0 0
        %5610 = vmatprep.subr.bf16.mxu0 0
        %5611 = vmatpush1.bf16.msra.mxu0 0
        %5612 = vmatprep.subr.bf16.mxu0 0
        %5613 = vmatpush1.bf16.msra.mxu0 0
        %5614 = vmatprep.subr.bf16.mxu0 0
        %5615 = vmatpush1.bf16.msra.mxu0 0
        %5616 = vmatprep.subr.bf16.mxu0 0
        %5617 = vmatpush1.bf16.msra.mxu0 0
        %5618 = vmatprep.mubr.bf16.mxu0 0
        %5619 = vmatmul.mubr.bf16.gmra.mrb[0].mxu0 %v5317
        %v5620 = vpop.f32.mrb[0].mxu0
        %v5621 = vadd.f32 %v5524, %v5620
        %v5622 = vpop.f32.mrb[0].mxu0
        %v5623 = vpop.f32.mrb[0].mxu0
        %v5624 = vadd.f32 %v5527, %v5623
        %v5625 = vpop.f32.mrb[0].mxu0
        %5626 = vmatprep.mubr.bf16.mxu0 0
        %5627 = vmatmul.mubr.bf16.gmra.mrb[0].mxu0 %v5320
        %v5628 = vpop.f32.mrb[0].mxu0
        %v5629 = vadd.f32 %v5532, %v5628
        %v5630 = vpop.f32.mrb[0].mxu0
        %v5631 = vpop.f32.mrb[0].mxu0
        %v5632 = vadd.f32 %v5535, %v5631
        %v5633 = vpop.f32.mrb[0].mxu0
        %5634 = vmatprep.mubr.bf16.mxu0 0
        %5635 = vmatmul.mubr.bf16.gmra.mrb[0].mxu0 %v5323
        %v5636 = vpop.f32.mrb[0].mxu0
        %v5637 = vadd.f32 %v5540, %v5636
        %v5638 = vpop.f32.mrb[0].mxu0
        %v5639 = vpop.f32.mrb[0].mxu0
        %v5640 = vadd.f32 %v5543, %v5639
        %v5641 = vpop.f32.mrb[0].mxu0
        %5642 = vmatprep.mubr.bf16.mxu0 0
        %5643 = vmatmul.mubr.bf16.gmra.mrb[0].mxu0 %v5326
        %v5644 = vpop.f32.mrb[0].mxu0
        %v5645 = vadd.f32 %v5548, %v5644
        %v5646 = vpop.f32.mrb[0].mxu0
        %v5647 = vpop.f32.mrb[0].mxu0
        %v5648 = vadd.f32 %v5551, %v5647
        %v5649 = vpop.f32.mrb[0].mxu0
        %5650 = vmatprep.mubr.bf16.mxu0 0
        %5651 = vmatmul.mubr.bf16.gmra.mrb[0].mxu0 %v5329
        %v5652 = vpop.f32.mrb[0].mxu0
        %v5653 = vadd.f32 %v5556, %v5652
        %v5654 = vpop.f32.mrb[0].mxu0
        %v5655 = vpop.f32.mrb[0].mxu0
        %v5656 = vadd.f32 %v5559, %v5655
        %v5657 = vpop.f32.mrb[0].mxu0
        %5658 = vmatprep.mubr.bf16.mxu0 0
        %5659 = vmatmul.mubr.bf16.gmra.mrb[0].mxu0 %v5332
        %v5660 = vpop.f32.mrb[0].mxu0
        %v5661 = vadd.f32 %v5564, %v5660
        %v5662 = vpop.f32.mrb[0].mxu0
        %v5663 = vpop.f32.mrb[0].mxu0
        %v5664 = vadd.f32 %v5567, %v5663
        %v5665 = vpop.f32.mrb[0].mxu0
        %5666 = vmatprep.mubr.bf16.mxu0 0
        %5667 = vmatmul.mubr.bf16.gmra.mrb[0].mxu0 %v5335
        %v5668 = vpop.f32.mrb[0].mxu0
        %v5669 = vadd.f32 %v5572, %v5668
        %v5670 = vpop.f32.mrb[0].mxu0
        %v5671 = vpop.f32.mrb[0].mxu0
        %v5672 = vadd.f32 %v5575, %v5671
        %v5673 = vpop.f32.mrb[0].mxu0
        %5674 = vmatprep.mubr.bf16.mxu0 0
        %5675 = vmatmul.mubr.bf16.gmra.mrb[0].mxu0 %v5338
        %v5676 = vpop.f32.mrb[0].mxu0
        %v5677 = vadd.f32 %v5580, %v5676
        %v5678 = vpop.f32.mrb[0].mxu0
        %v5679 = vpop.f32.mrb[0].mxu0
        %v5680 = vadd.f32 %v5583, %v5679
        %v5681 = vpop.f32.mrb[0].mxu0
        %5682 = vdwg.mxu0
        %v5683 = vmul.f32 %v5621, %v1458
        %v5684 = vmul.f32 %v5624, %v1458
        %v5685 = vmul.f32 %v5629, %v1458
        %v5686 = vmul.f32 %v5632, %v1458
        %v5687 = vmul.f32 %v5637, %v1458
        %v5688 = vmul.f32 %v5640, %v1458
        %v5689 = vmul.f32 %v5645, %v1458
        %v5690 = vmul.f32 %v5648, %v1458
        %v5691 = vmul.f32 %v5653, %v1458
        %v5692 = vmul.f32 %v5656, %v1458
        %v5693 = vmul.f32 %v5661, %v1458
        %v5694 = vmul.f32 %v5664, %v1458
        %v5695 = vmul.f32 %v5669, %v1458
        %v5696 = vmul.f32 %v5672, %v1458
        %v5697 = vmul.f32 %v5677, %v1458
        %v5698 = vmul.f32 %v5680, %v1458
        %v5699 = vadd.f32 %v5683, %v1480
        %v5700 = vadd.f32 %v5684, %v1480
        %v5701 = vadd.f32 %v5685, %v1480
        %v5702 = vadd.f32 %v5686, %v1480
        %v5703 = vadd.f32 %v5687, %v1480
        %v5704 = vadd.f32 %v5688, %v1480
        %v5705 = vadd.f32 %v5689, %v1480
        %v5706 = vadd.f32 %v5690, %v1480
        %v5707 = vadd.f32 %v5691, %v1480
        %v5708 = vadd.f32 %v5692, %v1480
        %v5709 = vadd.f32 %v5693, %v1480
        %v5710 = vadd.f32 %v5694, %v1480
        %v5711 = vadd.f32 %v5695, %v1480
        %v5712 = vadd.f32 %v5696, %v1480
        %v5713 = vadd.f32 %v5697, %v1480
        %v5714 = vadd.f32 %v5698, %v1480
        %vm5715 = vcmp.ge.f32.partialorder %v5699, 0.0
        %vm5716 = vcmp.ge.f32.partialorder %v5700, 0.0
        %vm5717 = vcmp.ge.f32.partialorder %v5701, 0.0
        %vm5718 = vcmp.ge.f32.partialorder %v5702, 0.0
        %vm5719 = vcmp.ge.f32.partialorder %v5703, 0.0
        %vm5720 = vcmp.ge.f32.partialorder %v5704, 0.0
        %vm5721 = vcmp.ge.f32.partialorder %v5705, 0.0
        %vm5722 = vcmp.ge.f32.partialorder %v5706, 0.0
        %vm5723 = vcmp.ge.f32.partialorder %v5707, 0.0
        %vm5724 = vcmp.ge.f32.partialorder %v5708, 0.0
        %vm5725 = vcmp.ge.f32.partialorder %v5709, 0.0
        %vm5726 = vcmp.ge.f32.partialorder %v5710, 0.0
        %vm5727 = vcmp.ge.f32.partialorder %v5711, 0.0
        %vm5728 = vcmp.ge.f32.partialorder %v5712, 0.0
        %vm5729 = vcmp.ge.f32.partialorder %v5713, 0.0
        %vm5730 = vcmp.ge.f32.partialorder %v5714, 0.0
        %v5731 = vmul.f32 %v5699, %v1518
        %v5732 = vmul.f32 %v5700, %v1518
        %v5733 = vmul.f32 %v5701, %v1518
        %v5734 = vmul.f32 %v5702, %v1518
        %v5735 = vmul.f32 %v5703, %v1518
        %v5736 = vmul.f32 %v5704, %v1518
        %v5737 = vmul.f32 %v5705, %v1518
        %v5738 = vmul.f32 %v5706, %v1518
        %v5739 = vmul.f32 %v5707, %v1518
        %v5740 = vmul.f32 %v5708, %v1518
        %v5741 = vmul.f32 %v5709, %v1518
        %v5742 = vmul.f32 %v5710, %v1518
        %v5743 = vmul.f32 %v5711, %v1518
        %v5744 = vmul.f32 %v5712, %v1518
        %v5745 = vmul.f32 %v5713, %v1518
        %v5746 = vmul.f32 %v5714, %v1518
        %v5747 = vsel %vm5715, %v5699, %v5731
        %v5748 = vsel %vm5716, %v5700, %v5732
        %v5749 = vsel %vm5717, %v5701, %v5733
        %v5750 = vsel %vm5718, %v5702, %v5734
        %v5751 = vsel %vm5719, %v5703, %v5735
        %v5752 = vsel %vm5720, %v5704, %v5736
        %v5753 = vsel %vm5721, %v5705, %v5737
        %v5754 = vsel %vm5722, %v5706, %v5738
        %v5755 = vsel %vm5723, %v5707, %v5739
        %v5756 = vsel %vm5724, %v5708, %v5740
        %v5757 = vsel %vm5725, %v5709, %v5741
        %v5758 = vsel %vm5726, %v5710, %v5742
        %v5759 = vsel %vm5727, %v5711, %v5743
        %v5760 = vsel %vm5728, %v5712, %v5744
        %v5761 = vsel %vm5729, %v5713, %v5745
        %v5762 = vsel %vm5730, %v5714, %v5746
        %s5763 = scalar_lea.vmem %s5, 1344
        %v5764 = vld [vmem:[%s5763] sm:$0xf]
        %v5765 = vld [vmem:[%s5763 + $0x4] sm:$0xf]
        %v5766 = vld [vmem:[%s5763 + $0x8] sm:$0xf]
        %v5767 = vld [vmem:[%s5763 + $0xc] sm:$0xf]
        %v5768 = vld [vmem:[%s5763 + $0x10] sm:$0xf]
        %v5769 = vld [vmem:[%s5763 + $0x14] sm:$0xf]
        %v5770 = vld [vmem:[%s5763 + $0x18] sm:$0xf]
        %v5771 = vld [vmem:[%s5763 + $0x1c] sm:$0xf]
        %v5772 = vld [vmem:[%s5763 + $0x20] sm:$0xf]
        %v5773 = vld [vmem:[%s5763 + $0x24] sm:$0xf]
        %v5774 = vld [vmem:[%s5763 + $0x28] sm:$0xf]
        %v5775 = vld [vmem:[%s5763 + $0x2c] sm:$0xf]
        %v5776 = vld [vmem:[%s5763 + $0x30] sm:$0xf]
        %v5777 = vld [vmem:[%s5763 + $0x34] sm:$0xf]
        %v5778 = vld [vmem:[%s5763 + $0x38] sm:$0xf]
        %v5779 = vld [vmem:[%s5763 + $0x3c] sm:$0xf]
        %v5780 = vld [vmem:[%s5763 + $0x40] sm:$0xf]
        %v5781 = vld [vmem:[%s5763 + $0x44] sm:$0xf]
        %v5782 = vld [vmem:[%s5763 + $0x48] sm:$0xf]
        %v5783 = vld [vmem:[%s5763 + $0x4c] sm:$0xf]
        %v5784 = vld [vmem:[%s5763 + $0x50] sm:$0xf]
        %v5785 = vld [vmem:[%s5763 + $0x54] sm:$0xf]
        %v5786 = vld [vmem:[%s5763 + $0x58] sm:$0xf]
        %v5787 = vld [vmem:[%s5763 + $0x5c] sm:$0xf]
        %v5788 = vld [vmem:[%s5763 + $0x60] sm:$0xf]
        %v5789 = vld [vmem:[%s5763 + $0x64] sm:$0xf]
        %v5790 = vld [vmem:[%s5763 + $0x68] sm:$0xf]
        %v5791 = vld [vmem:[%s5763 + $0x6c] sm:$0xf]
        %v5792 = vld [vmem:[%s5763 + $0x70] sm:$0xf]
        %v5793 = vld [vmem:[%s5763 + $0x74] sm:$0xf]
        %v5794 = vld [vmem:[%s5763 + $0x78] sm:$0xf]
        %v5795 = vld [vmem:[%s5763 + $0x7c] sm:$0xf]
        %v5796 = vld [vmem:[%s5763 + $0x80] sm:$0xf]
        %v5797 = vld [vmem:[%s5763 + $0x84] sm:$0xf]
        %v5798 = vld [vmem:[%s5763 + $0x88] sm:$0xf]
        %v5799 = vld [vmem:[%s5763 + $0x8c] sm:$0xf]
        %v5800 = vld [vmem:[%s5763 + $0x90] sm:$0xf]
        %v5801 = vld [vmem:[%s5763 + $0x94] sm:$0xf]
        %v5802 = vld [vmem:[%s5763 + $0x98] sm:$0xf]
        %v5803 = vld [vmem:[%s5763 + $0x9c] sm:$0xf]
        %v5804 = vld [vmem:[%s5763 + $0xa0] sm:$0xf]
        %v5805 = vld [vmem:[%s5763 + $0xa4] sm:$0xf]
        %v5806 = vld [vmem:[%s5763 + $0xa8] sm:$0xf]
        %v5807 = vld [vmem:[%s5763 + $0xac] sm:$0xf]
        %v5808 = vld [vmem:[%s5763 + $0xb0] sm:$0xf]
        %v5809 = vld [vmem:[%s5763 + $0xb4] sm:$0xf]
        %v5810 = vld [vmem:[%s5763 + $0xb8] sm:$0xf]
        %v5811 = vld [vmem:[%s5763 + $0xbc] sm:$0xf]
        %s5812 = scalar_lea.vmem %s6, 7
        %v5813 = vld [vmem:[%s5812] sm:$0x1]
        %v5814 = vrot.slane %v5747, 7
        %v5815 = vrot.slane %v5748, 7
        %v5816 = vrot.slane %v5749, 7
        %v5817 = vrot.slane %v5750, 7
        %v5818 = vrot.slane %v5751, 7
        %v5819 = vrot.slane %v5752, 7
        %v5820 = vrot.slane %v5753, 7
        %v5821 = vrot.slane %v5754, 7
        %v5822 = vrot.slane %v5755, 7
        %v5823 = vrot.slane %v5756, 7
        %v5824 = vrot.slane %v5757, 7
        %v5825 = vrot.slane %v5758, 7
        %v5826 = vrot.slane %v5759, 7
        %v5827 = vrot.slane %v5760, 7
        %v5828 = vrot.slane %v5761, 7
        %v5829 = vrot.slane %v5762, 7
        %v5830 = vsel %vm975, %v5828, %v5829
        %v5831 = vsel %vm975, %v5827, %v5828
        %v5832 = vsel %vm975, %v5826, %v5827
        %v5833 = vsel %vm975, %v5825, %v5826
        %v5834 = vsel %vm975, %v5824, %v5825
        %v5835 = vsel %vm975, %v5823, %v5824
        %v5836 = vsel %vm975, %v5822, %v5823
        %v5837 = vsel %vm975, %v5821, %v5822
        %v5838 = vsel %vm975, %v5820, %v5821
        %v5839 = vsel %vm975, %v5819, %v5820
        %v5840 = vsel %vm975, %v5818, %v5819
        %v5841 = vsel %vm975, %v5817, %v5818
        %v5842 = vsel %vm975, %v5816, %v5817
        %v5843 = vsel %vm975, %v5815, %v5816
        %v5844 = vsel %vm975, %v5814, %v5815
        %v5845 = vsel %vm975, %v5829, %v5814
        %v5846 = vsel %vm1008, %v5845, 0.0
        %v5847 = vsel %vm1009, %v5844, 0.0
        %v5848 = vsel %vm1010, %v5843, 0.0
        %v5849 = vsel %vm1011, %v5842, 0.0
        %v5850 = vsel %vm1012, %v5841, 0.0
        %v5851 = vsel %vm1013, %v5840, 0.0
        %v5852 = vsel %vm1014, %v5839, 0.0
        %v5853 = vsel %vm1015, %v5838, 0.0
        %v5854 = vsel %vm1016, %v5837, 0.0
        %v5855 = vsel %vm1017, %v5836, 0.0
        %v5856 = vsel %vm1018, %v5835, 0.0
        %v5857 = vsel %vm1019, %v5834, 0.0
        %v5858 = vsel %vm1020, %v5833, 0.0
        %v5859 = vsel %vm1021, %v5832, 0.0
        %v5860 = vsel %vm1022, %v5831, 0.0
        %v5861 = vsel %vm1023, %v5830, 0.0
        %v5862 = vrot.slane %v5747, 1
        %v5863 = vrot.slane %v5748, 1
        %v5864 = vrot.slane %v5749, 1
        %v5865 = vrot.slane %v5750, 1
        %v5866 = vrot.slane %v5751, 1
        %v5867 = vrot.slane %v5752, 1
        %v5868 = vrot.slane %v5753, 1
        %v5869 = vrot.slane %v5754, 1
        %v5870 = vrot.slane %v5755, 1
        %v5871 = vrot.slane %v5756, 1
        %v5872 = vrot.slane %v5757, 1
        %v5873 = vrot.slane %v5758, 1
        %v5874 = vrot.slane %v5759, 1
        %v5875 = vrot.slane %v5760, 1
        %v5876 = vrot.slane %v5761, 1
        %v5877 = vrot.slane %v5762, 1
        %v5878 = vsel %vm1056, %v5876, %v5877
        %v5879 = vsel %vm1056, %v5875, %v5876
        %v5880 = vsel %vm1056, %v5874, %v5875
        %v5881 = vsel %vm1056, %v5873, %v5874
        %v5882 = vsel %vm1056, %v5872, %v5873
        %v5883 = vsel %vm1056, %v5871, %v5872
        %v5884 = vsel %vm1056, %v5870, %v5871
        %v5885 = vsel %vm1056, %v5869, %v5870
        %v5886 = vsel %vm1056, %v5868, %v5869
        %v5887 = vsel %vm1056, %v5867, %v5868
        %v5888 = vsel %vm1056, %v5866, %v5867
        %v5889 = vsel %vm1056, %v5865, %v5866
        %v5890 = vsel %vm1056, %v5864, %v5865
        %v5891 = vsel %vm1056, %v5863, %v5864
        %v5892 = vsel %vm1056, %v5862, %v5863
        %v5893 = vsel %vm1056, %v5877, %v5862
        %v5894 = vsel %vm1089, %v5892, 0.0
        %v5895 = vsel %vm1090, %v5891, 0.0
        %v5896 = vsel %vm1091, %v5890, 0.0
        %v5897 = vsel %vm1092, %v5889, 0.0
        %v5898 = vsel %vm1093, %v5888, 0.0
        %v5899 = vsel %vm1094, %v5887, 0.0
        %v5900 = vsel %vm1095, %v5886, 0.0
        %v5901 = vsel %vm1096, %v5885, 0.0
        %v5902 = vsel %vm1097, %v5884, 0.0
        %v5903 = vsel %vm1098, %v5883, 0.0
        %v5904 = vsel %vm1099, %v5882, 0.0
        %v5905 = vsel %vm1100, %v5881, 0.0
        %v5906 = vsel %vm1101, %v5880, 0.0
        %v5907 = vsel %vm1102, %v5879, 0.0
        %v5908 = vsel %vm1103, %v5878, 0.0
        %v5909 = vsel %vm1104, %v5893, 0.0
        %v5910 = vpack.c.bf16 %v5847, %v5846
        %v5911 = vpack.c.bf16 %v5748, %v5747
        %v5912 = vpack.c.bf16 %v5895, %v5894
        %v5913 = vpack.c.bf16 %v5849, %v5848
        %v5914 = vpack.c.bf16 %v5750, %v5749
        %v5915 = vpack.c.bf16 %v5897, %v5896
        %v5916 = vpack.c.bf16 %v5851, %v5850
        %v5917 = vpack.c.bf16 %v5752, %v5751
        %v5918 = vpack.c.bf16 %v5899, %v5898
        %v5919 = vpack.c.bf16 %v5853, %v5852
        %v5920 = vpack.c.bf16 %v5754, %v5753
        %v5921 = vpack.c.bf16 %v5901, %v5900
        %v5922 = vpack.c.bf16 %v5855, %v5854
        %v5923 = vpack.c.bf16 %v5756, %v5755
        %v5924 = vpack.c.bf16 %v5903, %v5902
        %v5925 = vpack.c.bf16 %v5857, %v5856
        %v5926 = vpack.c.bf16 %v5758, %v5757
        %v5927 = vpack.c.bf16 %v5905, %v5904
        %v5928 = vpack.c.bf16 %v5859, %v5858
        %v5929 = vpack.c.bf16 %v5760, %v5759
        %v5930 = vpack.c.bf16 %v5907, %v5906
        %v5931 = vpack.c.bf16 %v5861, %v5860
        %v5932 = vpack.c.bf16 %v5762, %v5761
        %v5933 = vpack.c.bf16 %v5909, %v5908
        %v5935 = vlaneseq
        %v5936 = vshrl.u32 %v5935, 7
        %v5937 = vsub.s32 0, %v5936
        %v5938 = vrot.slane %v5813, %v5937
        %v5988 = vunpack.c.l.b16 %v5764
        %v5989 = vunpack.c.l.b16 %v5765
        %v5990 = vunpack.c.l.b16 %v5766
        %v5991 = vunpack.c.l.b16 %v5767
        %v5992 = vunpack.c.l.b16 %v5768
        %v5993 = vunpack.c.l.b16 %v5769
        %v5994 = vunpack.c.l.b16 %v5770
        %v5995 = vunpack.c.l.b16 %v5771
        %v5996 = vunpack.c.l.b16 %v5772
        %v5997 = vunpack.c.l.b16 %v5773
        %v5998 = vunpack.c.l.b16 %v5774
        %v5999 = vunpack.c.l.b16 %v5775
        %v6000 = vunpack.c.l.b16 %v5776
        %v6001 = vunpack.c.l.b16 %v5777
        %v6002 = vunpack.c.l.b16 %v5778
        %v6003 = vunpack.c.l.b16 %v5779
        %v6004 = vunpack.c.l.b16 %v5780
        %v6005 = vunpack.c.l.b16 %v5781
        %v6006 = vunpack.c.l.b16 %v5782
        %v6007 = vunpack.c.l.b16 %v5783
        %v6008 = vunpack.c.l.b16 %v5784
        %v6009 = vunpack.c.l.b16 %v5785
        %v6010 = vunpack.c.l.b16 %v5786
        %v6011 = vunpack.c.l.b16 %v5787
        %v6012 = vunpack.c.l.b16 %v5788
        %v6013 = vunpack.c.l.b16 %v5789
        %v6014 = vunpack.c.l.b16 %v5790
        %v6015 = vunpack.c.l.b16 %v5791
        %v6016 = vunpack.c.l.b16 %v5792
        %v6017 = vunpack.c.l.b16 %v5793
        %v6018 = vunpack.c.l.b16 %v5794
        %v6019 = vunpack.c.l.b16 %v5795
        %v6020 = vunpack.c.l.b16 %v5796
        %v6021 = vunpack.c.l.b16 %v5797
        %v6022 = vunpack.c.l.b16 %v5798
        %v6023 = vunpack.c.l.b16 %v5799
        %v6024 = vunpack.c.l.b16 %v5800
        %v6025 = vunpack.c.l.b16 %v5801
        %v6026 = vunpack.c.l.b16 %v5802
        %v6027 = vunpack.c.l.b16 %v5803
        %v6028 = vunpack.c.l.b16 %v5804
        %v6029 = vunpack.c.l.b16 %v5805
        %v6030 = vunpack.c.l.b16 %v5806
        %v6031 = vunpack.c.l.b16 %v5807
        %v6032 = vunpack.c.l.b16 %v5808
        %v6033 = vunpack.c.l.b16 %v5809
        %v6034 = vunpack.c.l.b16 %v5810
        %v6035 = vunpack.c.l.b16 %v5811
        %v6036 = vpack.c.b16 %v5989, %v5988
        %v6037 = vpack.c.b16 %v5991, %v5990
        %v6038 = vpack.c.b16 %v5993, %v5992
        %v6039 = vpack.c.b16 %v5995, %v5994
        %v6040 = vpack.c.b16 %v5997, %v5996
        %v6041 = vpack.c.b16 %v5999, %v5998
        %v6042 = vpack.c.b16 %v6001, %v6000
        %v6043 = vpack.c.b16 %v6003, %v6002
        %v6044 = vpack.c.b16 %v6005, %v6004
        %v6045 = vpack.c.b16 %v6007, %v6006
        %v6046 = vpack.c.b16 %v6009, %v6008
        %v6047 = vpack.c.b16 %v6011, %v6010
        %v6048 = vpack.c.b16 %v6013, %v6012
        %v6049 = vpack.c.b16 %v6015, %v6014
        %v6050 = vpack.c.b16 %v6017, %v6016
        %v6051 = vpack.c.b16 %v6019, %v6018
        %v6052 = vpack.c.b16 %v6021, %v6020
        %v6053 = vpack.c.b16 %v6023, %v6022
        %v6054 = vpack.c.b16 %v6025, %v6024
        %v6055 = vpack.c.b16 %v6027, %v6026
        %v6056 = vpack.c.b16 %v6029, %v6028
        %v6057 = vpack.c.b16 %v6031, %v6030
        %v6058 = vpack.c.b16 %v6033, %v6032
        %v6059 = vpack.c.b16 %v6035, %v6034
        %6084 = vmatprep.subr.bf16.mxu0 0
        %6085 = vmatpush1.bf16.msra.mxu0 %v6036
        %6086 = vmatprep.subr.bf16.mxu0 0
        %6087 = vmatpush1.bf16.msra.mxu0 %v6037
        %6088 = vmatprep.subr.bf16.mxu0 0
        %6089 = vmatpush1.bf16.msra.mxu0 %v6038
        %6090 = vmatprep.subr.bf16.mxu0 0
        %6091 = vmatpush1.bf16.msra.mxu0 %v6039
        %6092 = vmatprep.subr.bf16.mxu0 0
        %6093 = vmatpush1.bf16.msra.mxu0 %v6040
        %6094 = vmatprep.subr.bf16.mxu0 0
        %6095 = vmatpush1.bf16.msra.mxu0 %v6041
        %6096 = vmatprep.subr.bf16.mxu0 0
        %6097 = vmatpush1.bf16.msra.mxu0 %v6042
        %6098 = vmatprep.subr.bf16.mxu0 0
        %6099 = vmatpush1.bf16.msra.mxu0 %v6043
        %6100 = vmatprep.subr.bf16.mxu0 0
        %6101 = vmatpush1.bf16.msra.mxu0 %v6044
        %6102 = vmatprep.subr.bf16.mxu0 0
        %6103 = vmatpush1.bf16.msra.mxu0 %v6045
        %6104 = vmatprep.subr.bf16.mxu0 0
        %6105 = vmatpush1.bf16.msra.mxu0 %v6046
        %6106 = vmatprep.subr.bf16.mxu0 0
        %6107 = vmatpush1.bf16.msra.mxu0 %v6047
        %6108 = vmatprep.subr.bf16.mxu0 0
        %6109 = vmatpush1.bf16.msra.mxu0 %v6048
        %6110 = vmatprep.subr.bf16.mxu0 0
        %6111 = vmatpush1.bf16.msra.mxu0 %v6049
        %6112 = vmatprep.subr.bf16.mxu0 0
        %6113 = vmatpush1.bf16.msra.mxu0 %v6050
        %6114 = vmatprep.subr.bf16.mxu0 0
        %6115 = vmatpush1.bf16.msra.mxu0 %v6051
        %6116 = vmatprep.mubr.bf16.mxu0 %v5911
        %6117 = vmatmul.mubr.bf16.gmra.mrb[0].mxu0 %v5910
        %v6118 = vpop.f32.mrb[0].mxu0
        %v6119 = vadd.f32 %v5938, %v6118
        %v6120 = vpop.f32.mrb[0].mxu0
        %v6121 = vpop.f32.mrb[0].mxu0
        %v6122 = vadd.f32 %v5938, %v6121
        %v6123 = vpop.f32.mrb[0].mxu0
        %6124 = vmatprep.mubr.bf16.mxu0 %v5914
        %6125 = vmatmul.mubr.bf16.gmra.mrb[0].mxu0 %v5913
        %v6126 = vpop.f32.mrb[0].mxu0
        %v6127 = vadd.f32 %v5938, %v6126
        %v6128 = vpop.f32.mrb[0].mxu0
        %v6129 = vpop.f32.mrb[0].mxu0
        %v6130 = vadd.f32 %v5938, %v6129
        %v6131 = vpop.f32.mrb[0].mxu0
        %6132 = vmatprep.mubr.bf16.mxu0 %v5917
        %6133 = vmatmul.mubr.bf16.gmra.mrb[0].mxu0 %v5916
        %v6134 = vpop.f32.mrb[0].mxu0
        %v6135 = vadd.f32 %v5938, %v6134
        %v6136 = vpop.f32.mrb[0].mxu0
        %v6137 = vpop.f32.mrb[0].mxu0
        %v6138 = vadd.f32 %v5938, %v6137
        %v6139 = vpop.f32.mrb[0].mxu0
        %6140 = vmatprep.mubr.bf16.mxu0 %v5920
        %6141 = vmatmul.mubr.bf16.gmra.mrb[0].mxu0 %v5919
        %v6142 = vpop.f32.mrb[0].mxu0
        %v6143 = vadd.f32 %v5938, %v6142
        %v6144 = vpop.f32.mrb[0].mxu0
        %v6145 = vpop.f32.mrb[0].mxu0
        %v6146 = vadd.f32 %v5938, %v6145
        %v6147 = vpop.f32.mrb[0].mxu0
        %6148 = vmatprep.mubr.bf16.mxu0 %v5923
        %6149 = vmatmul.mubr.bf16.gmra.mrb[0].mxu0 %v5922
        %v6150 = vpop.f32.mrb[0].mxu0
        %v6151 = vadd.f32 %v5938, %v6150
        %v6152 = vpop.f32.mrb[0].mxu0
        %v6153 = vpop.f32.mrb[0].mxu0
        %v6154 = vadd.f32 %v5938, %v6153
        %v6155 = vpop.f32.mrb[0].mxu0
        %6156 = vmatprep.mubr.bf16.mxu0 %v5926
        %6157 = vmatmul.mubr.bf16.gmra.mrb[0].mxu0 %v5925
        %v6158 = vpop.f32.mrb[0].mxu0
        %v6159 = vadd.f32 %v5938, %v6158
        %v6160 = vpop.f32.mrb[0].mxu0
        %v6161 = vpop.f32.mrb[0].mxu0
        %v6162 = vadd.f32 %v5938, %v6161
        %v6163 = vpop.f32.mrb[0].mxu0
        %6164 = vmatprep.mubr.bf16.mxu0 %v5929
        %6165 = vmatmul.mubr.bf16.gmra.mrb[0].mxu0 %v5928
        %v6166 = vpop.f32.mrb[0].mxu0
        %v6167 = vadd.f32 %v5938, %v6166
        %v6168 = vpop.f32.mrb[0].mxu0
        %v6169 = vpop.f32.mrb[0].mxu0
        %v6170 = vadd.f32 %v5938, %v6169
        %v6171 = vpop.f32.mrb[0].mxu0
        %6172 = vmatprep.mubr.bf16.mxu0 %v5932
        %6173 = vmatmul.mubr.bf16.gmra.mrb[0].mxu0 %v5931
        %v6174 = vpop.f32.mrb[0].mxu0
        %v6175 = vadd.f32 %v5938, %v6174
        %v6176 = vpop.f32.mrb[0].mxu0
        %v6177 = vpop.f32.mrb[0].mxu0
        %v6178 = vadd.f32 %v5938, %v6177
        %v6179 = vpop.f32.mrb[0].mxu0
        %6180 = vdwg.mxu0
        %6181 = vmatprep.subr.bf16.mxu0 0
        %6182 = vmatpush1.bf16.msra.mxu0 %v6052
        %6183 = vmatprep.subr.bf16.mxu0 0
        %6184 = vmatpush1.bf16.msra.mxu0 %v6053
        %6185 = vmatprep.subr.bf16.mxu0 0
        %6186 = vmatpush1.bf16.msra.mxu0 %v6054
        %6187 = vmatprep.subr.bf16.mxu0 0
        %6188 = vmatpush1.bf16.msra.mxu0 %v6055
        %6189 = vmatprep.subr.bf16.mxu0 0
        %6190 = vmatpush1.bf16.msra.mxu0 %v6056
        %6191 = vmatprep.subr.bf16.mxu0 0
        %6192 = vmatpush1.bf16.msra.mxu0 %v6057
        %6193 = vmatprep.subr.bf16.mxu0 0
        %6194 = vmatpush1.bf16.msra.mxu0 %v6058
        %6195 = vmatprep.subr.bf16.mxu0 0
        %6196 = vmatpush1.bf16.msra.mxu0 %v6059
        %6197 = vmatprep.subr.bf16.mxu0 0
        %6198 = vmatpush1.bf16.msra.mxu0 0
        %6199 = vmatprep.subr.bf16.mxu0 0
        %6200 = vmatpush1.bf16.msra.mxu0 0
        %6201 = vmatprep.subr.bf16.mxu0 0
        %6202 = vmatpush1.bf16.msra.mxu0 0
        %6203 = vmatprep.subr.bf16.mxu0 0
        %6204 = vmatpush1.bf16.msra.mxu0 0
        %6205 = vmatprep.subr.bf16.mxu0 0
        %6206 = vmatpush1.bf16.msra.mxu0 0
        %6207 = vmatprep.subr.bf16.mxu0 0
        %6208 = vmatpush1.bf16.msra.mxu0 0
        %6209 = vmatprep.subr.bf16.mxu0 0
        %6210 = vmatpush1.bf16.msra.mxu0 0
        %6211 = vmatprep.subr.bf16.mxu0 0
        %6212 = vmatpush1.bf16.msra.mxu0 0
        %6213 = vmatprep.mubr.bf16.mxu0 0
        %6214 = vmatmul.mubr.bf16.gmra.mrb[0].mxu0 %v5912
        %v6215 = vpop.f32.mrb[0].mxu0
        %v6216 = vadd.f32 %v6119, %v6215
        %v6217 = vpop.f32.mrb[0].mxu0
        %v6218 = vpop.f32.mrb[0].mxu0
        %v6219 = vadd.f32 %v6122, %v6218
        %v6220 = vpop.f32.mrb[0].mxu0
        %6221 = vmatprep.mubr.bf16.mxu0 0
        %6222 = vmatmul.mubr.bf16.gmra.mrb[0].mxu0 %v5915
        %v6223 = vpop.f32.mrb[0].mxu0
        %v6224 = vadd.f32 %v6127, %v6223
        %v6225 = vpop.f32.mrb[0].mxu0
        %v6226 = vpop.f32.mrb[0].mxu0
        %v6227 = vadd.f32 %v6130, %v6226
        %v6228 = vpop.f32.mrb[0].mxu0
        %6229 = vmatprep.mubr.bf16.mxu0 0
        %6230 = vmatmul.mubr.bf16.gmra.mrb[0].mxu0 %v5918
        %v6231 = vpop.f32.mrb[0].mxu0
        %v6232 = vadd.f32 %v6135, %v6231
        %v6233 = vpop.f32.mrb[0].mxu0
        %v6234 = vpop.f32.mrb[0].mxu0
        %v6235 = vadd.f32 %v6138, %v6234
        %v6236 = vpop.f32.mrb[0].mxu0
        %6237 = vmatprep.mubr.bf16.mxu0 0
        %6238 = vmatmul.mubr.bf16.gmra.mrb[0].mxu0 %v5921
        %v6239 = vpop.f32.mrb[0].mxu0
        %v6240 = vadd.f32 %v6143, %v6239
        %v6241 = vpop.f32.mrb[0].mxu0
        %v6242 = vpop.f32.mrb[0].mxu0
        %v6243 = vadd.f32 %v6146, %v6242
        %v6244 = vpop.f32.mrb[0].mxu0
        %6245 = vmatprep.mubr.bf16.mxu0 0
        %6246 = vmatmul.mubr.bf16.gmra.mrb[0].mxu0 %v5924
        %v6247 = vpop.f32.mrb[0].mxu0
        %v6248 = vadd.f32 %v6151, %v6247
        %v6249 = vpop.f32.mrb[0].mxu0
        %v6250 = vpop.f32.mrb[0].mxu0
        %v6251 = vadd.f32 %v6154, %v6250
        %v6252 = vpop.f32.mrb[0].mxu0
        %6253 = vmatprep.mubr.bf16.mxu0 0
        %6254 = vmatmul.mubr.bf16.gmra.mrb[0].mxu0 %v5927
        %v6255 = vpop.f32.mrb[0].mxu0
        %v6256 = vadd.f32 %v6159, %v6255
        %v6257 = vpop.f32.mrb[0].mxu0
        %v6258 = vpop.f32.mrb[0].mxu0
        %v6259 = vadd.f32 %v6162, %v6258
        %v6260 = vpop.f32.mrb[0].mxu0
        %6261 = vmatprep.mubr.bf16.mxu0 0
        %6262 = vmatmul.mubr.bf16.gmra.mrb[0].mxu0 %v5930
        %v6263 = vpop.f32.mrb[0].mxu0
        %v6264 = vadd.f32 %v6167, %v6263
        %v6265 = vpop.f32.mrb[0].mxu0
        %v6266 = vpop.f32.mrb[0].mxu0
        %v6267 = vadd.f32 %v6170, %v6266
        %v6268 = vpop.f32.mrb[0].mxu0
        %6269 = vmatprep.mubr.bf16.mxu0 0
        %6270 = vmatmul.mubr.bf16.gmra.mrb[0].mxu0 %v5933
        %v6271 = vpop.f32.mrb[0].mxu0
        %v6272 = vadd.f32 %v6175, %v6271
        %v6273 = vpop.f32.mrb[0].mxu0
        %v6274 = vpop.f32.mrb[0].mxu0
        %v6275 = vadd.f32 %v6178, %v6274
        %v6276 = vpop.f32.mrb[0].mxu0
        %6277 = vdwg.mxu0
        %v6278 = vadd.f32 %v6216, %v5072
        %v6279 = vadd.f32 %v6219, %v5073
        %v6280 = vadd.f32 %v6224, %v5074
        %v6281 = vadd.f32 %v6227, %v5075
        %v6282 = vadd.f32 %v6232, %v5076
        %v6283 = vadd.f32 %v6235, %v5077
        %v6284 = vadd.f32 %v6240, %v5078
        %v6285 = vadd.f32 %v6243, %v5079
        %v6286 = vadd.f32 %v6248, %v5080
        %v6287 = vadd.f32 %v6251, %v5081
        %v6288 = vadd.f32 %v6256, %v5082
        %v6289 = vadd.f32 %v6259, %v5083
        %v6290 = vadd.f32 %v6264, %v5084
        %v6291 = vadd.f32 %v6267, %v5085
        %v6292 = vadd.f32 %v6272, %v5086
        %v6293 = vadd.f32 %v6275, %v5087
        %v6294 = vmul.f32 %v6278, %v1458
        %v6295 = vmul.f32 %v6279, %v1458
        %v6296 = vmul.f32 %v6280, %v1458
        %v6297 = vmul.f32 %v6281, %v1458
        %v6298 = vmul.f32 %v6282, %v1458
        %v6299 = vmul.f32 %v6283, %v1458
        %v6300 = vmul.f32 %v6284, %v1458
        %v6301 = vmul.f32 %v6285, %v1458
        %v6302 = vmul.f32 %v6286, %v1458
        %v6303 = vmul.f32 %v6287, %v1458
        %v6304 = vmul.f32 %v6288, %v1458
        %v6305 = vmul.f32 %v6289, %v1458
        %v6306 = vmul.f32 %v6290, %v1458
        %v6307 = vmul.f32 %v6291, %v1458
        %v6308 = vmul.f32 %v6292, %v1458
        %v6309 = vmul.f32 %v6293, %v1458
        %v6310 = vadd.f32 %v6294, %v1480
        %v6311 = vadd.f32 %v6295, %v1480
        %v6312 = vadd.f32 %v6296, %v1480
        %v6313 = vadd.f32 %v6297, %v1480
        %v6314 = vadd.f32 %v6298, %v1480
        %v6315 = vadd.f32 %v6299, %v1480
        %v6316 = vadd.f32 %v6300, %v1480
        %v6317 = vadd.f32 %v6301, %v1480
        %v6318 = vadd.f32 %v6302, %v1480
        %v6319 = vadd.f32 %v6303, %v1480
        %v6320 = vadd.f32 %v6304, %v1480
        %v6321 = vadd.f32 %v6305, %v1480
        %v6322 = vadd.f32 %v6306, %v1480
        %v6323 = vadd.f32 %v6307, %v1480
        %v6324 = vadd.f32 %v6308, %v1480
        %v6325 = vadd.f32 %v6309, %v1480
        %vm6326 = vcmp.ge.f32.partialorder %v6310, 0.0
        %vm6327 = vcmp.ge.f32.partialorder %v6311, 0.0
        %vm6328 = vcmp.ge.f32.partialorder %v6312, 0.0
        %vm6329 = vcmp.ge.f32.partialorder %v6313, 0.0
        %vm6330 = vcmp.ge.f32.partialorder %v6314, 0.0
        %vm6331 = vcmp.ge.f32.partialorder %v6315, 0.0
        %vm6332 = vcmp.ge.f32.partialorder %v6316, 0.0
        %vm6333 = vcmp.ge.f32.partialorder %v6317, 0.0
        %vm6334 = vcmp.ge.f32.partialorder %v6318, 0.0
        %vm6335 = vcmp.ge.f32.partialorder %v6319, 0.0
        %vm6336 = vcmp.ge.f32.partialorder %v6320, 0.0
        %vm6337 = vcmp.ge.f32.partialorder %v6321, 0.0
        %vm6338 = vcmp.ge.f32.partialorder %v6322, 0.0
        %vm6339 = vcmp.ge.f32.partialorder %v6323, 0.0
        %vm6340 = vcmp.ge.f32.partialorder %v6324, 0.0
        %vm6341 = vcmp.ge.f32.partialorder %v6325, 0.0
        %v6342 = vmul.f32 %v6310, %v1518
        %v6343 = vmul.f32 %v6311, %v1518
        %v6344 = vmul.f32 %v6312, %v1518
        %v6345 = vmul.f32 %v6313, %v1518
        %v6346 = vmul.f32 %v6314, %v1518
        %v6347 = vmul.f32 %v6315, %v1518
        %v6348 = vmul.f32 %v6316, %v1518
        %v6349 = vmul.f32 %v6317, %v1518
        %v6350 = vmul.f32 %v6318, %v1518
        %v6351 = vmul.f32 %v6319, %v1518
        %v6352 = vmul.f32 %v6320, %v1518
        %v6353 = vmul.f32 %v6321, %v1518
        %v6354 = vmul.f32 %v6322, %v1518
        %v6355 = vmul.f32 %v6323, %v1518
        %v6356 = vmul.f32 %v6324, %v1518
        %v6357 = vmul.f32 %v6325, %v1518
        %v6358 = vsel %vm6326, %v6310, %v6342
        %v6359 = vsel %vm6327, %v6311, %v6343
        %v6360 = vsel %vm6328, %v6312, %v6344
        %v6361 = vsel %vm6329, %v6313, %v6345
        %v6362 = vsel %vm6330, %v6314, %v6346
        %v6363 = vsel %vm6331, %v6315, %v6347
        %v6364 = vsel %vm6332, %v6316, %v6348
        %v6365 = vsel %vm6333, %v6317, %v6349
        %v6366 = vsel %vm6334, %v6318, %v6350
        %v6367 = vsel %vm6335, %v6319, %v6351
        %v6368 = vsel %vm6336, %v6320, %v6352
        %v6369 = vsel %vm6337, %v6321, %v6353
        %v6370 = vsel %vm6338, %v6322, %v6354
        %v6371 = vsel %vm6339, %v6323, %v6355
        %v6372 = vsel %vm6340, %v6324, %v6356
        %v6373 = vsel %vm6341, %v6325, %v6357
        %s6374 = scalar_lea.vmem %s5, 1536
        %v6375 = vld [vmem:[%s6374] sm:$0xf]
        %v6376 = vld [vmem:[%s6374 + $0x4] sm:$0xf]
        %v6377 = vld [vmem:[%s6374 + $0x8] sm:$0xf]
        %v6378 = vld [vmem:[%s6374 + $0xc] sm:$0xf]
        %v6379 = vld [vmem:[%s6374 + $0x10] sm:$0xf]
        %v6380 = vld [vmem:[%s6374 + $0x14] sm:$0xf]
        %v6381 = vld [vmem:[%s6374 + $0x18] sm:$0xf]
        %v6382 = vld [vmem:[%s6374 + $0x1c] sm:$0xf]
        %v6383 = vld [vmem:[%s6374 + $0x20] sm:$0xf]
        %v6384 = vld [vmem:[%s6374 + $0x24] sm:$0xf]
        %v6385 = vld [vmem:[%s6374 + $0x28] sm:$0xf]
        %v6386 = vld [vmem:[%s6374 + $0x2c] sm:$0xf]
        %v6387 = vld [vmem:[%s6374 + $0x30] sm:$0xf]
        %v6388 = vld [vmem:[%s6374 + $0x34] sm:$0xf]
        %v6389 = vld [vmem:[%s6374 + $0x38] sm:$0xf]
        %v6390 = vld [vmem:[%s6374 + $0x3c] sm:$0xf]
        %v6391 = vld [vmem:[%s6374 + $0x40] sm:$0xf]
        %v6392 = vld [vmem:[%s6374 + $0x44] sm:$0xf]
        %v6393 = vld [vmem:[%s6374 + $0x48] sm:$0xf]
        %v6394 = vld [vmem:[%s6374 + $0x4c] sm:$0xf]
        %v6395 = vld [vmem:[%s6374 + $0x50] sm:$0xf]
        %v6396 = vld [vmem:[%s6374 + $0x54] sm:$0xf]
        %v6397 = vld [vmem:[%s6374 + $0x58] sm:$0xf]
        %v6398 = vld [vmem:[%s6374 + $0x5c] sm:$0xf]
        %v6399 = vld [vmem:[%s6374 + $0x60] sm:$0xf]
        %v6400 = vld [vmem:[%s6374 + $0x64] sm:$0xf]
        %v6401 = vld [vmem:[%s6374 + $0x68] sm:$0xf]
        %v6402 = vld [vmem:[%s6374 + $0x6c] sm:$0xf]
        %v6403 = vld [vmem:[%s6374 + $0x70] sm:$0xf]
        %v6404 = vld [vmem:[%s6374 + $0x74] sm:$0xf]
        %v6405 = vld [vmem:[%s6374 + $0x78] sm:$0xf]
        %v6406 = vld [vmem:[%s6374 + $0x7c] sm:$0xf]
        %v6407 = vld [vmem:[%s6374 + $0x80] sm:$0xf]
        %v6408 = vld [vmem:[%s6374 + $0x84] sm:$0xf]
        %v6409 = vld [vmem:[%s6374 + $0x88] sm:$0xf]
        %v6410 = vld [vmem:[%s6374 + $0x8c] sm:$0xf]
        %v6411 = vld [vmem:[%s6374 + $0x90] sm:$0xf]
        %v6412 = vld [vmem:[%s6374 + $0x94] sm:$0xf]
        %v6413 = vld [vmem:[%s6374 + $0x98] sm:$0xf]
        %v6414 = vld [vmem:[%s6374 + $0x9c] sm:$0xf]
        %v6415 = vld [vmem:[%s6374 + $0xa0] sm:$0xf]
        %v6416 = vld [vmem:[%s6374 + $0xa4] sm:$0xf]
        %v6417 = vld [vmem:[%s6374 + $0xa8] sm:$0xf]
        %v6418 = vld [vmem:[%s6374 + $0xac] sm:$0xf]
        %v6419 = vld [vmem:[%s6374 + $0xb0] sm:$0xf]
        %v6420 = vld [vmem:[%s6374 + $0xb4] sm:$0xf]
        %v6421 = vld [vmem:[%s6374 + $0xb8] sm:$0xf]
        %v6422 = vld [vmem:[%s6374 + $0xbc] sm:$0xf]
        %s6423 = scalar_lea.vmem %s6, 8
        %v6424 = vld [vmem:[%s6423] sm:$0x1]
        %v6425 = vrot.slane %v6358, 7
        %v6426 = vrot.slane %v6359, 7
        %v6427 = vrot.slane %v6360, 7
        %v6428 = vrot.slane %v6361, 7
        %v6429 = vrot.slane %v6362, 7
        %v6430 = vrot.slane %v6363, 7
        %v6431 = vrot.slane %v6364, 7
        %v6432 = vrot.slane %v6365, 7
        %v6433 = vrot.slane %v6366, 7
        %v6434 = vrot.slane %v6367, 7
        %v6435 = vrot.slane %v6368, 7
        %v6436 = vrot.slane %v6369, 7
        %v6437 = vrot.slane %v6370, 7
        %v6438 = vrot.slane %v6371, 7
        %v6439 = vrot.slane %v6372, 7
        %v6440 = vrot.slane %v6373, 7
        %v6441 = vsel %vm975, %v6439, %v6440
        %v6442 = vsel %vm975, %v6438, %v6439
        %v6443 = vsel %vm975, %v6437, %v6438
        %v6444 = vsel %vm975, %v6436, %v6437
        %v6445 = vsel %vm975, %v6435, %v6436
        %v6446 = vsel %vm975, %v6434, %v6435
        %v6447 = vsel %vm975, %v6433, %v6434
        %v6448 = vsel %vm975, %v6432, %v6433
        %v6449 = vsel %vm975, %v6431, %v6432
        %v6450 = vsel %vm975, %v6430, %v6431
        %v6451 = vsel %vm975, %v6429, %v6430
        %v6452 = vsel %vm975, %v6428, %v6429
        %v6453 = vsel %vm975, %v6427, %v6428
        %v6454 = vsel %vm975, %v6426, %v6427
        %v6455 = vsel %vm975, %v6425, %v6426
        %v6456 = vsel %vm975, %v6440, %v6425
        %v6457 = vsel %vm1008, %v6456, 0.0
        %v6458 = vsel %vm1009, %v6455, 0.0
        %v6459 = vsel %vm1010, %v6454, 0.0
        %v6460 = vsel %vm1011, %v6453, 0.0
        %v6461 = vsel %vm1012, %v6452, 0.0
        %v6462 = vsel %vm1013, %v6451, 0.0
        %v6463 = vsel %vm1014, %v6450, 0.0
        %v6464 = vsel %vm1015, %v6449, 0.0
        %v6465 = vsel %vm1016, %v6448, 0.0
        %v6466 = vsel %vm1017, %v6447, 0.0
        %v6467 = vsel %vm1018, %v6446, 0.0
        %v6468 = vsel %vm1019, %v6445, 0.0
        %v6469 = vsel %vm1020, %v6444, 0.0
        %v6470 = vsel %vm1021, %v6443, 0.0
        %v6471 = vsel %vm1022, %v6442, 0.0
        %v6472 = vsel %vm1023, %v6441, 0.0
        %v6473 = vrot.slane %v6358, 1
        %v6474 = vrot.slane %v6359, 1
        %v6475 = vrot.slane %v6360, 1
        %v6476 = vrot.slane %v6361, 1
        %v6477 = vrot.slane %v6362, 1
        %v6478 = vrot.slane %v6363, 1
        %v6479 = vrot.slane %v6364, 1
        %v6480 = vrot.slane %v6365, 1
        %v6481 = vrot.slane %v6366, 1
        %v6482 = vrot.slane %v6367, 1
        %v6483 = vrot.slane %v6368, 1
        %v6484 = vrot.slane %v6369, 1
        %v6485 = vrot.slane %v6370, 1
        %v6486 = vrot.slane %v6371, 1
        %v6487 = vrot.slane %v6372, 1
        %v6488 = vrot.slane %v6373, 1
        %v6489 = vsel %vm1056, %v6487, %v6488
        %v6490 = vsel %vm1056, %v6486, %v6487
        %v6491 = vsel %vm1056, %v6485, %v6486
        %v6492 = vsel %vm1056, %v6484, %v6485
        %v6493 = vsel %vm1056, %v6483, %v6484
        %v6494 = vsel %vm1056, %v6482, %v6483
        %v6495 = vsel %vm1056, %v6481, %v6482
        %v6496 = vsel %vm1056, %v6480, %v6481
        %v6497 = vsel %vm1056, %v6479, %v6480
        %v6498 = vsel %vm1056, %v6478, %v6479
        %v6499 = vsel %vm1056, %v6477, %v6478
        %v6500 = vsel %vm1056, %v6476, %v6477
        %v6501 = vsel %vm1056, %v6475, %v6476
        %v6502 = vsel %vm1056, %v6474, %v6475
        %v6503 = vsel %vm1056, %v6473, %v6474
        %v6504 = vsel %vm1056, %v6488, %v6473
        %v6505 = vsel %vm1089, %v6503, 0.0
        %v6506 = vsel %vm1090, %v6502, 0.0
        %v6507 = vsel %vm1091, %v6501, 0.0
        %v6508 = vsel %vm1092, %v6500, 0.0
        %v6509 = vsel %vm1093, %v6499, 0.0
        %v6510 = vsel %vm1094, %v6498, 0.0
        %v6511 = vsel %vm1095, %v6497, 0.0
        %v6512 = vsel %vm1096, %v6496, 0.0
        %v6513 = vsel %vm1097, %v6495, 0.0
        %v6514 = vsel %vm1098, %v6494, 0.0
        %v6515 = vsel %vm1099, %v6493, 0.0
        %v6516 = vsel %vm1100, %v6492, 0.0
        %v6517 = vsel %vm1101, %v6491, 0.0
        %v6518 = vsel %vm1102, %v6490, 0.0
        %v6519 = vsel %vm1103, %v6489, 0.0
        %v6520 = vsel %vm1104, %v6504, 0.0
        %v6521 = vpack.c.bf16 %v6458, %v6457
        %v6522 = vpack.c.bf16 %v6359, %v6358
        %v6523 = vpack.c.bf16 %v6506, %v6505
        %v6524 = vpack.c.bf16 %v6460, %v6459
        %v6525 = vpack.c.bf16 %v6361, %v6360
        %v6526 = vpack.c.bf16 %v6508, %v6507
        %v6527 = vpack.c.bf16 %v6462, %v6461
        %v6528 = vpack.c.bf16 %v6363, %v6362
        %v6529 = vpack.c.bf16 %v6510, %v6509
        %v6530 = vpack.c.bf16 %v6464, %v6463
        %v6531 = vpack.c.bf16 %v6365, %v6364
        %v6532 = vpack.c.bf16 %v6512, %v6511
        %v6533 = vpack.c.bf16 %v6466, %v6465
        %v6534 = vpack.c.bf16 %v6367, %v6366
        %v6535 = vpack.c.bf16 %v6514, %v6513
        %v6536 = vpack.c.bf16 %v6468, %v6467
        %v6537 = vpack.c.bf16 %v6369, %v6368
        %v6538 = vpack.c.bf16 %v6516, %v6515
        %v6539 = vpack.c.bf16 %v6470, %v6469
        %v6540 = vpack.c.bf16 %v6371, %v6370
        %v6541 = vpack.c.bf16 %v6518, %v6517
        %v6542 = vpack.c.bf16 %v6472, %v6471
        %v6543 = vpack.c.bf16 %v6373, %v6372
        %v6544 = vpack.c.bf16 %v6520, %v6519
        %v6546 = vlaneseq
        %v6547 = vshrl.u32 %v6546, 7
        %v6548 = vsub.s32 0, %v6547
        %v6549 = vrot.slane %v6424, %v6548
        %v6599 = vunpack.c.l.b16 %v6375
        %v6600 = vunpack.c.l.b16 %v6376
        %v6601 = vunpack.c.l.b16 %v6377
        %v6602 = vunpack.c.l.b16 %v6378
        %v6603 = vunpack.c.l.b16 %v6379
        %v6604 = vunpack.c.l.b16 %v6380
        %v6605 = vunpack.c.l.b16 %v6381
        %v6606 = vunpack.c.l.b16 %v6382
        %v6607 = vunpack.c.l.b16 %v6383
        %v6608 = vunpack.c.l.b16 %v6384
        %v6609 = vunpack.c.l.b16 %v6385
        %v6610 = vunpack.c.l.b16 %v6386
        %v6611 = vunpack.c.l.b16 %v6387
        %v6612 = vunpack.c.l.b16 %v6388
        %v6613 = vunpack.c.l.b16 %v6389
        %v6614 = vunpack.c.l.b16 %v6390
        %v6615 = vunpack.c.l.b16 %v6391
        %v6616 = vunpack.c.l.b16 %v6392
        %v6617 = vunpack.c.l.b16 %v6393
        %v6618 = vunpack.c.l.b16 %v6394
        %v6619 = vunpack.c.l.b16 %v6395
        %v6620 = vunpack.c.l.b16 %v6396
        %v6621 = vunpack.c.l.b16 %v6397
        %v6622 = vunpack.c.l.b16 %v6398
        %v6623 = vunpack.c.l.b16 %v6399
        %v6624 = vunpack.c.l.b16 %v6400
        %v6625 = vunpack.c.l.b16 %v6401
        %v6626 = vunpack.c.l.b16 %v6402
        %v6627 = vunpack.c.l.b16 %v6403
        %v6628 = vunpack.c.l.b16 %v6404
        %v6629 = vunpack.c.l.b16 %v6405
        %v6630 = vunpack.c.l.b16 %v6406
        %v6631 = vunpack.c.l.b16 %v6407
        %v6632 = vunpack.c.l.b16 %v6408
        %v6633 = vunpack.c.l.b16 %v6409
        %v6634 = vunpack.c.l.b16 %v6410
        %v6635 = vunpack.c.l.b16 %v6411
        %v6636 = vunpack.c.l.b16 %v6412
        %v6637 = vunpack.c.l.b16 %v6413
        %v6638 = vunpack.c.l.b16 %v6414
        %v6639 = vunpack.c.l.b16 %v6415
        %v6640 = vunpack.c.l.b16 %v6416
        %v6641 = vunpack.c.l.b16 %v6417
        %v6642 = vunpack.c.l.b16 %v6418
        %v6643 = vunpack.c.l.b16 %v6419
        %v6644 = vunpack.c.l.b16 %v6420
        %v6645 = vunpack.c.l.b16 %v6421
        %v6646 = vunpack.c.l.b16 %v6422
        %v6647 = vpack.c.b16 %v6600, %v6599
        %v6648 = vpack.c.b16 %v6602, %v6601
        %v6649 = vpack.c.b16 %v6604, %v6603
        %v6650 = vpack.c.b16 %v6606, %v6605
        %v6651 = vpack.c.b16 %v6608, %v6607
        %v6652 = vpack.c.b16 %v6610, %v6609
        %v6653 = vpack.c.b16 %v6612, %v6611
        %v6654 = vpack.c.b16 %v6614, %v6613
        %v6655 = vpack.c.b16 %v6616, %v6615
        %v6656 = vpack.c.b16 %v6618, %v6617
        %v6657 = vpack.c.b16 %v6620, %v6619
        %v6658 = vpack.c.b16 %v6622, %v6621
        %v6659 = vpack.c.b16 %v6624, %v6623
        %v6660 = vpack.c.b16 %v6626, %v6625
        %v6661 = vpack.c.b16 %v6628, %v6627
        %v6662 = vpack.c.b16 %v6630, %v6629
        %v6663 = vpack.c.b16 %v6632, %v6631
        %v6664 = vpack.c.b16 %v6634, %v6633
        %v6665 = vpack.c.b16 %v6636, %v6635
        %v6666 = vpack.c.b16 %v6638, %v6637
        %v6667 = vpack.c.b16 %v6640, %v6639
        %v6668 = vpack.c.b16 %v6642, %v6641
        %v6669 = vpack.c.b16 %v6644, %v6643
        %v6670 = vpack.c.b16 %v6646, %v6645
        %6695 = vmatprep.subr.bf16.mxu0 0
        %6696 = vmatpush1.bf16.msra.mxu0 %v6647
        %6697 = vmatprep.subr.bf16.mxu0 0
        %6698 = vmatpush1.bf16.msra.mxu0 %v6648
        %6699 = vmatprep.subr.bf16.mxu0 0
        %6700 = vmatpush1.bf16.msra.mxu0 %v6649
        %6701 = vmatprep.subr.bf16.mxu0 0
        %6702 = vmatpush1.bf16.msra.mxu0 %v6650
        %6703 = vmatprep.subr.bf16.mxu0 0
        %6704 = vmatpush1.bf16.msra.mxu0 %v6651
        %6705 = vmatprep.subr.bf16.mxu0 0
        %6706 = vmatpush1.bf16.msra.mxu0 %v6652
        %6707 = vmatprep.subr.bf16.mxu0 0
        %6708 = vmatpush1.bf16.msra.mxu0 %v6653
        %6709 = vmatprep.subr.bf16.mxu0 0
        %6710 = vmatpush1.bf16.msra.mxu0 %v6654
        %6711 = vmatprep.subr.bf16.mxu0 0
        %6712 = vmatpush1.bf16.msra.mxu0 %v6655
        %6713 = vmatprep.subr.bf16.mxu0 0
        %6714 = vmatpush1.bf16.msra.mxu0 %v6656
        %6715 = vmatprep.subr.bf16.mxu0 0
        %6716 = vmatpush1.bf16.msra.mxu0 %v6657
        %6717 = vmatprep.subr.bf16.mxu0 0
        %6718 = vmatpush1.bf16.msra.mxu0 %v6658
        %6719 = vmatprep.subr.bf16.mxu0 0
        %6720 = vmatpush1.bf16.msra.mxu0 %v6659
        %6721 = vmatprep.subr.bf16.mxu0 0
        %6722 = vmatpush1.bf16.msra.mxu0 %v6660
        %6723 = vmatprep.subr.bf16.mxu0 0
        %6724 = vmatpush1.bf16.msra.mxu0 %v6661
        %6725 = vmatprep.subr.bf16.mxu0 0
        %6726 = vmatpush1.bf16.msra.mxu0 %v6662
        %6727 = vmatprep.mubr.bf16.mxu0 %v6522
        %6728 = vmatmul.mubr.bf16.gmra.mrb[0].mxu0 %v6521
        %v6729 = vpop.f32.mrb[0].mxu0
        %v6730 = vadd.f32 %v6549, %v6729
        %v6731 = vpop.f32.mrb[0].mxu0
        %v6732 = vpop.f32.mrb[0].mxu0
        %v6733 = vadd.f32 %v6549, %v6732
        %v6734 = vpop.f32.mrb[0].mxu0
        %6735 = vmatprep.mubr.bf16.mxu0 %v6525
        %6736 = vmatmul.mubr.bf16.gmra.mrb[0].mxu0 %v6524
        %v6737 = vpop.f32.mrb[0].mxu0
        %v6738 = vadd.f32 %v6549, %v6737
        %v6739 = vpop.f32.mrb[0].mxu0
        %v6740 = vpop.f32.mrb[0].mxu0
        %v6741 = vadd.f32 %v6549, %v6740
        %v6742 = vpop.f32.mrb[0].mxu0
        %6743 = vmatprep.mubr.bf16.mxu0 %v6528
        %6744 = vmatmul.mubr.bf16.gmra.mrb[0].mxu0 %v6527
        %v6745 = vpop.f32.mrb[0].mxu0
        %v6746 = vadd.f32 %v6549, %v6745
        %v6747 = vpop.f32.mrb[0].mxu0
        %v6748 = vpop.f32.mrb[0].mxu0
        %v6749 = vadd.f32 %v6549, %v6748
        %v6750 = vpop.f32.mrb[0].mxu0
        %6751 = vmatprep.mubr.bf16.mxu0 %v6531
        %6752 = vmatmul.mubr.bf16.gmra.mrb[0].mxu0 %v6530
        %v6753 = vpop.f32.mrb[0].mxu0
        %v6754 = vadd.f32 %v6549, %v6753
        %v6755 = vpop.f32.mrb[0].mxu0
        %v6756 = vpop.f32.mrb[0].mxu0
        %v6757 = vadd.f32 %v6549, %v6756
        %v6758 = vpop.f32.mrb[0].mxu0
        %6759 = vmatprep.mubr.bf16.mxu0 %v6534
        %6760 = vmatmul.mubr.bf16.gmra.mrb[0].mxu0 %v6533
        %v6761 = vpop.f32.mrb[0].mxu0
        %v6762 = vadd.f32 %v6549, %v6761
        %v6763 = vpop.f32.mrb[0].mxu0
        %v6764 = vpop.f32.mrb[0].mxu0
        %v6765 = vadd.f32 %v6549, %v6764
        %v6766 = vpop.f32.mrb[0].mxu0
        %6767 = vmatprep.mubr.bf16.mxu0 %v6537
        %6768 = vmatmul.mubr.bf16.gmra.mrb[0].mxu0 %v6536
        %v6769 = vpop.f32.mrb[0].mxu0
        %v6770 = vadd.f32 %v6549, %v6769
        %v6771 = vpop.f32.mrb[0].mxu0
        %v6772 = vpop.f32.mrb[0].mxu0
        %v6773 = vadd.f32 %v6549, %v6772
        %v6774 = vpop.f32.mrb[0].mxu0
        %6775 = vmatprep.mubr.bf16.mxu0 %v6540
        %6776 = vmatmul.mubr.bf16.gmra.mrb[0].mxu0 %v6539
        %v6777 = vpop.f32.mrb[0].mxu0
        %v6778 = vadd.f32 %v6549, %v6777
        %v6779 = vpop.f32.mrb[0].mxu0
        %v6780 = vpop.f32.mrb[0].mxu0
        %v6781 = vadd.f32 %v6549, %v6780
        %v6782 = vpop.f32.mrb[0].mxu0
        %6783 = vmatprep.mubr.bf16.mxu0 %v6543
        %6784 = vmatmul.mubr.bf16.gmra.mrb[0].mxu0 %v6542
        %v6785 = vpop.f32.mrb[0].mxu0
        %v6786 = vadd.f32 %v6549, %v6785
        %v6787 = vpop.f32.mrb[0].mxu0
        %v6788 = vpop.f32.mrb[0].mxu0
        %v6789 = vadd.f32 %v6549, %v6788
        %v6790 = vpop.f32.mrb[0].mxu0
        %6791 = vdwg.mxu0
        %6792 = vmatprep.subr.bf16.mxu0 0
        %6793 = vmatpush1.bf16.msra.mxu0 %v6663
        %6794 = vmatprep.subr.bf16.mxu0 0
        %6795 = vmatpush1.bf16.msra.mxu0 %v6664
        %6796 = vmatprep.subr.bf16.mxu0 0
        %6797 = vmatpush1.bf16.msra.mxu0 %v6665
        %6798 = vmatprep.subr.bf16.mxu0 0
        %6799 = vmatpush1.bf16.msra.mxu0 %v6666
        %6800 = vmatprep.subr.bf16.mxu0 0
        %6801 = vmatpush1.bf16.msra.mxu0 %v6667
        %6802 = vmatprep.subr.bf16.mxu0 0
        %6803 = vmatpush1.bf16.msra.mxu0 %v6668
        %6804 = vmatprep.subr.bf16.mxu0 0
        %6805 = vmatpush1.bf16.msra.mxu0 %v6669
        %6806 = vmatprep.subr.bf16.mxu0 0
        %6807 = vmatpush1.bf16.msra.mxu0 %v6670
        %6808 = vmatprep.subr.bf16.mxu0 0
        %6809 = vmatpush1.bf16.msra.mxu0 0
        %6810 = vmatprep.subr.bf16.mxu0 0
        %6811 = vmatpush1.bf16.msra.mxu0 0
        %6812 = vmatprep.subr.bf16.mxu0 0
        %6813 = vmatpush1.bf16.msra.mxu0 0
        %6814 = vmatprep.subr.bf16.mxu0 0
        %6815 = vmatpush1.bf16.msra.mxu0 0
        %6816 = vmatprep.subr.bf16.mxu0 0
        %6817 = vmatpush1.bf16.msra.mxu0 0
        %6818 = vmatprep.subr.bf16.mxu0 0
        %6819 = vmatpush1.bf16.msra.mxu0 0
        %6820 = vmatprep.subr.bf16.mxu0 0
        %6821 = vmatpush1.bf16.msra.mxu0 0
        %6822 = vmatprep.subr.bf16.mxu0 0
        %6823 = vmatpush1.bf16.msra.mxu0 0
        %6824 = vmatprep.mubr.bf16.mxu0 0
        %6825 = vmatmul.mubr.bf16.gmra.mrb[0].mxu0 %v6523
        %v6826 = vpop.f32.mrb[0].mxu0
        %v6827 = vadd.f32 %v6730, %v6826
        %v6828 = vpop.f32.mrb[0].mxu0
        %v6829 = vpop.f32.mrb[0].mxu0
        %v6830 = vadd.f32 %v6733, %v6829
        %v6831 = vpop.f32.mrb[0].mxu0
        %6832 = vmatprep.mubr.bf16.mxu0 0
        %6833 = vmatmul.mubr.bf16.gmra.mrb[0].mxu0 %v6526
        %v6834 = vpop.f32.mrb[0].mxu0
        %v6835 = vadd.f32 %v6738, %v6834
        %v6836 = vpop.f32.mrb[0].mxu0
        %v6837 = vpop.f32.mrb[0].mxu0
        %v6838 = vadd.f32 %v6741, %v6837
        %v6839 = vpop.f32.mrb[0].mxu0
        %6840 = vmatprep.mubr.bf16.mxu0 0
        %6841 = vmatmul.mubr.bf16.gmra.mrb[0].mxu0 %v6529
        %v6842 = vpop.f32.mrb[0].mxu0
        %v6843 = vadd.f32 %v6746, %v6842
        %v6844 = vpop.f32.mrb[0].mxu0
        %v6845 = vpop.f32.mrb[0].mxu0
        %v6846 = vadd.f32 %v6749, %v6845
        %v6847 = vpop.f32.mrb[0].mxu0
        %6848 = vmatprep.mubr.bf16.mxu0 0
        %6849 = vmatmul.mubr.bf16.gmra.mrb[0].mxu0 %v6532
        %v6850 = vpop.f32.mrb[0].mxu0
        %v6851 = vadd.f32 %v6754, %v6850
        %v6852 = vpop.f32.mrb[0].mxu0
        %v6853 = vpop.f32.mrb[0].mxu0
        %v6854 = vadd.f32 %v6757, %v6853
        %v6855 = vpop.f32.mrb[0].mxu0
        %6856 = vmatprep.mubr.bf16.mxu0 0
        %6857 = vmatmul.mubr.bf16.gmra.mrb[0].mxu0 %v6535
        %v6858 = vpop.f32.mrb[0].mxu0
        %v6859 = vadd.f32 %v6762, %v6858
        %v6860 = vpop.f32.mrb[0].mxu0
        %v6861 = vpop.f32.mrb[0].mxu0
        %v6862 = vadd.f32 %v6765, %v6861
        %v6863 = vpop.f32.mrb[0].mxu0
        %6864 = vmatprep.mubr.bf16.mxu0 0
        %6865 = vmatmul.mubr.bf16.gmra.mrb[0].mxu0 %v6538
        %v6866 = vpop.f32.mrb[0].mxu0
        %v6867 = vadd.f32 %v6770, %v6866
        %v6868 = vpop.f32.mrb[0].mxu0
        %v6869 = vpop.f32.mrb[0].mxu0
        %v6870 = vadd.f32 %v6773, %v6869
        %v6871 = vpop.f32.mrb[0].mxu0
        %6872 = vmatprep.mubr.bf16.mxu0 0
        %6873 = vmatmul.mubr.bf16.gmra.mrb[0].mxu0 %v6541
        %v6874 = vpop.f32.mrb[0].mxu0
        %v6875 = vadd.f32 %v6778, %v6874
        %v6876 = vpop.f32.mrb[0].mxu0
        %v6877 = vpop.f32.mrb[0].mxu0
        %v6878 = vadd.f32 %v6781, %v6877
        %v6879 = vpop.f32.mrb[0].mxu0
        %6880 = vmatprep.mubr.bf16.mxu0 0
        %6881 = vmatmul.mubr.bf16.gmra.mrb[0].mxu0 %v6544
        %v6882 = vpop.f32.mrb[0].mxu0
        %v6883 = vadd.f32 %v6786, %v6882
        %v6884 = vpop.f32.mrb[0].mxu0
        %v6885 = vpop.f32.mrb[0].mxu0
        %v6886 = vadd.f32 %v6789, %v6885
        %v6887 = vpop.f32.mrb[0].mxu0
        %6888 = vdwg.mxu0
        %v6889 = vmul.f32 %v6827, %v1458
        %v6890 = vmul.f32 %v6830, %v1458
        %v6891 = vmul.f32 %v6835, %v1458
        %v6892 = vmul.f32 %v6838, %v1458
        %v6893 = vmul.f32 %v6843, %v1458
        %v6894 = vmul.f32 %v6846, %v1458
        %v6895 = vmul.f32 %v6851, %v1458
        %v6896 = vmul.f32 %v6854, %v1458
        %v6897 = vmul.f32 %v6859, %v1458
        %v6898 = vmul.f32 %v6862, %v1458
        %v6899 = vmul.f32 %v6867, %v1458
        %v6900 = vmul.f32 %v6870, %v1458
        %v6901 = vmul.f32 %v6875, %v1458
        %v6902 = vmul.f32 %v6878, %v1458
        %v6903 = vmul.f32 %v6883, %v1458
        %v6904 = vmul.f32 %v6886, %v1458
        %v6905 = vadd.f32 %v6889, %v1480
        %v6906 = vadd.f32 %v6890, %v1480
        %v6907 = vadd.f32 %v6891, %v1480
        %v6908 = vadd.f32 %v6892, %v1480
        %v6909 = vadd.f32 %v6893, %v1480
        %v6910 = vadd.f32 %v6894, %v1480
        %v6911 = vadd.f32 %v6895, %v1480
        %v6912 = vadd.f32 %v6896, %v1480
        %v6913 = vadd.f32 %v6897, %v1480
        %v6914 = vadd.f32 %v6898, %v1480
        %v6915 = vadd.f32 %v6899, %v1480
        %v6916 = vadd.f32 %v6900, %v1480
        %v6917 = vadd.f32 %v6901, %v1480
        %v6918 = vadd.f32 %v6902, %v1480
        %v6919 = vadd.f32 %v6903, %v1480
        %v6920 = vadd.f32 %v6904, %v1480
        %vm6921 = vcmp.ge.f32.partialorder %v6905, 0.0
        %vm6922 = vcmp.ge.f32.partialorder %v6906, 0.0
        %vm6923 = vcmp.ge.f32.partialorder %v6907, 0.0
        %vm6924 = vcmp.ge.f32.partialorder %v6908, 0.0
        %vm6925 = vcmp.ge.f32.partialorder %v6909, 0.0
        %vm6926 = vcmp.ge.f32.partialorder %v6910, 0.0
        %vm6927 = vcmp.ge.f32.partialorder %v6911, 0.0
        %vm6928 = vcmp.ge.f32.partialorder %v6912, 0.0
        %vm6929 = vcmp.ge.f32.partialorder %v6913, 0.0
        %vm6930 = vcmp.ge.f32.partialorder %v6914, 0.0
        %vm6931 = vcmp.ge.f32.partialorder %v6915, 0.0
        %vm6932 = vcmp.ge.f32.partialorder %v6916, 0.0
        %vm6933 = vcmp.ge.f32.partialorder %v6917, 0.0
        %vm6934 = vcmp.ge.f32.partialorder %v6918, 0.0
        %vm6935 = vcmp.ge.f32.partialorder %v6919, 0.0
        %vm6936 = vcmp.ge.f32.partialorder %v6920, 0.0
        %v6937 = vmul.f32 %v6905, %v1518
        %v6938 = vmul.f32 %v6906, %v1518
        %v6939 = vmul.f32 %v6907, %v1518
        %v6940 = vmul.f32 %v6908, %v1518
        %v6941 = vmul.f32 %v6909, %v1518
        %v6942 = vmul.f32 %v6910, %v1518
        %v6943 = vmul.f32 %v6911, %v1518
        %v6944 = vmul.f32 %v6912, %v1518
        %v6945 = vmul.f32 %v6913, %v1518
        %v6946 = vmul.f32 %v6914, %v1518
        %v6947 = vmul.f32 %v6915, %v1518
        %v6948 = vmul.f32 %v6916, %v1518
        %v6949 = vmul.f32 %v6917, %v1518
        %v6950 = vmul.f32 %v6918, %v1518
        %v6951 = vmul.f32 %v6919, %v1518
        %v6952 = vmul.f32 %v6920, %v1518
        %v6953 = vsel %vm6921, %v6905, %v6937
        %v6954 = vsel %vm6922, %v6906, %v6938
        %v6955 = vsel %vm6923, %v6907, %v6939
        %v6956 = vsel %vm6924, %v6908, %v6940
        %v6957 = vsel %vm6925, %v6909, %v6941
        %v6958 = vsel %vm6926, %v6910, %v6942
        %v6959 = vsel %vm6927, %v6911, %v6943
        %v6960 = vsel %vm6928, %v6912, %v6944
        %v6961 = vsel %vm6929, %v6913, %v6945
        %v6962 = vsel %vm6930, %v6914, %v6946
        %v6963 = vsel %vm6931, %v6915, %v6947
        %v6964 = vsel %vm6932, %v6916, %v6948
        %v6965 = vsel %vm6933, %v6917, %v6949
        %v6966 = vsel %vm6934, %v6918, %v6950
        %v6967 = vsel %vm6935, %v6919, %v6951
        %v6968 = vsel %vm6936, %v6920, %v6952
        %s6969 = scalar_lea.vmem %s5, 1728
        %v6970 = vld [vmem:[%s6969] sm:$0xf]
        %v6971 = vld [vmem:[%s6969 + $0x4] sm:$0xf]
        %v6972 = vld [vmem:[%s6969 + $0x8] sm:$0xf]
        %v6973 = vld [vmem:[%s6969 + $0xc] sm:$0xf]
        %v6974 = vld [vmem:[%s6969 + $0x10] sm:$0xf]
        %v6975 = vld [vmem:[%s6969 + $0x14] sm:$0xf]
        %v6976 = vld [vmem:[%s6969 + $0x18] sm:$0xf]
        %v6977 = vld [vmem:[%s6969 + $0x1c] sm:$0xf]
        %v6978 = vld [vmem:[%s6969 + $0x20] sm:$0xf]
        %v6979 = vld [vmem:[%s6969 + $0x24] sm:$0xf]
        %v6980 = vld [vmem:[%s6969 + $0x28] sm:$0xf]
        %v6981 = vld [vmem:[%s6969 + $0x2c] sm:$0xf]
        %v6982 = vld [vmem:[%s6969 + $0x30] sm:$0xf]
        %v6983 = vld [vmem:[%s6969 + $0x34] sm:$0xf]
        %v6984 = vld [vmem:[%s6969 + $0x38] sm:$0xf]
        %v6985 = vld [vmem:[%s6969 + $0x3c] sm:$0xf]
        %v6986 = vld [vmem:[%s6969 + $0x40] sm:$0xf]
        %v6987 = vld [vmem:[%s6969 + $0x44] sm:$0xf]
        %v6988 = vld [vmem:[%s6969 + $0x48] sm:$0xf]
        %v6989 = vld [vmem:[%s6969 + $0x4c] sm:$0xf]
        %v6990 = vld [vmem:[%s6969 + $0x50] sm:$0xf]
        %v6991 = vld [vmem:[%s6969 + $0x54] sm:$0xf]
        %v6992 = vld [vmem:[%s6969 + $0x58] sm:$0xf]
        %v6993 = vld [vmem:[%s6969 + $0x5c] sm:$0xf]
        %v6994 = vld [vmem:[%s6969 + $0x60] sm:$0xf]
        %v6995 = vld [vmem:[%s6969 + $0x64] sm:$0xf]
        %v6996 = vld [vmem:[%s6969 + $0x68] sm:$0xf]
        %v6997 = vld [vmem:[%s6969 + $0x6c] sm:$0xf]
        %v6998 = vld [vmem:[%s6969 + $0x70] sm:$0xf]
        %v6999 = vld [vmem:[%s6969 + $0x74] sm:$0xf]
        %v7000 = vld [vmem:[%s6969 + $0x78] sm:$0xf]
        %v7001 = vld [vmem:[%s6969 + $0x7c] sm:$0xf]
        %v7002 = vld [vmem:[%s6969 + $0x80] sm:$0xf]
        %v7003 = vld [vmem:[%s6969 + $0x84] sm:$0xf]
        %v7004 = vld [vmem:[%s6969 + $0x88] sm:$0xf]
        %v7005 = vld [vmem:[%s6969 + $0x8c] sm:$0xf]
        %v7006 = vld [vmem:[%s6969 + $0x90] sm:$0xf]
        %v7007 = vld [vmem:[%s6969 + $0x94] sm:$0xf]
        %v7008 = vld [vmem:[%s6969 + $0x98] sm:$0xf]
        %v7009 = vld [vmem:[%s6969 + $0x9c] sm:$0xf]
        %v7010 = vld [vmem:[%s6969 + $0xa0] sm:$0xf]
        %v7011 = vld [vmem:[%s6969 + $0xa4] sm:$0xf]
        %v7012 = vld [vmem:[%s6969 + $0xa8] sm:$0xf]
        %v7013 = vld [vmem:[%s6969 + $0xac] sm:$0xf]
        %v7014 = vld [vmem:[%s6969 + $0xb0] sm:$0xf]
        %v7015 = vld [vmem:[%s6969 + $0xb4] sm:$0xf]
        %v7016 = vld [vmem:[%s6969 + $0xb8] sm:$0xf]
        %v7017 = vld [vmem:[%s6969 + $0xbc] sm:$0xf]
        %s7018 = scalar_lea.vmem %s6, 9
        %v7019 = vld [vmem:[%s7018] sm:$0x1]
        %v7020 = vrot.slane %v6953, 7
        %v7021 = vrot.slane %v6954, 7
        %v7022 = vrot.slane %v6955, 7
        %v7023 = vrot.slane %v6956, 7
        %v7024 = vrot.slane %v6957, 7
        %v7025 = vrot.slane %v6958, 7
        %v7026 = vrot.slane %v6959, 7
        %v7027 = vrot.slane %v6960, 7
        %v7028 = vrot.slane %v6961, 7
        %v7029 = vrot.slane %v6962, 7
        %v7030 = vrot.slane %v6963, 7
        %v7031 = vrot.slane %v6964, 7
        %v7032 = vrot.slane %v6965, 7
        %v7033 = vrot.slane %v6966, 7
        %v7034 = vrot.slane %v6967, 7
        %v7035 = vrot.slane %v6968, 7
        %v7036 = vsel %vm975, %v7034, %v7035
        %v7037 = vsel %vm975, %v7033, %v7034
        %v7038 = vsel %vm975, %v7032, %v7033
        %v7039 = vsel %vm975, %v7031, %v7032
        %v7040 = vsel %vm975, %v7030, %v7031
        %v7041 = vsel %vm975, %v7029, %v7030
        %v7042 = vsel %vm975, %v7028, %v7029
        %v7043 = vsel %vm975, %v7027, %v7028
        %v7044 = vsel %vm975, %v7026, %v7027
        %v7045 = vsel %vm975, %v7025, %v7026
        %v7046 = vsel %vm975, %v7024, %v7025
        %v7047 = vsel %vm975, %v7023, %v7024
        %v7048 = vsel %vm975, %v7022, %v7023
        %v7049 = vsel %vm975, %v7021, %v7022
        %v7050 = vsel %vm975, %v7020, %v7021
        %v7051 = vsel %vm975, %v7035, %v7020
        %v7052 = vsel %vm1008, %v7051, 0.0
        %v7053 = vsel %vm1009, %v7050, 0.0
        %v7054 = vsel %vm1010, %v7049, 0.0
        %v7055 = vsel %vm1011, %v7048, 0.0
        %v7056 = vsel %vm1012, %v7047, 0.0
        %v7057 = vsel %vm1013, %v7046, 0.0
        %v7058 = vsel %vm1014, %v7045, 0.0
        %v7059 = vsel %vm1015, %v7044, 0.0
        %v7060 = vsel %vm1016, %v7043, 0.0
        %v7061 = vsel %vm1017, %v7042, 0.0
        %v7062 = vsel %vm1018, %v7041, 0.0
        %v7063 = vsel %vm1019, %v7040, 0.0
        %v7064 = vsel %vm1020, %v7039, 0.0
        %v7065 = vsel %vm1021, %v7038, 0.0
        %v7066 = vsel %vm1022, %v7037, 0.0
        %v7067 = vsel %vm1023, %v7036, 0.0
        %v7068 = vrot.slane %v6953, 1
        %v7069 = vrot.slane %v6954, 1
        %v7070 = vrot.slane %v6955, 1
        %v7071 = vrot.slane %v6956, 1
        %v7072 = vrot.slane %v6957, 1
        %v7073 = vrot.slane %v6958, 1
        %v7074 = vrot.slane %v6959, 1
        %v7075 = vrot.slane %v6960, 1
        %v7076 = vrot.slane %v6961, 1
        %v7077 = vrot.slane %v6962, 1
        %v7078 = vrot.slane %v6963, 1
        %v7079 = vrot.slane %v6964, 1
        %v7080 = vrot.slane %v6965, 1
        %v7081 = vrot.slane %v6966, 1
        %v7082 = vrot.slane %v6967, 1
        %v7083 = vrot.slane %v6968, 1
        %v7084 = vsel %vm1056, %v7082, %v7083
        %v7085 = vsel %vm1056, %v7081, %v7082
        %v7086 = vsel %vm1056, %v7080, %v7081
        %v7087 = vsel %vm1056, %v7079, %v7080
        %v7088 = vsel %vm1056, %v7078, %v7079
        %v7089 = vsel %vm1056, %v7077, %v7078
        %v7090 = vsel %vm1056, %v7076, %v7077
        %v7091 = vsel %vm1056, %v7075, %v7076
        %v7092 = vsel %vm1056, %v7074, %v7075
        %v7093 = vsel %vm1056, %v7073, %v7074
        %v7094 = vsel %vm1056, %v7072, %v7073
        %v7095 = vsel %vm1056, %v7071, %v7072
        %v7096 = vsel %vm1056, %v7070, %v7071
        %v7097 = vsel %vm1056, %v7069, %v7070
        %v7098 = vsel %vm1056, %v7068, %v7069
        %v7099 = vsel %vm1056, %v7083, %v7068
        %v7100 = vsel %vm1089, %v7098, 0.0
        %v7101 = vsel %vm1090, %v7097, 0.0
        %v7102 = vsel %vm1091, %v7096, 0.0
        %v7103 = vsel %vm1092, %v7095, 0.0
        %v7104 = vsel %vm1093, %v7094, 0.0
        %v7105 = vsel %vm1094, %v7093, 0.0
        %v7106 = vsel %vm1095, %v7092, 0.0
        %v7107 = vsel %vm1096, %v7091, 0.0
        %v7108 = vsel %vm1097, %v7090, 0.0
        %v7109 = vsel %vm1098, %v7089, 0.0
        %v7110 = vsel %vm1099, %v7088, 0.0
        %v7111 = vsel %vm1100, %v7087, 0.0
        %v7112 = vsel %vm1101, %v7086, 0.0
        %v7113 = vsel %vm1102, %v7085, 0.0
        %v7114 = vsel %vm1103, %v7084, 0.0
        %v7115 = vsel %vm1104, %v7099, 0.0
        %v7116 = vpack.c.bf16 %v7053, %v7052
        %v7117 = vpack.c.bf16 %v6954, %v6953
        %v7118 = vpack.c.bf16 %v7101, %v7100
        %v7119 = vpack.c.bf16 %v7055, %v7054
        %v7120 = vpack.c.bf16 %v6956, %v6955
        %v7121 = vpack.c.bf16 %v7103, %v7102
        %v7122 = vpack.c.bf16 %v7057, %v7056
        %v7123 = vpack.c.bf16 %v6958, %v6957
        %v7124 = vpack.c.bf16 %v7105, %v7104
        %v7125 = vpack.c.bf16 %v7059, %v7058
        %v7126 = vpack.c.bf16 %v6960, %v6959
        %v7127 = vpack.c.bf16 %v7107, %v7106
        %v7128 = vpack.c.bf16 %v7061, %v7060
        %v7129 = vpack.c.bf16 %v6962, %v6961
        %v7130 = vpack.c.bf16 %v7109, %v7108
        %v7131 = vpack.c.bf16 %v7063, %v7062
        %v7132 = vpack.c.bf16 %v6964, %v6963
        %v7133 = vpack.c.bf16 %v7111, %v7110
        %v7134 = vpack.c.bf16 %v7065, %v7064
        %v7135 = vpack.c.bf16 %v6966, %v6965
        %v7136 = vpack.c.bf16 %v7113, %v7112
        %v7137 = vpack.c.bf16 %v7067, %v7066
        %v7138 = vpack.c.bf16 %v6968, %v6967
        %v7139 = vpack.c.bf16 %v7115, %v7114
        %v7141 = vlaneseq
        %v7142 = vshrl.u32 %v7141, 7
        %v7143 = vsub.s32 0, %v7142
        %v7144 = vrot.slane %v7019, %v7143
        %v7194 = vunpack.c.l.b16 %v6970
        %v7195 = vunpack.c.l.b16 %v6971
        %v7196 = vunpack.c.l.b16 %v6972
        %v7197 = vunpack.c.l.b16 %v6973
        %v7198 = vunpack.c.l.b16 %v6974
        %v7199 = vunpack.c.l.b16 %v6975
        %v7200 = vunpack.c.l.b16 %v6976
        %v7201 = vunpack.c.l.b16 %v6977
        %v7202 = vunpack.c.l.b16 %v6978
        %v7203 = vunpack.c.l.b16 %v6979
        %v7204 = vunpack.c.l.b16 %v6980
        %v7205 = vunpack.c.l.b16 %v6981
        %v7206 = vunpack.c.l.b16 %v6982
        %v7207 = vunpack.c.l.b16 %v6983
        %v7208 = vunpack.c.l.b16 %v6984
        %v7209 = vunpack.c.l.b16 %v6985
        %v7210 = vunpack.c.l.b16 %v6986
        %v7211 = vunpack.c.l.b16 %v6987
        %v7212 = vunpack.c.l.b16 %v6988
        %v7213 = vunpack.c.l.b16 %v6989
        %v7214 = vunpack.c.l.b16 %v6990
        %v7215 = vunpack.c.l.b16 %v6991
        %v7216 = vunpack.c.l.b16 %v6992
        %v7217 = vunpack.c.l.b16 %v6993
        %v7218 = vunpack.c.l.b16 %v6994
        %v7219 = vunpack.c.l.b16 %v6995
        %v7220 = vunpack.c.l.b16 %v6996
        %v7221 = vunpack.c.l.b16 %v6997
        %v7222 = vunpack.c.l.b16 %v6998
        %v7223 = vunpack.c.l.b16 %v6999
        %v7224 = vunpack.c.l.b16 %v7000
        %v7225 = vunpack.c.l.b16 %v7001
        %v7226 = vunpack.c.l.b16 %v7002
        %v7227 = vunpack.c.l.b16 %v7003
        %v7228 = vunpack.c.l.b16 %v7004
        %v7229 = vunpack.c.l.b16 %v7005
        %v7230 = vunpack.c.l.b16 %v7006
        %v7231 = vunpack.c.l.b16 %v7007
        %v7232 = vunpack.c.l.b16 %v7008
        %v7233 = vunpack.c.l.b16 %v7009
        %v7234 = vunpack.c.l.b16 %v7010
        %v7235 = vunpack.c.l.b16 %v7011
        %v7236 = vunpack.c.l.b16 %v7012
        %v7237 = vunpack.c.l.b16 %v7013
        %v7238 = vunpack.c.l.b16 %v7014
        %v7239 = vunpack.c.l.b16 %v7015
        %v7240 = vunpack.c.l.b16 %v7016
        %v7241 = vunpack.c.l.b16 %v7017
        %v7242 = vpack.c.b16 %v7195, %v7194
        %v7243 = vpack.c.b16 %v7197, %v7196
        %v7244 = vpack.c.b16 %v7199, %v7198
        %v7245 = vpack.c.b16 %v7201, %v7200
        %v7246 = vpack.c.b16 %v7203, %v7202
        %v7247 = vpack.c.b16 %v7205, %v7204
        %v7248 = vpack.c.b16 %v7207, %v7206
        %v7249 = vpack.c.b16 %v7209, %v7208
        %v7250 = vpack.c.b16 %v7211, %v7210
        %v7251 = vpack.c.b16 %v7213, %v7212
        %v7252 = vpack.c.b16 %v7215, %v7214
        %v7253 = vpack.c.b16 %v7217, %v7216
        %v7254 = vpack.c.b16 %v7219, %v7218
        %v7255 = vpack.c.b16 %v7221, %v7220
        %v7256 = vpack.c.b16 %v7223, %v7222
        %v7257 = vpack.c.b16 %v7225, %v7224
        %v7258 = vpack.c.b16 %v7227, %v7226
        %v7259 = vpack.c.b16 %v7229, %v7228
        %v7260 = vpack.c.b16 %v7231, %v7230
        %v7261 = vpack.c.b16 %v7233, %v7232
        %v7262 = vpack.c.b16 %v7235, %v7234
        %v7263 = vpack.c.b16 %v7237, %v7236
        %v7264 = vpack.c.b16 %v7239, %v7238
        %v7265 = vpack.c.b16 %v7241, %v7240
        %7290 = vmatprep.subr.bf16.mxu0 0
        %7291 = vmatpush1.bf16.msra.mxu0 %v7242
        %7292 = vmatprep.subr.bf16.mxu0 0
        %7293 = vmatpush1.bf16.msra.mxu0 %v7243
        %7294 = vmatprep.subr.bf16.mxu0 0
        %7295 = vmatpush1.bf16.msra.mxu0 %v7244
        %7296 = vmatprep.subr.bf16.mxu0 0
        %7297 = vmatpush1.bf16.msra.mxu0 %v7245
        %7298 = vmatprep.subr.bf16.mxu0 0
        %7299 = vmatpush1.bf16.msra.mxu0 %v7246
        %7300 = vmatprep.subr.bf16.mxu0 0
        %7301 = vmatpush1.bf16.msra.mxu0 %v7247
        %7302 = vmatprep.subr.bf16.mxu0 0
        %7303 = vmatpush1.bf16.msra.mxu0 %v7248
        %7304 = vmatprep.subr.bf16.mxu0 0
        %7305 = vmatpush1.bf16.msra.mxu0 %v7249
        %7306 = vmatprep.subr.bf16.mxu0 0
        %7307 = vmatpush1.bf16.msra.mxu0 %v7250
        %7308 = vmatprep.subr.bf16.mxu0 0
        %7309 = vmatpush1.bf16.msra.mxu0 %v7251
        %7310 = vmatprep.subr.bf16.mxu0 0
        %7311 = vmatpush1.bf16.msra.mxu0 %v7252
        %7312 = vmatprep.subr.bf16.mxu0 0
        %7313 = vmatpush1.bf16.msra.mxu0 %v7253
        %7314 = vmatprep.subr.bf16.mxu0 0
        %7315 = vmatpush1.bf16.msra.mxu0 %v7254
        %7316 = vmatprep.subr.bf16.mxu0 0
        %7317 = vmatpush1.bf16.msra.mxu0 %v7255
        %7318 = vmatprep.subr.bf16.mxu0 0
        %7319 = vmatpush1.bf16.msra.mxu0 %v7256
        %7320 = vmatprep.subr.bf16.mxu0 0
        %7321 = vmatpush1.bf16.msra.mxu0 %v7257
        %7322 = vmatprep.mubr.bf16.mxu0 %v7117
        %7323 = vmatmul.mubr.bf16.gmra.mrb[0].mxu0 %v7116
        %v7324 = vpop.f32.mrb[0].mxu0
        %v7325 = vadd.f32 %v7144, %v7324
        %v7326 = vpop.f32.mrb[0].mxu0
        %v7327 = vpop.f32.mrb[0].mxu0
        %v7328 = vadd.f32 %v7144, %v7327
        %v7329 = vpop.f32.mrb[0].mxu0
        %7330 = vmatprep.mubr.bf16.mxu0 %v7120
        %7331 = vmatmul.mubr.bf16.gmra.mrb[0].mxu0 %v7119
        %v7332 = vpop.f32.mrb[0].mxu0
        %v7333 = vadd.f32 %v7144, %v7332
        %v7334 = vpop.f32.mrb[0].mxu0
        %v7335 = vpop.f32.mrb[0].mxu0
        %v7336 = vadd.f32 %v7144, %v7335
        %v7337 = vpop.f32.mrb[0].mxu0
        %7338 = vmatprep.mubr.bf16.mxu0 %v7123
        %7339 = vmatmul.mubr.bf16.gmra.mrb[0].mxu0 %v7122
        %v7340 = vpop.f32.mrb[0].mxu0
        %v7341 = vadd.f32 %v7144, %v7340
        %v7342 = vpop.f32.mrb[0].mxu0
        %v7343 = vpop.f32.mrb[0].mxu0
        %v7344 = vadd.f32 %v7144, %v7343
        %v7345 = vpop.f32.mrb[0].mxu0
        %7346 = vmatprep.mubr.bf16.mxu0 %v7126
        %7347 = vmatmul.mubr.bf16.gmra.mrb[0].mxu0 %v7125
        %v7348 = vpop.f32.mrb[0].mxu0
        %v7349 = vadd.f32 %v7144, %v7348
        %v7350 = vpop.f32.mrb[0].mxu0
        %v7351 = vpop.f32.mrb[0].mxu0
        %v7352 = vadd.f32 %v7144, %v7351
        %v7353 = vpop.f32.mrb[0].mxu0
        %7354 = vmatprep.mubr.bf16.mxu0 %v7129
        %7355 = vmatmul.mubr.bf16.gmra.mrb[0].mxu0 %v7128
        %v7356 = vpop.f32.mrb[0].mxu0
        %v7357 = vadd.f32 %v7144, %v7356
        %v7358 = vpop.f32.mrb[0].mxu0
        %v7359 = vpop.f32.mrb[0].mxu0
        %v7360 = vadd.f32 %v7144, %v7359
        %v7361 = vpop.f32.mrb[0].mxu0
        %7362 = vmatprep.mubr.bf16.mxu0 %v7132
        %7363 = vmatmul.mubr.bf16.gmra.mrb[0].mxu0 %v7131
        %v7364 = vpop.f32.mrb[0].mxu0
        %v7365 = vadd.f32 %v7144, %v7364
        %v7366 = vpop.f32.mrb[0].mxu0
        %v7367 = vpop.f32.mrb[0].mxu0
        %v7368 = vadd.f32 %v7144, %v7367
        %v7369 = vpop.f32.mrb[0].mxu0
        %7370 = vmatprep.mubr.bf16.mxu0 %v7135
        %7371 = vmatmul.mubr.bf16.gmra.mrb[0].mxu0 %v7134
        %v7372 = vpop.f32.mrb[0].mxu0
        %v7373 = vadd.f32 %v7144, %v7372
        %v7374 = vpop.f32.mrb[0].mxu0
        %v7375 = vpop.f32.mrb[0].mxu0
        %v7376 = vadd.f32 %v7144, %v7375
        %v7377 = vpop.f32.mrb[0].mxu0
        %7378 = vmatprep.mubr.bf16.mxu0 %v7138
        %7379 = vmatmul.mubr.bf16.gmra.mrb[0].mxu0 %v7137
        %v7380 = vpop.f32.mrb[0].mxu0
        %v7381 = vadd.f32 %v7144, %v7380
        %v7382 = vpop.f32.mrb[0].mxu0
        %v7383 = vpop.f32.mrb[0].mxu0
        %v7384 = vadd.f32 %v7144, %v7383
        %v7385 = vpop.f32.mrb[0].mxu0
        %7386 = vdwg.mxu0
        %7387 = vmatprep.subr.bf16.mxu0 0
        %7388 = vmatpush1.bf16.msra.mxu0 %v7258
        %7389 = vmatprep.subr.bf16.mxu0 0
        %7390 = vmatpush1.bf16.msra.mxu0 %v7259
        %7391 = vmatprep.subr.bf16.mxu0 0
        %7392 = vmatpush1.bf16.msra.mxu0 %v7260
        %7393 = vmatprep.subr.bf16.mxu0 0
        %7394 = vmatpush1.bf16.msra.mxu0 %v7261
        %7395 = vmatprep.subr.bf16.mxu0 0
        %7396 = vmatpush1.bf16.msra.mxu0 %v7262
        %7397 = vmatprep.subr.bf16.mxu0 0
        %7398 = vmatpush1.bf16.msra.mxu0 %v7263
        %7399 = vmatprep.subr.bf16.mxu0 0
        %7400 = vmatpush1.bf16.msra.mxu0 %v7264
        %7401 = vmatprep.subr.bf16.mxu0 0
        %7402 = vmatpush1.bf16.msra.mxu0 %v7265
        %7403 = vmatprep.subr.bf16.mxu0 0
        %7404 = vmatpush1.bf16.msra.mxu0 0
        %7405 = vmatprep.subr.bf16.mxu0 0
        %7406 = vmatpush1.bf16.msra.mxu0 0
        %7407 = vmatprep.subr.bf16.mxu0 0
        %7408 = vmatpush1.bf16.msra.mxu0 0
        %7409 = vmatprep.subr.bf16.mxu0 0
        %7410 = vmatpush1.bf16.msra.mxu0 0
        %7411 = vmatprep.subr.bf16.mxu0 0
        %7412 = vmatpush1.bf16.msra.mxu0 0
        %7413 = vmatprep.subr.bf16.mxu0 0
        %7414 = vmatpush1.bf16.msra.mxu0 0
        %7415 = vmatprep.subr.bf16.mxu0 0
        %7416 = vmatpush1.bf16.msra.mxu0 0
        %7417 = vmatprep.subr.bf16.mxu0 0
        %7418 = vmatpush1.bf16.msra.mxu0 0
        %7419 = vmatprep.mubr.bf16.mxu0 0
        %7420 = vmatmul.mubr.bf16.gmra.mrb[0].mxu0 %v7118
        %v7421 = vpop.f32.mrb[0].mxu0
        %v7422 = vadd.f32 %v7325, %v7421
        %v7423 = vpop.f32.mrb[0].mxu0
        %v7424 = vpop.f32.mrb[0].mxu0
        %v7425 = vadd.f32 %v7328, %v7424
        %v7426 = vpop.f32.mrb[0].mxu0
        %7427 = vmatprep.mubr.bf16.mxu0 0
        %7428 = vmatmul.mubr.bf16.gmra.mrb[0].mxu0 %v7121
        %v7429 = vpop.f32.mrb[0].mxu0
        %v7430 = vadd.f32 %v7333, %v7429
        %v7431 = vpop.f32.mrb[0].mxu0
        %v7432 = vpop.f32.mrb[0].mxu0
        %v7433 = vadd.f32 %v7336, %v7432
        %v7434 = vpop.f32.mrb[0].mxu0
        %7435 = vmatprep.mubr.bf16.mxu0 0
        %7436 = vmatmul.mubr.bf16.gmra.mrb[0].mxu0 %v7124
        %v7437 = vpop.f32.mrb[0].mxu0
        %v7438 = vadd.f32 %v7341, %v7437
        %v7439 = vpop.f32.mrb[0].mxu0
        %v7440 = vpop.f32.mrb[0].mxu0
        %v7441 = vadd.f32 %v7344, %v7440
        %v7442 = vpop.f32.mrb[0].mxu0
        %7443 = vmatprep.mubr.bf16.mxu0 0
        %7444 = vmatmul.mubr.bf16.gmra.mrb[0].mxu0 %v7127
        %v7445 = vpop.f32.mrb[0].mxu0
        %v7446 = vadd.f32 %v7349, %v7445
        %v7447 = vpop.f32.mrb[0].mxu0
        %v7448 = vpop.f32.mrb[0].mxu0
        %v7449 = vadd.f32 %v7352, %v7448
        %v7450 = vpop.f32.mrb[0].mxu0
        %7451 = vmatprep.mubr.bf16.mxu0 0
        %7452 = vmatmul.mubr.bf16.gmra.mrb[0].mxu0 %v7130
        %v7453 = vpop.f32.mrb[0].mxu0
        %v7454 = vadd.f32 %v7357, %v7453
        %v7455 = vpop.f32.mrb[0].mxu0
        %v7456 = vpop.f32.mrb[0].mxu0
        %v7457 = vadd.f32 %v7360, %v7456
        %v7458 = vpop.f32.mrb[0].mxu0
        %7459 = vmatprep.mubr.bf16.mxu0 0
        %7460 = vmatmul.mubr.bf16.gmra.mrb[0].mxu0 %v7133
        %v7461 = vpop.f32.mrb[0].mxu0
        %v7462 = vadd.f32 %v7365, %v7461
        %v7463 = vpop.f32.mrb[0].mxu0
        %v7464 = vpop.f32.mrb[0].mxu0
        %v7465 = vadd.f32 %v7368, %v7464
        %v7466 = vpop.f32.mrb[0].mxu0
        %7467 = vmatprep.mubr.bf16.mxu0 0
        %7468 = vmatmul.mubr.bf16.gmra.mrb[0].mxu0 %v7136
        %v7469 = vpop.f32.mrb[0].mxu0
        %v7470 = vadd.f32 %v7373, %v7469
        %v7471 = vpop.f32.mrb[0].mxu0
        %v7472 = vpop.f32.mrb[0].mxu0
        %v7473 = vadd.f32 %v7376, %v7472
        %v7474 = vpop.f32.mrb[0].mxu0
        %7475 = vmatprep.mubr.bf16.mxu0 0
        %7476 = vmatmul.mubr.bf16.gmra.mrb[0].mxu0 %v7139
        %v7477 = vpop.f32.mrb[0].mxu0
        %v7478 = vadd.f32 %v7381, %v7477
        %v7479 = vpop.f32.mrb[0].mxu0
        %v7480 = vpop.f32.mrb[0].mxu0
        %v7481 = vadd.f32 %v7384, %v7480
        %v7482 = vpop.f32.mrb[0].mxu0
        %7483 = vdwg.mxu0
        %v7484 = vadd.f32 %v7422, %v6278
        %v7485 = vadd.f32 %v7425, %v6279
        %v7486 = vadd.f32 %v7430, %v6280
        %v7487 = vadd.f32 %v7433, %v6281
        %v7488 = vadd.f32 %v7438, %v6282
        %v7489 = vadd.f32 %v7441, %v6283
        %v7490 = vadd.f32 %v7446, %v6284
        %v7491 = vadd.f32 %v7449, %v6285
        %v7492 = vadd.f32 %v7454, %v6286
        %v7493 = vadd.f32 %v7457, %v6287
        %v7494 = vadd.f32 %v7462, %v6288
        %v7495 = vadd.f32 %v7465, %v6289
        %v7496 = vadd.f32 %v7470, %v6290
        %v7497 = vadd.f32 %v7473, %v6291
        %v7498 = vadd.f32 %v7478, %v6292
        %v7499 = vadd.f32 %v7481, %v6293
        %v7500 = vld [vmem:[%s10] sm:$0xff]
        %v7501 = vld [vmem:[%s10 + $0x8] sm:$0xff]
        %v7502 = vld [vmem:[%s10 + $0x10] sm:$0xff]
        %v7503 = vld [vmem:[%s10 + $0x18] sm:$0xff]
        %v7504 = vld [vmem:[%s10 + $0x20] sm:$0xff]
        %v7505 = vld [vmem:[%s10 + $0x28] sm:$0xff]
        %v7506 = vld [vmem:[%s10 + $0x30] sm:$0xff]
        %v7507 = vld [vmem:[%s10 + $0x38] sm:$0xff]
        %7508 = vmatprep.subr.mxu0 0.0
        %7509 = vmatpush1.msra.mxu0 %v7484
        %7510 = vmatprep.subr.mxu0 0.0
        %7511 = vmatpush1.msra.mxu0 %v7485
        %7512 = vmatprep.subr.mxu0 0.0
        %7513 = vmatpush1.msra.mxu0 %v7486
        %7514 = vmatprep.subr.mxu0 0.0
        %7515 = vmatpush1.msra.mxu0 %v7487
        %7516 = vmatprep.subr.mxu0 0.0
        %7517 = vmatpush1.msra.mxu0 %v7488
        %7518 = vmatprep.subr.mxu0 0.0
        %7519 = vmatpush1.msra.mxu0 %v7489
        %7520 = vmatprep.subr.mxu0 0.0
        %7521 = vmatpush1.msra.mxu0 %v7490
        %7522 = vmatprep.subr.mxu0 0.0
        %7523 = vmatpush1.msra.mxu0 %v7491
        %7524 = vmatprep.subr.mxu0 0.0
        %7525 = vmatpush1.msra.mxu0 %v7492
        %7526 = vmatprep.subr.mxu0 0.0
        %7527 = vmatpush1.msra.mxu0 %v7493
        %7528 = vmatprep.subr.mxu0 0.0
        %7529 = vmatpush1.msra.mxu0 %v7494
        %7530 = vmatprep.subr.mxu0 0.0
        %7531 = vmatpush1.msra.mxu0 %v7495
        %7532 = vmatprep.subr.mxu0 0.0
        %7533 = vmatpush1.msra.mxu0 %v7496
        %7534 = vmatprep.subr.mxu0 0.0
        %7535 = vmatpush1.msra.mxu0 %v7497
        %7536 = vmatprep.subr.mxu0 0.0
        %7537 = vmatpush1.msra.mxu0 %v7498
        %7538 = vmatprep.subr.mxu0 0.0
        %7539 = vmatpush1.msra.mxu0 %v7499
        %7540 = vmatprep.subr.mxu0 0.0
        %7541 = vmatpush1.msra.mxu0 0.0
        %7542 = vmatprep.subr.mxu0 0.0
        %7543 = vmatpush1.msra.mxu0 0.0
        %7544 = vmatprep.subr.mxu0 0.0
        %7545 = vmatpush1.msra.mxu0 0.0
        %7546 = vmatprep.subr.mxu0 0.0
        %7547 = vmatpush1.msra.mxu0 0.0
        %7548 = vmatprep.subr.mxu0 0.0
        %7549 = vmatpush1.msra.mxu0 0.0
        %7550 = vmatprep.subr.mxu0 0.0
        %7551 = vmatpush1.msra.mxu0 0.0
        %7552 = vmatprep.subr.mxu0 0.0
        %7553 = vmatpush1.msra.mxu0 0.0
        %7554 = vmatprep.subr.mxu0 0.0
        %7555 = vmatpush1.msra.mxu0 0.0
        %7556 = vmatprep.subr.mxu0 0.0
        %7557 = vmatpush1.msra.mxu0 0.0
        %7558 = vmatprep.subr.mxu0 0.0
        %7559 = vmatpush1.msra.mxu0 0.0
        %7560 = vmatprep.subr.mxu0 0.0
        %7561 = vmatpush1.msra.mxu0 0.0
        %7562 = vmatprep.subr.mxu0 0.0
        %7563 = vmatpush1.msra.mxu0 0.0
        %7564 = vmatprep.subr.mxu0 0.0
        %7565 = vmatpush1.msra.mxu0 0.0
        %7566 = vmatprep.subr.mxu0 0.0
        %7567 = vmatpush1.msra.mxu0 0.0
        %7568 = vmatprep.subr.mxu0 0.0
        %7569 = vmatpush1.msra.mxu0 0.0
        %7570 = vmatprep.subr.mxu0 0.0
        %7571 = vmatpush1.msra.mxu0 0.0
        %7572 = vmatprep.mubr.f32.mxu0 0.0
        %7573 = vmatmul.mubr.f32.gmra.mrb[0].mxu0 %v7500
        %v7574 = vpop.f32.mrb[0].mxu0
        %v7575 = vadd.f32 0.0, %v7574
        %v7576 = vpop.f32.mrb[0].mxu0
        %7577 = vmatprep.mubr.f32.mxu0 0.0
        %7578 = vmatmul.mubr.f32.gmra.mrb[0].mxu0 %v7501
        %v7579 = vpop.f32.mrb[0].mxu0
        %v7580 = vadd.f32 0.0, %v7579
        %v7581 = vpop.f32.mrb[0].mxu0
        %7582 = vmatprep.mubr.f32.mxu0 0.0
        %7583 = vmatmul.mubr.f32.gmra.mrb[0].mxu0 %v7502
        %v7584 = vpop.f32.mrb[0].mxu0
        %v7585 = vadd.f32 0.0, %v7584
        %v7586 = vpop.f32.mrb[0].mxu0
        %7587 = vmatprep.mubr.f32.mxu0 0.0
        %7588 = vmatmul.mubr.f32.gmra.mrb[0].mxu0 %v7503
        %v7589 = vpop.f32.mrb[0].mxu0
        %v7590 = vadd.f32 0.0, %v7589
        %v7591 = vpop.f32.mrb[0].mxu0
        %7592 = vmatprep.mubr.f32.mxu0 0.0
        %7593 = vmatmul.mubr.f32.gmra.mrb[0].mxu0 %v7504
        %v7594 = vpop.f32.mrb[0].mxu0
        %v7595 = vadd.f32 0.0, %v7594
        %v7596 = vpop.f32.mrb[0].mxu0
        %7597 = vmatprep.mubr.f32.mxu0 0.0
        %7598 = vmatmul.mubr.f32.gmra.mrb[0].mxu0 %v7505
        %v7599 = vpop.f32.mrb[0].mxu0
        %v7600 = vadd.f32 0.0, %v7599
        %v7601 = vpop.f32.mrb[0].mxu0
        %7602 = vmatprep.mubr.f32.mxu0 0.0
        %7603 = vmatmul.mubr.f32.gmra.mrb[0].mxu0 %v7506
        %v7604 = vpop.f32.mrb[0].mxu0
        %v7605 = vadd.f32 0.0, %v7604
        %v7606 = vpop.f32.mrb[0].mxu0
        %7607 = vmatprep.mubr.f32.mxu0 0.0
        %7608 = vmatmul.mubr.f32.gmra.mrb[0].mxu0 %v7507
        %v7609 = vpop.f32.mrb[0].mxu0
        %v7610 = vadd.f32 0.0, %v7609
        %v7611 = vpop.f32.mrb[0].mxu0
        %7612 = vdwg.mxu0
        %v7613 = vld [vmem:[%s11] sm:$0xff]
        %v7614 = vld [vmem:[%s11 + $0x8] sm:$0xff]
        %v7615 = vld [vmem:[%s11 + $0x10] sm:$0xff]
        %v7616 = vld [vmem:[%s11 + $0x18] sm:$0xff]
        %v7617 = vld [vmem:[%s11 + $0x20] sm:$0xff]
        %v7618 = vld [vmem:[%s11 + $0x28] sm:$0xff]
        %v7619 = vld [vmem:[%s11 + $0x30] sm:$0xff]
        %v7620 = vld [vmem:[%s11 + $0x38] sm:$0xff]
        %v7621 = vld [vmem:[%s11 + $0x40] sm:$0xff]
        %v7622 = vld [vmem:[%s11 + $0x48] sm:$0xff]
        %v7623 = vld [vmem:[%s11 + $0x50] sm:$0xff]
        %v7624 = vld [vmem:[%s11 + $0x58] sm:$0xff]
        %v7625 = vld [vmem:[%s11 + $0x60] sm:$0xff]
        %v7626 = vld [vmem:[%s11 + $0x68] sm:$0xff]
        %v7627 = vld [vmem:[%s11 + $0x70] sm:$0xff]
        %v7628 = vld [vmem:[%s11 + $0x78] sm:$0xff]
        %7629 = vmatprep.subr.mxu0 0.0
        %7630 = vmatpush1.msra.mxu0 %v7613
        %7631 = vmatprep.subr.mxu0 0.0
        %7632 = vmatpush1.msra.mxu0 %v7614
        %7633 = vmatprep.subr.mxu0 0.0
        %7634 = vmatpush1.msra.mxu0 %v7615
        %7635 = vmatprep.subr.mxu0 0.0
        %7636 = vmatpush1.msra.mxu0 %v7616
        %7637 = vmatprep.subr.mxu0 0.0
        %7638 = vmatpush1.msra.mxu0 %v7617
        %7639 = vmatprep.subr.mxu0 0.0
        %7640 = vmatpush1.msra.mxu0 %v7618
        %7641 = vmatprep.subr.mxu0 0.0
        %7642 = vmatpush1.msra.mxu0 %v7619
        %7643 = vmatprep.subr.mxu0 0.0
        %7644 = vmatpush1.msra.mxu0 %v7620
        %7645 = vmatprep.subr.mxu0 0.0
        %7646 = vmatpush1.msra.mxu0 %v7621
        %7647 = vmatprep.subr.mxu0 0.0
        %7648 = vmatpush1.msra.mxu0 %v7622
        %7649 = vmatprep.subr.mxu0 0.0
        %7650 = vmatpush1.msra.mxu0 %v7623
        %7651 = vmatprep.subr.mxu0 0.0
        %7652 = vmatpush1.msra.mxu0 %v7624
        %7653 = vmatprep.subr.mxu0 0.0
        %7654 = vmatpush1.msra.mxu0 %v7625
        %7655 = vmatprep.subr.mxu0 0.0
        %7656 = vmatpush1.msra.mxu0 %v7626
        %7657 = vmatprep.subr.mxu0 0.0
        %7658 = vmatpush1.msra.mxu0 %v7627
        %7659 = vmatprep.subr.mxu0 0.0
        %7660 = vmatpush1.msra.mxu0 %v7628
        %7661 = vmatprep.subr.mxu0 0.0
        %7662 = vmatpush1.msra.mxu0 0.0
        %7663 = vmatprep.subr.mxu0 0.0
        %7664 = vmatpush1.msra.mxu0 0.0
        %7665 = vmatprep.subr.mxu0 0.0
        %7666 = vmatpush1.msra.mxu0 0.0
        %7667 = vmatprep.subr.mxu0 0.0
        %7668 = vmatpush1.msra.mxu0 0.0
        %7669 = vmatprep.subr.mxu0 0.0
        %7670 = vmatpush1.msra.mxu0 0.0
        %7671 = vmatprep.subr.mxu0 0.0
        %7672 = vmatpush1.msra.mxu0 0.0
        %7673 = vmatprep.subr.mxu0 0.0
        %7674 = vmatpush1.msra.mxu0 0.0
        %7675 = vmatprep.subr.mxu0 0.0
        %7676 = vmatpush1.msra.mxu0 0.0
        %7677 = vmatprep.subr.mxu0 0.0
        %7678 = vmatpush1.msra.mxu0 0.0
        %7679 = vmatprep.subr.mxu0 0.0
        %7680 = vmatpush1.msra.mxu0 0.0
        %7681 = vmatprep.subr.mxu0 0.0
        %7682 = vmatpush1.msra.mxu0 0.0
        %7683 = vmatprep.subr.mxu0 0.0
        %7684 = vmatpush1.msra.mxu0 0.0
        %7685 = vmatprep.subr.mxu0 0.0
        %7686 = vmatpush1.msra.mxu0 0.0
        %7687 = vmatprep.subr.mxu0 0.0
        %7688 = vmatpush1.msra.mxu0 0.0
        %7689 = vmatprep.subr.mxu0 0.0
        %7690 = vmatpush1.msra.mxu0 0.0
        %7691 = vmatprep.subr.mxu0 0.0
        %7692 = vmatpush1.msra.mxu0 0.0
        %7693 = vmatprep.mubr.f32.mxu0 0.0
        %7694 = vmatmul.mubr.f32.gmra.mrb[0].mxu0 %v7575
        %v7695 = vpop.f32.mrb[0].mxu0
        %v7696 = vadd.f32 0.0, %v7695
        %v7697 = vpop.f32.mrb[0].mxu0
        %7698 = vmatprep.mubr.f32.mxu0 0.0
        %7699 = vmatmul.mubr.f32.gmra.mrb[0].mxu0 %v7580
        %v7700 = vpop.f32.mrb[0].mxu0
        %v7701 = vadd.f32 0.0, %v7700
        %v7702 = vpop.f32.mrb[0].mxu0
        %7703 = vmatprep.mubr.f32.mxu0 0.0
        %7704 = vmatmul.mubr.f32.gmra.mrb[0].mxu0 %v7585
        %v7705 = vpop.f32.mrb[0].mxu0
        %v7706 = vadd.f32 0.0, %v7705
        %v7707 = vpop.f32.mrb[0].mxu0
        %7708 = vmatprep.mubr.f32.mxu0 0.0
        %7709 = vmatmul.mubr.f32.gmra.mrb[0].mxu0 %v7590
        %v7710 = vpop.f32.mrb[0].mxu0
        %v7711 = vadd.f32 0.0, %v7710
        %v7712 = vpop.f32.mrb[0].mxu0
        %7713 = vmatprep.mubr.f32.mxu0 0.0
        %7714 = vmatmul.mubr.f32.gmra.mrb[0].mxu0 %v7595
        %v7715 = vpop.f32.mrb[0].mxu0
        %v7716 = vadd.f32 0.0, %v7715
        %v7717 = vpop.f32.mrb[0].mxu0
        %7718 = vmatprep.mubr.f32.mxu0 0.0
        %7719 = vmatmul.mubr.f32.gmra.mrb[0].mxu0 %v7600
        %v7720 = vpop.f32.mrb[0].mxu0
        %v7721 = vadd.f32 0.0, %v7720
        %v7722 = vpop.f32.mrb[0].mxu0
        %7723 = vmatprep.mubr.f32.mxu0 0.0
        %7724 = vmatmul.mubr.f32.gmra.mrb[0].mxu0 %v7605
        %v7725 = vpop.f32.mrb[0].mxu0
        %v7726 = vadd.f32 0.0, %v7725
        %v7727 = vpop.f32.mrb[0].mxu0
        %7728 = vmatprep.mubr.f32.mxu0 0.0
        %7729 = vmatmul.mubr.f32.gmra.mrb[0].mxu0 %v7610
        %v7730 = vpop.f32.mrb[0].mxu0
        %v7731 = vadd.f32 0.0, %v7730
        %v7732 = vpop.f32.mrb[0].mxu0
        %7733 = vdwg.mxu0
        %7734 = vst.msk [vmem:[%s454] sm:$0xff] %vm1265, %v7696
        %7735 = vst.msk [vmem:[%s454 + $0x8] sm:$0xff] %vm1265, %v7701
        %7736 = vst.msk [vmem:[%s454 + $0x10] sm:$0xff] %vm1265, %v7706
        %7737 = vst.msk [vmem:[%s454 + $0x18] sm:$0xff] %vm1265, %v7711
        %7738 = vst.msk [vmem:[%s454 + $0x20] sm:$0xff] %vm1265, %v7716
        %7739 = vst.msk [vmem:[%s454 + $0x28] sm:$0xff] %vm1265, %v7721
        %7740 = vst.msk [vmem:[%s454 + $0x30] sm:$0xff] %vm1265, %v7726
        %7741 = vst.msk [vmem:[%s454 + $0x38] sm:$0xff] %vm1265, %v7731
        %s7742 = sand.u32 %s293, 1
        %s7743 = scalar_lea.sflag [#allocation3], %s7742
        %s7744 = sand.u32 %s293, 1
        %s7745 = smul.addr %s7744, 128
        %s7746 = scalar_lea.vmem [#allocation2], %s7745
        %s7747 = smul.u32 8, %s28
        %p7748 = scmp.lt.s32.totalorder %s7747, 15
        %s7749 = scalar_select %p7748, %s7747, 15
        %s7750 = smul.addr %s7749, 8
        %s7751 = scalar_lea.vmem %s13, %s7750
        // Predicated region
        $region69: #{pred_inform_forward.1} parent=67 // pred_check
          %p7752 = pneg %p303
        $region70: #{pred_inform_forward.1} parent=67 // pred_check_branch
          %7754 = sbr.rel (%p7752) target = $region72
        $region71: #{pred_inform_forward.1} parent=67 // pred_region
          %s7755 = smul.u32 16, %s28
          %s7757 = ssub.s32 2048, 2048
          %7758 = vsyncadd %s7743, %s7757
          %s7759 = smul.addr %s7755, 128
          %s7760 = scalar_lea.hbm %s12, %s7759
          %s7761 = sshll.u32 %s7746, 4
          %s7762 = int_to_ptr.vmem [resolvable:$true] %s7761
          %7767 = dma.vmem_to_hbm [thread:$0]  %s7762, 2048, %s7760, %s7743, 128, 128, 8
        $region72: #{pred_inform_forward.1} parent=67 // pred_fallthru
          _
        // Predicated region
        $region73: #{pred_inform_forward.1} parent=67 // pred_check
          %p7768 = pneg %p329
        $region74: #{pred_inform_forward.1} parent=67 // pred_check_branch
          %7770 = sbr.rel (%p7768) target = $region76
        $region75: #{pred_inform_forward.1} parent=67 // pred_region
          %s7771 = smul.u32 8, %s28
        $region76: #{pred_inform_forward.1} parent=67 // pred_fallthru
          _
      $region68: #{pred_inform_forward.1} parent=5 // pred_fallthru
        _
      %p7772 = scmp.le.s32.totalorder 2, %s23
      // Predicated region
      $region77: #{pred_inform_forward.1} parent=5 // pred_check
        %p7773 = pneg %p7772
      $region78: #{pred_inform_forward.1} parent=5 // pred_check_branch
        %7775 = sbr.rel (%p7773) target = $region80
      $region79: #{pred_inform_forward.1} parent=5 // pred_region
        %s7776 = ssub.s32 %s23, 2
        // Predicated region
        $region81: #{pred_inform_forward.1} parent=79 // pred_check
          %p7777 = pneg %p309
        $region82: #{pred_inform_forward.1} parent=79 // pred_check_branch
          %7779 = sbr.rel (%p7777) target = $region84
        $region83: #{pred_inform_forward.1} parent=79 // pred_region
          %s7780 = sand.u32 %s294, 1
          %s7781 = scalar_lea.sflag [#allocation3], %s7780
          %s7782 = sand.u32 %s294, 1
          %s7783 = smul.addr %s7782, 128
          %s7784 = scalar_lea.vmem [#allocation2], %s7783
          %7785 = dma.done %s7781, 2048
        $region84: #{pred_inform_forward.1} parent=79 // pred_fallthru
          _
        // Predicated region
        $region85: #{pred_inform_forward.1} parent=79 // pred_check
          %p7786 = pneg %p335
        $region86: #{pred_inform_forward.1} parent=79 // pred_check_branch
          %7788 = sbr.rel (%p7786) target = $region88
        $region87: #{pred_inform_forward.1} parent=79 // pred_region
          %s7789 = smul.u32 8, %s29
          %p7790 = scmp.lt.s32.totalorder %s7789, 15
          %s7791 = scalar_select %p7790, %s7789, 15
          %s7792 = smul.addr %s7791, 8
          %s7793 = scalar_lea.vmem %s13, %s7792
        $region88: #{pred_inform_forward.1} parent=79 // pred_fallthru
          _
      $region80: #{pred_inform_forward.1} parent=5 // pred_fallthru
        _
    $region6: #{pred_inform_forward.1} parent=1 // loop_footer
      %s27 = sadd.s32 1, %s23
    $region7: #{pred_inform_forward.1} parent=1 // loop_footer_branch
      %22 = sbr.rel target = $region3
    $region8: #{pred_inform_forward.1} parent=1 // loop_exit
      _
    %7794 = vsyncpa [#allocation3], 1
    %s7795 = scalar_lea.sflag [#allocation3], 1
    %7796 = vsyncpa %s7795, 1

</llo_original>
